<compile_context>
chip_gen: v6e
topology: v6e:2x2x1
jax: 0.10.0
libtpu: 0.0.40
codegen_flags: <defaults>
</compile_context>

<pallas_src>
import numpy as np
import jax
import jax.numpy as jnp
from jax import lax
from jax.experimental import pallas as pl
from jax.experimental.pallas import tpu as pltpu

_TAPS3 = [(i, j) for i in range(3) for j in range(3)]
_N = 2            # batch size the fused kernel is specialized to
_EPS = 1e-5


# ----------------------- static 0/1 helper matrices (numpy) -------------------

def _build_constants(n):
    c = {}

    def hw(H, W):
        cols = np.arange(n * H * W)
        return (cols // W) % H, cols % W

    h7, w7 = hw(7, 7)
    h14, w14 = hw(14, 14)

    # conv2 taps read parity planes of the 14-grid at shifts {-1,0}; mask kills
    # reads that fall outside the (unpadded) input.
    m2 = np.ones((9, 1, n * 49), np.float32)
    for t, (i, j) in enumerate(_TAPS3):
        di = -1 if i == 0 else 0
        dj = -1 if j == 0 else 0
        m2[t, 0, ((h7 + di) < 0) | ((w7 + dj) < 0)] = 0.0
    c["mask2"] = m2

    # convT2 sub-pixel taps read the 7-grid at shifts {0,+1}.
    m5 = np.ones((9, 1, n * 49), np.float32)
    for t, (i, j) in enumerate(_TAPS3):
        dh = 1 if i == 0 else 0
        dw = 1 if j == 0 else 0
        m5[t, 0, ((h7 + dh) >= 7) | ((w7 + dw) >= 7)] = 0.0
    c["mask5"] = m5

    # convT3: same on the 14-grid.
    m6 = np.ones((9, 1, n * 196), np.float32)
    for t, (i, j) in enumerate(_TAPS3):
        dh = 1 if i == 0 else 0
        dw = 1 if j == 0 else 0
        m6[t, 0, ((h14 + dh) >= 14) | ((w14 + dw) >= 14)] = 0.0
    c["mask6"] = m6

    # conv3 (7x7 -> 1x1): x2b[(c,s), n] = X2[c, n*49+s] built as
    #   x2b = ((rep3 @ X2) * comb3) @ colsel      (matmuls only, no reshapes)
    C2, S = 16, 49
    rep = np.zeros((C2 * S, C2), np.float32)
    rep[np.arange(C2 * S), np.arange(C2 * S) // S] = 1.0
    c["rep3"] = rep
    rows_s = np.arange(C2 * S) % S
    cols_s = np.arange(n * S) % S
    c["comb3"] = (rows_s[:, None] == cols_s[None, :]).astype(np.float32)
    colsel = np.zeros((n * S, n), np.float32)
    colsel[np.arange(n * S), np.arange(n * S) // S] = 1.0
    c["colsel"] = colsel                      # (98, 2)
    c["expand"] = np.ascontiguousarray(colsel.T)  # (2, 98)

    # convT2: scatter the 4 output-parity blocks (columns (n,7,7)) into the
    # natural (n,14,14) column order.
    scat = np.zeros((4, n * 49, n * 196), np.float32)
    for k, (p, q) in enumerate([(0, 0), (0, 1), (1, 0), (1, 1)]):
        for nn in range(n):
            for h in range(7):
                for w in range(7):
                    scat[k, nn * 49 + h * 7 + w,
                         nn * 196 + (2 * h + p) * 14 + (2 * w + q)] = 1.0
    c["scat"] = scat
    return c


_CONSTS = _build_constants(_N)


# ------------------------------ the fused kernel ------------------------------

def _fused_autoencoder_kernel(
        a1_ref, w1_ref, b1_ref,                          # conv1
        w2_ref, m2_ref, bn2_ref,                         # conv2 + BN
        w3_ref, b3_ref, rep3_ref, comb3_ref, sel3_ref,   # conv3
        exp4_ref, wt1_ref, bn4_ref,                      # convT1 + BN
        wt2_ref, m5_ref, scat_ref, bn5_ref,              # convT2 + BN
        wt3_ref, m6_ref, bt3_ref,                        # convT3
        o_ref):
    f32 = jnp.float32

    def mm(a, b):
        return jnp.dot(a, b, preferred_element_type=f32)

    def shift_cols(x, d):
        # shifted[:, m] = x[:, m + d], zero-filled at the ends.
        if d == 0:
            return x
        cc, width = x.shape
        if d > 0:
            return jnp.concatenate(
                [x[:, d:], jnp.zeros((cc, d), x.dtype)], axis=1)
        return jnp.concatenate(
            [jnp.zeros((cc, -d), x.dtype), x[:, :width + d]], axis=1)

    def bn_relu(y, bn_ref):
        bn = bn_ref[...]
        g, b = bn[:, 0:1], bn[:, 1:2]
        mu = jnp.mean(y, axis=1, keepdims=True)
        d = y - mu
        var = jnp.mean(d * d, axis=1, keepdims=True)
        return jnp.maximum(d * (g * lax.rsqrt(var + _EPS)) + b, 0.0)

    # ---- conv1 (3->8, k3 s2 p1) + bias + ReLU: GEMM on the pre-built im2col ----
    # columns of x1 are parity-major on the 14-grid: (p, q, n, h', w')
    x1 = jnp.maximum(mm(w1_ref[...], a1_ref[...]) + b1_ref[...], 0.0)   # (8, 392)

    # ---- conv2 (8->16, k3 s2 p1) + BN + ReLU (bias cancelled by BN mean) -------
    acc2 = jnp.zeros((16, _N * 49), f32)
    for t, (i, j) in enumerate(_TAPS3):
        blk = (0 if i == 1 else 1) * 2 + (0 if j == 1 else 1)
        di = -1 if i == 0 else 0
        dj = -1 if j == 0 else 0
        plane = x1[:, blk * _N * 49:(blk + 1) * _N * 49]
        sh = shift_cols(plane, di * 7 + dj)
        if di or dj:
            sh = sh * m2_ref[t]
        acc2 = acc2 + mm(w2_ref[t], sh)
    x2 = bn_relu(acc2, bn2_ref)                                         # (16, 98)

    # ---- conv3 (16->32, k7 s2, 7x7 -> 1x1) + bias + ReLU -----------------------
    x2b = mm(mm(rep3_ref[...], x2) * comb3_ref[...], sel3_ref[...])     # (784, 2)
    x3 = jnp.maximum(mm(w3_ref[...], x2b) + b3_ref[...], 0.0)           # (32, 2)

    # ---- convT1 (32->16, k7 s2, 1x1 -> 7x7) + BN + ReLU (bias cancelled) -------
    x3e = mm(x3, exp4_ref[...])                                         # (32, 98)
    acc4 = jnp.zeros((16, _N * 49), f32)
    for ci in range(32):
        acc4 = acc4 + x3e[ci:ci + 1, :] * wt1_ref[ci]
    x4 = bn_relu(acc4, bn4_ref)                                         # (16, 98)

    # ---- convT2 (16->8, k3 s2 p1 op1): sub-pixel decomposition + BN + ReLU -----
    cls5 = [jnp.zeros((8, _N * 49), f32) for _ in range(4)]
    for t, (i, j) in enumerate(_TAPS3):
        k = (0 if i == 1 else 1) * 2 + (0 if j == 1 else 1)
        dh = 1 if i == 0 else 0
        dw = 1 if j == 0 else 0
        sh = shift_cols(x4, dh * 7 + dw)
        if dh or dw:
            sh = sh * m5_ref[t]
        cls5[k] = cls5[k] + mm(wt2_ref[t], sh)
    y5 = mm(cls5[0], scat_ref[0])
    for k in range(1, 4):
        y5 = y5 + mm(cls5[k], scat_ref[k])
    x5 = bn_relu(y5, bn5_ref)                                           # (8, 392)

    # ---- convT3 (8->3, k3 s2 p1 op1) + bias + sigmoid ---------------------------
    cls6 = [jnp.zeros((3, _N * 196), f32) for _ in range(4)]
    for t, (i, j) in enumerate(_TAPS3):
        k = (0 if i == 1 else 1) * 2 + (0 if j == 1 else 1)
        dh = 1 if i == 0 else 0
        dw = 1 if j == 0 else 0
        sh = shift_cols(x5, dh * 14 + dw)
        if dh or dw:
            sh = sh * m6_ref[t]
        cls6[k] = cls6[k] + mm(wt3_ref[t], sh)
    bt3 = bt3_ref[...]
    for k in range(4):
        o_ref[k] = jax.nn.sigmoid(cls6[k] + bt3)    # (4, 3, 392), blocks (P, Q)


# ------------------------------- host-side glue --------------------------------

def _full_spec(shape):
    nd = len(shape)
    return pl.BlockSpec(shape, lambda i, _nd=nd: (0,) * _nd)


def _build_a1(x):
    """im2col of the padded input for conv1 (k3 s2 p1) with the output columns in
    parity-major order (p, q, n, h', w') on the 14-grid.  Rows are (c, i, j)."""
    xp = jnp.pad(x, ((0, 0), (0, 0), (1, 1), (1, 1)))        # (N, 3, 30, 30)
    blocks = []
    for p in range(2):
        for q in range(2):
            taps = [xp[:, :, 2 * p + i:2 * p + i + 25:4,
                       2 * q + j:2 * q + j + 25:4] for (i, j) in _TAPS3]
            blk = jnp.stack(taps, axis=0)                     # (9, N, 3, 7, 7)
            blk = blk.transpose(2, 0, 1, 3, 4)                # (3, 9, N, 7, 7)
            blocks.append(blk.reshape(27, _N * 49))
    return jnp.concatenate(blocks, axis=1)                    # (27, 392)


def autoencoder_forward(x, p):
    assert x.shape == (_N, 3, 28, 28), "fused kernel is specialized to (2,3,28,28)"
    cst = {k: jnp.asarray(v) for k, v in _CONSTS.items()}

    a1 = _build_a1(x)
    w1mat = p["w1"].reshape(8, 27)
    b1 = p["b1"].reshape(8, 1)
    w2taps = jnp.stack([p["w2"][:, :, i, j] for (i, j) in _TAPS3], axis=0)      # (9,16,8)
    bn2 = jnp.stack([p["g2"], p["be2"]], axis=1)                                # (16,2)
    wmat3 = p["w3"].reshape(32, 16 * 49)
    b3 = p["b3"].reshape(32, 1)
    wt1t = jnp.tile(p["wt1"].reshape(32, 16, 49), (1, 1, _N))                   # (32,16,98)
    bn4 = jnp.stack([p["gt1"], p["bet1"]], axis=1)                              # (16,2)
    wt2taps = jnp.stack([p["wt2"][:, :, i, j].T for (i, j) in _TAPS3], axis=0)  # (9,8,16)
    bn5 = jnp.stack([p["gt2"], p["bet2"]], axis=1)                              # (8,2)
    wt3taps = jnp.stack([p["wt3"][:, :, i, j].T for (i, j) in _TAPS3], axis=0)  # (9,3,8)
    bt3 = p["bt3"].reshape(3, 1)

    inputs = [a1, w1mat, b1,
              w2taps, cst["mask2"], bn2,
              wmat3, b3, cst["rep3"], cst["comb3"], cst["colsel"],
              cst["expand"], wt1t, bn4,
              wt2taps, cst["mask5"], cst["scat"], bn5,
              wt3taps, cst["mask6"], bt3]
    inputs = [jnp.asarray(a, jnp.float32) for a in inputs]

    out = pl.pallas_call(
        _fused_autoencoder_kernel,
        out_shape=jax.ShapeDtypeStruct((4, 3, _N * 196), jnp.float32),
        grid=(1,),
        in_specs=[_full_spec(a.shape) for a in inputs],
        out_specs=_full_spec((4, 3, _N * 196)),
        compiler_params=pltpu.CompilerParams(dimension_semantics=("arbitrary",)),
    )(*inputs)

    # un-interleave the 4 output-parity blocks: (P,Q,c,n,h,w) -> NCHW (boundary glue)
    y = out.reshape(2, 2, 3, _N, 14, 14).transpose(3, 2, 4, 0, 5, 1)
    return y.reshape(_N, 3, 28, 28)


# ----------------------------- parameters (PyTorch layouts) --------------------

def init_params(key):
    def uni(key, shape, fan_in):
        bound = 1.0 / jnp.sqrt(fan_in)
        return jax.random.uniform(key, shape, jnp.float32, -bound, bound)

    ks = jax.random.split(key, 12)
    p = {}
    # encoder
    p["w1"] = uni(ks[0], (8, 3, 3, 3), 3 * 9);      p["b1"] = uni(ks[1], (8,), 3 * 9)
    p["w2"] = uni(ks[2], (16, 8, 3, 3), 8 * 9);     p["b2"] = uni(ks[3], (16,), 8 * 9)
    p["g2"] = jnp.ones((16,), jnp.float32);         p["be2"] = jnp.zeros((16,), jnp.float32)
    p["w3"] = uni(ks[4], (32, 16, 7, 7), 16 * 49);  p["b3"] = uni(ks[5], (32,), 16 * 49)
    # decoder (ConvTranspose2d weights are (C_in, C_out, KH, KW))
    p["wt1"] = uni(ks[6], (32, 16, 7, 7), 32 * 49); p["bt1"] = uni(ks[7], (16,), 32 * 49)
    p["gt1"] = jnp.ones((16,), jnp.float32);        p["bet1"] = jnp.zeros((16,), jnp.float32)
    p["wt2"] = uni(ks[8], (16, 8, 3, 3), 16 * 9);   p["bt2"] = uni(ks[9], (8,), 16 * 9)
    p["gt2"] = jnp.ones((8,), jnp.float32);         p["bet2"] = jnp.zeros((8,), jnp.float32)
    p["wt3"] = uni(ks[10], (8, 3, 3, 3), 8 * 9);    p["bt3"] = uni(ks[11], (3,), 8 * 9)
    return p


# ----------------------------- pure-JAX reference ------------------------------

def _ref_conv(x, w, b, stride, padding):
    out = lax.conv_general_dilated(
        x, w, (stride, stride), [(padding, padding)] * 2,
        dimension_numbers=("NCHW", "OIHW", "NCHW"))
    return out + b[None, :, None, None]


def _ref_convT(x, w_t, b, stride, padding, output_padding):
    KH, KW = w_t.shape[2], w_t.shape[3]
    w_conv = jnp.flip(w_t, (2, 3)).transpose(1, 0, 2, 3)
    pads = [(KH - 1 - padding, KH - 1 - padding + output_padding),
            (KW - 1 - padding, KW - 1 - padding + output_padding)]
    out = lax.conv_general_dilated(
        x, w_conv, (1, 1), pads, lhs_dilation=(stride, stride),
        dimension_numbers=("NCHW", "OIHW", "NCHW"))
    return out + b[None, :, None, None]


def _ref_bn_relu(x, g, be, eps=_EPS):
    mean = x.mean(axis=(0, 2, 3), keepdims=True)
    var = x.var(axis=(0, 2, 3), keepdims=True)
    y = (x - mean) * lax.rsqrt(var + eps) * g[None, :, None, None] + be[None, :, None, None]
    return jnp.maximum(y, 0.0)


def reference_forward(x, p):
    h = jnp.maximum(_ref_conv(x, p["w1"], p["b1"], 2, 1), 0.0)
    h = _ref_bn_relu(_ref_conv(h, p["w2"], p["b2"], 2, 1), p["g2"], p["be2"])
    h = jnp.maximum(_ref_conv(h, p["w3"], p["b3"], 2, 0), 0.0)
    h = _ref_bn_relu(_ref_convT(h, p["wt1"], p["bt1"], 2, 0, 0), p["gt1"], p["bet1"])
    h = _ref_bn_relu(_ref_convT(h, p["wt2"], p["bt2"], 2, 1, 1), p["gt2"], p["bet2"])
    return jax.nn.sigmoid(_ref_convT(h, p["wt3"], p["bt3"], 2, 1, 1))


# ----------------------------------- main ---------------------------------------

if __name__ == "__main__":
    key = jax.random.PRNGKey(0)
    kx, kp = jax.random.split(key)
    # NCHW input; 28x28 so the decoder reconstructs the exact input size.
    x = jax.random.uniform(kx, (2, 3, 28, 28), jnp.float32)
    params = init_params(kp)

    out = jax.block_until_ready(jax.jit(autoencoder_forward)(x, params))
    ref = jax.block_until_ready(reference_forward(x, params))

    assert out.shape == (2, 3, 28, 28), out.shape
    assert jnp.allclose(out, ref, atol=1e-4, rtol=1e-4), float(jnp.abs(out - ref).max())

    print("KERNEL_OK")
</pallas_src>

<mosaic_0001>
module attributes {stable_mosaic.version = 11 : i64} {
  func.func @_fused_autoencoder_kernel(%arg0: i32, %arg1: memref<27x392xf32, #tpu.memory_space<vmem>>, %arg2: memref<8x27xf32, #tpu.memory_space<vmem>>, %arg3: memref<8x1xf32, #tpu.memory_space<vmem>>, %arg4: memref<9x16x8xf32, #tpu.memory_space<vmem>>, %arg5: memref<9x1x98xf32, #tpu.memory_space<vmem>>, %arg6: memref<16x2xf32, #tpu.memory_space<vmem>>, %arg7: memref<32x784xf32, #tpu.memory_space<vmem>>, %arg8: memref<32x1xf32, #tpu.memory_space<vmem>>, %arg9: memref<784x16xf32, #tpu.memory_space<vmem>>, %arg10: memref<784x98xf32, #tpu.memory_space<vmem>>, %arg11: memref<98x2xf32, #tpu.memory_space<vmem>>, %arg12: memref<2x98xf32, #tpu.memory_space<vmem>>, %arg13: memref<32x16x98xf32, #tpu.memory_space<vmem>>, %arg14: memref<16x2xf32, #tpu.memory_space<vmem>>, %arg15: memref<9x8x16xf32, #tpu.memory_space<vmem>>, %arg16: memref<9x1x98xf32, #tpu.memory_space<vmem>>, %arg17: memref<4x98x392xf32, #tpu.memory_space<vmem>>, %arg18: memref<8x2xf32, #tpu.memory_space<vmem>>, %arg19: memref<9x3x8xf32, #tpu.memory_space<vmem>>, %arg20: memref<9x1x392xf32, #tpu.memory_space<vmem>>, %arg21: memref<3x1xf32, #tpu.memory_space<vmem>>, %arg22: memref<4x3x392xf32, #tpu.memory_space<vmem>>) attributes {dimension_semantics = [#tpu.dimension_semantics<arbitrary>], iteration_bounds = array<i64: 1>, scalar_prefetch = 0 : i64, scratch_operands = 0 : i64, tpu.core_type = #tpu.core_type<tc>, window_params = [{pipeline_mode = #tpu.pipeline_mode<synchronous>, transform_indices = @transform_0, window_bounds = array<i64: 27, 392>}, {pipeline_mode = #tpu.pipeline_mode<synchronous>, transform_indices = @transform_1, window_bounds = array<i64: 8, 27>}, {pipeline_mode = #tpu.pipeline_mode<synchronous>, transform_indices = @transform_2, window_bounds = array<i64: 8, 1>}, {pipeline_mode = #tpu.pipeline_mode<synchronous>, transform_indices = @transform_3, window_bounds = array<i64: 9, 16, 8>}, {pipeline_mode = #tpu.pipeline_mode<synchronous>, transform_indices = @transform_4, window_bounds = array<i64: 9, 1, 98>}, {pipeline_mode = #tpu.pipeline_mode<synchronous>, transform_indices = @transform_5, window_bounds = array<i64: 16, 2>}, {pipeline_mode = #tpu.pipeline_mode<synchronous>, transform_indices = @transform_6, window_bounds = array<i64: 32, 784>}, {pipeline_mode = #tpu.pipeline_mode<synchronous>, transform_indices = @transform_7, window_bounds = array<i64: 32, 1>}, {pipeline_mode = #tpu.pipeline_mode<synchronous>, transform_indices = @transform_8, window_bounds = array<i64: 784, 16>}, {pipeline_mode = #tpu.pipeline_mode<synchronous>, transform_indices = @transform_9, window_bounds = array<i64: 784, 98>}, {pipeline_mode = #tpu.pipeline_mode<synchronous>, transform_indices = @transform_10, window_bounds = array<i64: 98, 2>}, {pipeline_mode = #tpu.pipeline_mode<synchronous>, transform_indices = @transform_11, window_bounds = array<i64: 2, 98>}, {pipeline_mode = #tpu.pipeline_mode<synchronous>, transform_indices = @transform_12, window_bounds = array<i64: 32, 16, 98>}, {pipeline_mode = #tpu.pipeline_mode<synchronous>, transform_indices = @transform_13, window_bounds = array<i64: 16, 2>}, {pipeline_mode = #tpu.pipeline_mode<synchronous>, transform_indices = @transform_14, window_bounds = array<i64: 9, 8, 16>}, {pipeline_mode = #tpu.pipeline_mode<synchronous>, transform_indices = @transform_15, window_bounds = array<i64: 9, 1, 98>}, {pipeline_mode = #tpu.pipeline_mode<synchronous>, transform_indices = @transform_16, window_bounds = array<i64: 4, 98, 392>}, {pipeline_mode = #tpu.pipeline_mode<synchronous>, transform_indices = @transform_17, window_bounds = array<i64: 8, 2>}, {pipeline_mode = #tpu.pipeline_mode<synchronous>, transform_indices = @transform_18, window_bounds = array<i64: 9, 3, 8>}, {pipeline_mode = #tpu.pipeline_mode<synchronous>, transform_indices = @transform_19, window_bounds = array<i64: 9, 1, 392>}, {pipeline_mode = #tpu.pipeline_mode<synchronous>, transform_indices = @transform_20, window_bounds = array<i64: 3, 1>}, {pipeline_mode = #tpu.pipeline_mode<synchronous>, transform_indices = @transform_21, window_bounds = array<i64: 4, 3, 392>}]} {
    %c0 = arith.constant 0 : index
    %c0_0 = arith.constant 0 : index
    %0 = vector.load %arg2[%c0, %c0_0] : memref<8x27xf32, #tpu.memory_space<vmem>>, vector<8x27xf32>
    %c0_1 = arith.constant 0 : index
    %c0_2 = arith.constant 0 : index
    %1 = vector.load %arg1[%c0_1, %c0_2] : memref<27x392xf32, #tpu.memory_space<vmem>>, vector<27x392xf32>
    %cst = arith.constant dense<0.000000e+00> : vector<8x392xf32>
    %2 = tpu.matmul %0, %1, %cst {dimension_numbers = #tpu.dot_dimension_numbers<[1], [0], [0], [1], [0, 0, 1, 1], [], []>} : vector<8x27xf32>, vector<27x392xf32>, vector<8x392xf32> -> vector<8x392xf32>
    %c0_3 = arith.constant 0 : index
    %c0_4 = arith.constant 0 : index
    %3 = vector.load %arg3[%c0_3, %c0_4] : memref<8x1xf32, #tpu.memory_space<vmem>>, vector<8x1xf32>
    %4 = vector.broadcast %3 : vector<8x1xf32> to vector<8x392xf32>
    %5 = arith.addf %2, %4 : vector<8x392xf32>
    %cst_5 = arith.constant 0.000000e+00 : f32
    %6 = vector.broadcast %cst_5 : f32 to vector<8x392xf32>
    %7 = arith.maximumf %5, %6 : vector<8x392xf32>
    %cst_6 = arith.constant 0.000000e+00 : f32
    %8 = vector.broadcast %cst_6 : f32 to vector<16x98xf32>
    %9 = vector.extract_strided_slice %7 {offsets = [0, 294], sizes = [8, 98], strides = [1, 1]} : vector<8x392xf32> to vector<8x98xf32>
    %cst_7 = arith.constant 0.000000e+00 : f32
    %10 = vector.broadcast %cst_7 : f32 to vector<8x8xf32>
    %11 = vector.extract_strided_slice %9 {offsets = [0, 0], sizes = [8, 90], strides = [1, 1]} : vector<8x98xf32> to vector<8x90xf32>
    %12 = tpu.concatenate %10, %11 in 1 : vector<8x8xf32>, vector<8x90xf32> -> vector<8x98xf32>
    %c0_8 = arith.constant 0 : index
    %c0_9 = arith.constant 0 : index
    %c0_10 = arith.constant 0 : index
    %13 = vector.load %arg5[%c0_8, %c0_9, %c0_10] : memref<9x1x98xf32, #tpu.memory_space<vmem>>, vector<1x1x98xf32>
    %14 = vector.shape_cast %13 : vector<1x1x98xf32> to vector<1x98xf32>
    %15 = vector.broadcast %14 : vector<1x98xf32> to vector<8x98xf32>
    %16 = arith.mulf %12, %15 : vector<8x98xf32>
    %c0_11 = arith.constant 0 : index
    %c0_12 = arith.constant 0 : index
    %c0_13 = arith.constant 0 : index
    %17 = vector.load %arg4[%c0_11, %c0_12, %c0_13] : memref<9x16x8xf32, #tpu.memory_space<vmem>>, vector<1x16x8xf32>
    %18 = vector.shape_cast %17 : vector<1x16x8xf32> to vector<16x8xf32>
    %cst_14 = arith.constant dense<0.000000e+00> : vector<16x98xf32>
    %19 = tpu.matmul %18, %16, %cst_14 {dimension_numbers = #tpu.dot_dimension_numbers<[1], [0], [0], [1], [0, 0, 1, 1], [], []>} : vector<16x8xf32>, vector<8x98xf32>, vector<16x98xf32> -> vector<16x98xf32>
    %20 = arith.addf %8, %19 : vector<16x98xf32>
    %21 = vector.extract_strided_slice %7 {offsets = [0, 196], sizes = [8, 98], strides = [1, 1]} : vector<8x392xf32> to vector<8x98xf32>
    %cst_15 = arith.constant 0.000000e+00 : f32
    %22 = vector.broadcast %cst_15 : f32 to vector<8x7xf32>
    %23 = vector.extract_strided_slice %21 {offsets = [0, 0], sizes = [8, 91], strides = [1, 1]} : vector<8x98xf32> to vector<8x91xf32>
    %24 = tpu.concatenate %22, %23 in 1 : vector<8x7xf32>, vector<8x91xf32> -> vector<8x98xf32>
    %c1 = arith.constant 1 : index
    %c0_16 = arith.constant 0 : index
    %c0_17 = arith.constant 0 : index
    %25 = vector.load %arg5[%c1, %c0_16, %c0_17] : memref<9x1x98xf32, #tpu.memory_space<vmem>>, vector<1x1x98xf32>
    %26 = vector.shape_cast %25 : vector<1x1x98xf32> to vector<1x98xf32>
    %27 = vector.broadcast %26 : vector<1x98xf32> to vector<8x98xf32>
    %28 = arith.mulf %24, %27 : vector<8x98xf32>
    %c1_18 = arith.constant 1 : index
    %c0_19 = arith.constant 0 : index
    %c0_20 = arith.constant 0 : index
    %29 = vector.load %arg4[%c1_18, %c0_19, %c0_20] : memref<9x16x8xf32, #tpu.memory_space<vmem>>, vector<1x16x8xf32>
    %30 = vector.shape_cast %29 : vector<1x16x8xf32> to vector<16x8xf32>
    %cst_21 = arith.constant dense<0.000000e+00> : vector<16x98xf32>
    %31 = tpu.matmul %30, %28, %cst_21 {dimension_numbers = #tpu.dot_dimension_numbers<[1], [0], [0], [1], [0, 0, 1, 1], [], []>} : vector<16x8xf32>, vector<8x98xf32>, vector<16x98xf32> -> vector<16x98xf32>
    %32 = arith.addf %20, %31 : vector<16x98xf32>
    %33 = vector.extract_strided_slice %7 {offsets = [0, 294], sizes = [8, 98], strides = [1, 1]} : vector<8x392xf32> to vector<8x98xf32>
    %cst_22 = arith.constant 0.000000e+00 : f32
    %34 = vector.broadcast %cst_22 : f32 to vector<8x7xf32>
    %35 = vector.extract_strided_slice %33 {offsets = [0, 0], sizes = [8, 91], strides = [1, 1]} : vector<8x98xf32> to vector<8x91xf32>
    %36 = tpu.concatenate %34, %35 in 1 : vector<8x7xf32>, vector<8x91xf32> -> vector<8x98xf32>
    %c2 = arith.constant 2 : index
    %c0_23 = arith.constant 0 : index
    %c0_24 = arith.constant 0 : index
    %37 = vector.load %arg5[%c2, %c0_23, %c0_24] : memref<9x1x98xf32, #tpu.memory_space<vmem>>, vector<1x1x98xf32>
    %38 = vector.shape_cast %37 : vector<1x1x98xf32> to vector<1x98xf32>
    %39 = vector.broadcast %38 : vector<1x98xf32> to vector<8x98xf32>
    %40 = arith.mulf %36, %39 : vector<8x98xf32>
    %c2_25 = arith.constant 2 : index
    %c0_26 = arith.constant 0 : index
    %c0_27 = arith.constant 0 : index
    %41 = vector.load %arg4[%c2_25, %c0_26, %c0_27] : memref<9x16x8xf32, #tpu.memory_space<vmem>>, vector<1x16x8xf32>
    %42 = vector.shape_cast %41 : vector<1x16x8xf32> to vector<16x8xf32>
    %cst_28 = arith.constant dense<0.000000e+00> : vector<16x98xf32>
    %43 = tpu.matmul %42, %40, %cst_28 {dimension_numbers = #tpu.dot_dimension_numbers<[1], [0], [0], [1], [0, 0, 1, 1], [], []>} : vector<16x8xf32>, vector<8x98xf32>, vector<16x98xf32> -> vector<16x98xf32>
    %44 = arith.addf %32, %43 : vector<16x98xf32>
    %45 = vector.extract_strided_slice %7 {offsets = [0, 98], sizes = [8, 98], strides = [1, 1]} : vector<8x392xf32> to vector<8x98xf32>
    %cst_29 = arith.constant 0.000000e+00 : f32
    %46 = vector.broadcast %cst_29 : f32 to vector<8x1xf32>
    %47 = vector.extract_strided_slice %45 {offsets = [0, 0], sizes = [8, 97], strides = [1, 1]} : vector<8x98xf32> to vector<8x97xf32>
    %48 = tpu.concatenate %46, %47 in 1 : vector<8x1xf32>, vector<8x97xf32> -> vector<8x98xf32>
    %c3 = arith.constant 3 : index
    %c0_30 = arith.constant 0 : index
    %c0_31 = arith.constant 0 : index
    %49 = vector.load %arg5[%c3, %c0_30, %c0_31] : memref<9x1x98xf32, #tpu.memory_space<vmem>>, vector<1x1x98xf32>
    %50 = vector.shape_cast %49 : vector<1x1x98xf32> to vector<1x98xf32>
    %51 = vector.broadcast %50 : vector<1x98xf32> to vector<8x98xf32>
    %52 = arith.mulf %48, %51 : vector<8x98xf32>
    %c3_32 = arith.constant 3 : index
    %c0_33 = arith.constant 0 : index
    %c0_34 = arith.constant 0 : index
    %53 = vector.load %arg4[%c3_32, %c0_33, %c0_34] : memref<9x16x8xf32, #tpu.memory_space<vmem>>, vector<1x16x8xf32>
    %54 = vector.shape_cast %53 : vector<1x16x8xf32> to vector<16x8xf32>
    %cst_35 = arith.constant dense<0.000000e+00> : vector<16x98xf32>
    %55 = tpu.matmul %54, %52, %cst_35 {dimension_numbers = #tpu.dot_dimension_numbers<[1], [0], [0], [1], [0, 0, 1, 1], [], []>} : vector<16x8xf32>, vector<8x98xf32>, vector<16x98xf32> -> vector<16x98xf32>
    %56 = arith.addf %44, %55 : vector<16x98xf32>
    %57 = vector.extract_strided_slice %7 {offsets = [0, 0], sizes = [8, 98], strides = [1, 1]} : vector<8x392xf32> to vector<8x98xf32>
    %c4 = arith.constant 4 : index
    %c0_36 = arith.constant 0 : index
    %c0_37 = arith.constant 0 : index
    %58 = vector.load %arg4[%c4, %c0_36, %c0_37] : memref<9x16x8xf32, #tpu.memory_space<vmem>>, vector<1x16x8xf32>
    %59 = vector.shape_cast %58 : vector<1x16x8xf32> to vector<16x8xf32>
    %cst_38 = arith.constant dense<0.000000e+00> : vector<16x98xf32>
    %60 = tpu.matmul %59, %57, %cst_38 {dimension_numbers = #tpu.dot_dimension_numbers<[1], [0], [0], [1], [0, 0, 1, 1], [], []>} : vector<16x8xf32>, vector<8x98xf32>, vector<16x98xf32> -> vector<16x98xf32>
    %61 = arith.addf %56, %60 : vector<16x98xf32>
    %62 = vector.extract_strided_slice %7 {offsets = [0, 98], sizes = [8, 98], strides = [1, 1]} : vector<8x392xf32> to vector<8x98xf32>
    %c5 = arith.constant 5 : index
    %c0_39 = arith.constant 0 : index
    %c0_40 = arith.constant 0 : index
    %63 = vector.load %arg4[%c5, %c0_39, %c0_40] : memref<9x16x8xf32, #tpu.memory_space<vmem>>, vector<1x16x8xf32>
    %64 = vector.shape_cast %63 : vector<1x16x8xf32> to vector<16x8xf32>
    %cst_41 = arith.constant dense<0.000000e+00> : vector<16x98xf32>
    %65 = tpu.matmul %64, %62, %cst_41 {dimension_numbers = #tpu.dot_dimension_numbers<[1], [0], [0], [1], [0, 0, 1, 1], [], []>} : vector<16x8xf32>, vector<8x98xf32>, vector<16x98xf32> -> vector<16x98xf32>
    %66 = arith.addf %61, %65 : vector<16x98xf32>
    %67 = vector.extract_strided_slice %7 {offsets = [0, 294], sizes = [8, 98], strides = [1, 1]} : vector<8x392xf32> to vector<8x98xf32>
    %cst_42 = arith.constant 0.000000e+00 : f32
    %68 = vector.broadcast %cst_42 : f32 to vector<8x1xf32>
    %69 = vector.extract_strided_slice %67 {offsets = [0, 0], sizes = [8, 97], strides = [1, 1]} : vector<8x98xf32> to vector<8x97xf32>
    %70 = tpu.concatenate %68, %69 in 1 : vector<8x1xf32>, vector<8x97xf32> -> vector<8x98xf32>
    %c6 = arith.constant 6 : index
    %c0_43 = arith.constant 0 : index
    %c0_44 = arith.constant 0 : index
    %71 = vector.load %arg5[%c6, %c0_43, %c0_44] : memref<9x1x98xf32, #tpu.memory_space<vmem>>, vector<1x1x98xf32>
    %72 = vector.shape_cast %71 : vector<1x1x98xf32> to vector<1x98xf32>
    %73 = vector.broadcast %72 : vector<1x98xf32> to vector<8x98xf32>
    %74 = arith.mulf %70, %73 : vector<8x98xf32>
    %c6_45 = arith.constant 6 : index
    %c0_46 = arith.constant 0 : index
    %c0_47 = arith.constant 0 : index
    %75 = vector.load %arg4[%c6_45, %c0_46, %c0_47] : memref<9x16x8xf32, #tpu.memory_space<vmem>>, vector<1x16x8xf32>
    %76 = vector.shape_cast %75 : vector<1x16x8xf32> to vector<16x8xf32>
    %cst_48 = arith.constant dense<0.000000e+00> : vector<16x98xf32>
    %77 = tpu.matmul %76, %74, %cst_48 {dimension_numbers = #tpu.dot_dimension_numbers<[1], [0], [0], [1], [0, 0, 1, 1], [], []>} : vector<16x8xf32>, vector<8x98xf32>, vector<16x98xf32> -> vector<16x98xf32>
    %78 = arith.addf %66, %77 : vector<16x98xf32>
    %79 = vector.extract_strided_slice %7 {offsets = [0, 196], sizes = [8, 98], strides = [1, 1]} : vector<8x392xf32> to vector<8x98xf32>
    %c7 = arith.constant 7 : index
    %c0_49 = arith.constant 0 : index
    %c0_50 = arith.constant 0 : index
    %80 = vector.load %arg4[%c7, %c0_49, %c0_50] : memref<9x16x8xf32, #tpu.memory_space<vmem>>, vector<1x16x8xf32>
    %81 = vector.shape_cast %80 : vector<1x16x8xf32> to vector<16x8xf32>
    %cst_51 = arith.constant dense<0.000000e+00> : vector<16x98xf32>
    %82 = tpu.matmul %81, %79, %cst_51 {dimension_numbers = #tpu.dot_dimension_numbers<[1], [0], [0], [1], [0, 0, 1, 1], [], []>} : vector<16x8xf32>, vector<8x98xf32>, vector<16x98xf32> -> vector<16x98xf32>
    %83 = arith.addf %78, %82 : vector<16x98xf32>
    %84 = vector.extract_strided_slice %7 {offsets = [0, 294], sizes = [8, 98], strides = [1, 1]} : vector<8x392xf32> to vector<8x98xf32>
    %c8 = arith.constant 8 : index
    %c0_52 = arith.constant 0 : index
    %c0_53 = arith.constant 0 : index
    %85 = vector.load %arg4[%c8, %c0_52, %c0_53] : memref<9x16x8xf32, #tpu.memory_space<vmem>>, vector<1x16x8xf32>
    %86 = vector.shape_cast %85 : vector<1x16x8xf32> to vector<16x8xf32>
    %cst_54 = arith.constant dense<0.000000e+00> : vector<16x98xf32>
    %87 = tpu.matmul %86, %84, %cst_54 {dimension_numbers = #tpu.dot_dimension_numbers<[1], [0], [0], [1], [0, 0, 1, 1], [], []>} : vector<16x8xf32>, vector<8x98xf32>, vector<16x98xf32> -> vector<16x98xf32>
    %88 = arith.addf %83, %87 : vector<16x98xf32>
    %c0_55 = arith.constant 0 : index
    %c0_56 = arith.constant 0 : index
    %89 = vector.load %arg6[%c0_55, %c0_56] : memref<16x2xf32, #tpu.memory_space<vmem>>, vector<16x2xf32>
    %90 = vector.extract_strided_slice %89 {offsets = [0, 0], sizes = [16, 1], strides = [1, 1]} : vector<16x2xf32> to vector<16x1xf32>
    %91 = vector.extract_strided_slice %89 {offsets = [0, 1], sizes = [16, 1], strides = [1, 1]} : vector<16x2xf32> to vector<16x1xf32>
    %cst_57 = arith.constant dense<0.000000e+00> : vector<16xf32>
    %92 = vector.multi_reduction <add>, %88, %cst_57 [1] : vector<16x98xf32> to vector<16xf32>
    %93 = vector.shape_cast %92 : vector<16xf32> to vector<16x1xf32>
    %cst_58 = arith.constant 9.800000e+01 : f32
    %94 = vector.broadcast %cst_58 : f32 to vector<16x1xf32>
    %95 = arith.divf %93, %94 : vector<16x1xf32>
    %96 = vector.broadcast %95 : vector<16x1xf32> to vector<16x98xf32>
    %97 = arith.subf %88, %96 : vector<16x98xf32>
    %98 = arith.mulf %97, %97 : vector<16x98xf32>
    %cst_59 = arith.constant dense<0.000000e+00> : vector<16xf32>
    %99 = vector.multi_reduction <add>, %98, %cst_59 [1] : vector<16x98xf32> to vector<16xf32>
    %100 = vector.shape_cast %99 : vector<16xf32> to vector<16x1xf32>
    %cst_60 = arith.constant 9.800000e+01 : f32
    %101 = vector.broadcast %cst_60 : f32 to vector<16x1xf32>
    %102 = arith.divf %100, %101 : vector<16x1xf32>
    %cst_61 = arith.constant 9.99999974E-6 : f32
    %103 = vector.broadcast %cst_61 : f32 to vector<16x1xf32>
    %104 = arith.addf %102, %103 : vector<16x1xf32>
    %105 = math.rsqrt %104 : vector<16x1xf32>
    %106 = arith.mulf %90, %105 : vector<16x1xf32>
    %107 = vector.broadcast %106 : vector<16x1xf32> to vector<16x98xf32>
    %108 = arith.mulf %97, %107 : vector<16x98xf32>
    %109 = vector.broadcast %91 : vector<16x1xf32> to vector<16x98xf32>
    %110 = arith.addf %108, %109 : vector<16x98xf32>
    %cst_62 = arith.constant 0.000000e+00 : f32
    %111 = vector.broadcast %cst_62 : f32 to vector<16x98xf32>
    %112 = arith.maximumf %110, %111 : vector<16x98xf32>
    %c0_63 = arith.constant 0 : index
    %c0_64 = arith.constant 0 : index
    %113 = vector.load %arg9[%c0_63, %c0_64] : memref<784x16xf32, #tpu.memory_space<vmem>>, vector<784x16xf32>
    %cst_65 = arith.constant dense<0.000000e+00> : vector<784x98xf32>
    %114 = tpu.matmul %113, %112, %cst_65 {dimension_numbers = #tpu.dot_dimension_numbers<[1], [0], [0], [1], [0, 0, 1, 1], [], []>} : vector<784x16xf32>, vector<16x98xf32>, vector<784x98xf32> -> vector<784x98xf32>
    %c0_66 = arith.constant 0 : index
    %c0_67 = arith.constant 0 : index
    %115 = vector.load %arg10[%c0_66, %c0_67] : memref<784x98xf32, #tpu.memory_space<vmem>>, vector<784x98xf32>
    %116 = arith.mulf %114, %115 : vector<784x98xf32>
    %c0_68 = arith.constant 0 : index
    %c0_69 = arith.constant 0 : index
    %117 = vector.load %arg11[%c0_68, %c0_69] : memref<98x2xf32, #tpu.memory_space<vmem>>, vector<98x2xf32>
    %cst_70 = arith.constant dense<0.000000e+00> : vector<784x2xf32>
    %118 = tpu.matmul %116, %117, %cst_70 {dimension_numbers = #tpu.dot_dimension_numbers<[1], [0], [0], [1], [0, 0, 1, 1], [], []>} : vector<784x98xf32>, vector<98x2xf32>, vector<784x2xf32> -> vector<784x2xf32>
    %c0_71 = arith.constant 0 : index
    %c0_72 = arith.constant 0 : index
    %119 = vector.load %arg7[%c0_71, %c0_72] : memref<32x784xf32, #tpu.memory_space<vmem>>, vector<32x784xf32>
    %cst_73 = arith.constant dense<0.000000e+00> : vector<32x2xf32>
    %120 = tpu.matmul %119, %118, %cst_73 {dimension_numbers = #tpu.dot_dimension_numbers<[1], [0], [0], [1], [0, 0, 1, 1], [], []>} : vector<32x784xf32>, vector<784x2xf32>, vector<32x2xf32> -> vector<32x2xf32>
    %c0_74 = arith.constant 0 : index
    %c0_75 = arith.constant 0 : index
    %121 = vector.load %arg8[%c0_74, %c0_75] : memref<32x1xf32, #tpu.memory_space<vmem>>, vector<32x1xf32>
    %122 = vector.broadcast %121 : vector<32x1xf32> to vector<32x2xf32>
    %123 = arith.addf %120, %122 : vector<32x2xf32>
    %cst_76 = arith.constant 0.000000e+00 : f32
    %124 = vector.broadcast %cst_76 : f32 to vector<32x2xf32>
    %125 = arith.maximumf %123, %124 : vector<32x2xf32>
    %c0_77 = arith.constant 0 : index
    %c0_78 = arith.constant 0 : index
    %126 = vector.load %arg12[%c0_77, %c0_78] : memref<2x98xf32, #tpu.memory_space<vmem>>, vector<2x98xf32>
    %cst_79 = arith.constant dense<0.000000e+00> : vector<32x98xf32>
    %127 = tpu.matmul %125, %126, %cst_79 {dimension_numbers = #tpu.dot_dimension_numbers<[1], [0], [0], [1], [0, 0, 1, 1], [], []>} : vector<32x2xf32>, vector<2x98xf32>, vector<32x98xf32> -> vector<32x98xf32>
    %cst_80 = arith.constant 0.000000e+00 : f32
    %128 = vector.broadcast %cst_80 : f32 to vector<16x98xf32>
    %129 = vector.extract_strided_slice %127 {offsets = [0, 0], sizes = [1, 98], strides = [1, 1]} : vector<32x98xf32> to vector<1x98xf32>
    %c0_81 = arith.constant 0 : index
    %c0_82 = arith.constant 0 : index
    %c0_83 = arith.constant 0 : index
    %130 = vector.load %arg13[%c0_81, %c0_82, %c0_83] : memref<32x16x98xf32, #tpu.memory_space<vmem>>, vector<1x16x98xf32>
    %131 = vector.shape_cast %130 : vector<1x16x98xf32> to vector<16x98xf32>
    %132 = vector.broadcast %129 : vector<1x98xf32> to vector<16x98xf32>
    %133 = arith.mulf %132, %131 : vector<16x98xf32>
    %134 = arith.addf %128, %133 : vector<16x98xf32>
    %135 = vector.extract_strided_slice %127 {offsets = [1, 0], sizes = [1, 98], strides = [1, 1]} : vector<32x98xf32> to vector<1x98xf32>
    %c1_84 = arith.constant 1 : index
    %c0_85 = arith.constant 0 : index
    %c0_86 = arith.constant 0 : index
    %136 = vector.load %arg13[%c1_84, %c0_85, %c0_86] : memref<32x16x98xf32, #tpu.memory_space<vmem>>, vector<1x16x98xf32>
    %137 = vector.shape_cast %136 : vector<1x16x98xf32> to vector<16x98xf32>
    %138 = vector.broadcast %135 : vector<1x98xf32> to vector<16x98xf32>
    %139 = arith.mulf %138, %137 : vector<16x98xf32>
    %140 = arith.addf %134, %139 : vector<16x98xf32>
    %141 = vector.extract_strided_slice %127 {offsets = [2, 0], sizes = [1, 98], strides = [1, 1]} : vector<32x98xf32> to vector<1x98xf32>
    %c2_87 = arith.constant 2 : index
    %c0_88 = arith.constant 0 : index
    %c0_89 = arith.constant 0 : index
    %142 = vector.load %arg13[%c2_87, %c0_88, %c0_89] : memref<32x16x98xf32, #tpu.memory_space<vmem>>, vector<1x16x98xf32>
    %143 = vector.shape_cast %142 : vector<1x16x98xf32> to vector<16x98xf32>
    %144 = vector.broadcast %141 : vector<1x98xf32> to vector<16x98xf32>
    %145 = arith.mulf %144, %143 : vector<16x98xf32>
    %146 = arith.addf %140, %145 : vector<16x98xf32>
    %147 = vector.extract_strided_slice %127 {offsets = [3, 0], sizes = [1, 98], strides = [1, 1]} : vector<32x98xf32> to vector<1x98xf32>
    %c3_90 = arith.constant 3 : index
    %c0_91 = arith.constant 0 : index
    %c0_92 = arith.constant 0 : index
    %148 = vector.load %arg13[%c3_90, %c0_91, %c0_92] : memref<32x16x98xf32, #tpu.memory_space<vmem>>, vector<1x16x98xf32>
    %149 = vector.shape_cast %148 : vector<1x16x98xf32> to vector<16x98xf32>
    %150 = vector.broadcast %147 : vector<1x98xf32> to vector<16x98xf32>
    %151 = arith.mulf %150, %149 : vector<16x98xf32>
    %152 = arith.addf %146, %151 : vector<16x98xf32>
    %153 = vector.extract_strided_slice %127 {offsets = [4, 0], sizes = [1, 98], strides = [1, 1]} : vector<32x98xf32> to vector<1x98xf32>
    %c4_93 = arith.constant 4 : index
    %c0_94 = arith.constant 0 : index
    %c0_95 = arith.constant 0 : index
    %154 = vector.load %arg13[%c4_93, %c0_94, %c0_95] : memref<32x16x98xf32, #tpu.memory_space<vmem>>, vector<1x16x98xf32>
    %155 = vector.shape_cast %154 : vector<1x16x98xf32> to vector<16x98xf32>
    %156 = vector.broadcast %153 : vector<1x98xf32> to vector<16x98xf32>
    %157 = arith.mulf %156, %155 : vector<16x98xf32>
    %158 = arith.addf %152, %157 : vector<16x98xf32>
    %159 = vector.extract_strided_slice %127 {offsets = [5, 0], sizes = [1, 98], strides = [1, 1]} : vector<32x98xf32> to vector<1x98xf32>
    %c5_96 = arith.constant 5 : index
    %c0_97 = arith.constant 0 : index
    %c0_98 = arith.constant 0 : index
    %160 = vector.load %arg13[%c5_96, %c0_97, %c0_98] : memref<32x16x98xf32, #tpu.memory_space<vmem>>, vector<1x16x98xf32>
    %161 = vector.shape_cast %160 : vector<1x16x98xf32> to vector<16x98xf32>
    %162 = vector.broadcast %159 : vector<1x98xf32> to vector<16x98xf32>
    %163 = arith.mulf %162, %161 : vector<16x98xf32>
    %164 = arith.addf %158, %163 : vector<16x98xf32>
    %165 = vector.extract_strided_slice %127 {offsets = [6, 0], sizes = [1, 98], strides = [1, 1]} : vector<32x98xf32> to vector<1x98xf32>
    %c6_99 = arith.constant 6 : index
    %c0_100 = arith.constant 0 : index
    %c0_101 = arith.constant 0 : index
    %166 = vector.load %arg13[%c6_99, %c0_100, %c0_101] : memref<32x16x98xf32, #tpu.memory_space<vmem>>, vector<1x16x98xf32>
    %167 = vector.shape_cast %166 : vector<1x16x98xf32> to vector<16x98xf32>
    %168 = vector.broadcast %165 : vector<1x98xf32> to vector<16x98xf32>
    %169 = arith.mulf %168, %167 : vector<16x98xf32>
    %170 = arith.addf %164, %169 : vector<16x98xf32>
    %171 = vector.extract_strided_slice %127 {offsets = [7, 0], sizes = [1, 98], strides = [1, 1]} : vector<32x98xf32> to vector<1x98xf32>
    %c7_102 = arith.constant 7 : index
    %c0_103 = arith.constant 0 : index
    %c0_104 = arith.constant 0 : index
    %172 = vector.load %arg13[%c7_102, %c0_103, %c0_104] : memref<32x16x98xf32, #tpu.memory_space<vmem>>, vector<1x16x98xf32>
    %173 = vector.shape_cast %172 : vector<1x16x98xf32> to vector<16x98xf32>
    %174 = vector.broadcast %171 : vector<1x98xf32> to vector<16x98xf32>
    %175 = arith.mulf %174, %173 : vector<16x98xf32>
    %176 = arith.addf %170, %175 : vector<16x98xf32>
    %177 = vector.extract_strided_slice %127 {offsets = [8, 0], sizes = [1, 98], strides = [1, 1]} : vector<32x98xf32> to vector<1x98xf32>
    %c8_105 = arith.constant 8 : index
    %c0_106 = arith.constant 0 : index
    %c0_107 = arith.constant 0 : index
    %178 = vector.load %arg13[%c8_105, %c0_106, %c0_107] : memref<32x16x98xf32, #tpu.memory_space<vmem>>, vector<1x16x98xf32>
    %179 = vector.shape_cast %178 : vector<1x16x98xf32> to vector<16x98xf32>
    %180 = vector.broadcast %177 : vector<1x98xf32> to vector<16x98xf32>
    %181 = arith.mulf %180, %179 : vector<16x98xf32>
    %182 = arith.addf %176, %181 : vector<16x98xf32>
    %183 = vector.extract_strided_slice %127 {offsets = [9, 0], sizes = [1, 98], strides = [1, 1]} : vector<32x98xf32> to vector<1x98xf32>
    %c9 = arith.constant 9 : index
    %c0_108 = arith.constant 0 : index
    %c0_109 = arith.constant 0 : index
    %184 = vector.load %arg13[%c9, %c0_108, %c0_109] : memref<32x16x98xf32, #tpu.memory_space<vmem>>, vector<1x16x98xf32>
    %185 = vector.shape_cast %184 : vector<1x16x98xf32> to vector<16x98xf32>
    %186 = vector.broadcast %183 : vector<1x98xf32> to vector<16x98xf32>
    %187 = arith.mulf %186, %185 : vector<16x98xf32>
    %188 = arith.addf %182, %187 : vector<16x98xf32>
    %189 = vector.extract_strided_slice %127 {offsets = [10, 0], sizes = [1, 98], strides = [1, 1]} : vector<32x98xf32> to vector<1x98xf32>
    %c10 = arith.constant 10 : index
    %c0_110 = arith.constant 0 : index
    %c0_111 = arith.constant 0 : index
    %190 = vector.load %arg13[%c10, %c0_110, %c0_111] : memref<32x16x98xf32, #tpu.memory_space<vmem>>, vector<1x16x98xf32>
    %191 = vector.shape_cast %190 : vector<1x16x98xf32> to vector<16x98xf32>
    %192 = vector.broadcast %189 : vector<1x98xf32> to vector<16x98xf32>
    %193 = arith.mulf %192, %191 : vector<16x98xf32>
    %194 = arith.addf %188, %193 : vector<16x98xf32>
    %195 = vector.extract_strided_slice %127 {offsets = [11, 0], sizes = [1, 98], strides = [1, 1]} : vector<32x98xf32> to vector<1x98xf32>
    %c11 = arith.constant 11 : index
    %c0_112 = arith.constant 0 : index
    %c0_113 = arith.constant 0 : index
    %196 = vector.load %arg13[%c11, %c0_112, %c0_113] : memref<32x16x98xf32, #tpu.memory_space<vmem>>, vector<1x16x98xf32>
    %197 = vector.shape_cast %196 : vector<1x16x98xf32> to vector<16x98xf32>
    %198 = vector.broadcast %195 : vector<1x98xf32> to vector<16x98xf32>
    %199 = arith.mulf %198, %197 : vector<16x98xf32>
    %200 = arith.addf %194, %199 : vector<16x98xf32>
    %201 = vector.extract_strided_slice %127 {offsets = [12, 0], sizes = [1, 98], strides = [1, 1]} : vector<32x98xf32> to vector<1x98xf32>
    %c12 = arith.constant 12 : index
    %c0_114 = arith.constant 0 : index
    %c0_115 = arith.constant 0 : index
    %202 = vector.load %arg13[%c12, %c0_114, %c0_115] : memref<32x16x98xf32, #tpu.memory_space<vmem>>, vector<1x16x98xf32>
    %203 = vector.shape_cast %202 : vector<1x16x98xf32> to vector<16x98xf32>
    %204 = vector.broadcast %201 : vector<1x98xf32> to vector<16x98xf32>
    %205 = arith.mulf %204, %203 : vector<16x98xf32>
    %206 = arith.addf %200, %205 : vector<16x98xf32>
    %207 = vector.extract_strided_slice %127 {offsets = [13, 0], sizes = [1, 98], strides = [1, 1]} : vector<32x98xf32> to vector<1x98xf32>
    %c13 = arith.constant 13 : index
    %c0_116 = arith.constant 0 : index
    %c0_117 = arith.constant 0 : index
    %208 = vector.load %arg13[%c13, %c0_116, %c0_117] : memref<32x16x98xf32, #tpu.memory_space<vmem>>, vector<1x16x98xf32>
    %209 = vector.shape_cast %208 : vector<1x16x98xf32> to vector<16x98xf32>
    %210 = vector.broadcast %207 : vector<1x98xf32> to vector<16x98xf32>
    %211 = arith.mulf %210, %209 : vector<16x98xf32>
    %212 = arith.addf %206, %211 : vector<16x98xf32>
    %213 = vector.extract_strided_slice %127 {offsets = [14, 0], sizes = [1, 98], strides = [1, 1]} : vector<32x98xf32> to vector<1x98xf32>
    %c14 = arith.constant 14 : index
    %c0_118 = arith.constant 0 : index
    %c0_119 = arith.constant 0 : index
    %214 = vector.load %arg13[%c14, %c0_118, %c0_119] : memref<32x16x98xf32, #tpu.memory_space<vmem>>, vector<1x16x98xf32>
    %215 = vector.shape_cast %214 : vector<1x16x98xf32> to vector<16x98xf32>
    %216 = vector.broadcast %213 : vector<1x98xf32> to vector<16x98xf32>
    %217 = arith.mulf %216, %215 : vector<16x98xf32>
    %218 = arith.addf %212, %217 : vector<16x98xf32>
    %219 = vector.extract_strided_slice %127 {offsets = [15, 0], sizes = [1, 98], strides = [1, 1]} : vector<32x98xf32> to vector<1x98xf32>
    %c15 = arith.constant 15 : index
    %c0_120 = arith.constant 0 : index
    %c0_121 = arith.constant 0 : index
    %220 = vector.load %arg13[%c15, %c0_120, %c0_121] : memref<32x16x98xf32, #tpu.memory_space<vmem>>, vector<1x16x98xf32>
    %221 = vector.shape_cast %220 : vector<1x16x98xf32> to vector<16x98xf32>
    %222 = vector.broadcast %219 : vector<1x98xf32> to vector<16x98xf32>
    %223 = arith.mulf %222, %221 : vector<16x98xf32>
    %224 = arith.addf %218, %223 : vector<16x98xf32>
    %225 = vector.extract_strided_slice %127 {offsets = [16, 0], sizes = [1, 98], strides = [1, 1]} : vector<32x98xf32> to vector<1x98xf32>
    %c16 = arith.constant 16 : index
    %c0_122 = arith.constant 0 : index
    %c0_123 = arith.constant 0 : index
    %226 = vector.load %arg13[%c16, %c0_122, %c0_123] : memref<32x16x98xf32, #tpu.memory_space<vmem>>, vector<1x16x98xf32>
    %227 = vector.shape_cast %226 : vector<1x16x98xf32> to vector<16x98xf32>
    %228 = vector.broadcast %225 : vector<1x98xf32> to vector<16x98xf32>
    %229 = arith.mulf %228, %227 : vector<16x98xf32>
    %230 = arith.addf %224, %229 : vector<16x98xf32>
    %231 = vector.extract_strided_slice %127 {offsets = [17, 0], sizes = [1, 98], strides = [1, 1]} : vector<32x98xf32> to vector<1x98xf32>
    %c17 = arith.constant 17 : index
    %c0_124 = arith.constant 0 : index
    %c0_125 = arith.constant 0 : index
    %232 = vector.load %arg13[%c17, %c0_124, %c0_125] : memref<32x16x98xf32, #tpu.memory_space<vmem>>, vector<1x16x98xf32>
    %233 = vector.shape_cast %232 : vector<1x16x98xf32> to vector<16x98xf32>
    %234 = vector.broadcast %231 : vector<1x98xf32> to vector<16x98xf32>
    %235 = arith.mulf %234, %233 : vector<16x98xf32>
    %236 = arith.addf %230, %235 : vector<16x98xf32>
    %237 = vector.extract_strided_slice %127 {offsets = [18, 0], sizes = [1, 98], strides = [1, 1]} : vector<32x98xf32> to vector<1x98xf32>
    %c18 = arith.constant 18 : index
    %c0_126 = arith.constant 0 : index
    %c0_127 = arith.constant 0 : index
    %238 = vector.load %arg13[%c18, %c0_126, %c0_127] : memref<32x16x98xf32, #tpu.memory_space<vmem>>, vector<1x16x98xf32>
    %239 = vector.shape_cast %238 : vector<1x16x98xf32> to vector<16x98xf32>
    %240 = vector.broadcast %237 : vector<1x98xf32> to vector<16x98xf32>
    %241 = arith.mulf %240, %239 : vector<16x98xf32>
    %242 = arith.addf %236, %241 : vector<16x98xf32>
    %243 = vector.extract_strided_slice %127 {offsets = [19, 0], sizes = [1, 98], strides = [1, 1]} : vector<32x98xf32> to vector<1x98xf32>
    %c19 = arith.constant 19 : index
    %c0_128 = arith.constant 0 : index
    %c0_129 = arith.constant 0 : index
    %244 = vector.load %arg13[%c19, %c0_128, %c0_129] : memref<32x16x98xf32, #tpu.memory_space<vmem>>, vector<1x16x98xf32>
    %245 = vector.shape_cast %244 : vector<1x16x98xf32> to vector<16x98xf32>
    %246 = vector.broadcast %243 : vector<1x98xf32> to vector<16x98xf32>
    %247 = arith.mulf %246, %245 : vector<16x98xf32>
    %248 = arith.addf %242, %247 : vector<16x98xf32>
    %249 = vector.extract_strided_slice %127 {offsets = [20, 0], sizes = [1, 98], strides = [1, 1]} : vector<32x98xf32> to vector<1x98xf32>
    %c20 = arith.constant 20 : index
    %c0_130 = arith.constant 0 : index
    %c0_131 = arith.constant 0 : index
    %250 = vector.load %arg13[%c20, %c0_130, %c0_131] : memref<32x16x98xf32, #tpu.memory_space<vmem>>, vector<1x16x98xf32>
    %251 = vector.shape_cast %250 : vector<1x16x98xf32> to vector<16x98xf32>
    %252 = vector.broadcast %249 : vector<1x98xf32> to vector<16x98xf32>
    %253 = arith.mulf %252, %251 : vector<16x98xf32>
    %254 = arith.addf %248, %253 : vector<16x98xf32>
    %255 = vector.extract_strided_slice %127 {offsets = [21, 0], sizes = [1, 98], strides = [1, 1]} : vector<32x98xf32> to vector<1x98xf32>
    %c21 = arith.constant 21 : index
    %c0_132 = arith.constant 0 : index
    %c0_133 = arith.constant 0 : index
    %256 = vector.load %arg13[%c21, %c0_132, %c0_133] : memref<32x16x98xf32, #tpu.memory_space<vmem>>, vector<1x16x98xf32>
    %257 = vector.shape_cast %256 : vector<1x16x98xf32> to vector<16x98xf32>
    %258 = vector.broadcast %255 : vector<1x98xf32> to vector<16x98xf32>
    %259 = arith.mulf %258, %257 : vector<16x98xf32>
    %260 = arith.addf %254, %259 : vector<16x98xf32>
    %261 = vector.extract_strided_slice %127 {offsets = [22, 0], sizes = [1, 98], strides = [1, 1]} : vector<32x98xf32> to vector<1x98xf32>
    %c22 = arith.constant 22 : index
    %c0_134 = arith.constant 0 : index
    %c0_135 = arith.constant 0 : index
    %262 = vector.load %arg13[%c22, %c0_134, %c0_135] : memref<32x16x98xf32, #tpu.memory_space<vmem>>, vector<1x16x98xf32>
    %263 = vector.shape_cast %262 : vector<1x16x98xf32> to vector<16x98xf32>
    %264 = vector.broadcast %261 : vector<1x98xf32> to vector<16x98xf32>
    %265 = arith.mulf %264, %263 : vector<16x98xf32>
    %266 = arith.addf %260, %265 : vector<16x98xf32>
    %267 = vector.extract_strided_slice %127 {offsets = [23, 0], sizes = [1, 98], strides = [1, 1]} : vector<32x98xf32> to vector<1x98xf32>
    %c23 = arith.constant 23 : index
    %c0_136 = arith.constant 0 : index
    %c0_137 = arith.constant 0 : index
    %268 = vector.load %arg13[%c23, %c0_136, %c0_137] : memref<32x16x98xf32, #tpu.memory_space<vmem>>, vector<1x16x98xf32>
    %269 = vector.shape_cast %268 : vector<1x16x98xf32> to vector<16x98xf32>
    %270 = vector.broadcast %267 : vector<1x98xf32> to vector<16x98xf32>
    %271 = arith.mulf %270, %269 : vector<16x98xf32>
    %272 = arith.addf %266, %271 : vector<16x98xf32>
    %273 = vector.extract_strided_slice %127 {offsets = [24, 0], sizes = [1, 98], strides = [1, 1]} : vector<32x98xf32> to vector<1x98xf32>
    %c24 = arith.constant 24 : index
    %c0_138 = arith.constant 0 : index
    %c0_139 = arith.constant 0 : index
    %274 = vector.load %arg13[%c24, %c0_138, %c0_139] : memref<32x16x98xf32, #tpu.memory_space<vmem>>, vector<1x16x98xf32>
    %275 = vector.shape_cast %274 : vector<1x16x98xf32> to vector<16x98xf32>
    %276 = vector.broadcast %273 : vector<1x98xf32> to vector<16x98xf32>
    %277 = arith.mulf %276, %275 : vector<16x98xf32>
    %278 = arith.addf %272, %277 : vector<16x98xf32>
    %279 = vector.extract_strided_slice %127 {offsets = [25, 0], sizes = [1, 98], strides = [1, 1]} : vector<32x98xf32> to vector<1x98xf32>
    %c25 = arith.constant 25 : index
    %c0_140 = arith.constant 0 : index
    %c0_141 = arith.constant 0 : index
    %280 = vector.load %arg13[%c25, %c0_140, %c0_141] : memref<32x16x98xf32, #tpu.memory_space<vmem>>, vector<1x16x98xf32>
    %281 = vector.shape_cast %280 : vector<1x16x98xf32> to vector<16x98xf32>
    %282 = vector.broadcast %279 : vector<1x98xf32> to vector<16x98xf32>
    %283 = arith.mulf %282, %281 : vector<16x98xf32>
    %284 = arith.addf %278, %283 : vector<16x98xf32>
    %285 = vector.extract_strided_slice %127 {offsets = [26, 0], sizes = [1, 98], strides = [1, 1]} : vector<32x98xf32> to vector<1x98xf32>
    %c26 = arith.constant 26 : index
    %c0_142 = arith.constant 0 : index
    %c0_143 = arith.constant 0 : index
    %286 = vector.load %arg13[%c26, %c0_142, %c0_143] : memref<32x16x98xf32, #tpu.memory_space<vmem>>, vector<1x16x98xf32>
    %287 = vector.shape_cast %286 : vector<1x16x98xf32> to vector<16x98xf32>
    %288 = vector.broadcast %285 : vector<1x98xf32> to vector<16x98xf32>
    %289 = arith.mulf %288, %287 : vector<16x98xf32>
    %290 = arith.addf %284, %289 : vector<16x98xf32>
    %291 = vector.extract_strided_slice %127 {offsets = [27, 0], sizes = [1, 98], strides = [1, 1]} : vector<32x98xf32> to vector<1x98xf32>
    %c27 = arith.constant 27 : index
    %c0_144 = arith.constant 0 : index
    %c0_145 = arith.constant 0 : index
    %292 = vector.load %arg13[%c27, %c0_144, %c0_145] : memref<32x16x98xf32, #tpu.memory_space<vmem>>, vector<1x16x98xf32>
    %293 = vector.shape_cast %292 : vector<1x16x98xf32> to vector<16x98xf32>
    %294 = vector.broadcast %291 : vector<1x98xf32> to vector<16x98xf32>
    %295 = arith.mulf %294, %293 : vector<16x98xf32>
    %296 = arith.addf %290, %295 : vector<16x98xf32>
    %297 = vector.extract_strided_slice %127 {offsets = [28, 0], sizes = [1, 98], strides = [1, 1]} : vector<32x98xf32> to vector<1x98xf32>
    %c28 = arith.constant 28 : index
    %c0_146 = arith.constant 0 : index
    %c0_147 = arith.constant 0 : index
    %298 = vector.load %arg13[%c28, %c0_146, %c0_147] : memref<32x16x98xf32, #tpu.memory_space<vmem>>, vector<1x16x98xf32>
    %299 = vector.shape_cast %298 : vector<1x16x98xf32> to vector<16x98xf32>
    %300 = vector.broadcast %297 : vector<1x98xf32> to vector<16x98xf32>
    %301 = arith.mulf %300, %299 : vector<16x98xf32>
    %302 = arith.addf %296, %301 : vector<16x98xf32>
    %303 = vector.extract_strided_slice %127 {offsets = [29, 0], sizes = [1, 98], strides = [1, 1]} : vector<32x98xf32> to vector<1x98xf32>
    %c29 = arith.constant 29 : index
    %c0_148 = arith.constant 0 : index
    %c0_149 = arith.constant 0 : index
    %304 = vector.load %arg13[%c29, %c0_148, %c0_149] : memref<32x16x98xf32, #tpu.memory_space<vmem>>, vector<1x16x98xf32>
    %305 = vector.shape_cast %304 : vector<1x16x98xf32> to vector<16x98xf32>
    %306 = vector.broadcast %303 : vector<1x98xf32> to vector<16x98xf32>
    %307 = arith.mulf %306, %305 : vector<16x98xf32>
    %308 = arith.addf %302, %307 : vector<16x98xf32>
    %309 = vector.extract_strided_slice %127 {offsets = [30, 0], sizes = [1, 98], strides = [1, 1]} : vector<32x98xf32> to vector<1x98xf32>
    %c30 = arith.constant 30 : index
    %c0_150 = arith.constant 0 : index
    %c0_151 = arith.constant 0 : index
    %310 = vector.load %arg13[%c30, %c0_150, %c0_151] : memref<32x16x98xf32, #tpu.memory_space<vmem>>, vector<1x16x98xf32>
    %311 = vector.shape_cast %310 : vector<1x16x98xf32> to vector<16x98xf32>
    %312 = vector.broadcast %309 : vector<1x98xf32> to vector<16x98xf32>
    %313 = arith.mulf %312, %311 : vector<16x98xf32>
    %314 = arith.addf %308, %313 : vector<16x98xf32>
    %315 = vector.extract_strided_slice %127 {offsets = [31, 0], sizes = [1, 98], strides = [1, 1]} : vector<32x98xf32> to vector<1x98xf32>
    %c31 = arith.constant 31 : index
    %c0_152 = arith.constant 0 : index
    %c0_153 = arith.constant 0 : index
    %316 = vector.load %arg13[%c31, %c0_152, %c0_153] : memref<32x16x98xf32, #tpu.memory_space<vmem>>, vector<1x16x98xf32>
    %317 = vector.shape_cast %316 : vector<1x16x98xf32> to vector<16x98xf32>
    %318 = vector.broadcast %315 : vector<1x98xf32> to vector<16x98xf32>
    %319 = arith.mulf %318, %317 : vector<16x98xf32>
    %320 = arith.addf %314, %319 : vector<16x98xf32>
    %c0_154 = arith.constant 0 : index
    %c0_155 = arith.constant 0 : index
    %321 = vector.load %arg14[%c0_154, %c0_155] : memref<16x2xf32, #tpu.memory_space<vmem>>, vector<16x2xf32>
    %322 = vector.extract_strided_slice %321 {offsets = [0, 0], sizes = [16, 1], strides = [1, 1]} : vector<16x2xf32> to vector<16x1xf32>
    %323 = vector.extract_strided_slice %321 {offsets = [0, 1], sizes = [16, 1], strides = [1, 1]} : vector<16x2xf32> to vector<16x1xf32>
    %cst_156 = arith.constant dense<0.000000e+00> : vector<16xf32>
    %324 = vector.multi_reduction <add>, %320, %cst_156 [1] : vector<16x98xf32> to vector<16xf32>
    %325 = vector.shape_cast %324 : vector<16xf32> to vector<16x1xf32>
    %cst_157 = arith.constant 9.800000e+01 : f32
    %326 = vector.broadcast %cst_157 : f32 to vector<16x1xf32>
    %327 = arith.divf %325, %326 : vector<16x1xf32>
    %328 = vector.broadcast %327 : vector<16x1xf32> to vector<16x98xf32>
    %329 = arith.subf %320, %328 : vector<16x98xf32>
    %330 = arith.mulf %329, %329 : vector<16x98xf32>
    %cst_158 = arith.constant dense<0.000000e+00> : vector<16xf32>
    %331 = vector.multi_reduction <add>, %330, %cst_158 [1] : vector<16x98xf32> to vector<16xf32>
    %332 = vector.shape_cast %331 : vector<16xf32> to vector<16x1xf32>
    %cst_159 = arith.constant 9.800000e+01 : f32
    %333 = vector.broadcast %cst_159 : f32 to vector<16x1xf32>
    %334 = arith.divf %332, %333 : vector<16x1xf32>
    %cst_160 = arith.constant 9.99999974E-6 : f32
    %335 = vector.broadcast %cst_160 : f32 to vector<16x1xf32>
    %336 = arith.addf %334, %335 : vector<16x1xf32>
    %337 = math.rsqrt %336 : vector<16x1xf32>
    %338 = arith.mulf %322, %337 : vector<16x1xf32>
    %339 = vector.broadcast %338 : vector<16x1xf32> to vector<16x98xf32>
    %340 = arith.mulf %329, %339 : vector<16x98xf32>
    %341 = vector.broadcast %323 : vector<16x1xf32> to vector<16x98xf32>
    %342 = arith.addf %340, %341 : vector<16x98xf32>
    %cst_161 = arith.constant 0.000000e+00 : f32
    %343 = vector.broadcast %cst_161 : f32 to vector<16x98xf32>
    %344 = arith.maximumf %342, %343 : vector<16x98xf32>
    %cst_162 = arith.constant 0.000000e+00 : f32
    %345 = vector.broadcast %cst_162 : f32 to vector<8x98xf32>
    %cst_163 = arith.constant 0.000000e+00 : f32
    %346 = vector.broadcast %cst_163 : f32 to vector<8x98xf32>
    %cst_164 = arith.constant 0.000000e+00 : f32
    %347 = vector.broadcast %cst_164 : f32 to vector<8x98xf32>
    %cst_165 = arith.constant 0.000000e+00 : f32
    %348 = vector.broadcast %cst_165 : f32 to vector<8x98xf32>
    %349 = vector.extract_strided_slice %344 {offsets = [0, 8], sizes = [16, 90], strides = [1, 1]} : vector<16x98xf32> to vector<16x90xf32>
    %cst_166 = arith.constant 0.000000e+00 : f32
    %350 = vector.broadcast %cst_166 : f32 to vector<16x8xf32>
    %351 = tpu.concatenate %349, %350 in 1 : vector<16x90xf32>, vector<16x8xf32> -> vector<16x98xf32>
    %c0_167 = arith.constant 0 : index
    %c0_168 = arith.constant 0 : index
    %c0_169 = arith.constant 0 : index
    %352 = vector.load %arg16[%c0_167, %c0_168, %c0_169] : memref<9x1x98xf32, #tpu.memory_space<vmem>>, vector<1x1x98xf32>
    %353 = vector.shape_cast %352 : vector<1x1x98xf32> to vector<1x98xf32>
    %354 = vector.broadcast %353 : vector<1x98xf32> to vector<16x98xf32>
    %355 = arith.mulf %351, %354 : vector<16x98xf32>
    %c0_170 = arith.constant 0 : index
    %c0_171 = arith.constant 0 : index
    %c0_172 = arith.constant 0 : index
    %356 = vector.load %arg15[%c0_170, %c0_171, %c0_172] : memref<9x8x16xf32, #tpu.memory_space<vmem>>, vector<1x8x16xf32>
    %357 = vector.shape_cast %356 : vector<1x8x16xf32> to vector<8x16xf32>
    %cst_173 = arith.constant dense<0.000000e+00> : vector<8x98xf32>
    %358 = tpu.matmul %357, %355, %cst_173 {dimension_numbers = #tpu.dot_dimension_numbers<[1], [0], [0], [1], [0, 0, 1, 1], [], []>} : vector<8x16xf32>, vector<16x98xf32>, vector<8x98xf32> -> vector<8x98xf32>
    %359 = arith.addf %348, %358 : vector<8x98xf32>
    %360 = vector.extract_strided_slice %344 {offsets = [0, 7], sizes = [16, 91], strides = [1, 1]} : vector<16x98xf32> to vector<16x91xf32>
    %cst_174 = arith.constant 0.000000e+00 : f32
    %361 = vector.broadcast %cst_174 : f32 to vector<16x7xf32>
    %362 = tpu.concatenate %360, %361 in 1 : vector<16x91xf32>, vector<16x7xf32> -> vector<16x98xf32>
    %c1_175 = arith.constant 1 : index
    %c0_176 = arith.constant 0 : index
    %c0_177 = arith.constant 0 : index
    %363 = vector.load %arg16[%c1_175, %c0_176, %c0_177] : memref<9x1x98xf32, #tpu.memory_space<vmem>>, vector<1x1x98xf32>
    %364 = vector.shape_cast %363 : vector<1x1x98xf32> to vector<1x98xf32>
    %365 = vector.broadcast %364 : vector<1x98xf32> to vector<16x98xf32>
    %366 = arith.mulf %362, %365 : vector<16x98xf32>
    %c1_178 = arith.constant 1 : index
    %c0_179 = arith.constant 0 : index
    %c0_180 = arith.constant 0 : index
    %367 = vector.load %arg15[%c1_178, %c0_179, %c0_180] : memref<9x8x16xf32, #tpu.memory_space<vmem>>, vector<1x8x16xf32>
    %368 = vector.shape_cast %367 : vector<1x8x16xf32> to vector<8x16xf32>
    %cst_181 = arith.constant dense<0.000000e+00> : vector<8x98xf32>
    %369 = tpu.matmul %368, %366, %cst_181 {dimension_numbers = #tpu.dot_dimension_numbers<[1], [0], [0], [1], [0, 0, 1, 1], [], []>} : vector<8x16xf32>, vector<16x98xf32>, vector<8x98xf32> -> vector<8x98xf32>
    %370 = arith.addf %347, %369 : vector<8x98xf32>
    %371 = vector.extract_strided_slice %344 {offsets = [0, 7], sizes = [16, 91], strides = [1, 1]} : vector<16x98xf32> to vector<16x91xf32>
    %cst_182 = arith.constant 0.000000e+00 : f32
    %372 = vector.broadcast %cst_182 : f32 to vector<16x7xf32>
    %373 = tpu.concatenate %371, %372 in 1 : vector<16x91xf32>, vector<16x7xf32> -> vector<16x98xf32>
    %c2_183 = arith.constant 2 : index
    %c0_184 = arith.constant 0 : index
    %c0_185 = arith.constant 0 : index
    %374 = vector.load %arg16[%c2_183, %c0_184, %c0_185] : memref<9x1x98xf32, #tpu.memory_space<vmem>>, vector<1x1x98xf32>
    %375 = vector.shape_cast %374 : vector<1x1x98xf32> to vector<1x98xf32>
    %376 = vector.broadcast %375 : vector<1x98xf32> to vector<16x98xf32>
    %377 = arith.mulf %373, %376 : vector<16x98xf32>
    %c2_186 = arith.constant 2 : index
    %c0_187 = arith.constant 0 : index
    %c0_188 = arith.constant 0 : index
    %378 = vector.load %arg15[%c2_186, %c0_187, %c0_188] : memref<9x8x16xf32, #tpu.memory_space<vmem>>, vector<1x8x16xf32>
    %379 = vector.shape_cast %378 : vector<1x8x16xf32> to vector<8x16xf32>
    %cst_189 = arith.constant dense<0.000000e+00> : vector<8x98xf32>
    %380 = tpu.matmul %379, %377, %cst_189 {dimension_numbers = #tpu.dot_dimension_numbers<[1], [0], [0], [1], [0, 0, 1, 1], [], []>} : vector<8x16xf32>, vector<16x98xf32>, vector<8x98xf32> -> vector<8x98xf32>
    %381 = arith.addf %359, %380 : vector<8x98xf32>
    %382 = vector.extract_strided_slice %344 {offsets = [0, 1], sizes = [16, 97], strides = [1, 1]} : vector<16x98xf32> to vector<16x97xf32>
    %cst_190 = arith.constant 0.000000e+00 : f32
    %383 = vector.broadcast %cst_190 : f32 to vector<16x1xf32>
    %384 = tpu.concatenate %382, %383 in 1 : vector<16x97xf32>, vector<16x1xf32> -> vector<16x98xf32>
    %c3_191 = arith.constant 3 : index
    %c0_192 = arith.constant 0 : index
    %c0_193 = arith.constant 0 : index
    %385 = vector.load %arg16[%c3_191, %c0_192, %c0_193] : memref<9x1x98xf32, #tpu.memory_space<vmem>>, vector<1x1x98xf32>
    %386 = vector.shape_cast %385 : vector<1x1x98xf32> to vector<1x98xf32>
    %387 = vector.broadcast %386 : vector<1x98xf32> to vector<16x98xf32>
    %388 = arith.mulf %384, %387 : vector<16x98xf32>
    %c3_194 = arith.constant 3 : index
    %c0_195 = arith.constant 0 : index
    %c0_196 = arith.constant 0 : index
    %389 = vector.load %arg15[%c3_194, %c0_195, %c0_196] : memref<9x8x16xf32, #tpu.memory_space<vmem>>, vector<1x8x16xf32>
    %390 = vector.shape_cast %389 : vector<1x8x16xf32> to vector<8x16xf32>
    %cst_197 = arith.constant dense<0.000000e+00> : vector<8x98xf32>
    %391 = tpu.matmul %390, %388, %cst_197 {dimension_numbers = #tpu.dot_dimension_numbers<[1], [0], [0], [1], [0, 0, 1, 1], [], []>} : vector<8x16xf32>, vector<16x98xf32>, vector<8x98xf32> -> vector<8x98xf32>
    %392 = arith.addf %346, %391 : vector<8x98xf32>
    %c4_198 = arith.constant 4 : index
    %c0_199 = arith.constant 0 : index
    %c0_200 = arith.constant 0 : index
    %393 = vector.load %arg15[%c4_198, %c0_199, %c0_200] : memref<9x8x16xf32, #tpu.memory_space<vmem>>, vector<1x8x16xf32>
    %394 = vector.shape_cast %393 : vector<1x8x16xf32> to vector<8x16xf32>
    %cst_201 = arith.constant dense<0.000000e+00> : vector<8x98xf32>
    %395 = tpu.matmul %394, %344, %cst_201 {dimension_numbers = #tpu.dot_dimension_numbers<[1], [0], [0], [1], [0, 0, 1, 1], [], []>} : vector<8x16xf32>, vector<16x98xf32>, vector<8x98xf32> -> vector<8x98xf32>
    %396 = arith.addf %345, %395 : vector<8x98xf32>
    %c5_202 = arith.constant 5 : index
    %c0_203 = arith.constant 0 : index
    %c0_204 = arith.constant 0 : index
    %397 = vector.load %arg15[%c5_202, %c0_203, %c0_204] : memref<9x8x16xf32, #tpu.memory_space<vmem>>, vector<1x8x16xf32>
    %398 = vector.shape_cast %397 : vector<1x8x16xf32> to vector<8x16xf32>
    %cst_205 = arith.constant dense<0.000000e+00> : vector<8x98xf32>
    %399 = tpu.matmul %398, %344, %cst_205 {dimension_numbers = #tpu.dot_dimension_numbers<[1], [0], [0], [1], [0, 0, 1, 1], [], []>} : vector<8x16xf32>, vector<16x98xf32>, vector<8x98xf32> -> vector<8x98xf32>
    %400 = arith.addf %392, %399 : vector<8x98xf32>
    %401 = vector.extract_strided_slice %344 {offsets = [0, 1], sizes = [16, 97], strides = [1, 1]} : vector<16x98xf32> to vector<16x97xf32>
    %cst_206 = arith.constant 0.000000e+00 : f32
    %402 = vector.broadcast %cst_206 : f32 to vector<16x1xf32>
    %403 = tpu.concatenate %401, %402 in 1 : vector<16x97xf32>, vector<16x1xf32> -> vector<16x98xf32>
    %c6_207 = arith.constant 6 : index
    %c0_208 = arith.constant 0 : index
    %c0_209 = arith.constant 0 : index
    %404 = vector.load %arg16[%c6_207, %c0_208, %c0_209] : memref<9x1x98xf32, #tpu.memory_space<vmem>>, vector<1x1x98xf32>
    %405 = vector.shape_cast %404 : vector<1x1x98xf32> to vector<1x98xf32>
    %406 = vector.broadcast %405 : vector<1x98xf32> to vector<16x98xf32>
    %407 = arith.mulf %403, %406 : vector<16x98xf32>
    %c6_210 = arith.constant 6 : index
    %c0_211 = arith.constant 0 : index
    %c0_212 = arith.constant 0 : index
    %408 = vector.load %arg15[%c6_210, %c0_211, %c0_212] : memref<9x8x16xf32, #tpu.memory_space<vmem>>, vector<1x8x16xf32>
    %409 = vector.shape_cast %408 : vector<1x8x16xf32> to vector<8x16xf32>
    %cst_213 = arith.constant dense<0.000000e+00> : vector<8x98xf32>
    %410 = tpu.matmul %409, %407, %cst_213 {dimension_numbers = #tpu.dot_dimension_numbers<[1], [0], [0], [1], [0, 0, 1, 1], [], []>} : vector<8x16xf32>, vector<16x98xf32>, vector<8x98xf32> -> vector<8x98xf32>
    %411 = arith.addf %381, %410 : vector<8x98xf32>
    %c7_214 = arith.constant 7 : index
    %c0_215 = arith.constant 0 : index
    %c0_216 = arith.constant 0 : index
    %412 = vector.load %arg15[%c7_214, %c0_215, %c0_216] : memref<9x8x16xf32, #tpu.memory_space<vmem>>, vector<1x8x16xf32>
    %413 = vector.shape_cast %412 : vector<1x8x16xf32> to vector<8x16xf32>
    %cst_217 = arith.constant dense<0.000000e+00> : vector<8x98xf32>
    %414 = tpu.matmul %413, %344, %cst_217 {dimension_numbers = #tpu.dot_dimension_numbers<[1], [0], [0], [1], [0, 0, 1, 1], [], []>} : vector<8x16xf32>, vector<16x98xf32>, vector<8x98xf32> -> vector<8x98xf32>
    %415 = arith.addf %370, %414 : vector<8x98xf32>
    %c8_218 = arith.constant 8 : index
    %c0_219 = arith.constant 0 : index
    %c0_220 = arith.constant 0 : index
    %416 = vector.load %arg15[%c8_218, %c0_219, %c0_220] : memref<9x8x16xf32, #tpu.memory_space<vmem>>, vector<1x8x16xf32>
    %417 = vector.shape_cast %416 : vector<1x8x16xf32> to vector<8x16xf32>
    %cst_221 = arith.constant dense<0.000000e+00> : vector<8x98xf32>
    %418 = tpu.matmul %417, %344, %cst_221 {dimension_numbers = #tpu.dot_dimension_numbers<[1], [0], [0], [1], [0, 0, 1, 1], [], []>} : vector<8x16xf32>, vector<16x98xf32>, vector<8x98xf32> -> vector<8x98xf32>
    %419 = arith.addf %411, %418 : vector<8x98xf32>
    %c0_222 = arith.constant 0 : index
    %c0_223 = arith.constant 0 : index
    %c0_224 = arith.constant 0 : index
    %420 = vector.load %arg17[%c0_222, %c0_223, %c0_224] : memref<4x98x392xf32, #tpu.memory_space<vmem>>, vector<1x98x392xf32>
    %421 = vector.shape_cast %420 : vector<1x98x392xf32> to vector<98x392xf32>
    %cst_225 = arith.constant dense<0.000000e+00> : vector<8x392xf32>
    %422 = tpu.matmul %396, %421, %cst_225 {dimension_numbers = #tpu.dot_dimension_numbers<[1], [0], [0], [1], [0, 0, 1, 1], [], []>} : vector<8x98xf32>, vector<98x392xf32>, vector<8x392xf32> -> vector<8x392xf32>
    %c1_226 = arith.constant 1 : index
    %c0_227 = arith.constant 0 : index
    %c0_228 = arith.constant 0 : index
    %423 = vector.load %arg17[%c1_226, %c0_227, %c0_228] : memref<4x98x392xf32, #tpu.memory_space<vmem>>, vector<1x98x392xf32>
    %424 = vector.shape_cast %423 : vector<1x98x392xf32> to vector<98x392xf32>
    %cst_229 = arith.constant dense<0.000000e+00> : vector<8x392xf32>
    %425 = tpu.matmul %400, %424, %cst_229 {dimension_numbers = #tpu.dot_dimension_numbers<[1], [0], [0], [1], [0, 0, 1, 1], [], []>} : vector<8x98xf32>, vector<98x392xf32>, vector<8x392xf32> -> vector<8x392xf32>
    %426 = arith.addf %422, %425 : vector<8x392xf32>
    %c2_230 = arith.constant 2 : index
    %c0_231 = arith.constant 0 : index
    %c0_232 = arith.constant 0 : index
    %427 = vector.load %arg17[%c2_230, %c0_231, %c0_232] : memref<4x98x392xf32, #tpu.memory_space<vmem>>, vector<1x98x392xf32>
    %428 = vector.shape_cast %427 : vector<1x98x392xf32> to vector<98x392xf32>
    %cst_233 = arith.constant dense<0.000000e+00> : vector<8x392xf32>
    %429 = tpu.matmul %415, %428, %cst_233 {dimension_numbers = #tpu.dot_dimension_numbers<[1], [0], [0], [1], [0, 0, 1, 1], [], []>} : vector<8x98xf32>, vector<98x392xf32>, vector<8x392xf32> -> vector<8x392xf32>
    %430 = arith.addf %426, %429 : vector<8x392xf32>
    %c3_234 = arith.constant 3 : index
    %c0_235 = arith.constant 0 : index
    %c0_236 = arith.constant 0 : index
    %431 = vector.load %arg17[%c3_234, %c0_235, %c0_236] : memref<4x98x392xf32, #tpu.memory_space<vmem>>, vector<1x98x392xf32>
    %432 = vector.shape_cast %431 : vector<1x98x392xf32> to vector<98x392xf32>
    %cst_237 = arith.constant dense<0.000000e+00> : vector<8x392xf32>
    %433 = tpu.matmul %419, %432, %cst_237 {dimension_numbers = #tpu.dot_dimension_numbers<[1], [0], [0], [1], [0, 0, 1, 1], [], []>} : vector<8x98xf32>, vector<98x392xf32>, vector<8x392xf32> -> vector<8x392xf32>
    %434 = arith.addf %430, %433 : vector<8x392xf32>
    %c0_238 = arith.constant 0 : index
    %c0_239 = arith.constant 0 : index
    %435 = vector.load %arg18[%c0_238, %c0_239] : memref<8x2xf32, #tpu.memory_space<vmem>>, vector<8x2xf32>
    %436 = vector.extract_strided_slice %435 {offsets = [0, 0], sizes = [8, 1], strides = [1, 1]} : vector<8x2xf32> to vector<8x1xf32>
    %437 = vector.extract_strided_slice %435 {offsets = [0, 1], sizes = [8, 1], strides = [1, 1]} : vector<8x2xf32> to vector<8x1xf32>
    %cst_240 = arith.constant dense<0.000000e+00> : vector<8xf32>
    %438 = vector.multi_reduction <add>, %434, %cst_240 [1] : vector<8x392xf32> to vector<8xf32>
    %439 = vector.shape_cast %438 : vector<8xf32> to vector<8x1xf32>
    %cst_241 = arith.constant 3.920000e+02 : f32
    %440 = vector.broadcast %cst_241 : f32 to vector<8x1xf32>
    %441 = arith.divf %439, %440 : vector<8x1xf32>
    %442 = vector.broadcast %441 : vector<8x1xf32> to vector<8x392xf32>
    %443 = arith.subf %434, %442 : vector<8x392xf32>
    %444 = arith.mulf %443, %443 : vector<8x392xf32>
    %cst_242 = arith.constant dense<0.000000e+00> : vector<8xf32>
    %445 = vector.multi_reduction <add>, %444, %cst_242 [1] : vector<8x392xf32> to vector<8xf32>
    %446 = vector.shape_cast %445 : vector<8xf32> to vector<8x1xf32>
    %cst_243 = arith.constant 3.920000e+02 : f32
    %447 = vector.broadcast %cst_243 : f32 to vector<8x1xf32>
    %448 = arith.divf %446, %447 : vector<8x1xf32>
    %cst_244 = arith.constant 9.99999974E-6 : f32
    %449 = vector.broadcast %cst_244 : f32 to vector<8x1xf32>
    %450 = arith.addf %448, %449 : vector<8x1xf32>
    %451 = math.rsqrt %450 : vector<8x1xf32>
    %452 = arith.mulf %436, %451 : vector<8x1xf32>
    %453 = vector.broadcast %452 : vector<8x1xf32> to vector<8x392xf32>
    %454 = arith.mulf %443, %453 : vector<8x392xf32>
    %455 = vector.broadcast %437 : vector<8x1xf32> to vector<8x392xf32>
    %456 = arith.addf %454, %455 : vector<8x392xf32>
    %cst_245 = arith.constant 0.000000e+00 : f32
    %457 = vector.broadcast %cst_245 : f32 to vector<8x392xf32>
    %458 = arith.maximumf %456, %457 : vector<8x392xf32>
    %cst_246 = arith.constant 0.000000e+00 : f32
    %459 = vector.broadcast %cst_246 : f32 to vector<3x392xf32>
    %cst_247 = arith.constant 0.000000e+00 : f32
    %460 = vector.broadcast %cst_247 : f32 to vector<3x392xf32>
    %cst_248 = arith.constant 0.000000e+00 : f32
    %461 = vector.broadcast %cst_248 : f32 to vector<3x392xf32>
    %cst_249 = arith.constant 0.000000e+00 : f32
    %462 = vector.broadcast %cst_249 : f32 to vector<3x392xf32>
    %463 = vector.extract_strided_slice %458 {offsets = [0, 15], sizes = [8, 377], strides = [1, 1]} : vector<8x392xf32> to vector<8x377xf32>
    %cst_250 = arith.constant 0.000000e+00 : f32
    %464 = vector.broadcast %cst_250 : f32 to vector<8x15xf32>
    %465 = tpu.concatenate %463, %464 in 1 : vector<8x377xf32>, vector<8x15xf32> -> vector<8x392xf32>
    %c0_251 = arith.constant 0 : index
    %c0_252 = arith.constant 0 : index
    %c0_253 = arith.constant 0 : index
    %466 = vector.load %arg20[%c0_251, %c0_252, %c0_253] : memref<9x1x392xf32, #tpu.memory_space<vmem>>, vector<1x1x392xf32>
    %467 = vector.shape_cast %466 : vector<1x1x392xf32> to vector<1x392xf32>
    %468 = vector.broadcast %467 : vector<1x392xf32> to vector<8x392xf32>
    %469 = arith.mulf %465, %468 : vector<8x392xf32>
    %c0_254 = arith.constant 0 : index
    %c0_255 = arith.constant 0 : index
    %c0_256 = arith.constant 0 : index
    %470 = vector.load %arg19[%c0_254, %c0_255, %c0_256] : memref<9x3x8xf32, #tpu.memory_space<vmem>>, vector<1x3x8xf32>
    %471 = vector.shape_cast %470 : vector<1x3x8xf32> to vector<3x8xf32>
    %cst_257 = arith.constant dense<0.000000e+00> : vector<3x392xf32>
    %472 = tpu.matmul %471, %469, %cst_257 {dimension_numbers = #tpu.dot_dimension_numbers<[1], [0], [0], [1], [0, 0, 1, 1], [], []>} : vector<3x8xf32>, vector<8x392xf32>, vector<3x392xf32> -> vector<3x392xf32>
    %473 = arith.addf %462, %472 : vector<3x392xf32>
    %474 = vector.extract_strided_slice %458 {offsets = [0, 14], sizes = [8, 378], strides = [1, 1]} : vector<8x392xf32> to vector<8x378xf32>
    %cst_258 = arith.constant 0.000000e+00 : f32
    %475 = vector.broadcast %cst_258 : f32 to vector<8x14xf32>
    %476 = tpu.concatenate %474, %475 in 1 : vector<8x378xf32>, vector<8x14xf32> -> vector<8x392xf32>
    %c1_259 = arith.constant 1 : index
    %c0_260 = arith.constant 0 : index
    %c0_261 = arith.constant 0 : index
    %477 = vector.load %arg20[%c1_259, %c0_260, %c0_261] : memref<9x1x392xf32, #tpu.memory_space<vmem>>, vector<1x1x392xf32>
    %478 = vector.shape_cast %477 : vector<1x1x392xf32> to vector<1x392xf32>
    %479 = vector.broadcast %478 : vector<1x392xf32> to vector<8x392xf32>
    %480 = arith.mulf %476, %479 : vector<8x392xf32>
    %c1_262 = arith.constant 1 : index
    %c0_263 = arith.constant 0 : index
    %c0_264 = arith.constant 0 : index
    %481 = vector.load %arg19[%c1_262, %c0_263, %c0_264] : memref<9x3x8xf32, #tpu.memory_space<vmem>>, vector<1x3x8xf32>
    %482 = vector.shape_cast %481 : vector<1x3x8xf32> to vector<3x8xf32>
    %cst_265 = arith.constant dense<0.000000e+00> : vector<3x392xf32>
    %483 = tpu.matmul %482, %480, %cst_265 {dimension_numbers = #tpu.dot_dimension_numbers<[1], [0], [0], [1], [0, 0, 1, 1], [], []>} : vector<3x8xf32>, vector<8x392xf32>, vector<3x392xf32> -> vector<3x392xf32>
    %484 = arith.addf %461, %483 : vector<3x392xf32>
    %485 = vector.extract_strided_slice %458 {offsets = [0, 14], sizes = [8, 378], strides = [1, 1]} : vector<8x392xf32> to vector<8x378xf32>
    %cst_266 = arith.constant 0.000000e+00 : f32
    %486 = vector.broadcast %cst_266 : f32 to vector<8x14xf32>
    %487 = tpu.concatenate %485, %486 in 1 : vector<8x378xf32>, vector<8x14xf32> -> vector<8x392xf32>
    %c2_267 = arith.constant 2 : index
    %c0_268 = arith.constant 0 : index
    %c0_269 = arith.constant 0 : index
    %488 = vector.load %arg20[%c2_267, %c0_268, %c0_269] : memref<9x1x392xf32, #tpu.memory_space<vmem>>, vector<1x1x392xf32>
    %489 = vector.shape_cast %488 : vector<1x1x392xf32> to vector<1x392xf32>
    %490 = vector.broadcast %489 : vector<1x392xf32> to vector<8x392xf32>
    %491 = arith.mulf %487, %490 : vector<8x392xf32>
    %c2_270 = arith.constant 2 : index
    %c0_271 = arith.constant 0 : index
    %c0_272 = arith.constant 0 : index
    %492 = vector.load %arg19[%c2_270, %c0_271, %c0_272] : memref<9x3x8xf32, #tpu.memory_space<vmem>>, vector<1x3x8xf32>
    %493 = vector.shape_cast %492 : vector<1x3x8xf32> to vector<3x8xf32>
    %cst_273 = arith.constant dense<0.000000e+00> : vector<3x392xf32>
    %494 = tpu.matmul %493, %491, %cst_273 {dimension_numbers = #tpu.dot_dimension_numbers<[1], [0], [0], [1], [0, 0, 1, 1], [], []>} : vector<3x8xf32>, vector<8x392xf32>, vector<3x392xf32> -> vector<3x392xf32>
    %495 = arith.addf %473, %494 : vector<3x392xf32>
    %496 = vector.extract_strided_slice %458 {offsets = [0, 1], sizes = [8, 391], strides = [1, 1]} : vector<8x392xf32> to vector<8x391xf32>
    %cst_274 = arith.constant 0.000000e+00 : f32
    %497 = vector.broadcast %cst_274 : f32 to vector<8x1xf32>
    %498 = tpu.concatenate %496, %497 in 1 : vector<8x391xf32>, vector<8x1xf32> -> vector<8x392xf32>
    %c3_275 = arith.constant 3 : index
    %c0_276 = arith.constant 0 : index
    %c0_277 = arith.constant 0 : index
    %499 = vector.load %arg20[%c3_275, %c0_276, %c0_277] : memref<9x1x392xf32, #tpu.memory_space<vmem>>, vector<1x1x392xf32>
    %500 = vector.shape_cast %499 : vector<1x1x392xf32> to vector<1x392xf32>
    %501 = vector.broadcast %500 : vector<1x392xf32> to vector<8x392xf32>
    %502 = arith.mulf %498, %501 : vector<8x392xf32>
    %c3_278 = arith.constant 3 : index
    %c0_279 = arith.constant 0 : index
    %c0_280 = arith.constant 0 : index
    %503 = vector.load %arg19[%c3_278, %c0_279, %c0_280] : memref<9x3x8xf32, #tpu.memory_space<vmem>>, vector<1x3x8xf32>
    %504 = vector.shape_cast %503 : vector<1x3x8xf32> to vector<3x8xf32>
    %cst_281 = arith.constant dense<0.000000e+00> : vector<3x392xf32>
    %505 = tpu.matmul %504, %502, %cst_281 {dimension_numbers = #tpu.dot_dimension_numbers<[1], [0], [0], [1], [0, 0, 1, 1], [], []>} : vector<3x8xf32>, vector<8x392xf32>, vector<3x392xf32> -> vector<3x392xf32>
    %506 = arith.addf %460, %505 : vector<3x392xf32>
    %c4_282 = arith.constant 4 : index
    %c0_283 = arith.constant 0 : index
    %c0_284 = arith.constant 0 : index
    %507 = vector.load %arg19[%c4_282, %c0_283, %c0_284] : memref<9x3x8xf32, #tpu.memory_space<vmem>>, vector<1x3x8xf32>
    %508 = vector.shape_cast %507 : vector<1x3x8xf32> to vector<3x8xf32>
    %cst_285 = arith.constant dense<0.000000e+00> : vector<3x392xf32>
    %509 = tpu.matmul %508, %458, %cst_285 {dimension_numbers = #tpu.dot_dimension_numbers<[1], [0], [0], [1], [0, 0, 1, 1], [], []>} : vector<3x8xf32>, vector<8x392xf32>, vector<3x392xf32> -> vector<3x392xf32>
    %510 = arith.addf %459, %509 : vector<3x392xf32>
    %c5_286 = arith.constant 5 : index
    %c0_287 = arith.constant 0 : index
    %c0_288 = arith.constant 0 : index
    %511 = vector.load %arg19[%c5_286, %c0_287, %c0_288] : memref<9x3x8xf32, #tpu.memory_space<vmem>>, vector<1x3x8xf32>
    %512 = vector.shape_cast %511 : vector<1x3x8xf32> to vector<3x8xf32>
    %cst_289 = arith.constant dense<0.000000e+00> : vector<3x392xf32>
    %513 = tpu.matmul %512, %458, %cst_289 {dimension_numbers = #tpu.dot_dimension_numbers<[1], [0], [0], [1], [0, 0, 1, 1], [], []>} : vector<3x8xf32>, vector<8x392xf32>, vector<3x392xf32> -> vector<3x392xf32>
    %514 = arith.addf %506, %513 : vector<3x392xf32>
    %515 = vector.extract_strided_slice %458 {offsets = [0, 1], sizes = [8, 391], strides = [1, 1]} : vector<8x392xf32> to vector<8x391xf32>
    %cst_290 = arith.constant 0.000000e+00 : f32
    %516 = vector.broadcast %cst_290 : f32 to vector<8x1xf32>
    %517 = tpu.concatenate %515, %516 in 1 : vector<8x391xf32>, vector<8x1xf32> -> vector<8x392xf32>
    %c6_291 = arith.constant 6 : index
    %c0_292 = arith.constant 0 : index
    %c0_293 = arith.constant 0 : index
    %518 = vector.load %arg20[%c6_291, %c0_292, %c0_293] : memref<9x1x392xf32, #tpu.memory_space<vmem>>, vector<1x1x392xf32>
    %519 = vector.shape_cast %518 : vector<1x1x392xf32> to vector<1x392xf32>
    %520 = vector.broadcast %519 : vector<1x392xf32> to vector<8x392xf32>
    %521 = arith.mulf %517, %520 : vector<8x392xf32>
    %c6_294 = arith.constant 6 : index
    %c0_295 = arith.constant 0 : index
    %c0_296 = arith.constant 0 : index
    %522 = vector.load %arg19[%c6_294, %c0_295, %c0_296] : memref<9x3x8xf32, #tpu.memory_space<vmem>>, vector<1x3x8xf32>
    %523 = vector.shape_cast %522 : vector<1x3x8xf32> to vector<3x8xf32>
    %cst_297 = arith.constant dense<0.000000e+00> : vector<3x392xf32>
    %524 = tpu.matmul %523, %521, %cst_297 {dimension_numbers = #tpu.dot_dimension_numbers<[1], [0], [0], [1], [0, 0, 1, 1], [], []>} : vector<3x8xf32>, vector<8x392xf32>, vector<3x392xf32> -> vector<3x392xf32>
    %525 = arith.addf %495, %524 : vector<3x392xf32>
    %c7_298 = arith.constant 7 : index
    %c0_299 = arith.constant 0 : index
    %c0_300 = arith.constant 0 : index
    %526 = vector.load %arg19[%c7_298, %c0_299, %c0_300] : memref<9x3x8xf32, #tpu.memory_space<vmem>>, vector<1x3x8xf32>
    %527 = vector.shape_cast %526 : vector<1x3x8xf32> to vector<3x8xf32>
    %cst_301 = arith.constant dense<0.000000e+00> : vector<3x392xf32>
    %528 = tpu.matmul %527, %458, %cst_301 {dimension_numbers = #tpu.dot_dimension_numbers<[1], [0], [0], [1], [0, 0, 1, 1], [], []>} : vector<3x8xf32>, vector<8x392xf32>, vector<3x392xf32> -> vector<3x392xf32>
    %529 = arith.addf %484, %528 : vector<3x392xf32>
    %c8_302 = arith.constant 8 : index
    %c0_303 = arith.constant 0 : index
    %c0_304 = arith.constant 0 : index
    %530 = vector.load %arg19[%c8_302, %c0_303, %c0_304] : memref<9x3x8xf32, #tpu.memory_space<vmem>>, vector<1x3x8xf32>
    %531 = vector.shape_cast %530 : vector<1x3x8xf32> to vector<3x8xf32>
    %cst_305 = arith.constant dense<0.000000e+00> : vector<3x392xf32>
    %532 = tpu.matmul %531, %458, %cst_305 {dimension_numbers = #tpu.dot_dimension_numbers<[1], [0], [0], [1], [0, 0, 1, 1], [], []>} : vector<3x8xf32>, vector<8x392xf32>, vector<3x392xf32> -> vector<3x392xf32>
    %533 = arith.addf %525, %532 : vector<3x392xf32>
    %c0_306 = arith.constant 0 : index
    %c0_307 = arith.constant 0 : index
    %534 = vector.load %arg21[%c0_306, %c0_307] : memref<3x1xf32, #tpu.memory_space<vmem>>, vector<3x1xf32>
    %535 = vector.broadcast %534 : vector<3x1xf32> to vector<3x392xf32>
    %536 = arith.addf %510, %535 : vector<3x392xf32>
    %537 = arith.negf %536 : vector<3x392xf32>
    %538 = math.exp %537 : vector<3x392xf32>
    %cst_308 = arith.constant 1.000000e+00 : f32
    %539 = vector.broadcast %cst_308 : f32 to vector<3x392xf32>
    %540 = arith.addf %539, %538 : vector<3x392xf32>
    %541 = arith.divf %539, %540 : vector<3x392xf32>
    %c0_309 = arith.constant 0 : index
    %c0_310 = arith.constant 0 : index
    %c0_311 = arith.constant 0 : index
    %542 = vector.load %arg22[%c0_309, %c0_310, %c0_311] : memref<4x3x392xf32, #tpu.memory_space<vmem>>, vector<1x3x392xf32>
    %543 = vector.shape_cast %542 : vector<1x3x392xf32> to vector<3x392xf32>
    %544 = vector.shape_cast %541 : vector<3x392xf32> to vector<1x3x392xf32>
    tpu.vector_store %arg22[%c0_309, %c0_310, %c0_311], %544 {strides = array<i32>} : memref<4x3x392xf32, #tpu.memory_space<vmem>>, vector<1x3x392xf32>,
    %545 = vector.broadcast %534 : vector<3x1xf32> to vector<3x392xf32>
    %546 = arith.addf %514, %545 : vector<3x392xf32>
    %547 = arith.negf %546 : vector<3x392xf32>
    %548 = math.exp %547 : vector<3x392xf32>
    %cst_312 = arith.constant 1.000000e+00 : f32
    %549 = vector.broadcast %cst_312 : f32 to vector<3x392xf32>
    %550 = arith.addf %549, %548 : vector<3x392xf32>
    %551 = arith.divf %549, %550 : vector<3x392xf32>
    %c1_313 = arith.constant 1 : index
    %c0_314 = arith.constant 0 : index
    %c0_315 = arith.constant 0 : index
    %552 = vector.load %arg22[%c1_313, %c0_314, %c0_315] : memref<4x3x392xf32, #tpu.memory_space<vmem>>, vector<1x3x392xf32>
    %553 = vector.shape_cast %552 : vector<1x3x392xf32> to vector<3x392xf32>
    %554 = vector.shape_cast %551 : vector<3x392xf32> to vector<1x3x392xf32>
    tpu.vector_store %arg22[%c1_313, %c0_314, %c0_315], %554 {strides = array<i32>} : memref<4x3x392xf32, #tpu.memory_space<vmem>>, vector<1x3x392xf32>,
    %555 = vector.broadcast %534 : vector<3x1xf32> to vector<3x392xf32>
    %556 = arith.addf %529, %555 : vector<3x392xf32>
    %557 = arith.negf %556 : vector<3x392xf32>
    %558 = math.exp %557 : vector<3x392xf32>
    %cst_316 = arith.constant 1.000000e+00 : f32
    %559 = vector.broadcast %cst_316 : f32 to vector<3x392xf32>
    %560 = arith.addf %559, %558 : vector<3x392xf32>
    %561 = arith.divf %559, %560 : vector<3x392xf32>
    %c2_317 = arith.constant 2 : index
    %c0_318 = arith.constant 0 : index
    %c0_319 = arith.constant 0 : index
    %562 = vector.load %arg22[%c2_317, %c0_318, %c0_319] : memref<4x3x392xf32, #tpu.memory_space<vmem>>, vector<1x3x392xf32>
    %563 = vector.shape_cast %562 : vector<1x3x392xf32> to vector<3x392xf32>
    %564 = vector.shape_cast %561 : vector<3x392xf32> to vector<1x3x392xf32>
    tpu.vector_store %arg22[%c2_317, %c0_318, %c0_319], %564 {strides = array<i32>} : memref<4x3x392xf32, #tpu.memory_space<vmem>>, vector<1x3x392xf32>,
    %565 = vector.broadcast %534 : vector<3x1xf32> to vector<3x392xf32>
    %566 = arith.addf %533, %565 : vector<3x392xf32>
    %567 = arith.negf %566 : vector<3x392xf32>
    %568 = math.exp %567 : vector<3x392xf32>
    %cst_320 = arith.constant 1.000000e+00 : f32
    %569 = vector.broadcast %cst_320 : f32 to vector<3x392xf32>
    %570 = arith.addf %569, %568 : vector<3x392xf32>
    %571 = arith.divf %569, %570 : vector<3x392xf32>
    %c3_321 = arith.constant 3 : index
    %c0_322 = arith.constant 0 : index
    %c0_323 = arith.constant 0 : index
    %572 = vector.load %arg22[%c3_321, %c0_322, %c0_323] : memref<4x3x392xf32, #tpu.memory_space<vmem>>, vector<1x3x392xf32>
    %573 = vector.shape_cast %572 : vector<1x3x392xf32> to vector<3x392xf32>
    %574 = vector.shape_cast %571 : vector<3x392xf32> to vector<1x3x392xf32>
    tpu.vector_store %arg22[%c3_321, %c0_322, %c0_323], %574 {strides = array<i32>} : memref<4x3x392xf32, #tpu.memory_space<vmem>>, vector<1x3x392xf32>,
    return
  }
  func.func @transform_0(%arg0: i32) -> (i32, i32) {
    %c0_i32 = arith.constant 0 : i32
    %c0_i32_0 = arith.constant 0 : i32
    %c0_i32_1 = arith.constant 0 : i32
    return %c0_i32, %c0_i32_0 : i32, i32
  }
  func.func @transform_1(%arg0: i32) -> (i32, i32) {
    %c0_i32 = arith.constant 0 : i32
    %c0_i32_0 = arith.constant 0 : i32
    %c0_i32_1 = arith.constant 0 : i32
    return %c0_i32, %c0_i32_0 : i32, i32
  }
  func.func @transform_2(%arg0: i32) -> (i32, i32) {
    %c0_i32 = arith.constant 0 : i32
    %c0_i32_0 = arith.constant 0 : i32
    %c0_i32_1 = arith.constant 0 : i32
    return %c0_i32, %c0_i32_0 : i32, i32
  }
  func.func @transform_3(%arg0: i32) -> (i32, i32, i32) {
    %c0_i32 = arith.constant 0 : i32
    %c0_i32_0 = arith.constant 0 : i32
    %c0_i32_1 = arith.constant 0 : i32
    %c0_i32_2 = arith.constant 0 : i32
    return %c0_i32, %c0_i32_0, %c0_i32_1 : i32, i32, i32
  }
  func.func @transform_4(%arg0: i32) -> (i32, i32, i32) {
    %c0_i32 = arith.constant 0 : i32
    %c0_i32_0 = arith.constant 0 : i32
    %c0_i32_1 = arith.constant 0 : i32
    %c0_i32_2 = arith.constant 0 : i32
    return %c0_i32, %c0_i32_0, %c0_i32_1 : i32, i32, i32
  }
  func.func @transform_5(%arg0: i32) -> (i32, i32) {
    %c0_i32 = arith.constant 0 : i32
    %c0_i32_0 = arith.constant 0 : i32
    %c0_i32_1 = arith.constant 0 : i32
    return %c0_i32, %c0_i32_0 : i32, i32
  }
  func.func @transform_6(%arg0: i32) -> (i32, i32) {
    %c0_i32 = arith.constant 0 : i32
    %c0_i32_0 = arith.constant 0 : i32
    %c0_i32_1 = arith.constant 0 : i32
    return %c0_i32, %c0_i32_0 : i32, i32
  }
  func.func @transform_7(%arg0: i32) -> (i32, i32) {
    %c0_i32 = arith.constant 0 : i32
    %c0_i32_0 = arith.constant 0 : i32
    %c0_i32_1 = arith.constant 0 : i32
    return %c0_i32, %c0_i32_0 : i32, i32
  }
  func.func @transform_8(%arg0: i32) -> (i32, i32) {
    %c0_i32 = arith.constant 0 : i32
    %c0_i32_0 = arith.constant 0 : i32
    %c0_i32_1 = arith.constant 0 : i32
    return %c0_i32, %c0_i32_0 : i32, i32
  }
  func.func @transform_9(%arg0: i32) -> (i32, i32) {
    %c0_i32 = arith.constant 0 : i32
    %c0_i32_0 = arith.constant 0 : i32
    %c0_i32_1 = arith.constant 0 : i32
    return %c0_i32, %c0_i32_0 : i32, i32
  }
  func.func @transform_10(%arg0: i32) -> (i32, i32) {
    %c0_i32 = arith.constant 0 : i32
    %c0_i32_0 = arith.constant 0 : i32
    %c0_i32_1 = arith.constant 0 : i32
    return %c0_i32, %c0_i32_0 : i32, i32
  }
  func.func @transform_11(%arg0: i32) -> (i32, i32) {
    %c0_i32 = arith.constant 0 : i32
    %c0_i32_0 = arith.constant 0 : i32
    %c0_i32_1 = arith.constant 0 : i32
    return %c0_i32, %c0_i32_0 : i32, i32
  }
  func.func @transform_12(%arg0: i32) -> (i32, i32, i32) {
    %c0_i32 = arith.constant 0 : i32
    %c0_i32_0 = arith.constant 0 : i32
    %c0_i32_1 = arith.constant 0 : i32
    %c0_i32_2 = arith.constant 0 : i32
    return %c0_i32, %c0_i32_0, %c0_i32_1 : i32, i32, i32
  }
  func.func @transform_13(%arg0: i32) -> (i32, i32) {
    %c0_i32 = arith.constant 0 : i32
    %c0_i32_0 = arith.constant 0 : i32
    %c0_i32_1 = arith.constant 0 : i32
    return %c0_i32, %c0_i32_0 : i32, i32
  }
  func.func @transform_14(%arg0: i32) -> (i32, i32, i32) {
    %c0_i32 = arith.constant 0 : i32
    %c0_i32_0 = arith.constant 0 : i32
    %c0_i32_1 = arith.constant 0 : i32
    %c0_i32_2 = arith.constant 0 : i32
    return %c0_i32, %c0_i32_0, %c0_i32_1 : i32, i32, i32
  }
  func.func @transform_15(%arg0: i32) -> (i32, i32, i32) {
    %c0_i32 = arith.constant 0 : i32
    %c0_i32_0 = arith.constant 0 : i32
    %c0_i32_1 = arith.constant 0 : i32
    %c0_i32_2 = arith.constant 0 : i32
    return %c0_i32, %c0_i32_0, %c0_i32_1 : i32, i32, i32
  }
  func.func @transform_16(%arg0: i32) -> (i32, i32, i32) {
    %c0_i32 = arith.constant 0 : i32
    %c0_i32_0 = arith.constant 0 : i32
    %c0_i32_1 = arith.constant 0 : i32
    %c0_i32_2 = arith.constant 0 : i32
    return %c0_i32, %c0_i32_0, %c0_i32_1 : i32, i32, i32
  }
  func.func @transform_17(%arg0: i32) -> (i32, i32) {
    %c0_i32 = arith.constant 0 : i32
    %c0_i32_0 = arith.constant 0 : i32
    %c0_i32_1 = arith.constant 0 : i32
    return %c0_i32, %c0_i32_0 : i32, i32
  }
  func.func @transform_18(%arg0: i32) -> (i32, i32, i32) {
    %c0_i32 = arith.constant 0 : i32
    %c0_i32_0 = arith.constant 0 : i32
    %c0_i32_1 = arith.constant 0 : i32
    %c0_i32_2 = arith.constant 0 : i32
    return %c0_i32, %c0_i32_0, %c0_i32_1 : i32, i32, i32
  }
  func.func @transform_19(%arg0: i32) -> (i32, i32, i32) {
    %c0_i32 = arith.constant 0 : i32
    %c0_i32_0 = arith.constant 0 : i32
    %c0_i32_1 = arith.constant 0 : i32
    %c0_i32_2 = arith.constant 0 : i32
    return %c0_i32, %c0_i32_0, %c0_i32_1 : i32, i32, i32
  }
  func.func @transform_20(%arg0: i32) -> (i32, i32) {
    %c0_i32 = arith.constant 0 : i32
    %c0_i32_0 = arith.constant 0 : i32
    %c0_i32_1 = arith.constant 0 : i32
    return %c0_i32, %c0_i32_0 : i32, i32
  }
  func.func @transform_21(%arg0: i32) -> (i32, i32, i32) {
    %c0_i32 = arith.constant 0 : i32
    %c0_i32_0 = arith.constant 0 : i32
    %c0_i32_1 = arith.constant 0 : i32
    %c0_i32_2 = arith.constant 0 : i32
    return %c0_i32, %c0_i32_0, %c0_i32_1 : i32, i32, i32
  }
}

</mosaic_0001>

<llo_original>
// kernel: tile.7
$region0: #{tile.7}
  %s0 = inlined_call_operand.vmem [shape: f32[32,16,2,49], index: 0, kind: input, shape index: {}]
  %s1 = inlined_call_operand.vmem [shape: f32[32,16,98], index: 1, kind: output, shape index: {}]
  $region1: #{tile.7} parent=0
    #allocation0 [shape = 'u8[2097152]{0}', space=vmem, size = 0x200000, scoped, tag = 'scoped mem for input reshape']
    %s3 = sshll.u32 1, 2
    %s4 = ssub.s32 %s3, 1
    %s5 = smul.addr 2, 511
    %s6 = scalar_lea.vmem %s0, %s5
    %v7 = vld [vmem:[%s6] sm:%s4]
    %s8 = scalar_lea.vmem [#allocation0], 4088
    %9 = vst [vmem:[%s8] sm:%s4] %v7
    %s10 = smul.addr 2, 510
    %s11 = scalar_lea.vmem %s0, %s10
    %v12 = vld [vmem:[%s11] sm:%s4]
    %s13 = scalar_lea.vmem [#allocation0], 4080
    %14 = vst [vmem:[%s13] sm:%s4] %v12
    %s15 = smul.addr 2, 509
    %s16 = scalar_lea.vmem %s0, %s15
    %v17 = vld [vmem:[%s16] sm:%s4]
    %s18 = scalar_lea.vmem [#allocation0], 4072
    %19 = vst [vmem:[%s18] sm:%s4] %v17
    %s20 = smul.addr 2, 508
    %s21 = scalar_lea.vmem %s0, %s20
    %v22 = vld [vmem:[%s21] sm:%s4]
    %s23 = scalar_lea.vmem [#allocation0], 4064
    %24 = vst [vmem:[%s23] sm:%s4] %v22
    %s25 = smul.addr 2, 507
    %s26 = scalar_lea.vmem %s0, %s25
    %v27 = vld [vmem:[%s26] sm:%s4]
    %s28 = scalar_lea.vmem [#allocation0], 4056
    %29 = vst [vmem:[%s28] sm:%s4] %v27
    %s30 = smul.addr 2, 506
    %s31 = scalar_lea.vmem %s0, %s30
    %v32 = vld [vmem:[%s31] sm:%s4]
    %s33 = scalar_lea.vmem [#allocation0], 4048
    %34 = vst [vmem:[%s33] sm:%s4] %v32
    %s35 = smul.addr 2, 505
    %s36 = scalar_lea.vmem %s0, %s35
    %v37 = vld [vmem:[%s36] sm:%s4]
    %s38 = scalar_lea.vmem [#allocation0], 4040
    %39 = vst [vmem:[%s38] sm:%s4] %v37
    %s40 = smul.addr 2, 504
    %s41 = scalar_lea.vmem %s0, %s40
    %v42 = vld [vmem:[%s41] sm:%s4]
    %s43 = scalar_lea.vmem [#allocation0], 4032
    %44 = vst [vmem:[%s43] sm:%s4] %v42
    %s45 = smul.addr 2, 503
    %s46 = scalar_lea.vmem %s0, %s45
    %v47 = vld [vmem:[%s46] sm:%s4]
    %s48 = scalar_lea.vmem [#allocation0], 4024
    %49 = vst [vmem:[%s48] sm:%s4] %v47
    %s50 = smul.addr 2, 502
    %s51 = scalar_lea.vmem %s0, %s50
    %v52 = vld [vmem:[%s51] sm:%s4]
    %s53 = scalar_lea.vmem [#allocation0], 4016
    %54 = vst [vmem:[%s53] sm:%s4] %v52
    %s55 = smul.addr 2, 501
    %s56 = scalar_lea.vmem %s0, %s55
    %v57 = vld [vmem:[%s56] sm:%s4]
    %s58 = scalar_lea.vmem [#allocation0], 4008
    %59 = vst [vmem:[%s58] sm:%s4] %v57
    %s60 = smul.addr 2, 500
    %s61 = scalar_lea.vmem %s0, %s60
    %v62 = vld [vmem:[%s61] sm:%s4]
    %s63 = scalar_lea.vmem [#allocation0], 4000
    %64 = vst [vmem:[%s63] sm:%s4] %v62
    %s65 = smul.addr 2, 499
    %s66 = scalar_lea.vmem %s0, %s65
    %v67 = vld [vmem:[%s66] sm:%s4]
    %s68 = scalar_lea.vmem [#allocation0], 3992
    %69 = vst [vmem:[%s68] sm:%s4] %v67
    %s70 = smul.addr 2, 498
    %s71 = scalar_lea.vmem %s0, %s70
    %v72 = vld [vmem:[%s71] sm:%s4]
    %s73 = scalar_lea.vmem [#allocation0], 3984
    %74 = vst [vmem:[%s73] sm:%s4] %v72
    %s75 = smul.addr 2, 497
    %s76 = scalar_lea.vmem %s0, %s75
    %v77 = vld [vmem:[%s76] sm:%s4]
    %s78 = scalar_lea.vmem [#allocation0], 3976
    %79 = vst [vmem:[%s78] sm:%s4] %v77
    %s80 = smul.addr 2, 496
    %s81 = scalar_lea.vmem %s0, %s80
    %v82 = vld [vmem:[%s81] sm:%s4]
    %s83 = scalar_lea.vmem [#allocation0], 3968
    %84 = vst [vmem:[%s83] sm:%s4] %v82
    %s85 = smul.addr 2, 495
    %s86 = scalar_lea.vmem %s0, %s85
    %v87 = vld [vmem:[%s86] sm:%s4]
    %s88 = scalar_lea.vmem [#allocation0], 3960
    %89 = vst [vmem:[%s88] sm:%s4] %v87
    %s90 = smul.addr 2, 494
    %s91 = scalar_lea.vmem %s0, %s90
    %v92 = vld [vmem:[%s91] sm:%s4]
    %s93 = scalar_lea.vmem [#allocation0], 3952
    %94 = vst [vmem:[%s93] sm:%s4] %v92
    %s95 = smul.addr 2, 493
    %s96 = scalar_lea.vmem %s0, %s95
    %v97 = vld [vmem:[%s96] sm:%s4]
    %s98 = scalar_lea.vmem [#allocation0], 3944
    %99 = vst [vmem:[%s98] sm:%s4] %v97
    %s100 = smul.addr 2, 492
    %s101 = scalar_lea.vmem %s0, %s100
    %v102 = vld [vmem:[%s101] sm:%s4]
    %s103 = scalar_lea.vmem [#allocation0], 3936
    %104 = vst [vmem:[%s103] sm:%s4] %v102
    %s105 = smul.addr 2, 491
    %s106 = scalar_lea.vmem %s0, %s105
    %v107 = vld [vmem:[%s106] sm:%s4]
    %s108 = scalar_lea.vmem [#allocation0], 3928
    %109 = vst [vmem:[%s108] sm:%s4] %v107
    %s110 = smul.addr 2, 490
    %s111 = scalar_lea.vmem %s0, %s110
    %v112 = vld [vmem:[%s111] sm:%s4]
    %s113 = scalar_lea.vmem [#allocation0], 3920
    %114 = vst [vmem:[%s113] sm:%s4] %v112
    %s115 = smul.addr 2, 489
    %s116 = scalar_lea.vmem %s0, %s115
    %v117 = vld [vmem:[%s116] sm:%s4]
    %s118 = scalar_lea.vmem [#allocation0], 3912
    %119 = vst [vmem:[%s118] sm:%s4] %v117
    %s120 = smul.addr 2, 488
    %s121 = scalar_lea.vmem %s0, %s120
    %v122 = vld [vmem:[%s121] sm:%s4]
    %s123 = scalar_lea.vmem [#allocation0], 3904
    %124 = vst [vmem:[%s123] sm:%s4] %v122
    %s125 = smul.addr 2, 487
    %s126 = scalar_lea.vmem %s0, %s125
    %v127 = vld [vmem:[%s126] sm:%s4]
    %s128 = scalar_lea.vmem [#allocation0], 3896
    %129 = vst [vmem:[%s128] sm:%s4] %v127
    %s130 = smul.addr 2, 486
    %s131 = scalar_lea.vmem %s0, %s130
    %v132 = vld [vmem:[%s131] sm:%s4]
    %s133 = scalar_lea.vmem [#allocation0], 3888
    %134 = vst [vmem:[%s133] sm:%s4] %v132
    %s135 = smul.addr 2, 485
    %s136 = scalar_lea.vmem %s0, %s135
    %v137 = vld [vmem:[%s136] sm:%s4]
    %s138 = scalar_lea.vmem [#allocation0], 3880
    %139 = vst [vmem:[%s138] sm:%s4] %v137
    %s140 = smul.addr 2, 484
    %s141 = scalar_lea.vmem %s0, %s140
    %v142 = vld [vmem:[%s141] sm:%s4]
    %s143 = scalar_lea.vmem [#allocation0], 3872
    %144 = vst [vmem:[%s143] sm:%s4] %v142
    %s145 = smul.addr 2, 483
    %s146 = scalar_lea.vmem %s0, %s145
    %v147 = vld [vmem:[%s146] sm:%s4]
    %s148 = scalar_lea.vmem [#allocation0], 3864
    %149 = vst [vmem:[%s148] sm:%s4] %v147
    %s150 = smul.addr 2, 482
    %s151 = scalar_lea.vmem %s0, %s150
    %v152 = vld [vmem:[%s151] sm:%s4]
    %s153 = scalar_lea.vmem [#allocation0], 3856
    %154 = vst [vmem:[%s153] sm:%s4] %v152
    %s155 = smul.addr 2, 481
    %s156 = scalar_lea.vmem %s0, %s155
    %v157 = vld [vmem:[%s156] sm:%s4]
    %s158 = scalar_lea.vmem [#allocation0], 3848
    %159 = vst [vmem:[%s158] sm:%s4] %v157
    %s160 = smul.addr 2, 480
    %s161 = scalar_lea.vmem %s0, %s160
    %v162 = vld [vmem:[%s161] sm:%s4]
    %s163 = scalar_lea.vmem [#allocation0], 3840
    %164 = vst [vmem:[%s163] sm:%s4] %v162
    %s165 = smul.addr 2, 479
    %s166 = scalar_lea.vmem %s0, %s165
    %v167 = vld [vmem:[%s166] sm:%s4]
    %s168 = scalar_lea.vmem [#allocation0], 3832
    %169 = vst [vmem:[%s168] sm:%s4] %v167
    %s170 = smul.addr 2, 478
    %s171 = scalar_lea.vmem %s0, %s170
    %v172 = vld [vmem:[%s171] sm:%s4]
    %s173 = scalar_lea.vmem [#allocation0], 3824
    %174 = vst [vmem:[%s173] sm:%s4] %v172
    %s175 = smul.addr 2, 477
    %s176 = scalar_lea.vmem %s0, %s175
    %v177 = vld [vmem:[%s176] sm:%s4]
    %s178 = scalar_lea.vmem [#allocation0], 3816
    %179 = vst [vmem:[%s178] sm:%s4] %v177
    %s180 = smul.addr 2, 476
    %s181 = scalar_lea.vmem %s0, %s180
    %v182 = vld [vmem:[%s181] sm:%s4]
    %s183 = scalar_lea.vmem [#allocation0], 3808
    %184 = vst [vmem:[%s183] sm:%s4] %v182
    %s185 = smul.addr 2, 475
    %s186 = scalar_lea.vmem %s0, %s185
    %v187 = vld [vmem:[%s186] sm:%s4]
    %s188 = scalar_lea.vmem [#allocation0], 3800
    %189 = vst [vmem:[%s188] sm:%s4] %v187
    %s190 = smul.addr 2, 474
    %s191 = scalar_lea.vmem %s0, %s190
    %v192 = vld [vmem:[%s191] sm:%s4]
    %s193 = scalar_lea.vmem [#allocation0], 3792
    %194 = vst [vmem:[%s193] sm:%s4] %v192
    %s195 = smul.addr 2, 473
    %s196 = scalar_lea.vmem %s0, %s195
    %v197 = vld [vmem:[%s196] sm:%s4]
    %s198 = scalar_lea.vmem [#allocation0], 3784
    %199 = vst [vmem:[%s198] sm:%s4] %v197
    %s200 = smul.addr 2, 472
    %s201 = scalar_lea.vmem %s0, %s200
    %v202 = vld [vmem:[%s201] sm:%s4]
    %s203 = scalar_lea.vmem [#allocation0], 3776
    %204 = vst [vmem:[%s203] sm:%s4] %v202
    %s205 = smul.addr 2, 471
    %s206 = scalar_lea.vmem %s0, %s205
    %v207 = vld [vmem:[%s206] sm:%s4]
    %s208 = scalar_lea.vmem [#allocation0], 3768
    %209 = vst [vmem:[%s208] sm:%s4] %v207
    %s210 = smul.addr 2, 470
    %s211 = scalar_lea.vmem %s0, %s210
    %v212 = vld [vmem:[%s211] sm:%s4]
    %s213 = scalar_lea.vmem [#allocation0], 3760
    %214 = vst [vmem:[%s213] sm:%s4] %v212
    %s215 = smul.addr 2, 469
    %s216 = scalar_lea.vmem %s0, %s215
    %v217 = vld [vmem:[%s216] sm:%s4]
    %s218 = scalar_lea.vmem [#allocation0], 3752
    %219 = vst [vmem:[%s218] sm:%s4] %v217
    %s220 = smul.addr 2, 468
    %s221 = scalar_lea.vmem %s0, %s220
    %v222 = vld [vmem:[%s221] sm:%s4]
    %s223 = scalar_lea.vmem [#allocation0], 3744
    %224 = vst [vmem:[%s223] sm:%s4] %v222
    %s225 = smul.addr 2, 467
    %s226 = scalar_lea.vmem %s0, %s225
    %v227 = vld [vmem:[%s226] sm:%s4]
    %s228 = scalar_lea.vmem [#allocation0], 3736
    %229 = vst [vmem:[%s228] sm:%s4] %v227
    %s230 = smul.addr 2, 466
    %s231 = scalar_lea.vmem %s0, %s230
    %v232 = vld [vmem:[%s231] sm:%s4]
    %s233 = scalar_lea.vmem [#allocation0], 3728
    %234 = vst [vmem:[%s233] sm:%s4] %v232
    %s235 = smul.addr 2, 465
    %s236 = scalar_lea.vmem %s0, %s235
    %v237 = vld [vmem:[%s236] sm:%s4]
    %s238 = scalar_lea.vmem [#allocation0], 3720
    %239 = vst [vmem:[%s238] sm:%s4] %v237
    %s240 = smul.addr 2, 464
    %s241 = scalar_lea.vmem %s0, %s240
    %v242 = vld [vmem:[%s241] sm:%s4]
    %s243 = scalar_lea.vmem [#allocation0], 3712
    %244 = vst [vmem:[%s243] sm:%s4] %v242
    %s245 = smul.addr 2, 463
    %s246 = scalar_lea.vmem %s0, %s245
    %v247 = vld [vmem:[%s246] sm:%s4]
    %s248 = scalar_lea.vmem [#allocation0], 3704
    %249 = vst [vmem:[%s248] sm:%s4] %v247
    %s250 = smul.addr 2, 462
    %s251 = scalar_lea.vmem %s0, %s250
    %v252 = vld [vmem:[%s251] sm:%s4]
    %s253 = scalar_lea.vmem [#allocation0], 3696
    %254 = vst [vmem:[%s253] sm:%s4] %v252
    %s255 = smul.addr 2, 461
    %s256 = scalar_lea.vmem %s0, %s255
    %v257 = vld [vmem:[%s256] sm:%s4]
    %s258 = scalar_lea.vmem [#allocation0], 3688
    %259 = vst [vmem:[%s258] sm:%s4] %v257
    %s260 = smul.addr 2, 460
    %s261 = scalar_lea.vmem %s0, %s260
    %v262 = vld [vmem:[%s261] sm:%s4]
    %s263 = scalar_lea.vmem [#allocation0], 3680
    %264 = vst [vmem:[%s263] sm:%s4] %v262
    %s265 = smul.addr 2, 459
    %s266 = scalar_lea.vmem %s0, %s265
    %v267 = vld [vmem:[%s266] sm:%s4]
    %s268 = scalar_lea.vmem [#allocation0], 3672
    %269 = vst [vmem:[%s268] sm:%s4] %v267
    %s270 = smul.addr 2, 458
    %s271 = scalar_lea.vmem %s0, %s270
    %v272 = vld [vmem:[%s271] sm:%s4]
    %s273 = scalar_lea.vmem [#allocation0], 3664
    %274 = vst [vmem:[%s273] sm:%s4] %v272
    %s275 = smul.addr 2, 457
    %s276 = scalar_lea.vmem %s0, %s275
    %v277 = vld [vmem:[%s276] sm:%s4]
    %s278 = scalar_lea.vmem [#allocation0], 3656
    %279 = vst [vmem:[%s278] sm:%s4] %v277
    %s280 = smul.addr 2, 456
    %s281 = scalar_lea.vmem %s0, %s280
    %v282 = vld [vmem:[%s281] sm:%s4]
    %s283 = scalar_lea.vmem [#allocation0], 3648
    %284 = vst [vmem:[%s283] sm:%s4] %v282
    %s285 = smul.addr 2, 455
    %s286 = scalar_lea.vmem %s0, %s285
    %v287 = vld [vmem:[%s286] sm:%s4]
    %s288 = scalar_lea.vmem [#allocation0], 3640
    %289 = vst [vmem:[%s288] sm:%s4] %v287
    %s290 = smul.addr 2, 454
    %s291 = scalar_lea.vmem %s0, %s290
    %v292 = vld [vmem:[%s291] sm:%s4]
    %s293 = scalar_lea.vmem [#allocation0], 3632
    %294 = vst [vmem:[%s293] sm:%s4] %v292
    %s295 = smul.addr 2, 453
    %s296 = scalar_lea.vmem %s0, %s295
    %v297 = vld [vmem:[%s296] sm:%s4]
    %s298 = scalar_lea.vmem [#allocation0], 3624
    %299 = vst [vmem:[%s298] sm:%s4] %v297
    %s300 = smul.addr 2, 452
    %s301 = scalar_lea.vmem %s0, %s300
    %v302 = vld [vmem:[%s301] sm:%s4]
    %s303 = scalar_lea.vmem [#allocation0], 3616
    %304 = vst [vmem:[%s303] sm:%s4] %v302
    %s305 = smul.addr 2, 451
    %s306 = scalar_lea.vmem %s0, %s305
    %v307 = vld [vmem:[%s306] sm:%s4]
    %s308 = scalar_lea.vmem [#allocation0], 3608
    %309 = vst [vmem:[%s308] sm:%s4] %v307
    %s310 = smul.addr 2, 450
    %s311 = scalar_lea.vmem %s0, %s310
    %v312 = vld [vmem:[%s311] sm:%s4]
    %s313 = scalar_lea.vmem [#allocation0], 3600
    %314 = vst [vmem:[%s313] sm:%s4] %v312
    %s315 = smul.addr 2, 449
    %s316 = scalar_lea.vmem %s0, %s315
    %v317 = vld [vmem:[%s316] sm:%s4]
    %s318 = scalar_lea.vmem [#allocation0], 3592
    %319 = vst [vmem:[%s318] sm:%s4] %v317
    %s320 = smul.addr 2, 448
    %s321 = scalar_lea.vmem %s0, %s320
    %v322 = vld [vmem:[%s321] sm:%s4]
    %s323 = scalar_lea.vmem [#allocation0], 3584
    %324 = vst [vmem:[%s323] sm:%s4] %v322
    %s325 = smul.addr 2, 447
    %s326 = scalar_lea.vmem %s0, %s325
    %v327 = vld [vmem:[%s326] sm:%s4]
    %s328 = scalar_lea.vmem [#allocation0], 3576
    %329 = vst [vmem:[%s328] sm:%s4] %v327
    %s330 = smul.addr 2, 446
    %s331 = scalar_lea.vmem %s0, %s330
    %v332 = vld [vmem:[%s331] sm:%s4]
    %s333 = scalar_lea.vmem [#allocation0], 3568
    %334 = vst [vmem:[%s333] sm:%s4] %v332
    %s335 = smul.addr 2, 445
    %s336 = scalar_lea.vmem %s0, %s335
    %v337 = vld [vmem:[%s336] sm:%s4]
    %s338 = scalar_lea.vmem [#allocation0], 3560
    %339 = vst [vmem:[%s338] sm:%s4] %v337
    %s340 = smul.addr 2, 444
    %s341 = scalar_lea.vmem %s0, %s340
    %v342 = vld [vmem:[%s341] sm:%s4]
    %s343 = scalar_lea.vmem [#allocation0], 3552
    %344 = vst [vmem:[%s343] sm:%s4] %v342
    %s345 = smul.addr 2, 443
    %s346 = scalar_lea.vmem %s0, %s345
    %v347 = vld [vmem:[%s346] sm:%s4]
    %s348 = scalar_lea.vmem [#allocation0], 3544
    %349 = vst [vmem:[%s348] sm:%s4] %v347
    %s350 = smul.addr 2, 442
    %s351 = scalar_lea.vmem %s0, %s350
    %v352 = vld [vmem:[%s351] sm:%s4]
    %s353 = scalar_lea.vmem [#allocation0], 3536
    %354 = vst [vmem:[%s353] sm:%s4] %v352
    %s355 = smul.addr 2, 441
    %s356 = scalar_lea.vmem %s0, %s355
    %v357 = vld [vmem:[%s356] sm:%s4]
    %s358 = scalar_lea.vmem [#allocation0], 3528
    %359 = vst [vmem:[%s358] sm:%s4] %v357
    %s360 = smul.addr 2, 440
    %s361 = scalar_lea.vmem %s0, %s360
    %v362 = vld [vmem:[%s361] sm:%s4]
    %s363 = scalar_lea.vmem [#allocation0], 3520
    %364 = vst [vmem:[%s363] sm:%s4] %v362
    %s365 = smul.addr 2, 439
    %s366 = scalar_lea.vmem %s0, %s365
    %v367 = vld [vmem:[%s366] sm:%s4]
    %s368 = scalar_lea.vmem [#allocation0], 3512
    %369 = vst [vmem:[%s368] sm:%s4] %v367
    %s370 = smul.addr 2, 438
    %s371 = scalar_lea.vmem %s0, %s370
    %v372 = vld [vmem:[%s371] sm:%s4]
    %s373 = scalar_lea.vmem [#allocation0], 3504
    %374 = vst [vmem:[%s373] sm:%s4] %v372
    %s375 = smul.addr 2, 437
    %s376 = scalar_lea.vmem %s0, %s375
    %v377 = vld [vmem:[%s376] sm:%s4]
    %s378 = scalar_lea.vmem [#allocation0], 3496
    %379 = vst [vmem:[%s378] sm:%s4] %v377
    %s380 = smul.addr 2, 436
    %s381 = scalar_lea.vmem %s0, %s380
    %v382 = vld [vmem:[%s381] sm:%s4]
    %s383 = scalar_lea.vmem [#allocation0], 3488
    %384 = vst [vmem:[%s383] sm:%s4] %v382
    %s385 = smul.addr 2, 435
    %s386 = scalar_lea.vmem %s0, %s385
    %v387 = vld [vmem:[%s386] sm:%s4]
    %s388 = scalar_lea.vmem [#allocation0], 3480
    %389 = vst [vmem:[%s388] sm:%s4] %v387
    %s390 = smul.addr 2, 434
    %s391 = scalar_lea.vmem %s0, %s390
    %v392 = vld [vmem:[%s391] sm:%s4]
    %s393 = scalar_lea.vmem [#allocation0], 3472
    %394 = vst [vmem:[%s393] sm:%s4] %v392
    %s395 = smul.addr 2, 433
    %s396 = scalar_lea.vmem %s0, %s395
    %v397 = vld [vmem:[%s396] sm:%s4]
    %s398 = scalar_lea.vmem [#allocation0], 3464
    %399 = vst [vmem:[%s398] sm:%s4] %v397
    %s400 = smul.addr 2, 432
    %s401 = scalar_lea.vmem %s0, %s400
    %v402 = vld [vmem:[%s401] sm:%s4]
    %s403 = scalar_lea.vmem [#allocation0], 3456
    %404 = vst [vmem:[%s403] sm:%s4] %v402
    %s405 = smul.addr 2, 431
    %s406 = scalar_lea.vmem %s0, %s405
    %v407 = vld [vmem:[%s406] sm:%s4]
    %s408 = scalar_lea.vmem [#allocation0], 3448
    %409 = vst [vmem:[%s408] sm:%s4] %v407
    %s410 = smul.addr 2, 430
    %s411 = scalar_lea.vmem %s0, %s410
    %v412 = vld [vmem:[%s411] sm:%s4]
    %s413 = scalar_lea.vmem [#allocation0], 3440
    %414 = vst [vmem:[%s413] sm:%s4] %v412
    %s415 = smul.addr 2, 429
    %s416 = scalar_lea.vmem %s0, %s415
    %v417 = vld [vmem:[%s416] sm:%s4]
    %s418 = scalar_lea.vmem [#allocation0], 3432
    %419 = vst [vmem:[%s418] sm:%s4] %v417
    %s420 = smul.addr 2, 428
    %s421 = scalar_lea.vmem %s0, %s420
    %v422 = vld [vmem:[%s421] sm:%s4]
    %s423 = scalar_lea.vmem [#allocation0], 3424
    %424 = vst [vmem:[%s423] sm:%s4] %v422
    %s425 = smul.addr 2, 427
    %s426 = scalar_lea.vmem %s0, %s425
    %v427 = vld [vmem:[%s426] sm:%s4]
    %s428 = scalar_lea.vmem [#allocation0], 3416
    %429 = vst [vmem:[%s428] sm:%s4] %v427
    %s430 = smul.addr 2, 426
    %s431 = scalar_lea.vmem %s0, %s430
    %v432 = vld [vmem:[%s431] sm:%s4]
    %s433 = scalar_lea.vmem [#allocation0], 3408
    %434 = vst [vmem:[%s433] sm:%s4] %v432
    %s435 = smul.addr 2, 425
    %s436 = scalar_lea.vmem %s0, %s435
    %v437 = vld [vmem:[%s436] sm:%s4]
    %s438 = scalar_lea.vmem [#allocation0], 3400
    %439 = vst [vmem:[%s438] sm:%s4] %v437
    %s440 = smul.addr 2, 424
    %s441 = scalar_lea.vmem %s0, %s440
    %v442 = vld [vmem:[%s441] sm:%s4]
    %s443 = scalar_lea.vmem [#allocation0], 3392
    %444 = vst [vmem:[%s443] sm:%s4] %v442
    %s445 = smul.addr 2, 423
    %s446 = scalar_lea.vmem %s0, %s445
    %v447 = vld [vmem:[%s446] sm:%s4]
    %s448 = scalar_lea.vmem [#allocation0], 3384
    %449 = vst [vmem:[%s448] sm:%s4] %v447
    %s450 = smul.addr 2, 422
    %s451 = scalar_lea.vmem %s0, %s450
    %v452 = vld [vmem:[%s451] sm:%s4]
    %s453 = scalar_lea.vmem [#allocation0], 3376
    %454 = vst [vmem:[%s453] sm:%s4] %v452
    %s455 = smul.addr 2, 421
    %s456 = scalar_lea.vmem %s0, %s455
    %v457 = vld [vmem:[%s456] sm:%s4]
    %s458 = scalar_lea.vmem [#allocation0], 3368
    %459 = vst [vmem:[%s458] sm:%s4] %v457
    %s460 = smul.addr 2, 420
    %s461 = scalar_lea.vmem %s0, %s460
    %v462 = vld [vmem:[%s461] sm:%s4]
    %s463 = scalar_lea.vmem [#allocation0], 3360
    %464 = vst [vmem:[%s463] sm:%s4] %v462
    %s465 = smul.addr 2, 419
    %s466 = scalar_lea.vmem %s0, %s465
    %v467 = vld [vmem:[%s466] sm:%s4]
    %s468 = scalar_lea.vmem [#allocation0], 3352
    %469 = vst [vmem:[%s468] sm:%s4] %v467
    %s470 = smul.addr 2, 418
    %s471 = scalar_lea.vmem %s0, %s470
    %v472 = vld [vmem:[%s471] sm:%s4]
    %s473 = scalar_lea.vmem [#allocation0], 3344
    %474 = vst [vmem:[%s473] sm:%s4] %v472
    %s475 = smul.addr 2, 417
    %s476 = scalar_lea.vmem %s0, %s475
    %v477 = vld [vmem:[%s476] sm:%s4]
    %s478 = scalar_lea.vmem [#allocation0], 3336
    %479 = vst [vmem:[%s478] sm:%s4] %v477
    %s480 = smul.addr 2, 416
    %s481 = scalar_lea.vmem %s0, %s480
    %v482 = vld [vmem:[%s481] sm:%s4]
    %s483 = scalar_lea.vmem [#allocation0], 3328
    %484 = vst [vmem:[%s483] sm:%s4] %v482
    %s485 = smul.addr 2, 415
    %s486 = scalar_lea.vmem %s0, %s485
    %v487 = vld [vmem:[%s486] sm:%s4]
    %s488 = scalar_lea.vmem [#allocation0], 3320
    %489 = vst [vmem:[%s488] sm:%s4] %v487
    %s490 = smul.addr 2, 414
    %s491 = scalar_lea.vmem %s0, %s490
    %v492 = vld [vmem:[%s491] sm:%s4]
    %s493 = scalar_lea.vmem [#allocation0], 3312
    %494 = vst [vmem:[%s493] sm:%s4] %v492
    %s495 = smul.addr 2, 413
    %s496 = scalar_lea.vmem %s0, %s495
    %v497 = vld [vmem:[%s496] sm:%s4]
    %s498 = scalar_lea.vmem [#allocation0], 3304
    %499 = vst [vmem:[%s498] sm:%s4] %v497
    %s500 = smul.addr 2, 412
    %s501 = scalar_lea.vmem %s0, %s500
    %v502 = vld [vmem:[%s501] sm:%s4]
    %s503 = scalar_lea.vmem [#allocation0], 3296
    %504 = vst [vmem:[%s503] sm:%s4] %v502
    %s505 = smul.addr 2, 411
    %s506 = scalar_lea.vmem %s0, %s505
    %v507 = vld [vmem:[%s506] sm:%s4]
    %s508 = scalar_lea.vmem [#allocation0], 3288
    %509 = vst [vmem:[%s508] sm:%s4] %v507
    %s510 = smul.addr 2, 410
    %s511 = scalar_lea.vmem %s0, %s510
    %v512 = vld [vmem:[%s511] sm:%s4]
    %s513 = scalar_lea.vmem [#allocation0], 3280
    %514 = vst [vmem:[%s513] sm:%s4] %v512
    %s515 = smul.addr 2, 409
    %s516 = scalar_lea.vmem %s0, %s515
    %v517 = vld [vmem:[%s516] sm:%s4]
    %s518 = scalar_lea.vmem [#allocation0], 3272
    %519 = vst [vmem:[%s518] sm:%s4] %v517
    %s520 = smul.addr 2, 408
    %s521 = scalar_lea.vmem %s0, %s520
    %v522 = vld [vmem:[%s521] sm:%s4]
    %s523 = scalar_lea.vmem [#allocation0], 3264
    %524 = vst [vmem:[%s523] sm:%s4] %v522
    %s525 = smul.addr 2, 407
    %s526 = scalar_lea.vmem %s0, %s525
    %v527 = vld [vmem:[%s526] sm:%s4]
    %s528 = scalar_lea.vmem [#allocation0], 3256
    %529 = vst [vmem:[%s528] sm:%s4] %v527
    %s530 = smul.addr 2, 406
    %s531 = scalar_lea.vmem %s0, %s530
    %v532 = vld [vmem:[%s531] sm:%s4]
    %s533 = scalar_lea.vmem [#allocation0], 3248
    %534 = vst [vmem:[%s533] sm:%s4] %v532
    %s535 = smul.addr 2, 405
    %s536 = scalar_lea.vmem %s0, %s535
    %v537 = vld [vmem:[%s536] sm:%s4]
    %s538 = scalar_lea.vmem [#allocation0], 3240
    %539 = vst [vmem:[%s538] sm:%s4] %v537
    %s540 = smul.addr 2, 404
    %s541 = scalar_lea.vmem %s0, %s540
    %v542 = vld [vmem:[%s541] sm:%s4]
    %s543 = scalar_lea.vmem [#allocation0], 3232
    %544 = vst [vmem:[%s543] sm:%s4] %v542
    %s545 = smul.addr 2, 403
    %s546 = scalar_lea.vmem %s0, %s545
    %v547 = vld [vmem:[%s546] sm:%s4]
    %s548 = scalar_lea.vmem [#allocation0], 3224
    %549 = vst [vmem:[%s548] sm:%s4] %v547
    %s550 = smul.addr 2, 402
    %s551 = scalar_lea.vmem %s0, %s550
    %v552 = vld [vmem:[%s551] sm:%s4]
    %s553 = scalar_lea.vmem [#allocation0], 3216
    %554 = vst [vmem:[%s553] sm:%s4] %v552
    %s555 = smul.addr 2, 401
    %s556 = scalar_lea.vmem %s0, %s555
    %v557 = vld [vmem:[%s556] sm:%s4]
    %s558 = scalar_lea.vmem [#allocation0], 3208
    %559 = vst [vmem:[%s558] sm:%s4] %v557
    %s560 = smul.addr 2, 400
    %s561 = scalar_lea.vmem %s0, %s560
    %v562 = vld [vmem:[%s561] sm:%s4]
    %s563 = scalar_lea.vmem [#allocation0], 3200
    %564 = vst [vmem:[%s563] sm:%s4] %v562
    %s565 = smul.addr 2, 399
    %s566 = scalar_lea.vmem %s0, %s565
    %v567 = vld [vmem:[%s566] sm:%s4]
    %s568 = scalar_lea.vmem [#allocation0], 3192
    %569 = vst [vmem:[%s568] sm:%s4] %v567
    %s570 = smul.addr 2, 398
    %s571 = scalar_lea.vmem %s0, %s570
    %v572 = vld [vmem:[%s571] sm:%s4]
    %s573 = scalar_lea.vmem [#allocation0], 3184
    %574 = vst [vmem:[%s573] sm:%s4] %v572
    %s575 = smul.addr 2, 397
    %s576 = scalar_lea.vmem %s0, %s575
    %v577 = vld [vmem:[%s576] sm:%s4]
    %s578 = scalar_lea.vmem [#allocation0], 3176
    %579 = vst [vmem:[%s578] sm:%s4] %v577
    %s580 = smul.addr 2, 396
    %s581 = scalar_lea.vmem %s0, %s580
    %v582 = vld [vmem:[%s581] sm:%s4]
    %s583 = scalar_lea.vmem [#allocation0], 3168
    %584 = vst [vmem:[%s583] sm:%s4] %v582
    %s585 = smul.addr 2, 395
    %s586 = scalar_lea.vmem %s0, %s585
    %v587 = vld [vmem:[%s586] sm:%s4]
    %s588 = scalar_lea.vmem [#allocation0], 3160
    %589 = vst [vmem:[%s588] sm:%s4] %v587
    %s590 = smul.addr 2, 394
    %s591 = scalar_lea.vmem %s0, %s590
    %v592 = vld [vmem:[%s591] sm:%s4]
    %s593 = scalar_lea.vmem [#allocation0], 3152
    %594 = vst [vmem:[%s593] sm:%s4] %v592
    %s595 = smul.addr 2, 393
    %s596 = scalar_lea.vmem %s0, %s595
    %v597 = vld [vmem:[%s596] sm:%s4]
    %s598 = scalar_lea.vmem [#allocation0], 3144
    %599 = vst [vmem:[%s598] sm:%s4] %v597
    %s600 = smul.addr 2, 392
    %s601 = scalar_lea.vmem %s0, %s600
    %v602 = vld [vmem:[%s601] sm:%s4]
    %s603 = scalar_lea.vmem [#allocation0], 3136
    %604 = vst [vmem:[%s603] sm:%s4] %v602
    %s605 = smul.addr 2, 391
    %s606 = scalar_lea.vmem %s0, %s605
    %v607 = vld [vmem:[%s606] sm:%s4]
    %s608 = scalar_lea.vmem [#allocation0], 3128
    %609 = vst [vmem:[%s608] sm:%s4] %v607
    %s610 = smul.addr 2, 390
    %s611 = scalar_lea.vmem %s0, %s610
    %v612 = vld [vmem:[%s611] sm:%s4]
    %s613 = scalar_lea.vmem [#allocation0], 3120
    %614 = vst [vmem:[%s613] sm:%s4] %v612
    %s615 = smul.addr 2, 389
    %s616 = scalar_lea.vmem %s0, %s615
    %v617 = vld [vmem:[%s616] sm:%s4]
    %s618 = scalar_lea.vmem [#allocation0], 3112
    %619 = vst [vmem:[%s618] sm:%s4] %v617
    %s620 = smul.addr 2, 388
    %s621 = scalar_lea.vmem %s0, %s620
    %v622 = vld [vmem:[%s621] sm:%s4]
    %s623 = scalar_lea.vmem [#allocation0], 3104
    %624 = vst [vmem:[%s623] sm:%s4] %v622
    %s625 = smul.addr 2, 387
    %s626 = scalar_lea.vmem %s0, %s625
    %v627 = vld [vmem:[%s626] sm:%s4]
    %s628 = scalar_lea.vmem [#allocation0], 3096
    %629 = vst [vmem:[%s628] sm:%s4] %v627
    %s630 = smul.addr 2, 386
    %s631 = scalar_lea.vmem %s0, %s630
    %v632 = vld [vmem:[%s631] sm:%s4]
    %s633 = scalar_lea.vmem [#allocation0], 3088
    %634 = vst [vmem:[%s633] sm:%s4] %v632
    %s635 = smul.addr 2, 385
    %s636 = scalar_lea.vmem %s0, %s635
    %v637 = vld [vmem:[%s636] sm:%s4]
    %s638 = scalar_lea.vmem [#allocation0], 3080
    %639 = vst [vmem:[%s638] sm:%s4] %v637
    %s640 = smul.addr 2, 384
    %s641 = scalar_lea.vmem %s0, %s640
    %v642 = vld [vmem:[%s641] sm:%s4]
    %s643 = scalar_lea.vmem [#allocation0], 3072
    %644 = vst [vmem:[%s643] sm:%s4] %v642
    %s645 = smul.addr 2, 383
    %s646 = scalar_lea.vmem %s0, %s645
    %v647 = vld [vmem:[%s646] sm:%s4]
    %s648 = scalar_lea.vmem [#allocation0], 3064
    %649 = vst [vmem:[%s648] sm:%s4] %v647
    %s650 = smul.addr 2, 382
    %s651 = scalar_lea.vmem %s0, %s650
    %v652 = vld [vmem:[%s651] sm:%s4]
    %s653 = scalar_lea.vmem [#allocation0], 3056
    %654 = vst [vmem:[%s653] sm:%s4] %v652
    %s655 = smul.addr 2, 381
    %s656 = scalar_lea.vmem %s0, %s655
    %v657 = vld [vmem:[%s656] sm:%s4]
    %s658 = scalar_lea.vmem [#allocation0], 3048
    %659 = vst [vmem:[%s658] sm:%s4] %v657
    %s660 = smul.addr 2, 380
    %s661 = scalar_lea.vmem %s0, %s660
    %v662 = vld [vmem:[%s661] sm:%s4]
    %s663 = scalar_lea.vmem [#allocation0], 3040
    %664 = vst [vmem:[%s663] sm:%s4] %v662
    %s665 = smul.addr 2, 379
    %s666 = scalar_lea.vmem %s0, %s665
    %v667 = vld [vmem:[%s666] sm:%s4]
    %s668 = scalar_lea.vmem [#allocation0], 3032
    %669 = vst [vmem:[%s668] sm:%s4] %v667
    %s670 = smul.addr 2, 378
    %s671 = scalar_lea.vmem %s0, %s670
    %v672 = vld [vmem:[%s671] sm:%s4]
    %s673 = scalar_lea.vmem [#allocation0], 3024
    %674 = vst [vmem:[%s673] sm:%s4] %v672
    %s675 = smul.addr 2, 377
    %s676 = scalar_lea.vmem %s0, %s675
    %v677 = vld [vmem:[%s676] sm:%s4]
    %s678 = scalar_lea.vmem [#allocation0], 3016
    %679 = vst [vmem:[%s678] sm:%s4] %v677
    %s680 = smul.addr 2, 376
    %s681 = scalar_lea.vmem %s0, %s680
    %v682 = vld [vmem:[%s681] sm:%s4]
    %s683 = scalar_lea.vmem [#allocation0], 3008
    %684 = vst [vmem:[%s683] sm:%s4] %v682
    %s685 = smul.addr 2, 375
    %s686 = scalar_lea.vmem %s0, %s685
    %v687 = vld [vmem:[%s686] sm:%s4]
    %s688 = scalar_lea.vmem [#allocation0], 3000
    %689 = vst [vmem:[%s688] sm:%s4] %v687
    %s690 = smul.addr 2, 374
    %s691 = scalar_lea.vmem %s0, %s690
    %v692 = vld [vmem:[%s691] sm:%s4]
    %s693 = scalar_lea.vmem [#allocation0], 2992
    %694 = vst [vmem:[%s693] sm:%s4] %v692
    %s695 = smul.addr 2, 373
    %s696 = scalar_lea.vmem %s0, %s695
    %v697 = vld [vmem:[%s696] sm:%s4]
    %s698 = scalar_lea.vmem [#allocation0], 2984
    %699 = vst [vmem:[%s698] sm:%s4] %v697
    %s700 = smul.addr 2, 372
    %s701 = scalar_lea.vmem %s0, %s700
    %v702 = vld [vmem:[%s701] sm:%s4]
    %s703 = scalar_lea.vmem [#allocation0], 2976
    %704 = vst [vmem:[%s703] sm:%s4] %v702
    %s705 = smul.addr 2, 371
    %s706 = scalar_lea.vmem %s0, %s705
    %v707 = vld [vmem:[%s706] sm:%s4]
    %s708 = scalar_lea.vmem [#allocation0], 2968
    %709 = vst [vmem:[%s708] sm:%s4] %v707
    %s710 = smul.addr 2, 370
    %s711 = scalar_lea.vmem %s0, %s710
    %v712 = vld [vmem:[%s711] sm:%s4]
    %s713 = scalar_lea.vmem [#allocation0], 2960
    %714 = vst [vmem:[%s713] sm:%s4] %v712
    %s715 = smul.addr 2, 369
    %s716 = scalar_lea.vmem %s0, %s715
    %v717 = vld [vmem:[%s716] sm:%s4]
    %s718 = scalar_lea.vmem [#allocation0], 2952
    %719 = vst [vmem:[%s718] sm:%s4] %v717
    %s720 = smul.addr 2, 368
    %s721 = scalar_lea.vmem %s0, %s720
    %v722 = vld [vmem:[%s721] sm:%s4]
    %s723 = scalar_lea.vmem [#allocation0], 2944
    %724 = vst [vmem:[%s723] sm:%s4] %v722
    %s725 = smul.addr 2, 367
    %s726 = scalar_lea.vmem %s0, %s725
    %v727 = vld [vmem:[%s726] sm:%s4]
    %s728 = scalar_lea.vmem [#allocation0], 2936
    %729 = vst [vmem:[%s728] sm:%s4] %v727
    %s730 = smul.addr 2, 366
    %s731 = scalar_lea.vmem %s0, %s730
    %v732 = vld [vmem:[%s731] sm:%s4]
    %s733 = scalar_lea.vmem [#allocation0], 2928
    %734 = vst [vmem:[%s733] sm:%s4] %v732
    %s735 = smul.addr 2, 365
    %s736 = scalar_lea.vmem %s0, %s735
    %v737 = vld [vmem:[%s736] sm:%s4]
    %s738 = scalar_lea.vmem [#allocation0], 2920
    %739 = vst [vmem:[%s738] sm:%s4] %v737
    %s740 = smul.addr 2, 364
    %s741 = scalar_lea.vmem %s0, %s740
    %v742 = vld [vmem:[%s741] sm:%s4]
    %s743 = scalar_lea.vmem [#allocation0], 2912
    %744 = vst [vmem:[%s743] sm:%s4] %v742
    %s745 = smul.addr 2, 363
    %s746 = scalar_lea.vmem %s0, %s745
    %v747 = vld [vmem:[%s746] sm:%s4]
    %s748 = scalar_lea.vmem [#allocation0], 2904
    %749 = vst [vmem:[%s748] sm:%s4] %v747
    %s750 = smul.addr 2, 362
    %s751 = scalar_lea.vmem %s0, %s750
    %v752 = vld [vmem:[%s751] sm:%s4]
    %s753 = scalar_lea.vmem [#allocation0], 2896
    %754 = vst [vmem:[%s753] sm:%s4] %v752
    %s755 = smul.addr 2, 361
    %s756 = scalar_lea.vmem %s0, %s755
    %v757 = vld [vmem:[%s756] sm:%s4]
    %s758 = scalar_lea.vmem [#allocation0], 2888
    %759 = vst [vmem:[%s758] sm:%s4] %v757
    %s760 = smul.addr 2, 360
    %s761 = scalar_lea.vmem %s0, %s760
    %v762 = vld [vmem:[%s761] sm:%s4]
    %s763 = scalar_lea.vmem [#allocation0], 2880
    %764 = vst [vmem:[%s763] sm:%s4] %v762
    %s765 = smul.addr 2, 359
    %s766 = scalar_lea.vmem %s0, %s765
    %v767 = vld [vmem:[%s766] sm:%s4]
    %s768 = scalar_lea.vmem [#allocation0], 2872
    %769 = vst [vmem:[%s768] sm:%s4] %v767
    %s770 = smul.addr 2, 358
    %s771 = scalar_lea.vmem %s0, %s770
    %v772 = vld [vmem:[%s771] sm:%s4]
    %s773 = scalar_lea.vmem [#allocation0], 2864
    %774 = vst [vmem:[%s773] sm:%s4] %v772
    %s775 = smul.addr 2, 357
    %s776 = scalar_lea.vmem %s0, %s775
    %v777 = vld [vmem:[%s776] sm:%s4]
    %s778 = scalar_lea.vmem [#allocation0], 2856
    %779 = vst [vmem:[%s778] sm:%s4] %v777
    %s780 = smul.addr 2, 356
    %s781 = scalar_lea.vmem %s0, %s780
    %v782 = vld [vmem:[%s781] sm:%s4]
    %s783 = scalar_lea.vmem [#allocation0], 2848
    %784 = vst [vmem:[%s783] sm:%s4] %v782
    %s785 = smul.addr 2, 355
    %s786 = scalar_lea.vmem %s0, %s785
    %v787 = vld [vmem:[%s786] sm:%s4]
    %s788 = scalar_lea.vmem [#allocation0], 2840
    %789 = vst [vmem:[%s788] sm:%s4] %v787
    %s790 = smul.addr 2, 354
    %s791 = scalar_lea.vmem %s0, %s790
    %v792 = vld [vmem:[%s791] sm:%s4]
    %s793 = scalar_lea.vmem [#allocation0], 2832
    %794 = vst [vmem:[%s793] sm:%s4] %v792
    %s795 = smul.addr 2, 353
    %s796 = scalar_lea.vmem %s0, %s795
    %v797 = vld [vmem:[%s796] sm:%s4]
    %s798 = scalar_lea.vmem [#allocation0], 2824
    %799 = vst [vmem:[%s798] sm:%s4] %v797
    %s800 = smul.addr 2, 352
    %s801 = scalar_lea.vmem %s0, %s800
    %v802 = vld [vmem:[%s801] sm:%s4]
    %s803 = scalar_lea.vmem [#allocation0], 2816
    %804 = vst [vmem:[%s803] sm:%s4] %v802
    %s805 = smul.addr 2, 351
    %s806 = scalar_lea.vmem %s0, %s805
    %v807 = vld [vmem:[%s806] sm:%s4]
    %s808 = scalar_lea.vmem [#allocation0], 2808
    %809 = vst [vmem:[%s808] sm:%s4] %v807
    %s810 = smul.addr 2, 350
    %s811 = scalar_lea.vmem %s0, %s810
    %v812 = vld [vmem:[%s811] sm:%s4]
    %s813 = scalar_lea.vmem [#allocation0], 2800
    %814 = vst [vmem:[%s813] sm:%s4] %v812
    %s815 = smul.addr 2, 349
    %s816 = scalar_lea.vmem %s0, %s815
    %v817 = vld [vmem:[%s816] sm:%s4]
    %s818 = scalar_lea.vmem [#allocation0], 2792
    %819 = vst [vmem:[%s818] sm:%s4] %v817
    %s820 = smul.addr 2, 348
    %s821 = scalar_lea.vmem %s0, %s820
    %v822 = vld [vmem:[%s821] sm:%s4]
    %s823 = scalar_lea.vmem [#allocation0], 2784
    %824 = vst [vmem:[%s823] sm:%s4] %v822
    %s825 = smul.addr 2, 347
    %s826 = scalar_lea.vmem %s0, %s825
    %v827 = vld [vmem:[%s826] sm:%s4]
    %s828 = scalar_lea.vmem [#allocation0], 2776
    %829 = vst [vmem:[%s828] sm:%s4] %v827
    %s830 = smul.addr 2, 346
    %s831 = scalar_lea.vmem %s0, %s830
    %v832 = vld [vmem:[%s831] sm:%s4]
    %s833 = scalar_lea.vmem [#allocation0], 2768
    %834 = vst [vmem:[%s833] sm:%s4] %v832
    %s835 = smul.addr 2, 345
    %s836 = scalar_lea.vmem %s0, %s835
    %v837 = vld [vmem:[%s836] sm:%s4]
    %s838 = scalar_lea.vmem [#allocation0], 2760
    %839 = vst [vmem:[%s838] sm:%s4] %v837
    %s840 = smul.addr 2, 344
    %s841 = scalar_lea.vmem %s0, %s840
    %v842 = vld [vmem:[%s841] sm:%s4]
    %s843 = scalar_lea.vmem [#allocation0], 2752
    %844 = vst [vmem:[%s843] sm:%s4] %v842
    %s845 = smul.addr 2, 343
    %s846 = scalar_lea.vmem %s0, %s845
    %v847 = vld [vmem:[%s846] sm:%s4]
    %s848 = scalar_lea.vmem [#allocation0], 2744
    %849 = vst [vmem:[%s848] sm:%s4] %v847
    %s850 = smul.addr 2, 342
    %s851 = scalar_lea.vmem %s0, %s850
    %v852 = vld [vmem:[%s851] sm:%s4]
    %s853 = scalar_lea.vmem [#allocation0], 2736
    %854 = vst [vmem:[%s853] sm:%s4] %v852
    %s855 = smul.addr 2, 341
    %s856 = scalar_lea.vmem %s0, %s855
    %v857 = vld [vmem:[%s856] sm:%s4]
    %s858 = scalar_lea.vmem [#allocation0], 2728
    %859 = vst [vmem:[%s858] sm:%s4] %v857
    %s860 = smul.addr 2, 340
    %s861 = scalar_lea.vmem %s0, %s860
    %v862 = vld [vmem:[%s861] sm:%s4]
    %s863 = scalar_lea.vmem [#allocation0], 2720
    %864 = vst [vmem:[%s863] sm:%s4] %v862
    %s865 = smul.addr 2, 339
    %s866 = scalar_lea.vmem %s0, %s865
    %v867 = vld [vmem:[%s866] sm:%s4]
    %s868 = scalar_lea.vmem [#allocation0], 2712
    %869 = vst [vmem:[%s868] sm:%s4] %v867
    %s870 = smul.addr 2, 338
    %s871 = scalar_lea.vmem %s0, %s870
    %v872 = vld [vmem:[%s871] sm:%s4]
    %s873 = scalar_lea.vmem [#allocation0], 2704
    %874 = vst [vmem:[%s873] sm:%s4] %v872
    %s875 = smul.addr 2, 337
    %s876 = scalar_lea.vmem %s0, %s875
    %v877 = vld [vmem:[%s876] sm:%s4]
    %s878 = scalar_lea.vmem [#allocation0], 2696
    %879 = vst [vmem:[%s878] sm:%s4] %v877
    %s880 = smul.addr 2, 336
    %s881 = scalar_lea.vmem %s0, %s880
    %v882 = vld [vmem:[%s881] sm:%s4]
    %s883 = scalar_lea.vmem [#allocation0], 2688
    %884 = vst [vmem:[%s883] sm:%s4] %v882
    %s885 = smul.addr 2, 335
    %s886 = scalar_lea.vmem %s0, %s885
    %v887 = vld [vmem:[%s886] sm:%s4]
    %s888 = scalar_lea.vmem [#allocation0], 2680
    %889 = vst [vmem:[%s888] sm:%s4] %v887
    %s890 = smul.addr 2, 334
    %s891 = scalar_lea.vmem %s0, %s890
    %v892 = vld [vmem:[%s891] sm:%s4]
    %s893 = scalar_lea.vmem [#allocation0], 2672
    %894 = vst [vmem:[%s893] sm:%s4] %v892
    %s895 = smul.addr 2, 333
    %s896 = scalar_lea.vmem %s0, %s895
    %v897 = vld [vmem:[%s896] sm:%s4]
    %s898 = scalar_lea.vmem [#allocation0], 2664
    %899 = vst [vmem:[%s898] sm:%s4] %v897
    %s900 = smul.addr 2, 332
    %s901 = scalar_lea.vmem %s0, %s900
    %v902 = vld [vmem:[%s901] sm:%s4]
    %s903 = scalar_lea.vmem [#allocation0], 2656
    %904 = vst [vmem:[%s903] sm:%s4] %v902
    %s905 = smul.addr 2, 331
    %s906 = scalar_lea.vmem %s0, %s905
    %v907 = vld [vmem:[%s906] sm:%s4]
    %s908 = scalar_lea.vmem [#allocation0], 2648
    %909 = vst [vmem:[%s908] sm:%s4] %v907
    %s910 = smul.addr 2, 330
    %s911 = scalar_lea.vmem %s0, %s910
    %v912 = vld [vmem:[%s911] sm:%s4]
    %s913 = scalar_lea.vmem [#allocation0], 2640
    %914 = vst [vmem:[%s913] sm:%s4] %v912
    %s915 = smul.addr 2, 329
    %s916 = scalar_lea.vmem %s0, %s915
    %v917 = vld [vmem:[%s916] sm:%s4]
    %s918 = scalar_lea.vmem [#allocation0], 2632
    %919 = vst [vmem:[%s918] sm:%s4] %v917
    %s920 = smul.addr 2, 328
    %s921 = scalar_lea.vmem %s0, %s920
    %v922 = vld [vmem:[%s921] sm:%s4]
    %s923 = scalar_lea.vmem [#allocation0], 2624
    %924 = vst [vmem:[%s923] sm:%s4] %v922
    %s925 = smul.addr 2, 327
    %s926 = scalar_lea.vmem %s0, %s925
    %v927 = vld [vmem:[%s926] sm:%s4]
    %s928 = scalar_lea.vmem [#allocation0], 2616
    %929 = vst [vmem:[%s928] sm:%s4] %v927
    %s930 = smul.addr 2, 326
    %s931 = scalar_lea.vmem %s0, %s930
    %v932 = vld [vmem:[%s931] sm:%s4]
    %s933 = scalar_lea.vmem [#allocation0], 2608
    %934 = vst [vmem:[%s933] sm:%s4] %v932
    %s935 = smul.addr 2, 325
    %s936 = scalar_lea.vmem %s0, %s935
    %v937 = vld [vmem:[%s936] sm:%s4]
    %s938 = scalar_lea.vmem [#allocation0], 2600
    %939 = vst [vmem:[%s938] sm:%s4] %v937
    %s940 = smul.addr 2, 324
    %s941 = scalar_lea.vmem %s0, %s940
    %v942 = vld [vmem:[%s941] sm:%s4]
    %s943 = scalar_lea.vmem [#allocation0], 2592
    %944 = vst [vmem:[%s943] sm:%s4] %v942
    %s945 = smul.addr 2, 323
    %s946 = scalar_lea.vmem %s0, %s945
    %v947 = vld [vmem:[%s946] sm:%s4]
    %s948 = scalar_lea.vmem [#allocation0], 2584
    %949 = vst [vmem:[%s948] sm:%s4] %v947
    %s950 = smul.addr 2, 322
    %s951 = scalar_lea.vmem %s0, %s950
    %v952 = vld [vmem:[%s951] sm:%s4]
    %s953 = scalar_lea.vmem [#allocation0], 2576
    %954 = vst [vmem:[%s953] sm:%s4] %v952
    %s955 = smul.addr 2, 321
    %s956 = scalar_lea.vmem %s0, %s955
    %v957 = vld [vmem:[%s956] sm:%s4]
    %s958 = scalar_lea.vmem [#allocation0], 2568
    %959 = vst [vmem:[%s958] sm:%s4] %v957
    %s960 = smul.addr 2, 320
    %s961 = scalar_lea.vmem %s0, %s960
    %v962 = vld [vmem:[%s961] sm:%s4]
    %s963 = scalar_lea.vmem [#allocation0], 2560
    %964 = vst [vmem:[%s963] sm:%s4] %v962
    %s965 = smul.addr 2, 319
    %s966 = scalar_lea.vmem %s0, %s965
    %v967 = vld [vmem:[%s966] sm:%s4]
    %s968 = scalar_lea.vmem [#allocation0], 2552
    %969 = vst [vmem:[%s968] sm:%s4] %v967
    %s970 = smul.addr 2, 318
    %s971 = scalar_lea.vmem %s0, %s970
    %v972 = vld [vmem:[%s971] sm:%s4]
    %s973 = scalar_lea.vmem [#allocation0], 2544
    %974 = vst [vmem:[%s973] sm:%s4] %v972
    %s975 = smul.addr 2, 317
    %s976 = scalar_lea.vmem %s0, %s975
    %v977 = vld [vmem:[%s976] sm:%s4]
    %s978 = scalar_lea.vmem [#allocation0], 2536
    %979 = vst [vmem:[%s978] sm:%s4] %v977
    %s980 = smul.addr 2, 316
    %s981 = scalar_lea.vmem %s0, %s980
    %v982 = vld [vmem:[%s981] sm:%s4]
    %s983 = scalar_lea.vmem [#allocation0], 2528
    %984 = vst [vmem:[%s983] sm:%s4] %v982
    %s985 = smul.addr 2, 315
    %s986 = scalar_lea.vmem %s0, %s985
    %v987 = vld [vmem:[%s986] sm:%s4]
    %s988 = scalar_lea.vmem [#allocation0], 2520
    %989 = vst [vmem:[%s988] sm:%s4] %v987
    %s990 = smul.addr 2, 314
    %s991 = scalar_lea.vmem %s0, %s990
    %v992 = vld [vmem:[%s991] sm:%s4]
    %s993 = scalar_lea.vmem [#allocation0], 2512
    %994 = vst [vmem:[%s993] sm:%s4] %v992
    %s995 = smul.addr 2, 313
    %s996 = scalar_lea.vmem %s0, %s995
    %v997 = vld [vmem:[%s996] sm:%s4]
    %s998 = scalar_lea.vmem [#allocation0], 2504
    %999 = vst [vmem:[%s998] sm:%s4] %v997
    %s1000 = smul.addr 2, 312
    %s1001 = scalar_lea.vmem %s0, %s1000
    %v1002 = vld [vmem:[%s1001] sm:%s4]
    %s1003 = scalar_lea.vmem [#allocation0], 2496
    %1004 = vst [vmem:[%s1003] sm:%s4] %v1002
    %s1005 = smul.addr 2, 311
    %s1006 = scalar_lea.vmem %s0, %s1005
    %v1007 = vld [vmem:[%s1006] sm:%s4]
    %s1008 = scalar_lea.vmem [#allocation0], 2488
    %1009 = vst [vmem:[%s1008] sm:%s4] %v1007
    %s1010 = smul.addr 2, 310
    %s1011 = scalar_lea.vmem %s0, %s1010
    %v1012 = vld [vmem:[%s1011] sm:%s4]
    %s1013 = scalar_lea.vmem [#allocation0], 2480
    %1014 = vst [vmem:[%s1013] sm:%s4] %v1012
    %s1015 = smul.addr 2, 309
    %s1016 = scalar_lea.vmem %s0, %s1015
    %v1017 = vld [vmem:[%s1016] sm:%s4]
    %s1018 = scalar_lea.vmem [#allocation0], 2472
    %1019 = vst [vmem:[%s1018] sm:%s4] %v1017
    %s1020 = smul.addr 2, 308
    %s1021 = scalar_lea.vmem %s0, %s1020
    %v1022 = vld [vmem:[%s1021] sm:%s4]
    %s1023 = scalar_lea.vmem [#allocation0], 2464
    %1024 = vst [vmem:[%s1023] sm:%s4] %v1022
    %s1025 = smul.addr 2, 307
    %s1026 = scalar_lea.vmem %s0, %s1025
    %v1027 = vld [vmem:[%s1026] sm:%s4]
    %s1028 = scalar_lea.vmem [#allocation0], 2456
    %1029 = vst [vmem:[%s1028] sm:%s4] %v1027
    %s1030 = smul.addr 2, 306
    %s1031 = scalar_lea.vmem %s0, %s1030
    %v1032 = vld [vmem:[%s1031] sm:%s4]
    %s1033 = scalar_lea.vmem [#allocation0], 2448
    %1034 = vst [vmem:[%s1033] sm:%s4] %v1032
    %s1035 = smul.addr 2, 305
    %s1036 = scalar_lea.vmem %s0, %s1035
    %v1037 = vld [vmem:[%s1036] sm:%s4]
    %s1038 = scalar_lea.vmem [#allocation0], 2440
    %1039 = vst [vmem:[%s1038] sm:%s4] %v1037
    %s1040 = smul.addr 2, 304
    %s1041 = scalar_lea.vmem %s0, %s1040
    %v1042 = vld [vmem:[%s1041] sm:%s4]
    %s1043 = scalar_lea.vmem [#allocation0], 2432
    %1044 = vst [vmem:[%s1043] sm:%s4] %v1042
    %s1045 = smul.addr 2, 303
    %s1046 = scalar_lea.vmem %s0, %s1045
    %v1047 = vld [vmem:[%s1046] sm:%s4]
    %s1048 = scalar_lea.vmem [#allocation0], 2424
    %1049 = vst [vmem:[%s1048] sm:%s4] %v1047
    %s1050 = smul.addr 2, 302
    %s1051 = scalar_lea.vmem %s0, %s1050
    %v1052 = vld [vmem:[%s1051] sm:%s4]
    %s1053 = scalar_lea.vmem [#allocation0], 2416
    %1054 = vst [vmem:[%s1053] sm:%s4] %v1052
    %s1055 = smul.addr 2, 301
    %s1056 = scalar_lea.vmem %s0, %s1055
    %v1057 = vld [vmem:[%s1056] sm:%s4]
    %s1058 = scalar_lea.vmem [#allocation0], 2408
    %1059 = vst [vmem:[%s1058] sm:%s4] %v1057
    %s1060 = smul.addr 2, 300
    %s1061 = scalar_lea.vmem %s0, %s1060
    %v1062 = vld [vmem:[%s1061] sm:%s4]
    %s1063 = scalar_lea.vmem [#allocation0], 2400
    %1064 = vst [vmem:[%s1063] sm:%s4] %v1062
    %s1065 = smul.addr 2, 299
    %s1066 = scalar_lea.vmem %s0, %s1065
    %v1067 = vld [vmem:[%s1066] sm:%s4]
    %s1068 = scalar_lea.vmem [#allocation0], 2392
    %1069 = vst [vmem:[%s1068] sm:%s4] %v1067
    %s1070 = smul.addr 2, 298
    %s1071 = scalar_lea.vmem %s0, %s1070
    %v1072 = vld [vmem:[%s1071] sm:%s4]
    %s1073 = scalar_lea.vmem [#allocation0], 2384
    %1074 = vst [vmem:[%s1073] sm:%s4] %v1072
    %s1075 = smul.addr 2, 297
    %s1076 = scalar_lea.vmem %s0, %s1075
    %v1077 = vld [vmem:[%s1076] sm:%s4]
    %s1078 = scalar_lea.vmem [#allocation0], 2376
    %1079 = vst [vmem:[%s1078] sm:%s4] %v1077
    %s1080 = smul.addr 2, 296
    %s1081 = scalar_lea.vmem %s0, %s1080
    %v1082 = vld [vmem:[%s1081] sm:%s4]
    %s1083 = scalar_lea.vmem [#allocation0], 2368
    %1084 = vst [vmem:[%s1083] sm:%s4] %v1082
    %s1085 = smul.addr 2, 295
    %s1086 = scalar_lea.vmem %s0, %s1085
    %v1087 = vld [vmem:[%s1086] sm:%s4]
    %s1088 = scalar_lea.vmem [#allocation0], 2360
    %1089 = vst [vmem:[%s1088] sm:%s4] %v1087
    %s1090 = smul.addr 2, 294
    %s1091 = scalar_lea.vmem %s0, %s1090
    %v1092 = vld [vmem:[%s1091] sm:%s4]
    %s1093 = scalar_lea.vmem [#allocation0], 2352
    %1094 = vst [vmem:[%s1093] sm:%s4] %v1092
    %s1095 = smul.addr 2, 293
    %s1096 = scalar_lea.vmem %s0, %s1095
    %v1097 = vld [vmem:[%s1096] sm:%s4]
    %s1098 = scalar_lea.vmem [#allocation0], 2344
    %1099 = vst [vmem:[%s1098] sm:%s4] %v1097
    %s1100 = smul.addr 2, 292
    %s1101 = scalar_lea.vmem %s0, %s1100
    %v1102 = vld [vmem:[%s1101] sm:%s4]
    %s1103 = scalar_lea.vmem [#allocation0], 2336
    %1104 = vst [vmem:[%s1103] sm:%s4] %v1102
    %s1105 = smul.addr 2, 291
    %s1106 = scalar_lea.vmem %s0, %s1105
    %v1107 = vld [vmem:[%s1106] sm:%s4]
    %s1108 = scalar_lea.vmem [#allocation0], 2328
    %1109 = vst [vmem:[%s1108] sm:%s4] %v1107
    %s1110 = smul.addr 2, 290
    %s1111 = scalar_lea.vmem %s0, %s1110
    %v1112 = vld [vmem:[%s1111] sm:%s4]
    %s1113 = scalar_lea.vmem [#allocation0], 2320
    %1114 = vst [vmem:[%s1113] sm:%s4] %v1112
    %s1115 = smul.addr 2, 289
    %s1116 = scalar_lea.vmem %s0, %s1115
    %v1117 = vld [vmem:[%s1116] sm:%s4]
    %s1118 = scalar_lea.vmem [#allocation0], 2312
    %1119 = vst [vmem:[%s1118] sm:%s4] %v1117
    %s1120 = smul.addr 2, 288
    %s1121 = scalar_lea.vmem %s0, %s1120
    %v1122 = vld [vmem:[%s1121] sm:%s4]
    %s1123 = scalar_lea.vmem [#allocation0], 2304
    %1124 = vst [vmem:[%s1123] sm:%s4] %v1122
    %s1125 = smul.addr 2, 287
    %s1126 = scalar_lea.vmem %s0, %s1125
    %v1127 = vld [vmem:[%s1126] sm:%s4]
    %s1128 = scalar_lea.vmem [#allocation0], 2296
    %1129 = vst [vmem:[%s1128] sm:%s4] %v1127
    %s1130 = smul.addr 2, 286
    %s1131 = scalar_lea.vmem %s0, %s1130
    %v1132 = vld [vmem:[%s1131] sm:%s4]
    %s1133 = scalar_lea.vmem [#allocation0], 2288
    %1134 = vst [vmem:[%s1133] sm:%s4] %v1132
    %s1135 = smul.addr 2, 285
    %s1136 = scalar_lea.vmem %s0, %s1135
    %v1137 = vld [vmem:[%s1136] sm:%s4]
    %s1138 = scalar_lea.vmem [#allocation0], 2280
    %1139 = vst [vmem:[%s1138] sm:%s4] %v1137
    %s1140 = smul.addr 2, 284
    %s1141 = scalar_lea.vmem %s0, %s1140
    %v1142 = vld [vmem:[%s1141] sm:%s4]
    %s1143 = scalar_lea.vmem [#allocation0], 2272
    %1144 = vst [vmem:[%s1143] sm:%s4] %v1142
    %s1145 = smul.addr 2, 283
    %s1146 = scalar_lea.vmem %s0, %s1145
    %v1147 = vld [vmem:[%s1146] sm:%s4]
    %s1148 = scalar_lea.vmem [#allocation0], 2264
    %1149 = vst [vmem:[%s1148] sm:%s4] %v1147
    %s1150 = smul.addr 2, 282
    %s1151 = scalar_lea.vmem %s0, %s1150
    %v1152 = vld [vmem:[%s1151] sm:%s4]
    %s1153 = scalar_lea.vmem [#allocation0], 2256
    %1154 = vst [vmem:[%s1153] sm:%s4] %v1152
    %s1155 = smul.addr 2, 281
    %s1156 = scalar_lea.vmem %s0, %s1155
    %v1157 = vld [vmem:[%s1156] sm:%s4]
    %s1158 = scalar_lea.vmem [#allocation0], 2248
    %1159 = vst [vmem:[%s1158] sm:%s4] %v1157
    %s1160 = smul.addr 2, 280
    %s1161 = scalar_lea.vmem %s0, %s1160
    %v1162 = vld [vmem:[%s1161] sm:%s4]
    %s1163 = scalar_lea.vmem [#allocation0], 2240
    %1164 = vst [vmem:[%s1163] sm:%s4] %v1162
    %s1165 = smul.addr 2, 279
    %s1166 = scalar_lea.vmem %s0, %s1165
    %v1167 = vld [vmem:[%s1166] sm:%s4]
    %s1168 = scalar_lea.vmem [#allocation0], 2232
    %1169 = vst [vmem:[%s1168] sm:%s4] %v1167
    %s1170 = smul.addr 2, 278
    %s1171 = scalar_lea.vmem %s0, %s1170
    %v1172 = vld [vmem:[%s1171] sm:%s4]
    %s1173 = scalar_lea.vmem [#allocation0], 2224
    %1174 = vst [vmem:[%s1173] sm:%s4] %v1172
    %s1175 = smul.addr 2, 277
    %s1176 = scalar_lea.vmem %s0, %s1175
    %v1177 = vld [vmem:[%s1176] sm:%s4]
    %s1178 = scalar_lea.vmem [#allocation0], 2216
    %1179 = vst [vmem:[%s1178] sm:%s4] %v1177
    %s1180 = smul.addr 2, 276
    %s1181 = scalar_lea.vmem %s0, %s1180
    %v1182 = vld [vmem:[%s1181] sm:%s4]
    %s1183 = scalar_lea.vmem [#allocation0], 2208
    %1184 = vst [vmem:[%s1183] sm:%s4] %v1182
    %s1185 = smul.addr 2, 275
    %s1186 = scalar_lea.vmem %s0, %s1185
    %v1187 = vld [vmem:[%s1186] sm:%s4]
    %s1188 = scalar_lea.vmem [#allocation0], 2200
    %1189 = vst [vmem:[%s1188] sm:%s4] %v1187
    %s1190 = smul.addr 2, 274
    %s1191 = scalar_lea.vmem %s0, %s1190
    %v1192 = vld [vmem:[%s1191] sm:%s4]
    %s1193 = scalar_lea.vmem [#allocation0], 2192
    %1194 = vst [vmem:[%s1193] sm:%s4] %v1192
    %s1195 = smul.addr 2, 273
    %s1196 = scalar_lea.vmem %s0, %s1195
    %v1197 = vld [vmem:[%s1196] sm:%s4]
    %s1198 = scalar_lea.vmem [#allocation0], 2184
    %1199 = vst [vmem:[%s1198] sm:%s4] %v1197
    %s1200 = smul.addr 2, 272
    %s1201 = scalar_lea.vmem %s0, %s1200
    %v1202 = vld [vmem:[%s1201] sm:%s4]
    %s1203 = scalar_lea.vmem [#allocation0], 2176
    %1204 = vst [vmem:[%s1203] sm:%s4] %v1202
    %s1205 = smul.addr 2, 271
    %s1206 = scalar_lea.vmem %s0, %s1205
    %v1207 = vld [vmem:[%s1206] sm:%s4]
    %s1208 = scalar_lea.vmem [#allocation0], 2168
    %1209 = vst [vmem:[%s1208] sm:%s4] %v1207
    %s1210 = smul.addr 2, 270
    %s1211 = scalar_lea.vmem %s0, %s1210
    %v1212 = vld [vmem:[%s1211] sm:%s4]
    %s1213 = scalar_lea.vmem [#allocation0], 2160
    %1214 = vst [vmem:[%s1213] sm:%s4] %v1212
    %s1215 = smul.addr 2, 269
    %s1216 = scalar_lea.vmem %s0, %s1215
    %v1217 = vld [vmem:[%s1216] sm:%s4]
    %s1218 = scalar_lea.vmem [#allocation0], 2152
    %1219 = vst [vmem:[%s1218] sm:%s4] %v1217
    %s1220 = smul.addr 2, 268
    %s1221 = scalar_lea.vmem %s0, %s1220
    %v1222 = vld [vmem:[%s1221] sm:%s4]
    %s1223 = scalar_lea.vmem [#allocation0], 2144
    %1224 = vst [vmem:[%s1223] sm:%s4] %v1222
    %s1225 = smul.addr 2, 267
    %s1226 = scalar_lea.vmem %s0, %s1225
    %v1227 = vld [vmem:[%s1226] sm:%s4]
    %s1228 = scalar_lea.vmem [#allocation0], 2136
    %1229 = vst [vmem:[%s1228] sm:%s4] %v1227
    %s1230 = smul.addr 2, 266
    %s1231 = scalar_lea.vmem %s0, %s1230
    %v1232 = vld [vmem:[%s1231] sm:%s4]
    %s1233 = scalar_lea.vmem [#allocation0], 2128
    %1234 = vst [vmem:[%s1233] sm:%s4] %v1232
    %s1235 = smul.addr 2, 265
    %s1236 = scalar_lea.vmem %s0, %s1235
    %v1237 = vld [vmem:[%s1236] sm:%s4]
    %s1238 = scalar_lea.vmem [#allocation0], 2120
    %1239 = vst [vmem:[%s1238] sm:%s4] %v1237
    %s1240 = smul.addr 2, 264
    %s1241 = scalar_lea.vmem %s0, %s1240
    %v1242 = vld [vmem:[%s1241] sm:%s4]
    %s1243 = scalar_lea.vmem [#allocation0], 2112
    %1244 = vst [vmem:[%s1243] sm:%s4] %v1242
    %s1245 = smul.addr 2, 263
    %s1246 = scalar_lea.vmem %s0, %s1245
    %v1247 = vld [vmem:[%s1246] sm:%s4]
    %s1248 = scalar_lea.vmem [#allocation0], 2104
    %1249 = vst [vmem:[%s1248] sm:%s4] %v1247
    %s1250 = smul.addr 2, 262
    %s1251 = scalar_lea.vmem %s0, %s1250
    %v1252 = vld [vmem:[%s1251] sm:%s4]
    %s1253 = scalar_lea.vmem [#allocation0], 2096
    %1254 = vst [vmem:[%s1253] sm:%s4] %v1252
    %s1255 = smul.addr 2, 261
    %s1256 = scalar_lea.vmem %s0, %s1255
    %v1257 = vld [vmem:[%s1256] sm:%s4]
    %s1258 = scalar_lea.vmem [#allocation0], 2088
    %1259 = vst [vmem:[%s1258] sm:%s4] %v1257
    %s1260 = smul.addr 2, 260
    %s1261 = scalar_lea.vmem %s0, %s1260
    %v1262 = vld [vmem:[%s1261] sm:%s4]
    %s1263 = scalar_lea.vmem [#allocation0], 2080
    %1264 = vst [vmem:[%s1263] sm:%s4] %v1262
    %s1265 = smul.addr 2, 259
    %s1266 = scalar_lea.vmem %s0, %s1265
    %v1267 = vld [vmem:[%s1266] sm:%s4]
    %s1268 = scalar_lea.vmem [#allocation0], 2072
    %1269 = vst [vmem:[%s1268] sm:%s4] %v1267
    %s1270 = smul.addr 2, 258
    %s1271 = scalar_lea.vmem %s0, %s1270
    %v1272 = vld [vmem:[%s1271] sm:%s4]
    %s1273 = scalar_lea.vmem [#allocation0], 2064
    %1274 = vst [vmem:[%s1273] sm:%s4] %v1272
    %s1275 = smul.addr 2, 257
    %s1276 = scalar_lea.vmem %s0, %s1275
    %v1277 = vld [vmem:[%s1276] sm:%s4]
    %s1278 = scalar_lea.vmem [#allocation0], 2056
    %1279 = vst [vmem:[%s1278] sm:%s4] %v1277
    %s1280 = smul.addr 2, 256
    %s1281 = scalar_lea.vmem %s0, %s1280
    %v1282 = vld [vmem:[%s1281] sm:%s4]
    %s1283 = scalar_lea.vmem [#allocation0], 2048
    %1284 = vst [vmem:[%s1283] sm:%s4] %v1282
    %s1285 = smul.addr 2, 255
    %s1286 = scalar_lea.vmem %s0, %s1285
    %v1287 = vld [vmem:[%s1286] sm:%s4]
    %s1288 = scalar_lea.vmem [#allocation0], 2040
    %1289 = vst [vmem:[%s1288] sm:%s4] %v1287
    %s1290 = smul.addr 2, 254
    %s1291 = scalar_lea.vmem %s0, %s1290
    %v1292 = vld [vmem:[%s1291] sm:%s4]
    %s1293 = scalar_lea.vmem [#allocation0], 2032
    %1294 = vst [vmem:[%s1293] sm:%s4] %v1292
    %s1295 = smul.addr 2, 253
    %s1296 = scalar_lea.vmem %s0, %s1295
    %v1297 = vld [vmem:[%s1296] sm:%s4]
    %s1298 = scalar_lea.vmem [#allocation0], 2024
    %1299 = vst [vmem:[%s1298] sm:%s4] %v1297
    %s1300 = smul.addr 2, 252
    %s1301 = scalar_lea.vmem %s0, %s1300
    %v1302 = vld [vmem:[%s1301] sm:%s4]
    %s1303 = scalar_lea.vmem [#allocation0], 2016
    %1304 = vst [vmem:[%s1303] sm:%s4] %v1302
    %s1305 = smul.addr 2, 251
    %s1306 = scalar_lea.vmem %s0, %s1305
    %v1307 = vld [vmem:[%s1306] sm:%s4]
    %s1308 = scalar_lea.vmem [#allocation0], 2008
    %1309 = vst [vmem:[%s1308] sm:%s4] %v1307
    %s1310 = smul.addr 2, 250
    %s1311 = scalar_lea.vmem %s0, %s1310
    %v1312 = vld [vmem:[%s1311] sm:%s4]
    %s1313 = scalar_lea.vmem [#allocation0], 2000
    %1314 = vst [vmem:[%s1313] sm:%s4] %v1312
    %s1315 = smul.addr 2, 249
    %s1316 = scalar_lea.vmem %s0, %s1315
    %v1317 = vld [vmem:[%s1316] sm:%s4]
    %s1318 = scalar_lea.vmem [#allocation0], 1992
    %1319 = vst [vmem:[%s1318] sm:%s4] %v1317
    %s1320 = smul.addr 2, 248
    %s1321 = scalar_lea.vmem %s0, %s1320
    %v1322 = vld [vmem:[%s1321] sm:%s4]
    %s1323 = scalar_lea.vmem [#allocation0], 1984
    %1324 = vst [vmem:[%s1323] sm:%s4] %v1322
    %s1325 = smul.addr 2, 247
    %s1326 = scalar_lea.vmem %s0, %s1325
    %v1327 = vld [vmem:[%s1326] sm:%s4]
    %s1328 = scalar_lea.vmem [#allocation0], 1976
    %1329 = vst [vmem:[%s1328] sm:%s4] %v1327
    %s1330 = smul.addr 2, 246
    %s1331 = scalar_lea.vmem %s0, %s1330
    %v1332 = vld [vmem:[%s1331] sm:%s4]
    %s1333 = scalar_lea.vmem [#allocation0], 1968
    %1334 = vst [vmem:[%s1333] sm:%s4] %v1332
    %s1335 = smul.addr 2, 245
    %s1336 = scalar_lea.vmem %s0, %s1335
    %v1337 = vld [vmem:[%s1336] sm:%s4]
    %s1338 = scalar_lea.vmem [#allocation0], 1960
    %1339 = vst [vmem:[%s1338] sm:%s4] %v1337
    %s1340 = smul.addr 2, 244
    %s1341 = scalar_lea.vmem %s0, %s1340
    %v1342 = vld [vmem:[%s1341] sm:%s4]
    %s1343 = scalar_lea.vmem [#allocation0], 1952
    %1344 = vst [vmem:[%s1343] sm:%s4] %v1342
    %s1345 = smul.addr 2, 243
    %s1346 = scalar_lea.vmem %s0, %s1345
    %v1347 = vld [vmem:[%s1346] sm:%s4]
    %s1348 = scalar_lea.vmem [#allocation0], 1944
    %1349 = vst [vmem:[%s1348] sm:%s4] %v1347
    %s1350 = smul.addr 2, 242
    %s1351 = scalar_lea.vmem %s0, %s1350
    %v1352 = vld [vmem:[%s1351] sm:%s4]
    %s1353 = scalar_lea.vmem [#allocation0], 1936
    %1354 = vst [vmem:[%s1353] sm:%s4] %v1352
    %s1355 = smul.addr 2, 241
    %s1356 = scalar_lea.vmem %s0, %s1355
    %v1357 = vld [vmem:[%s1356] sm:%s4]
    %s1358 = scalar_lea.vmem [#allocation0], 1928
    %1359 = vst [vmem:[%s1358] sm:%s4] %v1357
    %s1360 = smul.addr 2, 240
    %s1361 = scalar_lea.vmem %s0, %s1360
    %v1362 = vld [vmem:[%s1361] sm:%s4]
    %s1363 = scalar_lea.vmem [#allocation0], 1920
    %1364 = vst [vmem:[%s1363] sm:%s4] %v1362
    %s1365 = smul.addr 2, 239
    %s1366 = scalar_lea.vmem %s0, %s1365
    %v1367 = vld [vmem:[%s1366] sm:%s4]
    %s1368 = scalar_lea.vmem [#allocation0], 1912
    %1369 = vst [vmem:[%s1368] sm:%s4] %v1367
    %s1370 = smul.addr 2, 238
    %s1371 = scalar_lea.vmem %s0, %s1370
    %v1372 = vld [vmem:[%s1371] sm:%s4]
    %s1373 = scalar_lea.vmem [#allocation0], 1904
    %1374 = vst [vmem:[%s1373] sm:%s4] %v1372
    %s1375 = smul.addr 2, 237
    %s1376 = scalar_lea.vmem %s0, %s1375
    %v1377 = vld [vmem:[%s1376] sm:%s4]
    %s1378 = scalar_lea.vmem [#allocation0], 1896
    %1379 = vst [vmem:[%s1378] sm:%s4] %v1377
    %s1380 = smul.addr 2, 236
    %s1381 = scalar_lea.vmem %s0, %s1380
    %v1382 = vld [vmem:[%s1381] sm:%s4]
    %s1383 = scalar_lea.vmem [#allocation0], 1888
    %1384 = vst [vmem:[%s1383] sm:%s4] %v1382
    %s1385 = smul.addr 2, 235
    %s1386 = scalar_lea.vmem %s0, %s1385
    %v1387 = vld [vmem:[%s1386] sm:%s4]
    %s1388 = scalar_lea.vmem [#allocation0], 1880
    %1389 = vst [vmem:[%s1388] sm:%s4] %v1387
    %s1390 = smul.addr 2, 234
    %s1391 = scalar_lea.vmem %s0, %s1390
    %v1392 = vld [vmem:[%s1391] sm:%s4]
    %s1393 = scalar_lea.vmem [#allocation0], 1872
    %1394 = vst [vmem:[%s1393] sm:%s4] %v1392
    %s1395 = smul.addr 2, 233
    %s1396 = scalar_lea.vmem %s0, %s1395
    %v1397 = vld [vmem:[%s1396] sm:%s4]
    %s1398 = scalar_lea.vmem [#allocation0], 1864
    %1399 = vst [vmem:[%s1398] sm:%s4] %v1397
    %s1400 = smul.addr 2, 232
    %s1401 = scalar_lea.vmem %s0, %s1400
    %v1402 = vld [vmem:[%s1401] sm:%s4]
    %s1403 = scalar_lea.vmem [#allocation0], 1856
    %1404 = vst [vmem:[%s1403] sm:%s4] %v1402
    %s1405 = smul.addr 2, 231
    %s1406 = scalar_lea.vmem %s0, %s1405
    %v1407 = vld [vmem:[%s1406] sm:%s4]
    %s1408 = scalar_lea.vmem [#allocation0], 1848
    %1409 = vst [vmem:[%s1408] sm:%s4] %v1407
    %s1410 = smul.addr 2, 230
    %s1411 = scalar_lea.vmem %s0, %s1410
    %v1412 = vld [vmem:[%s1411] sm:%s4]
    %s1413 = scalar_lea.vmem [#allocation0], 1840
    %1414 = vst [vmem:[%s1413] sm:%s4] %v1412
    %s1415 = smul.addr 2, 229
    %s1416 = scalar_lea.vmem %s0, %s1415
    %v1417 = vld [vmem:[%s1416] sm:%s4]
    %s1418 = scalar_lea.vmem [#allocation0], 1832
    %1419 = vst [vmem:[%s1418] sm:%s4] %v1417
    %s1420 = smul.addr 2, 228
    %s1421 = scalar_lea.vmem %s0, %s1420
    %v1422 = vld [vmem:[%s1421] sm:%s4]
    %s1423 = scalar_lea.vmem [#allocation0], 1824
    %1424 = vst [vmem:[%s1423] sm:%s4] %v1422
    %s1425 = smul.addr 2, 227
    %s1426 = scalar_lea.vmem %s0, %s1425
    %v1427 = vld [vmem:[%s1426] sm:%s4]
    %s1428 = scalar_lea.vmem [#allocation0], 1816
    %1429 = vst [vmem:[%s1428] sm:%s4] %v1427
    %s1430 = smul.addr 2, 226
    %s1431 = scalar_lea.vmem %s0, %s1430
    %v1432 = vld [vmem:[%s1431] sm:%s4]
    %s1433 = scalar_lea.vmem [#allocation0], 1808
    %1434 = vst [vmem:[%s1433] sm:%s4] %v1432
    %s1435 = smul.addr 2, 225
    %s1436 = scalar_lea.vmem %s0, %s1435
    %v1437 = vld [vmem:[%s1436] sm:%s4]
    %s1438 = scalar_lea.vmem [#allocation0], 1800
    %1439 = vst [vmem:[%s1438] sm:%s4] %v1437
    %s1440 = smul.addr 2, 224
    %s1441 = scalar_lea.vmem %s0, %s1440
    %v1442 = vld [vmem:[%s1441] sm:%s4]
    %s1443 = scalar_lea.vmem [#allocation0], 1792
    %1444 = vst [vmem:[%s1443] sm:%s4] %v1442
    %s1445 = smul.addr 2, 223
    %s1446 = scalar_lea.vmem %s0, %s1445
    %v1447 = vld [vmem:[%s1446] sm:%s4]
    %s1448 = scalar_lea.vmem [#allocation0], 1784
    %1449 = vst [vmem:[%s1448] sm:%s4] %v1447
    %s1450 = smul.addr 2, 222
    %s1451 = scalar_lea.vmem %s0, %s1450
    %v1452 = vld [vmem:[%s1451] sm:%s4]
    %s1453 = scalar_lea.vmem [#allocation0], 1776
    %1454 = vst [vmem:[%s1453] sm:%s4] %v1452
    %s1455 = smul.addr 2, 221
    %s1456 = scalar_lea.vmem %s0, %s1455
    %v1457 = vld [vmem:[%s1456] sm:%s4]
    %s1458 = scalar_lea.vmem [#allocation0], 1768
    %1459 = vst [vmem:[%s1458] sm:%s4] %v1457
    %s1460 = smul.addr 2, 220
    %s1461 = scalar_lea.vmem %s0, %s1460
    %v1462 = vld [vmem:[%s1461] sm:%s4]
    %s1463 = scalar_lea.vmem [#allocation0], 1760
    %1464 = vst [vmem:[%s1463] sm:%s4] %v1462
    %s1465 = smul.addr 2, 219
    %s1466 = scalar_lea.vmem %s0, %s1465
    %v1467 = vld [vmem:[%s1466] sm:%s4]
    %s1468 = scalar_lea.vmem [#allocation0], 1752
    %1469 = vst [vmem:[%s1468] sm:%s4] %v1467
    %s1470 = smul.addr 2, 218
    %s1471 = scalar_lea.vmem %s0, %s1470
    %v1472 = vld [vmem:[%s1471] sm:%s4]
    %s1473 = scalar_lea.vmem [#allocation0], 1744
    %1474 = vst [vmem:[%s1473] sm:%s4] %v1472
    %s1475 = smul.addr 2, 217
    %s1476 = scalar_lea.vmem %s0, %s1475
    %v1477 = vld [vmem:[%s1476] sm:%s4]
    %s1478 = scalar_lea.vmem [#allocation0], 1736
    %1479 = vst [vmem:[%s1478] sm:%s4] %v1477
    %s1480 = smul.addr 2, 216
    %s1481 = scalar_lea.vmem %s0, %s1480
    %v1482 = vld [vmem:[%s1481] sm:%s4]
    %s1483 = scalar_lea.vmem [#allocation0], 1728
    %1484 = vst [vmem:[%s1483] sm:%s4] %v1482
    %s1485 = smul.addr 2, 215
    %s1486 = scalar_lea.vmem %s0, %s1485
    %v1487 = vld [vmem:[%s1486] sm:%s4]
    %s1488 = scalar_lea.vmem [#allocation0], 1720
    %1489 = vst [vmem:[%s1488] sm:%s4] %v1487
    %s1490 = smul.addr 2, 214
    %s1491 = scalar_lea.vmem %s0, %s1490
    %v1492 = vld [vmem:[%s1491] sm:%s4]
    %s1493 = scalar_lea.vmem [#allocation0], 1712
    %1494 = vst [vmem:[%s1493] sm:%s4] %v1492
    %s1495 = smul.addr 2, 213
    %s1496 = scalar_lea.vmem %s0, %s1495
    %v1497 = vld [vmem:[%s1496] sm:%s4]
    %s1498 = scalar_lea.vmem [#allocation0], 1704
    %1499 = vst [vmem:[%s1498] sm:%s4] %v1497
    %s1500 = smul.addr 2, 212
    %s1501 = scalar_lea.vmem %s0, %s1500
    %v1502 = vld [vmem:[%s1501] sm:%s4]
    %s1503 = scalar_lea.vmem [#allocation0], 1696
    %1504 = vst [vmem:[%s1503] sm:%s4] %v1502
    %s1505 = smul.addr 2, 211
    %s1506 = scalar_lea.vmem %s0, %s1505
    %v1507 = vld [vmem:[%s1506] sm:%s4]
    %s1508 = scalar_lea.vmem [#allocation0], 1688
    %1509 = vst [vmem:[%s1508] sm:%s4] %v1507
    %s1510 = smul.addr 2, 210
    %s1511 = scalar_lea.vmem %s0, %s1510
    %v1512 = vld [vmem:[%s1511] sm:%s4]
    %s1513 = scalar_lea.vmem [#allocation0], 1680
    %1514 = vst [vmem:[%s1513] sm:%s4] %v1512
    %s1515 = smul.addr 2, 209
    %s1516 = scalar_lea.vmem %s0, %s1515
    %v1517 = vld [vmem:[%s1516] sm:%s4]
    %s1518 = scalar_lea.vmem [#allocation0], 1672
    %1519 = vst [vmem:[%s1518] sm:%s4] %v1517
    %s1520 = smul.addr 2, 208
    %s1521 = scalar_lea.vmem %s0, %s1520
    %v1522 = vld [vmem:[%s1521] sm:%s4]
    %s1523 = scalar_lea.vmem [#allocation0], 1664
    %1524 = vst [vmem:[%s1523] sm:%s4] %v1522
    %s1525 = smul.addr 2, 207
    %s1526 = scalar_lea.vmem %s0, %s1525
    %v1527 = vld [vmem:[%s1526] sm:%s4]
    %s1528 = scalar_lea.vmem [#allocation0], 1656
    %1529 = vst [vmem:[%s1528] sm:%s4] %v1527
    %s1530 = smul.addr 2, 206
    %s1531 = scalar_lea.vmem %s0, %s1530
    %v1532 = vld [vmem:[%s1531] sm:%s4]
    %s1533 = scalar_lea.vmem [#allocation0], 1648
    %1534 = vst [vmem:[%s1533] sm:%s4] %v1532
    %s1535 = smul.addr 2, 205
    %s1536 = scalar_lea.vmem %s0, %s1535
    %v1537 = vld [vmem:[%s1536] sm:%s4]
    %s1538 = scalar_lea.vmem [#allocation0], 1640
    %1539 = vst [vmem:[%s1538] sm:%s4] %v1537
    %s1540 = smul.addr 2, 204
    %s1541 = scalar_lea.vmem %s0, %s1540
    %v1542 = vld [vmem:[%s1541] sm:%s4]
    %s1543 = scalar_lea.vmem [#allocation0], 1632
    %1544 = vst [vmem:[%s1543] sm:%s4] %v1542
    %s1545 = smul.addr 2, 203
    %s1546 = scalar_lea.vmem %s0, %s1545
    %v1547 = vld [vmem:[%s1546] sm:%s4]
    %s1548 = scalar_lea.vmem [#allocation0], 1624
    %1549 = vst [vmem:[%s1548] sm:%s4] %v1547
    %s1550 = smul.addr 2, 202
    %s1551 = scalar_lea.vmem %s0, %s1550
    %v1552 = vld [vmem:[%s1551] sm:%s4]
    %s1553 = scalar_lea.vmem [#allocation0], 1616
    %1554 = vst [vmem:[%s1553] sm:%s4] %v1552
    %s1555 = smul.addr 2, 201
    %s1556 = scalar_lea.vmem %s0, %s1555
    %v1557 = vld [vmem:[%s1556] sm:%s4]
    %s1558 = scalar_lea.vmem [#allocation0], 1608
    %1559 = vst [vmem:[%s1558] sm:%s4] %v1557
    %s1560 = smul.addr 2, 200
    %s1561 = scalar_lea.vmem %s0, %s1560
    %v1562 = vld [vmem:[%s1561] sm:%s4]
    %s1563 = scalar_lea.vmem [#allocation0], 1600
    %1564 = vst [vmem:[%s1563] sm:%s4] %v1562
    %s1565 = smul.addr 2, 199
    %s1566 = scalar_lea.vmem %s0, %s1565
    %v1567 = vld [vmem:[%s1566] sm:%s4]
    %s1568 = scalar_lea.vmem [#allocation0], 1592
    %1569 = vst [vmem:[%s1568] sm:%s4] %v1567
    %s1570 = smul.addr 2, 198
    %s1571 = scalar_lea.vmem %s0, %s1570
    %v1572 = vld [vmem:[%s1571] sm:%s4]
    %s1573 = scalar_lea.vmem [#allocation0], 1584
    %1574 = vst [vmem:[%s1573] sm:%s4] %v1572
    %s1575 = smul.addr 2, 197
    %s1576 = scalar_lea.vmem %s0, %s1575
    %v1577 = vld [vmem:[%s1576] sm:%s4]
    %s1578 = scalar_lea.vmem [#allocation0], 1576
    %1579 = vst [vmem:[%s1578] sm:%s4] %v1577
    %s1580 = smul.addr 2, 196
    %s1581 = scalar_lea.vmem %s0, %s1580
    %v1582 = vld [vmem:[%s1581] sm:%s4]
    %s1583 = scalar_lea.vmem [#allocation0], 1568
    %1584 = vst [vmem:[%s1583] sm:%s4] %v1582
    %s1585 = smul.addr 2, 195
    %s1586 = scalar_lea.vmem %s0, %s1585
    %v1587 = vld [vmem:[%s1586] sm:%s4]
    %s1588 = scalar_lea.vmem [#allocation0], 1560
    %1589 = vst [vmem:[%s1588] sm:%s4] %v1587
    %s1590 = smul.addr 2, 194
    %s1591 = scalar_lea.vmem %s0, %s1590
    %v1592 = vld [vmem:[%s1591] sm:%s4]
    %s1593 = scalar_lea.vmem [#allocation0], 1552
    %1594 = vst [vmem:[%s1593] sm:%s4] %v1592
    %s1595 = smul.addr 2, 193
    %s1596 = scalar_lea.vmem %s0, %s1595
    %v1597 = vld [vmem:[%s1596] sm:%s4]
    %s1598 = scalar_lea.vmem [#allocation0], 1544
    %1599 = vst [vmem:[%s1598] sm:%s4] %v1597
    %s1600 = smul.addr 2, 192
    %s1601 = scalar_lea.vmem %s0, %s1600
    %v1602 = vld [vmem:[%s1601] sm:%s4]
    %s1603 = scalar_lea.vmem [#allocation0], 1536
    %1604 = vst [vmem:[%s1603] sm:%s4] %v1602
    %s1605 = smul.addr 2, 191
    %s1606 = scalar_lea.vmem %s0, %s1605
    %v1607 = vld [vmem:[%s1606] sm:%s4]
    %s1608 = scalar_lea.vmem [#allocation0], 1528
    %1609 = vst [vmem:[%s1608] sm:%s4] %v1607
    %s1610 = smul.addr 2, 190
    %s1611 = scalar_lea.vmem %s0, %s1610
    %v1612 = vld [vmem:[%s1611] sm:%s4]
    %s1613 = scalar_lea.vmem [#allocation0], 1520
    %1614 = vst [vmem:[%s1613] sm:%s4] %v1612
    %s1615 = smul.addr 2, 189
    %s1616 = scalar_lea.vmem %s0, %s1615
    %v1617 = vld [vmem:[%s1616] sm:%s4]
    %s1618 = scalar_lea.vmem [#allocation0], 1512
    %1619 = vst [vmem:[%s1618] sm:%s4] %v1617
    %s1620 = smul.addr 2, 188
    %s1621 = scalar_lea.vmem %s0, %s1620
    %v1622 = vld [vmem:[%s1621] sm:%s4]
    %s1623 = scalar_lea.vmem [#allocation0], 1504
    %1624 = vst [vmem:[%s1623] sm:%s4] %v1622
    %s1625 = smul.addr 2, 187
    %s1626 = scalar_lea.vmem %s0, %s1625
    %v1627 = vld [vmem:[%s1626] sm:%s4]
    %s1628 = scalar_lea.vmem [#allocation0], 1496
    %1629 = vst [vmem:[%s1628] sm:%s4] %v1627
    %s1630 = smul.addr 2, 186
    %s1631 = scalar_lea.vmem %s0, %s1630
    %v1632 = vld [vmem:[%s1631] sm:%s4]
    %s1633 = scalar_lea.vmem [#allocation0], 1488
    %1634 = vst [vmem:[%s1633] sm:%s4] %v1632
    %s1635 = smul.addr 2, 185
    %s1636 = scalar_lea.vmem %s0, %s1635
    %v1637 = vld [vmem:[%s1636] sm:%s4]
    %s1638 = scalar_lea.vmem [#allocation0], 1480
    %1639 = vst [vmem:[%s1638] sm:%s4] %v1637
    %s1640 = smul.addr 2, 184
    %s1641 = scalar_lea.vmem %s0, %s1640
    %v1642 = vld [vmem:[%s1641] sm:%s4]
    %s1643 = scalar_lea.vmem [#allocation0], 1472
    %1644 = vst [vmem:[%s1643] sm:%s4] %v1642
    %s1645 = smul.addr 2, 183
    %s1646 = scalar_lea.vmem %s0, %s1645
    %v1647 = vld [vmem:[%s1646] sm:%s4]
    %s1648 = scalar_lea.vmem [#allocation0], 1464
    %1649 = vst [vmem:[%s1648] sm:%s4] %v1647
    %s1650 = smul.addr 2, 182
    %s1651 = scalar_lea.vmem %s0, %s1650
    %v1652 = vld [vmem:[%s1651] sm:%s4]
    %s1653 = scalar_lea.vmem [#allocation0], 1456
    %1654 = vst [vmem:[%s1653] sm:%s4] %v1652
    %s1655 = smul.addr 2, 181
    %s1656 = scalar_lea.vmem %s0, %s1655
    %v1657 = vld [vmem:[%s1656] sm:%s4]
    %s1658 = scalar_lea.vmem [#allocation0], 1448
    %1659 = vst [vmem:[%s1658] sm:%s4] %v1657
    %s1660 = smul.addr 2, 180
    %s1661 = scalar_lea.vmem %s0, %s1660
    %v1662 = vld [vmem:[%s1661] sm:%s4]
    %s1663 = scalar_lea.vmem [#allocation0], 1440
    %1664 = vst [vmem:[%s1663] sm:%s4] %v1662
    %s1665 = smul.addr 2, 179
    %s1666 = scalar_lea.vmem %s0, %s1665
    %v1667 = vld [vmem:[%s1666] sm:%s4]
    %s1668 = scalar_lea.vmem [#allocation0], 1432
    %1669 = vst [vmem:[%s1668] sm:%s4] %v1667
    %s1670 = smul.addr 2, 178
    %s1671 = scalar_lea.vmem %s0, %s1670
    %v1672 = vld [vmem:[%s1671] sm:%s4]
    %s1673 = scalar_lea.vmem [#allocation0], 1424
    %1674 = vst [vmem:[%s1673] sm:%s4] %v1672
    %s1675 = smul.addr 2, 177
    %s1676 = scalar_lea.vmem %s0, %s1675
    %v1677 = vld [vmem:[%s1676] sm:%s4]
    %s1678 = scalar_lea.vmem [#allocation0], 1416
    %1679 = vst [vmem:[%s1678] sm:%s4] %v1677
    %s1680 = smul.addr 2, 176
    %s1681 = scalar_lea.vmem %s0, %s1680
    %v1682 = vld [vmem:[%s1681] sm:%s4]
    %s1683 = scalar_lea.vmem [#allocation0], 1408
    %1684 = vst [vmem:[%s1683] sm:%s4] %v1682
    %s1685 = smul.addr 2, 175
    %s1686 = scalar_lea.vmem %s0, %s1685
    %v1687 = vld [vmem:[%s1686] sm:%s4]
    %s1688 = scalar_lea.vmem [#allocation0], 1400
    %1689 = vst [vmem:[%s1688] sm:%s4] %v1687
    %s1690 = smul.addr 2, 174
    %s1691 = scalar_lea.vmem %s0, %s1690
    %v1692 = vld [vmem:[%s1691] sm:%s4]
    %s1693 = scalar_lea.vmem [#allocation0], 1392
    %1694 = vst [vmem:[%s1693] sm:%s4] %v1692
    %s1695 = smul.addr 2, 173
    %s1696 = scalar_lea.vmem %s0, %s1695
    %v1697 = vld [vmem:[%s1696] sm:%s4]
    %s1698 = scalar_lea.vmem [#allocation0], 1384
    %1699 = vst [vmem:[%s1698] sm:%s4] %v1697
    %s1700 = smul.addr 2, 172
    %s1701 = scalar_lea.vmem %s0, %s1700
    %v1702 = vld [vmem:[%s1701] sm:%s4]
    %s1703 = scalar_lea.vmem [#allocation0], 1376
    %1704 = vst [vmem:[%s1703] sm:%s4] %v1702
    %s1705 = smul.addr 2, 171
    %s1706 = scalar_lea.vmem %s0, %s1705
    %v1707 = vld [vmem:[%s1706] sm:%s4]
    %s1708 = scalar_lea.vmem [#allocation0], 1368
    %1709 = vst [vmem:[%s1708] sm:%s4] %v1707
    %s1710 = smul.addr 2, 170
    %s1711 = scalar_lea.vmem %s0, %s1710
    %v1712 = vld [vmem:[%s1711] sm:%s4]
    %s1713 = scalar_lea.vmem [#allocation0], 1360
    %1714 = vst [vmem:[%s1713] sm:%s4] %v1712
    %s1715 = smul.addr 2, 169
    %s1716 = scalar_lea.vmem %s0, %s1715
    %v1717 = vld [vmem:[%s1716] sm:%s4]
    %s1718 = scalar_lea.vmem [#allocation0], 1352
    %1719 = vst [vmem:[%s1718] sm:%s4] %v1717
    %s1720 = smul.addr 2, 168
    %s1721 = scalar_lea.vmem %s0, %s1720
    %v1722 = vld [vmem:[%s1721] sm:%s4]
    %s1723 = scalar_lea.vmem [#allocation0], 1344
    %1724 = vst [vmem:[%s1723] sm:%s4] %v1722
    %s1725 = smul.addr 2, 167
    %s1726 = scalar_lea.vmem %s0, %s1725
    %v1727 = vld [vmem:[%s1726] sm:%s4]
    %s1728 = scalar_lea.vmem [#allocation0], 1336
    %1729 = vst [vmem:[%s1728] sm:%s4] %v1727
    %s1730 = smul.addr 2, 166
    %s1731 = scalar_lea.vmem %s0, %s1730
    %v1732 = vld [vmem:[%s1731] sm:%s4]
    %s1733 = scalar_lea.vmem [#allocation0], 1328
    %1734 = vst [vmem:[%s1733] sm:%s4] %v1732
    %s1735 = smul.addr 2, 165
    %s1736 = scalar_lea.vmem %s0, %s1735
    %v1737 = vld [vmem:[%s1736] sm:%s4]
    %s1738 = scalar_lea.vmem [#allocation0], 1320
    %1739 = vst [vmem:[%s1738] sm:%s4] %v1737
    %s1740 = smul.addr 2, 164
    %s1741 = scalar_lea.vmem %s0, %s1740
    %v1742 = vld [vmem:[%s1741] sm:%s4]
    %s1743 = scalar_lea.vmem [#allocation0], 1312
    %1744 = vst [vmem:[%s1743] sm:%s4] %v1742
    %s1745 = smul.addr 2, 163
    %s1746 = scalar_lea.vmem %s0, %s1745
    %v1747 = vld [vmem:[%s1746] sm:%s4]
    %s1748 = scalar_lea.vmem [#allocation0], 1304
    %1749 = vst [vmem:[%s1748] sm:%s4] %v1747
    %s1750 = smul.addr 2, 162
    %s1751 = scalar_lea.vmem %s0, %s1750
    %v1752 = vld [vmem:[%s1751] sm:%s4]
    %s1753 = scalar_lea.vmem [#allocation0], 1296
    %1754 = vst [vmem:[%s1753] sm:%s4] %v1752
    %s1755 = smul.addr 2, 161
    %s1756 = scalar_lea.vmem %s0, %s1755
    %v1757 = vld [vmem:[%s1756] sm:%s4]
    %s1758 = scalar_lea.vmem [#allocation0], 1288
    %1759 = vst [vmem:[%s1758] sm:%s4] %v1757
    %s1760 = smul.addr 2, 160
    %s1761 = scalar_lea.vmem %s0, %s1760
    %v1762 = vld [vmem:[%s1761] sm:%s4]
    %s1763 = scalar_lea.vmem [#allocation0], 1280
    %1764 = vst [vmem:[%s1763] sm:%s4] %v1762
    %s1765 = smul.addr 2, 159
    %s1766 = scalar_lea.vmem %s0, %s1765
    %v1767 = vld [vmem:[%s1766] sm:%s4]
    %s1768 = scalar_lea.vmem [#allocation0], 1272
    %1769 = vst [vmem:[%s1768] sm:%s4] %v1767
    %s1770 = smul.addr 2, 158
    %s1771 = scalar_lea.vmem %s0, %s1770
    %v1772 = vld [vmem:[%s1771] sm:%s4]
    %s1773 = scalar_lea.vmem [#allocation0], 1264
    %1774 = vst [vmem:[%s1773] sm:%s4] %v1772
    %s1775 = smul.addr 2, 157
    %s1776 = scalar_lea.vmem %s0, %s1775
    %v1777 = vld [vmem:[%s1776] sm:%s4]
    %s1778 = scalar_lea.vmem [#allocation0], 1256
    %1779 = vst [vmem:[%s1778] sm:%s4] %v1777
    %s1780 = smul.addr 2, 156
    %s1781 = scalar_lea.vmem %s0, %s1780
    %v1782 = vld [vmem:[%s1781] sm:%s4]
    %s1783 = scalar_lea.vmem [#allocation0], 1248
    %1784 = vst [vmem:[%s1783] sm:%s4] %v1782
    %s1785 = smul.addr 2, 155
    %s1786 = scalar_lea.vmem %s0, %s1785
    %v1787 = vld [vmem:[%s1786] sm:%s4]
    %s1788 = scalar_lea.vmem [#allocation0], 1240
    %1789 = vst [vmem:[%s1788] sm:%s4] %v1787
    %s1790 = smul.addr 2, 154
    %s1791 = scalar_lea.vmem %s0, %s1790
    %v1792 = vld [vmem:[%s1791] sm:%s4]
    %s1793 = scalar_lea.vmem [#allocation0], 1232
    %1794 = vst [vmem:[%s1793] sm:%s4] %v1792
    %s1795 = smul.addr 2, 153
    %s1796 = scalar_lea.vmem %s0, %s1795
    %v1797 = vld [vmem:[%s1796] sm:%s4]
    %s1798 = scalar_lea.vmem [#allocation0], 1224
    %1799 = vst [vmem:[%s1798] sm:%s4] %v1797
    %s1800 = smul.addr 2, 152
    %s1801 = scalar_lea.vmem %s0, %s1800
    %v1802 = vld [vmem:[%s1801] sm:%s4]
    %s1803 = scalar_lea.vmem [#allocation0], 1216
    %1804 = vst [vmem:[%s1803] sm:%s4] %v1802
    %s1805 = smul.addr 2, 151
    %s1806 = scalar_lea.vmem %s0, %s1805
    %v1807 = vld [vmem:[%s1806] sm:%s4]
    %s1808 = scalar_lea.vmem [#allocation0], 1208
    %1809 = vst [vmem:[%s1808] sm:%s4] %v1807
    %s1810 = smul.addr 2, 150
    %s1811 = scalar_lea.vmem %s0, %s1810
    %v1812 = vld [vmem:[%s1811] sm:%s4]
    %s1813 = scalar_lea.vmem [#allocation0], 1200
    %1814 = vst [vmem:[%s1813] sm:%s4] %v1812
    %s1815 = smul.addr 2, 149
    %s1816 = scalar_lea.vmem %s0, %s1815
    %v1817 = vld [vmem:[%s1816] sm:%s4]
    %s1818 = scalar_lea.vmem [#allocation0], 1192
    %1819 = vst [vmem:[%s1818] sm:%s4] %v1817
    %s1820 = smul.addr 2, 148
    %s1821 = scalar_lea.vmem %s0, %s1820
    %v1822 = vld [vmem:[%s1821] sm:%s4]
    %s1823 = scalar_lea.vmem [#allocation0], 1184
    %1824 = vst [vmem:[%s1823] sm:%s4] %v1822
    %s1825 = smul.addr 2, 147
    %s1826 = scalar_lea.vmem %s0, %s1825
    %v1827 = vld [vmem:[%s1826] sm:%s4]
    %s1828 = scalar_lea.vmem [#allocation0], 1176
    %1829 = vst [vmem:[%s1828] sm:%s4] %v1827
    %s1830 = smul.addr 2, 146
    %s1831 = scalar_lea.vmem %s0, %s1830
    %v1832 = vld [vmem:[%s1831] sm:%s4]
    %s1833 = scalar_lea.vmem [#allocation0], 1168
    %1834 = vst [vmem:[%s1833] sm:%s4] %v1832
    %s1835 = smul.addr 2, 145
    %s1836 = scalar_lea.vmem %s0, %s1835
    %v1837 = vld [vmem:[%s1836] sm:%s4]
    %s1838 = scalar_lea.vmem [#allocation0], 1160
    %1839 = vst [vmem:[%s1838] sm:%s4] %v1837
    %s1840 = smul.addr 2, 144
    %s1841 = scalar_lea.vmem %s0, %s1840
    %v1842 = vld [vmem:[%s1841] sm:%s4]
    %s1843 = scalar_lea.vmem [#allocation0], 1152
    %1844 = vst [vmem:[%s1843] sm:%s4] %v1842
    %s1845 = smul.addr 2, 143
    %s1846 = scalar_lea.vmem %s0, %s1845
    %v1847 = vld [vmem:[%s1846] sm:%s4]
    %s1848 = scalar_lea.vmem [#allocation0], 1144
    %1849 = vst [vmem:[%s1848] sm:%s4] %v1847
    %s1850 = smul.addr 2, 142
    %s1851 = scalar_lea.vmem %s0, %s1850
    %v1852 = vld [vmem:[%s1851] sm:%s4]
    %s1853 = scalar_lea.vmem [#allocation0], 1136
    %1854 = vst [vmem:[%s1853] sm:%s4] %v1852
    %s1855 = smul.addr 2, 141
    %s1856 = scalar_lea.vmem %s0, %s1855
    %v1857 = vld [vmem:[%s1856] sm:%s4]
    %s1858 = scalar_lea.vmem [#allocation0], 1128
    %1859 = vst [vmem:[%s1858] sm:%s4] %v1857
    %s1860 = smul.addr 2, 140
    %s1861 = scalar_lea.vmem %s0, %s1860
    %v1862 = vld [vmem:[%s1861] sm:%s4]
    %s1863 = scalar_lea.vmem [#allocation0], 1120
    %1864 = vst [vmem:[%s1863] sm:%s4] %v1862
    %s1865 = smul.addr 2, 139
    %s1866 = scalar_lea.vmem %s0, %s1865
    %v1867 = vld [vmem:[%s1866] sm:%s4]
    %s1868 = scalar_lea.vmem [#allocation0], 1112
    %1869 = vst [vmem:[%s1868] sm:%s4] %v1867
    %s1870 = smul.addr 2, 138
    %s1871 = scalar_lea.vmem %s0, %s1870
    %v1872 = vld [vmem:[%s1871] sm:%s4]
    %s1873 = scalar_lea.vmem [#allocation0], 1104
    %1874 = vst [vmem:[%s1873] sm:%s4] %v1872
    %s1875 = smul.addr 2, 137
    %s1876 = scalar_lea.vmem %s0, %s1875
    %v1877 = vld [vmem:[%s1876] sm:%s4]
    %s1878 = scalar_lea.vmem [#allocation0], 1096
    %1879 = vst [vmem:[%s1878] sm:%s4] %v1877
    %s1880 = smul.addr 2, 136
    %s1881 = scalar_lea.vmem %s0, %s1880
    %v1882 = vld [vmem:[%s1881] sm:%s4]
    %s1883 = scalar_lea.vmem [#allocation0], 1088
    %1884 = vst [vmem:[%s1883] sm:%s4] %v1882
    %s1885 = smul.addr 2, 135
    %s1886 = scalar_lea.vmem %s0, %s1885
    %v1887 = vld [vmem:[%s1886] sm:%s4]
    %s1888 = scalar_lea.vmem [#allocation0], 1080
    %1889 = vst [vmem:[%s1888] sm:%s4] %v1887
    %s1890 = smul.addr 2, 134
    %s1891 = scalar_lea.vmem %s0, %s1890
    %v1892 = vld [vmem:[%s1891] sm:%s4]
    %s1893 = scalar_lea.vmem [#allocation0], 1072
    %1894 = vst [vmem:[%s1893] sm:%s4] %v1892
    %s1895 = smul.addr 2, 133
    %s1896 = scalar_lea.vmem %s0, %s1895
    %v1897 = vld [vmem:[%s1896] sm:%s4]
    %s1898 = scalar_lea.vmem [#allocation0], 1064
    %1899 = vst [vmem:[%s1898] sm:%s4] %v1897
    %s1900 = smul.addr 2, 132
    %s1901 = scalar_lea.vmem %s0, %s1900
    %v1902 = vld [vmem:[%s1901] sm:%s4]
    %s1903 = scalar_lea.vmem [#allocation0], 1056
    %1904 = vst [vmem:[%s1903] sm:%s4] %v1902
    %s1905 = smul.addr 2, 131
    %s1906 = scalar_lea.vmem %s0, %s1905
    %v1907 = vld [vmem:[%s1906] sm:%s4]
    %s1908 = scalar_lea.vmem [#allocation0], 1048
    %1909 = vst [vmem:[%s1908] sm:%s4] %v1907
    %s1910 = smul.addr 2, 130
    %s1911 = scalar_lea.vmem %s0, %s1910
    %v1912 = vld [vmem:[%s1911] sm:%s4]
    %s1913 = scalar_lea.vmem [#allocation0], 1040
    %1914 = vst [vmem:[%s1913] sm:%s4] %v1912
    %s1915 = smul.addr 2, 129
    %s1916 = scalar_lea.vmem %s0, %s1915
    %v1917 = vld [vmem:[%s1916] sm:%s4]
    %s1918 = scalar_lea.vmem [#allocation0], 1032
    %1919 = vst [vmem:[%s1918] sm:%s4] %v1917
    %s1920 = smul.addr 2, 128
    %s1921 = scalar_lea.vmem %s0, %s1920
    %v1922 = vld [vmem:[%s1921] sm:%s4]
    %s1923 = scalar_lea.vmem [#allocation0], 1024
    %1924 = vst [vmem:[%s1923] sm:%s4] %v1922
    %s1925 = smul.addr 2, 127
    %s1926 = scalar_lea.vmem %s0, %s1925
    %v1927 = vld [vmem:[%s1926] sm:%s4]
    %s1928 = scalar_lea.vmem [#allocation0], 1016
    %1929 = vst [vmem:[%s1928] sm:%s4] %v1927
    %s1930 = smul.addr 2, 126
    %s1931 = scalar_lea.vmem %s0, %s1930
    %v1932 = vld [vmem:[%s1931] sm:%s4]
    %s1933 = scalar_lea.vmem [#allocation0], 1008
    %1934 = vst [vmem:[%s1933] sm:%s4] %v1932
    %s1935 = smul.addr 2, 125
    %s1936 = scalar_lea.vmem %s0, %s1935
    %v1937 = vld [vmem:[%s1936] sm:%s4]
    %s1938 = scalar_lea.vmem [#allocation0], 1000
    %1939 = vst [vmem:[%s1938] sm:%s4] %v1937
    %s1940 = smul.addr 2, 124
    %s1941 = scalar_lea.vmem %s0, %s1940
    %v1942 = vld [vmem:[%s1941] sm:%s4]
    %s1943 = scalar_lea.vmem [#allocation0], 992
    %1944 = vst [vmem:[%s1943] sm:%s4] %v1942
    %s1945 = smul.addr 2, 123
    %s1946 = scalar_lea.vmem %s0, %s1945
    %v1947 = vld [vmem:[%s1946] sm:%s4]
    %s1948 = scalar_lea.vmem [#allocation0], 984
    %1949 = vst [vmem:[%s1948] sm:%s4] %v1947
    %s1950 = smul.addr 2, 122
    %s1951 = scalar_lea.vmem %s0, %s1950
    %v1952 = vld [vmem:[%s1951] sm:%s4]
    %s1953 = scalar_lea.vmem [#allocation0], 976
    %1954 = vst [vmem:[%s1953] sm:%s4] %v1952
    %s1955 = smul.addr 2, 121
    %s1956 = scalar_lea.vmem %s0, %s1955
    %v1957 = vld [vmem:[%s1956] sm:%s4]
    %s1958 = scalar_lea.vmem [#allocation0], 968
    %1959 = vst [vmem:[%s1958] sm:%s4] %v1957
    %s1960 = smul.addr 2, 120
    %s1961 = scalar_lea.vmem %s0, %s1960
    %v1962 = vld [vmem:[%s1961] sm:%s4]
    %s1963 = scalar_lea.vmem [#allocation0], 960
    %1964 = vst [vmem:[%s1963] sm:%s4] %v1962
    %s1965 = smul.addr 2, 119
    %s1966 = scalar_lea.vmem %s0, %s1965
    %v1967 = vld [vmem:[%s1966] sm:%s4]
    %s1968 = scalar_lea.vmem [#allocation0], 952
    %1969 = vst [vmem:[%s1968] sm:%s4] %v1967
    %s1970 = smul.addr 2, 118
    %s1971 = scalar_lea.vmem %s0, %s1970
    %v1972 = vld [vmem:[%s1971] sm:%s4]
    %s1973 = scalar_lea.vmem [#allocation0], 944
    %1974 = vst [vmem:[%s1973] sm:%s4] %v1972
    %s1975 = smul.addr 2, 117
    %s1976 = scalar_lea.vmem %s0, %s1975
    %v1977 = vld [vmem:[%s1976] sm:%s4]
    %s1978 = scalar_lea.vmem [#allocation0], 936
    %1979 = vst [vmem:[%s1978] sm:%s4] %v1977
    %s1980 = smul.addr 2, 116
    %s1981 = scalar_lea.vmem %s0, %s1980
    %v1982 = vld [vmem:[%s1981] sm:%s4]
    %s1983 = scalar_lea.vmem [#allocation0], 928
    %1984 = vst [vmem:[%s1983] sm:%s4] %v1982
    %s1985 = smul.addr 2, 115
    %s1986 = scalar_lea.vmem %s0, %s1985
    %v1987 = vld [vmem:[%s1986] sm:%s4]
    %s1988 = scalar_lea.vmem [#allocation0], 920
    %1989 = vst [vmem:[%s1988] sm:%s4] %v1987
    %s1990 = smul.addr 2, 114
    %s1991 = scalar_lea.vmem %s0, %s1990
    %v1992 = vld [vmem:[%s1991] sm:%s4]
    %s1993 = scalar_lea.vmem [#allocation0], 912
    %1994 = vst [vmem:[%s1993] sm:%s4] %v1992
    %s1995 = smul.addr 2, 113
    %s1996 = scalar_lea.vmem %s0, %s1995
    %v1997 = vld [vmem:[%s1996] sm:%s4]
    %s1998 = scalar_lea.vmem [#allocation0], 904
    %1999 = vst [vmem:[%s1998] sm:%s4] %v1997
    %s2000 = smul.addr 2, 112
    %s2001 = scalar_lea.vmem %s0, %s2000
    %v2002 = vld [vmem:[%s2001] sm:%s4]
    %s2003 = scalar_lea.vmem [#allocation0], 896
    %2004 = vst [vmem:[%s2003] sm:%s4] %v2002
    %s2005 = smul.addr 2, 111
    %s2006 = scalar_lea.vmem %s0, %s2005
    %v2007 = vld [vmem:[%s2006] sm:%s4]
    %s2008 = scalar_lea.vmem [#allocation0], 888
    %2009 = vst [vmem:[%s2008] sm:%s4] %v2007
    %s2010 = smul.addr 2, 110
    %s2011 = scalar_lea.vmem %s0, %s2010
    %v2012 = vld [vmem:[%s2011] sm:%s4]
    %s2013 = scalar_lea.vmem [#allocation0], 880
    %2014 = vst [vmem:[%s2013] sm:%s4] %v2012
    %s2015 = smul.addr 2, 109
    %s2016 = scalar_lea.vmem %s0, %s2015
    %v2017 = vld [vmem:[%s2016] sm:%s4]
    %s2018 = scalar_lea.vmem [#allocation0], 872
    %2019 = vst [vmem:[%s2018] sm:%s4] %v2017
    %s2020 = smul.addr 2, 108
    %s2021 = scalar_lea.vmem %s0, %s2020
    %v2022 = vld [vmem:[%s2021] sm:%s4]
    %s2023 = scalar_lea.vmem [#allocation0], 864
    %2024 = vst [vmem:[%s2023] sm:%s4] %v2022
    %s2025 = smul.addr 2, 107
    %s2026 = scalar_lea.vmem %s0, %s2025
    %v2027 = vld [vmem:[%s2026] sm:%s4]
    %s2028 = scalar_lea.vmem [#allocation0], 856
    %2029 = vst [vmem:[%s2028] sm:%s4] %v2027
    %s2030 = smul.addr 2, 106
    %s2031 = scalar_lea.vmem %s0, %s2030
    %v2032 = vld [vmem:[%s2031] sm:%s4]
    %s2033 = scalar_lea.vmem [#allocation0], 848
    %2034 = vst [vmem:[%s2033] sm:%s4] %v2032
    %s2035 = smul.addr 2, 105
    %s2036 = scalar_lea.vmem %s0, %s2035
    %v2037 = vld [vmem:[%s2036] sm:%s4]
    %s2038 = scalar_lea.vmem [#allocation0], 840
    %2039 = vst [vmem:[%s2038] sm:%s4] %v2037
    %s2040 = smul.addr 2, 104
    %s2041 = scalar_lea.vmem %s0, %s2040
    %v2042 = vld [vmem:[%s2041] sm:%s4]
    %s2043 = scalar_lea.vmem [#allocation0], 832
    %2044 = vst [vmem:[%s2043] sm:%s4] %v2042
    %s2045 = smul.addr 2, 103
    %s2046 = scalar_lea.vmem %s0, %s2045
    %v2047 = vld [vmem:[%s2046] sm:%s4]
    %s2048 = scalar_lea.vmem [#allocation0], 824
    %2049 = vst [vmem:[%s2048] sm:%s4] %v2047
    %s2050 = smul.addr 2, 102
    %s2051 = scalar_lea.vmem %s0, %s2050
    %v2052 = vld [vmem:[%s2051] sm:%s4]
    %s2053 = scalar_lea.vmem [#allocation0], 816
    %2054 = vst [vmem:[%s2053] sm:%s4] %v2052
    %s2055 = smul.addr 2, 101
    %s2056 = scalar_lea.vmem %s0, %s2055
    %v2057 = vld [vmem:[%s2056] sm:%s4]
    %s2058 = scalar_lea.vmem [#allocation0], 808
    %2059 = vst [vmem:[%s2058] sm:%s4] %v2057
    %s2060 = smul.addr 2, 100
    %s2061 = scalar_lea.vmem %s0, %s2060
    %v2062 = vld [vmem:[%s2061] sm:%s4]
    %s2063 = scalar_lea.vmem [#allocation0], 800
    %2064 = vst [vmem:[%s2063] sm:%s4] %v2062
    %s2065 = smul.addr 2, 99
    %s2066 = scalar_lea.vmem %s0, %s2065
    %v2067 = vld [vmem:[%s2066] sm:%s4]
    %s2068 = scalar_lea.vmem [#allocation0], 792
    %2069 = vst [vmem:[%s2068] sm:%s4] %v2067
    %s2070 = smul.addr 2, 98
    %s2071 = scalar_lea.vmem %s0, %s2070
    %v2072 = vld [vmem:[%s2071] sm:%s4]
    %s2073 = scalar_lea.vmem [#allocation0], 784
    %2074 = vst [vmem:[%s2073] sm:%s4] %v2072
    %s2075 = smul.addr 2, 97
    %s2076 = scalar_lea.vmem %s0, %s2075
    %v2077 = vld [vmem:[%s2076] sm:%s4]
    %s2078 = scalar_lea.vmem [#allocation0], 776
    %2079 = vst [vmem:[%s2078] sm:%s4] %v2077
    %s2080 = smul.addr 2, 96
    %s2081 = scalar_lea.vmem %s0, %s2080
    %v2082 = vld [vmem:[%s2081] sm:%s4]
    %s2083 = scalar_lea.vmem [#allocation0], 768
    %2084 = vst [vmem:[%s2083] sm:%s4] %v2082
    %s2085 = smul.addr 2, 95
    %s2086 = scalar_lea.vmem %s0, %s2085
    %v2087 = vld [vmem:[%s2086] sm:%s4]
    %s2088 = scalar_lea.vmem [#allocation0], 760
    %2089 = vst [vmem:[%s2088] sm:%s4] %v2087
    %s2090 = smul.addr 2, 94
    %s2091 = scalar_lea.vmem %s0, %s2090
    %v2092 = vld [vmem:[%s2091] sm:%s4]
    %s2093 = scalar_lea.vmem [#allocation0], 752
    %2094 = vst [vmem:[%s2093] sm:%s4] %v2092
    %s2095 = smul.addr 2, 93
    %s2096 = scalar_lea.vmem %s0, %s2095
    %v2097 = vld [vmem:[%s2096] sm:%s4]
    %s2098 = scalar_lea.vmem [#allocation0], 744
    %2099 = vst [vmem:[%s2098] sm:%s4] %v2097
    %s2100 = smul.addr 2, 92
    %s2101 = scalar_lea.vmem %s0, %s2100
    %v2102 = vld [vmem:[%s2101] sm:%s4]
    %s2103 = scalar_lea.vmem [#allocation0], 736
    %2104 = vst [vmem:[%s2103] sm:%s4] %v2102
    %s2105 = smul.addr 2, 91
    %s2106 = scalar_lea.vmem %s0, %s2105
    %v2107 = vld [vmem:[%s2106] sm:%s4]
    %s2108 = scalar_lea.vmem [#allocation0], 728
    %2109 = vst [vmem:[%s2108] sm:%s4] %v2107
    %s2110 = smul.addr 2, 90
    %s2111 = scalar_lea.vmem %s0, %s2110
    %v2112 = vld [vmem:[%s2111] sm:%s4]
    %s2113 = scalar_lea.vmem [#allocation0], 720
    %2114 = vst [vmem:[%s2113] sm:%s4] %v2112
    %s2115 = smul.addr 2, 89
    %s2116 = scalar_lea.vmem %s0, %s2115
    %v2117 = vld [vmem:[%s2116] sm:%s4]
    %s2118 = scalar_lea.vmem [#allocation0], 712
    %2119 = vst [vmem:[%s2118] sm:%s4] %v2117
    %s2120 = smul.addr 2, 88
    %s2121 = scalar_lea.vmem %s0, %s2120
    %v2122 = vld [vmem:[%s2121] sm:%s4]
    %s2123 = scalar_lea.vmem [#allocation0], 704
    %2124 = vst [vmem:[%s2123] sm:%s4] %v2122
    %s2125 = smul.addr 2, 87
    %s2126 = scalar_lea.vmem %s0, %s2125
    %v2127 = vld [vmem:[%s2126] sm:%s4]
    %s2128 = scalar_lea.vmem [#allocation0], 696
    %2129 = vst [vmem:[%s2128] sm:%s4] %v2127
    %s2130 = smul.addr 2, 86
    %s2131 = scalar_lea.vmem %s0, %s2130
    %v2132 = vld [vmem:[%s2131] sm:%s4]
    %s2133 = scalar_lea.vmem [#allocation0], 688
    %2134 = vst [vmem:[%s2133] sm:%s4] %v2132
    %s2135 = smul.addr 2, 85
    %s2136 = scalar_lea.vmem %s0, %s2135
    %v2137 = vld [vmem:[%s2136] sm:%s4]
    %s2138 = scalar_lea.vmem [#allocation0], 680
    %2139 = vst [vmem:[%s2138] sm:%s4] %v2137
    %s2140 = smul.addr 2, 84
    %s2141 = scalar_lea.vmem %s0, %s2140
    %v2142 = vld [vmem:[%s2141] sm:%s4]
    %s2143 = scalar_lea.vmem [#allocation0], 672
    %2144 = vst [vmem:[%s2143] sm:%s4] %v2142
    %s2145 = smul.addr 2, 83
    %s2146 = scalar_lea.vmem %s0, %s2145
    %v2147 = vld [vmem:[%s2146] sm:%s4]
    %s2148 = scalar_lea.vmem [#allocation0], 664
    %2149 = vst [vmem:[%s2148] sm:%s4] %v2147
    %s2150 = smul.addr 2, 82
    %s2151 = scalar_lea.vmem %s0, %s2150
    %v2152 = vld [vmem:[%s2151] sm:%s4]
    %s2153 = scalar_lea.vmem [#allocation0], 656
    %2154 = vst [vmem:[%s2153] sm:%s4] %v2152
    %s2155 = smul.addr 2, 81
    %s2156 = scalar_lea.vmem %s0, %s2155
    %v2157 = vld [vmem:[%s2156] sm:%s4]
    %s2158 = scalar_lea.vmem [#allocation0], 648
    %2159 = vst [vmem:[%s2158] sm:%s4] %v2157
    %s2160 = smul.addr 2, 80
    %s2161 = scalar_lea.vmem %s0, %s2160
    %v2162 = vld [vmem:[%s2161] sm:%s4]
    %s2163 = scalar_lea.vmem [#allocation0], 640
    %2164 = vst [vmem:[%s2163] sm:%s4] %v2162
    %s2165 = smul.addr 2, 79
    %s2166 = scalar_lea.vmem %s0, %s2165
    %v2167 = vld [vmem:[%s2166] sm:%s4]
    %s2168 = scalar_lea.vmem [#allocation0], 632
    %2169 = vst [vmem:[%s2168] sm:%s4] %v2167
    %s2170 = smul.addr 2, 78
    %s2171 = scalar_lea.vmem %s0, %s2170
    %v2172 = vld [vmem:[%s2171] sm:%s4]
    %s2173 = scalar_lea.vmem [#allocation0], 624
    %2174 = vst [vmem:[%s2173] sm:%s4] %v2172
    %s2175 = smul.addr 2, 77
    %s2176 = scalar_lea.vmem %s0, %s2175
    %v2177 = vld [vmem:[%s2176] sm:%s4]
    %s2178 = scalar_lea.vmem [#allocation0], 616
    %2179 = vst [vmem:[%s2178] sm:%s4] %v2177
    %s2180 = smul.addr 2, 76
    %s2181 = scalar_lea.vmem %s0, %s2180
    %v2182 = vld [vmem:[%s2181] sm:%s4]
    %s2183 = scalar_lea.vmem [#allocation0], 608
    %2184 = vst [vmem:[%s2183] sm:%s4] %v2182
    %s2185 = smul.addr 2, 75
    %s2186 = scalar_lea.vmem %s0, %s2185
    %v2187 = vld [vmem:[%s2186] sm:%s4]
    %s2188 = scalar_lea.vmem [#allocation0], 600
    %2189 = vst [vmem:[%s2188] sm:%s4] %v2187
    %s2190 = smul.addr 2, 74
    %s2191 = scalar_lea.vmem %s0, %s2190
    %v2192 = vld [vmem:[%s2191] sm:%s4]
    %s2193 = scalar_lea.vmem [#allocation0], 592
    %2194 = vst [vmem:[%s2193] sm:%s4] %v2192
    %s2195 = smul.addr 2, 73
    %s2196 = scalar_lea.vmem %s0, %s2195
    %v2197 = vld [vmem:[%s2196] sm:%s4]
    %s2198 = scalar_lea.vmem [#allocation0], 584
    %2199 = vst [vmem:[%s2198] sm:%s4] %v2197
    %s2200 = smul.addr 2, 72
    %s2201 = scalar_lea.vmem %s0, %s2200
    %v2202 = vld [vmem:[%s2201] sm:%s4]
    %s2203 = scalar_lea.vmem [#allocation0], 576
    %2204 = vst [vmem:[%s2203] sm:%s4] %v2202
    %s2205 = smul.addr 2, 71
    %s2206 = scalar_lea.vmem %s0, %s2205
    %v2207 = vld [vmem:[%s2206] sm:%s4]
    %s2208 = scalar_lea.vmem [#allocation0], 568
    %2209 = vst [vmem:[%s2208] sm:%s4] %v2207
    %s2210 = smul.addr 2, 70
    %s2211 = scalar_lea.vmem %s0, %s2210
    %v2212 = vld [vmem:[%s2211] sm:%s4]
    %s2213 = scalar_lea.vmem [#allocation0], 560
    %2214 = vst [vmem:[%s2213] sm:%s4] %v2212
    %s2215 = smul.addr 2, 69
    %s2216 = scalar_lea.vmem %s0, %s2215
    %v2217 = vld [vmem:[%s2216] sm:%s4]
    %s2218 = scalar_lea.vmem [#allocation0], 552
    %2219 = vst [vmem:[%s2218] sm:%s4] %v2217
    %s2220 = smul.addr 2, 68
    %s2221 = scalar_lea.vmem %s0, %s2220
    %v2222 = vld [vmem:[%s2221] sm:%s4]
    %s2223 = scalar_lea.vmem [#allocation0], 544
    %2224 = vst [vmem:[%s2223] sm:%s4] %v2222
    %s2225 = smul.addr 2, 67
    %s2226 = scalar_lea.vmem %s0, %s2225
    %v2227 = vld [vmem:[%s2226] sm:%s4]
    %s2228 = scalar_lea.vmem [#allocation0], 536
    %2229 = vst [vmem:[%s2228] sm:%s4] %v2227
    %s2230 = smul.addr 2, 66
    %s2231 = scalar_lea.vmem %s0, %s2230
    %v2232 = vld [vmem:[%s2231] sm:%s4]
    %s2233 = scalar_lea.vmem [#allocation0], 528
    %2234 = vst [vmem:[%s2233] sm:%s4] %v2232
    %s2235 = smul.addr 2, 65
    %s2236 = scalar_lea.vmem %s0, %s2235
    %v2237 = vld [vmem:[%s2236] sm:%s4]
    %s2238 = scalar_lea.vmem [#allocation0], 520
    %2239 = vst [vmem:[%s2238] sm:%s4] %v2237
    %s2240 = smul.addr 2, 64
    %s2241 = scalar_lea.vmem %s0, %s2240
    %v2242 = vld [vmem:[%s2241] sm:%s4]
    %s2243 = scalar_lea.vmem [#allocation0], 512
    %2244 = vst [vmem:[%s2243] sm:%s4] %v2242
    %s2245 = smul.addr 2, 63
    %s2246 = scalar_lea.vmem %s0, %s2245
    %v2247 = vld [vmem:[%s2246] sm:%s4]
    %s2248 = scalar_lea.vmem [#allocation0], 504
    %2249 = vst [vmem:[%s2248] sm:%s4] %v2247
    %s2250 = smul.addr 2, 62
    %s2251 = scalar_lea.vmem %s0, %s2250
    %v2252 = vld [vmem:[%s2251] sm:%s4]
    %s2253 = scalar_lea.vmem [#allocation0], 496
    %2254 = vst [vmem:[%s2253] sm:%s4] %v2252
    %s2255 = smul.addr 2, 61
    %s2256 = scalar_lea.vmem %s0, %s2255
    %v2257 = vld [vmem:[%s2256] sm:%s4]
    %s2258 = scalar_lea.vmem [#allocation0], 488
    %2259 = vst [vmem:[%s2258] sm:%s4] %v2257
    %s2260 = smul.addr 2, 60
    %s2261 = scalar_lea.vmem %s0, %s2260
    %v2262 = vld [vmem:[%s2261] sm:%s4]
    %s2263 = scalar_lea.vmem [#allocation0], 480
    %2264 = vst [vmem:[%s2263] sm:%s4] %v2262
    %s2265 = smul.addr 2, 59
    %s2266 = scalar_lea.vmem %s0, %s2265
    %v2267 = vld [vmem:[%s2266] sm:%s4]
    %s2268 = scalar_lea.vmem [#allocation0], 472
    %2269 = vst [vmem:[%s2268] sm:%s4] %v2267
    %s2270 = smul.addr 2, 58
    %s2271 = scalar_lea.vmem %s0, %s2270
    %v2272 = vld [vmem:[%s2271] sm:%s4]
    %s2273 = scalar_lea.vmem [#allocation0], 464
    %2274 = vst [vmem:[%s2273] sm:%s4] %v2272
    %s2275 = smul.addr 2, 57
    %s2276 = scalar_lea.vmem %s0, %s2275
    %v2277 = vld [vmem:[%s2276] sm:%s4]
    %s2278 = scalar_lea.vmem [#allocation0], 456
    %2279 = vst [vmem:[%s2278] sm:%s4] %v2277
    %s2280 = smul.addr 2, 56
    %s2281 = scalar_lea.vmem %s0, %s2280
    %v2282 = vld [vmem:[%s2281] sm:%s4]
    %s2283 = scalar_lea.vmem [#allocation0], 448
    %2284 = vst [vmem:[%s2283] sm:%s4] %v2282
    %s2285 = smul.addr 2, 55
    %s2286 = scalar_lea.vmem %s0, %s2285
    %v2287 = vld [vmem:[%s2286] sm:%s4]
    %s2288 = scalar_lea.vmem [#allocation0], 440
    %2289 = vst [vmem:[%s2288] sm:%s4] %v2287
    %s2290 = smul.addr 2, 54
    %s2291 = scalar_lea.vmem %s0, %s2290
    %v2292 = vld [vmem:[%s2291] sm:%s4]
    %s2293 = scalar_lea.vmem [#allocation0], 432
    %2294 = vst [vmem:[%s2293] sm:%s4] %v2292
    %s2295 = smul.addr 2, 53
    %s2296 = scalar_lea.vmem %s0, %s2295
    %v2297 = vld [vmem:[%s2296] sm:%s4]
    %s2298 = scalar_lea.vmem [#allocation0], 424
    %2299 = vst [vmem:[%s2298] sm:%s4] %v2297
    %s2300 = smul.addr 2, 52
    %s2301 = scalar_lea.vmem %s0, %s2300
    %v2302 = vld [vmem:[%s2301] sm:%s4]
    %s2303 = scalar_lea.vmem [#allocation0], 416
    %2304 = vst [vmem:[%s2303] sm:%s4] %v2302
    %s2305 = smul.addr 2, 51
    %s2306 = scalar_lea.vmem %s0, %s2305
    %v2307 = vld [vmem:[%s2306] sm:%s4]
    %s2308 = scalar_lea.vmem [#allocation0], 408
    %2309 = vst [vmem:[%s2308] sm:%s4] %v2307
    %s2310 = smul.addr 2, 50
    %s2311 = scalar_lea.vmem %s0, %s2310
    %v2312 = vld [vmem:[%s2311] sm:%s4]
    %s2313 = scalar_lea.vmem [#allocation0], 400
    %2314 = vst [vmem:[%s2313] sm:%s4] %v2312
    %s2315 = smul.addr 2, 49
    %s2316 = scalar_lea.vmem %s0, %s2315
    %v2317 = vld [vmem:[%s2316] sm:%s4]
    %s2318 = scalar_lea.vmem [#allocation0], 392
    %2319 = vst [vmem:[%s2318] sm:%s4] %v2317
    %s2320 = smul.addr 2, 48
    %s2321 = scalar_lea.vmem %s0, %s2320
    %v2322 = vld [vmem:[%s2321] sm:%s4]
    %s2323 = scalar_lea.vmem [#allocation0], 384
    %2324 = vst [vmem:[%s2323] sm:%s4] %v2322
    %s2325 = smul.addr 2, 47
    %s2326 = scalar_lea.vmem %s0, %s2325
    %v2327 = vld [vmem:[%s2326] sm:%s4]
    %s2328 = scalar_lea.vmem [#allocation0], 376
    %2329 = vst [vmem:[%s2328] sm:%s4] %v2327
    %s2330 = smul.addr 2, 46
    %s2331 = scalar_lea.vmem %s0, %s2330
    %v2332 = vld [vmem:[%s2331] sm:%s4]
    %s2333 = scalar_lea.vmem [#allocation0], 368
    %2334 = vst [vmem:[%s2333] sm:%s4] %v2332
    %s2335 = smul.addr 2, 45
    %s2336 = scalar_lea.vmem %s0, %s2335
    %v2337 = vld [vmem:[%s2336] sm:%s4]
    %s2338 = scalar_lea.vmem [#allocation0], 360
    %2339 = vst [vmem:[%s2338] sm:%s4] %v2337
    %s2340 = smul.addr 2, 44
    %s2341 = scalar_lea.vmem %s0, %s2340
    %v2342 = vld [vmem:[%s2341] sm:%s4]
    %s2343 = scalar_lea.vmem [#allocation0], 352
    %2344 = vst [vmem:[%s2343] sm:%s4] %v2342
    %s2345 = smul.addr 2, 43
    %s2346 = scalar_lea.vmem %s0, %s2345
    %v2347 = vld [vmem:[%s2346] sm:%s4]
    %s2348 = scalar_lea.vmem [#allocation0], 344
    %2349 = vst [vmem:[%s2348] sm:%s4] %v2347
    %s2350 = smul.addr 2, 42
    %s2351 = scalar_lea.vmem %s0, %s2350
    %v2352 = vld [vmem:[%s2351] sm:%s4]
    %s2353 = scalar_lea.vmem [#allocation0], 336
    %2354 = vst [vmem:[%s2353] sm:%s4] %v2352
    %s2355 = smul.addr 2, 41
    %s2356 = scalar_lea.vmem %s0, %s2355
    %v2357 = vld [vmem:[%s2356] sm:%s4]
    %s2358 = scalar_lea.vmem [#allocation0], 328
    %2359 = vst [vmem:[%s2358] sm:%s4] %v2357
    %s2360 = smul.addr 2, 40
    %s2361 = scalar_lea.vmem %s0, %s2360
    %v2362 = vld [vmem:[%s2361] sm:%s4]
    %s2363 = scalar_lea.vmem [#allocation0], 320
    %2364 = vst [vmem:[%s2363] sm:%s4] %v2362
    %s2365 = smul.addr 2, 39
    %s2366 = scalar_lea.vmem %s0, %s2365
    %v2367 = vld [vmem:[%s2366] sm:%s4]
    %s2368 = scalar_lea.vmem [#allocation0], 312
    %2369 = vst [vmem:[%s2368] sm:%s4] %v2367
    %s2370 = smul.addr 2, 38
    %s2371 = scalar_lea.vmem %s0, %s2370
    %v2372 = vld [vmem:[%s2371] sm:%s4]
    %s2373 = scalar_lea.vmem [#allocation0], 304
    %2374 = vst [vmem:[%s2373] sm:%s4] %v2372
    %s2375 = smul.addr 2, 37
    %s2376 = scalar_lea.vmem %s0, %s2375
    %v2377 = vld [vmem:[%s2376] sm:%s4]
    %s2378 = scalar_lea.vmem [#allocation0], 296
    %2379 = vst [vmem:[%s2378] sm:%s4] %v2377
    %s2380 = smul.addr 2, 36
    %s2381 = scalar_lea.vmem %s0, %s2380
    %v2382 = vld [vmem:[%s2381] sm:%s4]
    %s2383 = scalar_lea.vmem [#allocation0], 288
    %2384 = vst [vmem:[%s2383] sm:%s4] %v2382
    %s2385 = smul.addr 2, 35
    %s2386 = scalar_lea.vmem %s0, %s2385
    %v2387 = vld [vmem:[%s2386] sm:%s4]
    %s2388 = scalar_lea.vmem [#allocation0], 280
    %2389 = vst [vmem:[%s2388] sm:%s4] %v2387
    %s2390 = smul.addr 2, 34
    %s2391 = scalar_lea.vmem %s0, %s2390
    %v2392 = vld [vmem:[%s2391] sm:%s4]
    %s2393 = scalar_lea.vmem [#allocation0], 272
    %2394 = vst [vmem:[%s2393] sm:%s4] %v2392
    %s2395 = smul.addr 2, 33
    %s2396 = scalar_lea.vmem %s0, %s2395
    %v2397 = vld [vmem:[%s2396] sm:%s4]
    %s2398 = scalar_lea.vmem [#allocation0], 264
    %2399 = vst [vmem:[%s2398] sm:%s4] %v2397
    %s2400 = smul.addr 2, 32
    %s2401 = scalar_lea.vmem %s0, %s2400
    %v2402 = vld [vmem:[%s2401] sm:%s4]
    %s2403 = scalar_lea.vmem [#allocation0], 256
    %2404 = vst [vmem:[%s2403] sm:%s4] %v2402
    %s2405 = smul.addr 2, 31
    %s2406 = scalar_lea.vmem %s0, %s2405
    %v2407 = vld [vmem:[%s2406] sm:%s4]
    %s2408 = scalar_lea.vmem [#allocation0], 248
    %2409 = vst [vmem:[%s2408] sm:%s4] %v2407
    %s2410 = smul.addr 2, 30
    %s2411 = scalar_lea.vmem %s0, %s2410
    %v2412 = vld [vmem:[%s2411] sm:%s4]
    %s2413 = scalar_lea.vmem [#allocation0], 240
    %2414 = vst [vmem:[%s2413] sm:%s4] %v2412
    %s2415 = smul.addr 2, 29
    %s2416 = scalar_lea.vmem %s0, %s2415
    %v2417 = vld [vmem:[%s2416] sm:%s4]
    %s2418 = scalar_lea.vmem [#allocation0], 232
    %2419 = vst [vmem:[%s2418] sm:%s4] %v2417
    %s2420 = smul.addr 2, 28
    %s2421 = scalar_lea.vmem %s0, %s2420
    %v2422 = vld [vmem:[%s2421] sm:%s4]
    %s2423 = scalar_lea.vmem [#allocation0], 224
    %2424 = vst [vmem:[%s2423] sm:%s4] %v2422
    %s2425 = smul.addr 2, 27
    %s2426 = scalar_lea.vmem %s0, %s2425
    %v2427 = vld [vmem:[%s2426] sm:%s4]
    %s2428 = scalar_lea.vmem [#allocation0], 216
    %2429 = vst [vmem:[%s2428] sm:%s4] %v2427
    %s2430 = smul.addr 2, 26
    %s2431 = scalar_lea.vmem %s0, %s2430
    %v2432 = vld [vmem:[%s2431] sm:%s4]
    %s2433 = scalar_lea.vmem [#allocation0], 208
    %2434 = vst [vmem:[%s2433] sm:%s4] %v2432
    %s2435 = smul.addr 2, 25
    %s2436 = scalar_lea.vmem %s0, %s2435
    %v2437 = vld [vmem:[%s2436] sm:%s4]
    %s2438 = scalar_lea.vmem [#allocation0], 200
    %2439 = vst [vmem:[%s2438] sm:%s4] %v2437
    %s2440 = smul.addr 2, 24
    %s2441 = scalar_lea.vmem %s0, %s2440
    %v2442 = vld [vmem:[%s2441] sm:%s4]
    %s2443 = scalar_lea.vmem [#allocation0], 192
    %2444 = vst [vmem:[%s2443] sm:%s4] %v2442
    %s2445 = smul.addr 2, 23
    %s2446 = scalar_lea.vmem %s0, %s2445
    %v2447 = vld [vmem:[%s2446] sm:%s4]
    %s2448 = scalar_lea.vmem [#allocation0], 184
    %2449 = vst [vmem:[%s2448] sm:%s4] %v2447
    %s2450 = smul.addr 2, 22
    %s2451 = scalar_lea.vmem %s0, %s2450
    %v2452 = vld [vmem:[%s2451] sm:%s4]
    %s2453 = scalar_lea.vmem [#allocation0], 176
    %2454 = vst [vmem:[%s2453] sm:%s4] %v2452
    %s2455 = smul.addr 2, 21
    %s2456 = scalar_lea.vmem %s0, %s2455
    %v2457 = vld [vmem:[%s2456] sm:%s4]
    %s2458 = scalar_lea.vmem [#allocation0], 168
    %2459 = vst [vmem:[%s2458] sm:%s4] %v2457
    %s2460 = smul.addr 2, 20
    %s2461 = scalar_lea.vmem %s0, %s2460
    %v2462 = vld [vmem:[%s2461] sm:%s4]
    %s2463 = scalar_lea.vmem [#allocation0], 160
    %2464 = vst [vmem:[%s2463] sm:%s4] %v2462
    %s2465 = smul.addr 2, 19
    %s2466 = scalar_lea.vmem %s0, %s2465
    %v2467 = vld [vmem:[%s2466] sm:%s4]
    %s2468 = scalar_lea.vmem [#allocation0], 152
    %2469 = vst [vmem:[%s2468] sm:%s4] %v2467
    %s2470 = smul.addr 2, 18
    %s2471 = scalar_lea.vmem %s0, %s2470
    %v2472 = vld [vmem:[%s2471] sm:%s4]
    %s2473 = scalar_lea.vmem [#allocation0], 144
    %2474 = vst [vmem:[%s2473] sm:%s4] %v2472
    %s2475 = smul.addr 2, 17
    %s2476 = scalar_lea.vmem %s0, %s2475
    %v2477 = vld [vmem:[%s2476] sm:%s4]
    %s2478 = scalar_lea.vmem [#allocation0], 136
    %2479 = vst [vmem:[%s2478] sm:%s4] %v2477
    %s2480 = smul.addr 2, 16
    %s2481 = scalar_lea.vmem %s0, %s2480
    %v2482 = vld [vmem:[%s2481] sm:%s4]
    %s2483 = scalar_lea.vmem [#allocation0], 128
    %2484 = vst [vmem:[%s2483] sm:%s4] %v2482
    %s2485 = smul.addr 2, 15
    %s2486 = scalar_lea.vmem %s0, %s2485
    %v2487 = vld [vmem:[%s2486] sm:%s4]
    %s2488 = scalar_lea.vmem [#allocation0], 120
    %2489 = vst [vmem:[%s2488] sm:%s4] %v2487
    %s2490 = smul.addr 2, 14
    %s2491 = scalar_lea.vmem %s0, %s2490
    %v2492 = vld [vmem:[%s2491] sm:%s4]
    %s2493 = scalar_lea.vmem [#allocation0], 112
    %2494 = vst [vmem:[%s2493] sm:%s4] %v2492
    %s2495 = smul.addr 2, 13
    %s2496 = scalar_lea.vmem %s0, %s2495
    %v2497 = vld [vmem:[%s2496] sm:%s4]
    %s2498 = scalar_lea.vmem [#allocation0], 104
    %2499 = vst [vmem:[%s2498] sm:%s4] %v2497
    %s2500 = smul.addr 2, 12
    %s2501 = scalar_lea.vmem %s0, %s2500
    %v2502 = vld [vmem:[%s2501] sm:%s4]
    %s2503 = scalar_lea.vmem [#allocation0], 96
    %2504 = vst [vmem:[%s2503] sm:%s4] %v2502
    %s2505 = smul.addr 2, 11
    %s2506 = scalar_lea.vmem %s0, %s2505
    %v2507 = vld [vmem:[%s2506] sm:%s4]
    %s2508 = scalar_lea.vmem [#allocation0], 88
    %2509 = vst [vmem:[%s2508] sm:%s4] %v2507
    %s2510 = smul.addr 2, 10
    %s2511 = scalar_lea.vmem %s0, %s2510
    %v2512 = vld [vmem:[%s2511] sm:%s4]
    %s2513 = scalar_lea.vmem [#allocation0], 80
    %2514 = vst [vmem:[%s2513] sm:%s4] %v2512
    %s2515 = smul.addr 2, 9
    %s2516 = scalar_lea.vmem %s0, %s2515
    %v2517 = vld [vmem:[%s2516] sm:%s4]
    %s2518 = scalar_lea.vmem [#allocation0], 72
    %2519 = vst [vmem:[%s2518] sm:%s4] %v2517
    %s2520 = smul.addr 2, 8
    %s2521 = scalar_lea.vmem %s0, %s2520
    %v2522 = vld [vmem:[%s2521] sm:%s4]
    %s2523 = scalar_lea.vmem [#allocation0], 64
    %2524 = vst [vmem:[%s2523] sm:%s4] %v2522
    %s2525 = smul.addr 2, 7
    %s2526 = scalar_lea.vmem %s0, %s2525
    %v2527 = vld [vmem:[%s2526] sm:%s4]
    %s2528 = scalar_lea.vmem [#allocation0], 56
    %2529 = vst [vmem:[%s2528] sm:%s4] %v2527
    %s2530 = smul.addr 2, 6
    %s2531 = scalar_lea.vmem %s0, %s2530
    %v2532 = vld [vmem:[%s2531] sm:%s4]
    %s2533 = scalar_lea.vmem [#allocation0], 48
    %2534 = vst [vmem:[%s2533] sm:%s4] %v2532
    %s2535 = smul.addr 2, 5
    %s2536 = scalar_lea.vmem %s0, %s2535
    %v2537 = vld [vmem:[%s2536] sm:%s4]
    %s2538 = scalar_lea.vmem [#allocation0], 40
    %2539 = vst [vmem:[%s2538] sm:%s4] %v2537
    %s2540 = smul.addr 2, 4
    %s2541 = scalar_lea.vmem %s0, %s2540
    %v2542 = vld [vmem:[%s2541] sm:%s4]
    %s2543 = scalar_lea.vmem [#allocation0], 32
    %2544 = vst [vmem:[%s2543] sm:%s4] %v2542
    %s2545 = smul.addr 2, 3
    %s2546 = scalar_lea.vmem %s0, %s2545
    %v2547 = vld [vmem:[%s2546] sm:%s4]
    %s2548 = scalar_lea.vmem [#allocation0], 24
    %2549 = vst [vmem:[%s2548] sm:%s4] %v2547
    %s2550 = smul.addr 2, 2
    %s2551 = scalar_lea.vmem %s0, %s2550
    %v2552 = vld [vmem:[%s2551] sm:%s4]
    %s2553 = scalar_lea.vmem [#allocation0], 16
    %2554 = vst [vmem:[%s2553] sm:%s4] %v2552
    %s2555 = scalar_lea.vmem %s0, 2
    %v2556 = vld [vmem:[%s2555] sm:%s4]
    %s2557 = scalar_lea.vmem [#allocation0], 8
    %2558 = vst [vmem:[%s2557] sm:%s4] %v2556
    %v2559 = vld [vmem:[%s0] sm:%s4]
    %2560 = vst [vmem:[#allocation0] sm:%s4] %v2559
    %v2561 = vld [vmem:[#allocation0] ss:$8 sm:$0xf]
    %v2562 = vld [vmem:[#allocation0] ss:$8 sm:$0xf0]
    %vm2563 = vcmask 1047556
    %v2564 = vsel %vm2563, %v2562, %v2561
    %vm2565 = vcmask 400384
    %2566 = vst.msk [vmem:[%s1] sm:$0xff] %vm2565, %v2564
    %s2567 = scalar_lea.vmem [#allocation0], 64
    %v2568 = vld [vmem:[%s2567] ss:$8 sm:$0xf]
    %s2569 = scalar_lea.vmem [#allocation0], 64
    %v2570 = vld [vmem:[%s2569] ss:$8 sm:$0xf0]
    %vm2571 = vcmask 1047556
    %v2572 = vsel %vm2571, %v2570, %v2568
    %vm2573 = vcmask 400384
    %s2574 = scalar_lea.vmem %s1, 8
    %2575 = vst.msk [vmem:[%s2574] sm:$0xff] %vm2573, %v2572
    %s2576 = scalar_lea.vmem [#allocation0], 128
    %v2577 = vld [vmem:[%s2576] ss:$8 sm:$0xf]
    %s2578 = scalar_lea.vmem [#allocation0], 128
    %v2579 = vld [vmem:[%s2578] ss:$8 sm:$0xf0]
    %vm2580 = vcmask 1047556
    %v2581 = vsel %vm2580, %v2579, %v2577
    %vm2582 = vcmask 400384
    %s2583 = scalar_lea.vmem %s1, 16
    %2584 = vst.msk [vmem:[%s2583] sm:$0xff] %vm2582, %v2581
    %s2585 = scalar_lea.vmem [#allocation0], 192
    %v2586 = vld [vmem:[%s2585] ss:$8 sm:$0xf]
    %s2587 = scalar_lea.vmem [#allocation0], 192
    %v2588 = vld [vmem:[%s2587] ss:$8 sm:$0xf0]
    %vm2589 = vcmask 1047556
    %v2590 = vsel %vm2589, %v2588, %v2586
    %vm2591 = vcmask 400384
    %s2592 = scalar_lea.vmem %s1, 24
    %2593 = vst.msk [vmem:[%s2592] sm:$0xff] %vm2591, %v2590
    %s2594 = scalar_lea.vmem [#allocation0], 256
    %v2595 = vld [vmem:[%s2594] ss:$8 sm:$0xf]
    %s2596 = scalar_lea.vmem [#allocation0], 256
    %v2597 = vld [vmem:[%s2596] ss:$8 sm:$0xf0]
    %vm2598 = vcmask 1047556
    %v2599 = vsel %vm2598, %v2597, %v2595
    %vm2600 = vcmask 400384
    %s2601 = scalar_lea.vmem %s1, 32
    %2602 = vst.msk [vmem:[%s2601] sm:$0xff] %vm2600, %v2599
    %s2603 = scalar_lea.vmem [#allocation0], 320
    %v2604 = vld [vmem:[%s2603] ss:$8 sm:$0xf]
    %s2605 = scalar_lea.vmem [#allocation0], 320
    %v2606 = vld [vmem:[%s2605] ss:$8 sm:$0xf0]
    %vm2607 = vcmask 1047556
    %v2608 = vsel %vm2607, %v2606, %v2604
    %vm2609 = vcmask 400384
    %s2610 = scalar_lea.vmem %s1, 40
    %2611 = vst.msk [vmem:[%s2610] sm:$0xff] %vm2609, %v2608
    %s2612 = scalar_lea.vmem [#allocation0], 384
    %v2613 = vld [vmem:[%s2612] ss:$8 sm:$0xf]
    %s2614 = scalar_lea.vmem [#allocation0], 384
    %v2615 = vld [vmem:[%s2614] ss:$8 sm:$0xf0]
    %vm2616 = vcmask 1047556
    %v2617 = vsel %vm2616, %v2615, %v2613
    %vm2618 = vcmask 400384
    %s2619 = scalar_lea.vmem %s1, 48
    %2620 = vst.msk [vmem:[%s2619] sm:$0xff] %vm2618, %v2617
    %s2621 = scalar_lea.vmem [#allocation0], 448
    %v2622 = vld [vmem:[%s2621] ss:$8 sm:$0xf]
    %s2623 = scalar_lea.vmem [#allocation0], 448
    %v2624 = vld [vmem:[%s2623] ss:$8 sm:$0xf0]
    %vm2625 = vcmask 1047556
    %v2626 = vsel %vm2625, %v2624, %v2622
    %vm2627 = vcmask 400384
    %s2628 = scalar_lea.vmem %s1, 56
    %2629 = vst.msk [vmem:[%s2628] sm:$0xff] %vm2627, %v2626
    %s2630 = scalar_lea.vmem [#allocation0], 512
    %v2631 = vld [vmem:[%s2630] ss:$8 sm:$0xf]
    %s2632 = scalar_lea.vmem [#allocation0], 512
    %v2633 = vld [vmem:[%s2632] ss:$8 sm:$0xf0]
    %vm2634 = vcmask 1047556
    %v2635 = vsel %vm2634, %v2633, %v2631
    %vm2636 = vcmask 400384
    %s2637 = scalar_lea.vmem %s1, 64
    %2638 = vst.msk [vmem:[%s2637] sm:$0xff] %vm2636, %v2635
    %s2639 = scalar_lea.vmem [#allocation0], 576
    %v2640 = vld [vmem:[%s2639] ss:$8 sm:$0xf]
    %s2641 = scalar_lea.vmem [#allocation0], 576
    %v2642 = vld [vmem:[%s2641] ss:$8 sm:$0xf0]
    %vm2643 = vcmask 1047556
    %v2644 = vsel %vm2643, %v2642, %v2640
    %vm2645 = vcmask 400384
    %s2646 = scalar_lea.vmem %s1, 72
    %2647 = vst.msk [vmem:[%s2646] sm:$0xff] %vm2645, %v2644
    %s2648 = scalar_lea.vmem [#allocation0], 640
    %v2649 = vld [vmem:[%s2648] ss:$8 sm:$0xf]
    %s2650 = scalar_lea.vmem [#allocation0], 640
    %v2651 = vld [vmem:[%s2650] ss:$8 sm:$0xf0]
    %vm2652 = vcmask 1047556
    %v2653 = vsel %vm2652, %v2651, %v2649
    %vm2654 = vcmask 400384
    %s2655 = scalar_lea.vmem %s1, 80
    %2656 = vst.msk [vmem:[%s2655] sm:$0xff] %vm2654, %v2653
    %s2657 = scalar_lea.vmem [#allocation0], 704
    %v2658 = vld [vmem:[%s2657] ss:$8 sm:$0xf]
    %s2659 = scalar_lea.vmem [#allocation0], 704
    %v2660 = vld [vmem:[%s2659] ss:$8 sm:$0xf0]
    %vm2661 = vcmask 1047556
    %v2662 = vsel %vm2661, %v2660, %v2658
    %vm2663 = vcmask 400384
    %s2664 = scalar_lea.vmem %s1, 88
    %2665 = vst.msk [vmem:[%s2664] sm:$0xff] %vm2663, %v2662
    %s2666 = scalar_lea.vmem [#allocation0], 768
    %v2667 = vld [vmem:[%s2666] ss:$8 sm:$0xf]
    %s2668 = scalar_lea.vmem [#allocation0], 768
    %v2669 = vld [vmem:[%s2668] ss:$8 sm:$0xf0]
    %vm2670 = vcmask 1047556
    %v2671 = vsel %vm2670, %v2669, %v2667
    %vm2672 = vcmask 400384
    %s2673 = scalar_lea.vmem %s1, 96
    %2674 = vst.msk [vmem:[%s2673] sm:$0xff] %vm2672, %v2671
    %s2675 = scalar_lea.vmem [#allocation0], 832
    %v2676 = vld [vmem:[%s2675] ss:$8 sm:$0xf]
    %s2677 = scalar_lea.vmem [#allocation0], 832
    %v2678 = vld [vmem:[%s2677] ss:$8 sm:$0xf0]
    %vm2679 = vcmask 1047556
    %v2680 = vsel %vm2679, %v2678, %v2676
    %vm2681 = vcmask 400384
    %s2682 = scalar_lea.vmem %s1, 104
    %2683 = vst.msk [vmem:[%s2682] sm:$0xff] %vm2681, %v2680
    %s2684 = scalar_lea.vmem [#allocation0], 896
    %v2685 = vld [vmem:[%s2684] ss:$8 sm:$0xf]
    %s2686 = scalar_lea.vmem [#allocation0], 896
    %v2687 = vld [vmem:[%s2686] ss:$8 sm:$0xf0]
    %vm2688 = vcmask 1047556
    %v2689 = vsel %vm2688, %v2687, %v2685
    %vm2690 = vcmask 400384
    %s2691 = scalar_lea.vmem %s1, 112
    %2692 = vst.msk [vmem:[%s2691] sm:$0xff] %vm2690, %v2689
    %s2693 = scalar_lea.vmem [#allocation0], 960
    %v2694 = vld [vmem:[%s2693] ss:$8 sm:$0xf]
    %s2695 = scalar_lea.vmem [#allocation0], 960
    %v2696 = vld [vmem:[%s2695] ss:$8 sm:$0xf0]
    %vm2697 = vcmask 1047556
    %v2698 = vsel %vm2697, %v2696, %v2694
    %vm2699 = vcmask 400384
    %s2700 = scalar_lea.vmem %s1, 120
    %2701 = vst.msk [vmem:[%s2700] sm:$0xff] %vm2699, %v2698
    %s2702 = scalar_lea.vmem [#allocation0], 1024
    %v2703 = vld [vmem:[%s2702] ss:$8 sm:$0xf]
    %s2704 = scalar_lea.vmem [#allocation0], 1024
    %v2705 = vld [vmem:[%s2704] ss:$8 sm:$0xf0]
    %vm2706 = vcmask 1047556
    %v2707 = vsel %vm2706, %v2705, %v2703
    %vm2708 = vcmask 400384
    %s2709 = scalar_lea.vmem %s1, 128
    %2710 = vst.msk [vmem:[%s2709] sm:$0xff] %vm2708, %v2707
    %s2711 = scalar_lea.vmem [#allocation0], 1088
    %v2712 = vld [vmem:[%s2711] ss:$8 sm:$0xf]
    %s2713 = scalar_lea.vmem [#allocation0], 1088
    %v2714 = vld [vmem:[%s2713] ss:$8 sm:$0xf0]
    %vm2715 = vcmask 1047556
    %v2716 = vsel %vm2715, %v2714, %v2712
    %vm2717 = vcmask 400384
    %s2718 = scalar_lea.vmem %s1, 136
    %2719 = vst.msk [vmem:[%s2718] sm:$0xff] %vm2717, %v2716
    %s2720 = scalar_lea.vmem [#allocation0], 1152
    %v2721 = vld [vmem:[%s2720] ss:$8 sm:$0xf]
    %s2722 = scalar_lea.vmem [#allocation0], 1152
    %v2723 = vld [vmem:[%s2722] ss:$8 sm:$0xf0]
    %vm2724 = vcmask 1047556
    %v2725 = vsel %vm2724, %v2723, %v2721
    %vm2726 = vcmask 400384
    %s2727 = scalar_lea.vmem %s1, 144
    %2728 = vst.msk [vmem:[%s2727] sm:$0xff] %vm2726, %v2725
    %s2729 = scalar_lea.vmem [#allocation0], 1216
    %v2730 = vld [vmem:[%s2729] ss:$8 sm:$0xf]
    %s2731 = scalar_lea.vmem [#allocation0], 1216
    %v2732 = vld [vmem:[%s2731] ss:$8 sm:$0xf0]
    %vm2733 = vcmask 1047556
    %v2734 = vsel %vm2733, %v2732, %v2730
    %vm2735 = vcmask 400384
    %s2736 = scalar_lea.vmem %s1, 152
    %2737 = vst.msk [vmem:[%s2736] sm:$0xff] %vm2735, %v2734
    %s2738 = scalar_lea.vmem [#allocation0], 1280
    %v2739 = vld [vmem:[%s2738] ss:$8 sm:$0xf]
    %s2740 = scalar_lea.vmem [#allocation0], 1280
    %v2741 = vld [vmem:[%s2740] ss:$8 sm:$0xf0]
    %vm2742 = vcmask 1047556
    %v2743 = vsel %vm2742, %v2741, %v2739
    %vm2744 = vcmask 400384
    %s2745 = scalar_lea.vmem %s1, 160
    %2746 = vst.msk [vmem:[%s2745] sm:$0xff] %vm2744, %v2743
    %s2747 = scalar_lea.vmem [#allocation0], 1344
    %v2748 = vld [vmem:[%s2747] ss:$8 sm:$0xf]
    %s2749 = scalar_lea.vmem [#allocation0], 1344
    %v2750 = vld [vmem:[%s2749] ss:$8 sm:$0xf0]
    %vm2751 = vcmask 1047556
    %v2752 = vsel %vm2751, %v2750, %v2748
    %vm2753 = vcmask 400384
    %s2754 = scalar_lea.vmem %s1, 168
    %2755 = vst.msk [vmem:[%s2754] sm:$0xff] %vm2753, %v2752
    %s2756 = scalar_lea.vmem [#allocation0], 1408
    %v2757 = vld [vmem:[%s2756] ss:$8 sm:$0xf]
    %s2758 = scalar_lea.vmem [#allocation0], 1408
    %v2759 = vld [vmem:[%s2758] ss:$8 sm:$0xf0]
    %vm2760 = vcmask 1047556
    %v2761 = vsel %vm2760, %v2759, %v2757
    %vm2762 = vcmask 400384
    %s2763 = scalar_lea.vmem %s1, 176
    %2764 = vst.msk [vmem:[%s2763] sm:$0xff] %vm2762, %v2761
    %s2765 = scalar_lea.vmem [#allocation0], 1472
    %v2766 = vld [vmem:[%s2765] ss:$8 sm:$0xf]
    %s2767 = scalar_lea.vmem [#allocation0], 1472
    %v2768 = vld [vmem:[%s2767] ss:$8 sm:$0xf0]
    %vm2769 = vcmask 1047556
    %v2770 = vsel %vm2769, %v2768, %v2766
    %vm2771 = vcmask 400384
    %s2772 = scalar_lea.vmem %s1, 184
    %2773 = vst.msk [vmem:[%s2772] sm:$0xff] %vm2771, %v2770
    %s2774 = scalar_lea.vmem [#allocation0], 1536
    %v2775 = vld [vmem:[%s2774] ss:$8 sm:$0xf]
    %s2776 = scalar_lea.vmem [#allocation0], 1536
    %v2777 = vld [vmem:[%s2776] ss:$8 sm:$0xf0]
    %vm2778 = vcmask 1047556
    %v2779 = vsel %vm2778, %v2777, %v2775
    %vm2780 = vcmask 400384
    %s2781 = scalar_lea.vmem %s1, 192
    %2782 = vst.msk [vmem:[%s2781] sm:$0xff] %vm2780, %v2779
    %s2783 = scalar_lea.vmem [#allocation0], 1600
    %v2784 = vld [vmem:[%s2783] ss:$8 sm:$0xf]
    %s2785 = scalar_lea.vmem [#allocation0], 1600
    %v2786 = vld [vmem:[%s2785] ss:$8 sm:$0xf0]
    %vm2787 = vcmask 1047556
    %v2788 = vsel %vm2787, %v2786, %v2784
    %vm2789 = vcmask 400384
    %s2790 = scalar_lea.vmem %s1, 200
    %2791 = vst.msk [vmem:[%s2790] sm:$0xff] %vm2789, %v2788
    %s2792 = scalar_lea.vmem [#allocation0], 1664
    %v2793 = vld [vmem:[%s2792] ss:$8 sm:$0xf]
    %s2794 = scalar_lea.vmem [#allocation0], 1664
    %v2795 = vld [vmem:[%s2794] ss:$8 sm:$0xf0]
    %vm2796 = vcmask 1047556
    %v2797 = vsel %vm2796, %v2795, %v2793
    %vm2798 = vcmask 400384
    %s2799 = scalar_lea.vmem %s1, 208
    %2800 = vst.msk [vmem:[%s2799] sm:$0xff] %vm2798, %v2797
    %s2801 = scalar_lea.vmem [#allocation0], 1728
    %v2802 = vld [vmem:[%s2801] ss:$8 sm:$0xf]
    %s2803 = scalar_lea.vmem [#allocation0], 1728
    %v2804 = vld [vmem:[%s2803] ss:$8 sm:$0xf0]
    %vm2805 = vcmask 1047556
    %v2806 = vsel %vm2805, %v2804, %v2802
    %vm2807 = vcmask 400384
    %s2808 = scalar_lea.vmem %s1, 216
    %2809 = vst.msk [vmem:[%s2808] sm:$0xff] %vm2807, %v2806
    %s2810 = scalar_lea.vmem [#allocation0], 1792
    %v2811 = vld [vmem:[%s2810] ss:$8 sm:$0xf]
    %s2812 = scalar_lea.vmem [#allocation0], 1792
    %v2813 = vld [vmem:[%s2812] ss:$8 sm:$0xf0]
    %vm2814 = vcmask 1047556
    %v2815 = vsel %vm2814, %v2813, %v2811
    %vm2816 = vcmask 400384
    %s2817 = scalar_lea.vmem %s1, 224
    %2818 = vst.msk [vmem:[%s2817] sm:$0xff] %vm2816, %v2815
    %s2819 = scalar_lea.vmem [#allocation0], 1856
    %v2820 = vld [vmem:[%s2819] ss:$8 sm:$0xf]
    %s2821 = scalar_lea.vmem [#allocation0], 1856
    %v2822 = vld [vmem:[%s2821] ss:$8 sm:$0xf0]
    %vm2823 = vcmask 1047556
    %v2824 = vsel %vm2823, %v2822, %v2820
    %vm2825 = vcmask 400384
    %s2826 = scalar_lea.vmem %s1, 232
    %2827 = vst.msk [vmem:[%s2826] sm:$0xff] %vm2825, %v2824
    %s2828 = scalar_lea.vmem [#allocation0], 1920
    %v2829 = vld [vmem:[%s2828] ss:$8 sm:$0xf]
    %s2830 = scalar_lea.vmem [#allocation0], 1920
    %v2831 = vld [vmem:[%s2830] ss:$8 sm:$0xf0]
    %vm2832 = vcmask 1047556
    %v2833 = vsel %vm2832, %v2831, %v2829
    %vm2834 = vcmask 400384
    %s2835 = scalar_lea.vmem %s1, 240
    %2836 = vst.msk [vmem:[%s2835] sm:$0xff] %vm2834, %v2833
    %s2837 = scalar_lea.vmem [#allocation0], 1984
    %v2838 = vld [vmem:[%s2837] ss:$8 sm:$0xf]
    %s2839 = scalar_lea.vmem [#allocation0], 1984
    %v2840 = vld [vmem:[%s2839] ss:$8 sm:$0xf0]
    %vm2841 = vcmask 1047556
    %v2842 = vsel %vm2841, %v2840, %v2838
    %vm2843 = vcmask 400384
    %s2844 = scalar_lea.vmem %s1, 248
    %2845 = vst.msk [vmem:[%s2844] sm:$0xff] %vm2843, %v2842
    %s2846 = scalar_lea.vmem [#allocation0], 2048
    %v2847 = vld [vmem:[%s2846] ss:$8 sm:$0xf]
    %s2848 = scalar_lea.vmem [#allocation0], 2048
    %v2849 = vld [vmem:[%s2848] ss:$8 sm:$0xf0]
    %vm2850 = vcmask 1047556
    %v2851 = vsel %vm2850, %v2849, %v2847
    %vm2852 = vcmask 400384
    %s2853 = scalar_lea.vmem %s1, 256
    %2854 = vst.msk [vmem:[%s2853] sm:$0xff] %vm2852, %v2851
    %s2855 = scalar_lea.vmem [#allocation0], 2112
    %v2856 = vld [vmem:[%s2855] ss:$8 sm:$0xf]
    %s2857 = scalar_lea.vmem [#allocation0], 2112
    %v2858 = vld [vmem:[%s2857] ss:$8 sm:$0xf0]
    %vm2859 = vcmask 1047556
    %v2860 = vsel %vm2859, %v2858, %v2856
    %vm2861 = vcmask 400384
    %s2862 = scalar_lea.vmem %s1, 264
    %2863 = vst.msk [vmem:[%s2862] sm:$0xff] %vm2861, %v2860
    %s2864 = scalar_lea.vmem [#allocation0], 2176
    %v2865 = vld [vmem:[%s2864] ss:$8 sm:$0xf]
    %s2866 = scalar_lea.vmem [#allocation0], 2176
    %v2867 = vld [vmem:[%s2866] ss:$8 sm:$0xf0]
    %vm2868 = vcmask 1047556
    %v2869 = vsel %vm2868, %v2867, %v2865
    %vm2870 = vcmask 400384
    %s2871 = scalar_lea.vmem %s1, 272
    %2872 = vst.msk [vmem:[%s2871] sm:$0xff] %vm2870, %v2869
    %s2873 = scalar_lea.vmem [#allocation0], 2240
    %v2874 = vld [vmem:[%s2873] ss:$8 sm:$0xf]
    %s2875 = scalar_lea.vmem [#allocation0], 2240
    %v2876 = vld [vmem:[%s2875] ss:$8 sm:$0xf0]
    %vm2877 = vcmask 1047556
    %v2878 = vsel %vm2877, %v2876, %v2874
    %vm2879 = vcmask 400384
    %s2880 = scalar_lea.vmem %s1, 280
    %2881 = vst.msk [vmem:[%s2880] sm:$0xff] %vm2879, %v2878
    %s2882 = scalar_lea.vmem [#allocation0], 2304
    %v2883 = vld [vmem:[%s2882] ss:$8 sm:$0xf]
    %s2884 = scalar_lea.vmem [#allocation0], 2304
    %v2885 = vld [vmem:[%s2884] ss:$8 sm:$0xf0]
    %vm2886 = vcmask 1047556
    %v2887 = vsel %vm2886, %v2885, %v2883
    %vm2888 = vcmask 400384
    %s2889 = scalar_lea.vmem %s1, 288
    %2890 = vst.msk [vmem:[%s2889] sm:$0xff] %vm2888, %v2887
    %s2891 = scalar_lea.vmem [#allocation0], 2368
    %v2892 = vld [vmem:[%s2891] ss:$8 sm:$0xf]
    %s2893 = scalar_lea.vmem [#allocation0], 2368
    %v2894 = vld [vmem:[%s2893] ss:$8 sm:$0xf0]
    %vm2895 = vcmask 1047556
    %v2896 = vsel %vm2895, %v2894, %v2892
    %vm2897 = vcmask 400384
    %s2898 = scalar_lea.vmem %s1, 296
    %2899 = vst.msk [vmem:[%s2898] sm:$0xff] %vm2897, %v2896
    %s2900 = scalar_lea.vmem [#allocation0], 2432
    %v2901 = vld [vmem:[%s2900] ss:$8 sm:$0xf]
    %s2902 = scalar_lea.vmem [#allocation0], 2432
    %v2903 = vld [vmem:[%s2902] ss:$8 sm:$0xf0]
    %vm2904 = vcmask 1047556
    %v2905 = vsel %vm2904, %v2903, %v2901
    %vm2906 = vcmask 400384
    %s2907 = scalar_lea.vmem %s1, 304
    %2908 = vst.msk [vmem:[%s2907] sm:$0xff] %vm2906, %v2905
    %s2909 = scalar_lea.vmem [#allocation0], 2496
    %v2910 = vld [vmem:[%s2909] ss:$8 sm:$0xf]
    %s2911 = scalar_lea.vmem [#allocation0], 2496
    %v2912 = vld [vmem:[%s2911] ss:$8 sm:$0xf0]
    %vm2913 = vcmask 1047556
    %v2914 = vsel %vm2913, %v2912, %v2910
    %vm2915 = vcmask 400384
    %s2916 = scalar_lea.vmem %s1, 312
    %2917 = vst.msk [vmem:[%s2916] sm:$0xff] %vm2915, %v2914
    %s2918 = scalar_lea.vmem [#allocation0], 2560
    %v2919 = vld [vmem:[%s2918] ss:$8 sm:$0xf]
    %s2920 = scalar_lea.vmem [#allocation0], 2560
    %v2921 = vld [vmem:[%s2920] ss:$8 sm:$0xf0]
    %vm2922 = vcmask 1047556
    %v2923 = vsel %vm2922, %v2921, %v2919
    %vm2924 = vcmask 400384
    %s2925 = scalar_lea.vmem %s1, 320
    %2926 = vst.msk [vmem:[%s2925] sm:$0xff] %vm2924, %v2923
    %s2927 = scalar_lea.vmem [#allocation0], 2624
    %v2928 = vld [vmem:[%s2927] ss:$8 sm:$0xf]
    %s2929 = scalar_lea.vmem [#allocation0], 2624
    %v2930 = vld [vmem:[%s2929] ss:$8 sm:$0xf0]
    %vm2931 = vcmask 1047556
    %v2932 = vsel %vm2931, %v2930, %v2928
    %vm2933 = vcmask 400384
    %s2934 = scalar_lea.vmem %s1, 328
    %2935 = vst.msk [vmem:[%s2934] sm:$0xff] %vm2933, %v2932
    %s2936 = scalar_lea.vmem [#allocation0], 2688
    %v2937 = vld [vmem:[%s2936] ss:$8 sm:$0xf]
    %s2938 = scalar_lea.vmem [#allocation0], 2688
    %v2939 = vld [vmem:[%s2938] ss:$8 sm:$0xf0]
    %vm2940 = vcmask 1047556
    %v2941 = vsel %vm2940, %v2939, %v2937
    %vm2942 = vcmask 400384
    %s2943 = scalar_lea.vmem %s1, 336
    %2944 = vst.msk [vmem:[%s2943] sm:$0xff] %vm2942, %v2941
    %s2945 = scalar_lea.vmem [#allocation0], 2752
    %v2946 = vld [vmem:[%s2945] ss:$8 sm:$0xf]
    %s2947 = scalar_lea.vmem [#allocation0], 2752
    %v2948 = vld [vmem:[%s2947] ss:$8 sm:$0xf0]
    %vm2949 = vcmask 1047556
    %v2950 = vsel %vm2949, %v2948, %v2946
    %vm2951 = vcmask 400384
    %s2952 = scalar_lea.vmem %s1, 344
    %2953 = vst.msk [vmem:[%s2952] sm:$0xff] %vm2951, %v2950
    %s2954 = scalar_lea.vmem [#allocation0], 2816
    %v2955 = vld [vmem:[%s2954] ss:$8 sm:$0xf]
    %s2956 = scalar_lea.vmem [#allocation0], 2816
    %v2957 = vld [vmem:[%s2956] ss:$8 sm:$0xf0]
    %vm2958 = vcmask 1047556
    %v2959 = vsel %vm2958, %v2957, %v2955
    %vm2960 = vcmask 400384
    %s2961 = scalar_lea.vmem %s1, 352
    %2962 = vst.msk [vmem:[%s2961] sm:$0xff] %vm2960, %v2959
    %s2963 = scalar_lea.vmem [#allocation0], 2880
    %v2964 = vld [vmem:[%s2963] ss:$8 sm:$0xf]
    %s2965 = scalar_lea.vmem [#allocation0], 2880
    %v2966 = vld [vmem:[%s2965] ss:$8 sm:$0xf0]
    %vm2967 = vcmask 1047556
    %v2968 = vsel %vm2967, %v2966, %v2964
    %vm2969 = vcmask 400384
    %s2970 = scalar_lea.vmem %s1, 360
    %2971 = vst.msk [vmem:[%s2970] sm:$0xff] %vm2969, %v2968
    %s2972 = scalar_lea.vmem [#allocation0], 2944
    %v2973 = vld [vmem:[%s2972] ss:$8 sm:$0xf]
    %s2974 = scalar_lea.vmem [#allocation0], 2944
    %v2975 = vld [vmem:[%s2974] ss:$8 sm:$0xf0]
    %vm2976 = vcmask 1047556
    %v2977 = vsel %vm2976, %v2975, %v2973
    %vm2978 = vcmask 400384
    %s2979 = scalar_lea.vmem %s1, 368
    %2980 = vst.msk [vmem:[%s2979] sm:$0xff] %vm2978, %v2977
    %s2981 = scalar_lea.vmem [#allocation0], 3008
    %v2982 = vld [vmem:[%s2981] ss:$8 sm:$0xf]
    %s2983 = scalar_lea.vmem [#allocation0], 3008
    %v2984 = vld [vmem:[%s2983] ss:$8 sm:$0xf0]
    %vm2985 = vcmask 1047556
    %v2986 = vsel %vm2985, %v2984, %v2982
    %vm2987 = vcmask 400384
    %s2988 = scalar_lea.vmem %s1, 376
    %2989 = vst.msk [vmem:[%s2988] sm:$0xff] %vm2987, %v2986
    %s2990 = scalar_lea.vmem [#allocation0], 3072
    %v2991 = vld [vmem:[%s2990] ss:$8 sm:$0xf]
    %s2992 = scalar_lea.vmem [#allocation0], 3072
    %v2993 = vld [vmem:[%s2992] ss:$8 sm:$0xf0]
    %vm2994 = vcmask 1047556
    %v2995 = vsel %vm2994, %v2993, %v2991
    %vm2996 = vcmask 400384
    %s2997 = scalar_lea.vmem %s1, 384
    %2998 = vst.msk [vmem:[%s2997] sm:$0xff] %vm2996, %v2995
    %s2999 = scalar_lea.vmem [#allocation0], 3136
    %v3000 = vld [vmem:[%s2999] ss:$8 sm:$0xf]
    %s3001 = scalar_lea.vmem [#allocation0], 3136
    %v3002 = vld [vmem:[%s3001] ss:$8 sm:$0xf0]
    %vm3003 = vcmask 1047556
    %v3004 = vsel %vm3003, %v3002, %v3000
    %vm3005 = vcmask 400384
    %s3006 = scalar_lea.vmem %s1, 392
    %3007 = vst.msk [vmem:[%s3006] sm:$0xff] %vm3005, %v3004
    %s3008 = scalar_lea.vmem [#allocation0], 3200
    %v3009 = vld [vmem:[%s3008] ss:$8 sm:$0xf]
    %s3010 = scalar_lea.vmem [#allocation0], 3200
    %v3011 = vld [vmem:[%s3010] ss:$8 sm:$0xf0]
    %vm3012 = vcmask 1047556
    %v3013 = vsel %vm3012, %v3011, %v3009
    %vm3014 = vcmask 400384
    %s3015 = scalar_lea.vmem %s1, 400
    %3016 = vst.msk [vmem:[%s3015] sm:$0xff] %vm3014, %v3013
    %s3017 = scalar_lea.vmem [#allocation0], 3264
    %v3018 = vld [vmem:[%s3017] ss:$8 sm:$0xf]
    %s3019 = scalar_lea.vmem [#allocation0], 3264
    %v3020 = vld [vmem:[%s3019] ss:$8 sm:$0xf0]
    %vm3021 = vcmask 1047556
    %v3022 = vsel %vm3021, %v3020, %v3018
    %vm3023 = vcmask 400384
    %s3024 = scalar_lea.vmem %s1, 408
    %3025 = vst.msk [vmem:[%s3024] sm:$0xff] %vm3023, %v3022
    %s3026 = scalar_lea.vmem [#allocation0], 3328
    %v3027 = vld [vmem:[%s3026] ss:$8 sm:$0xf]
    %s3028 = scalar_lea.vmem [#allocation0], 3328
    %v3029 = vld [vmem:[%s3028] ss:$8 sm:$0xf0]
    %vm3030 = vcmask 1047556
    %v3031 = vsel %vm3030, %v3029, %v3027
    %vm3032 = vcmask 400384
    %s3033 = scalar_lea.vmem %s1, 416
    %3034 = vst.msk [vmem:[%s3033] sm:$0xff] %vm3032, %v3031
    %s3035 = scalar_lea.vmem [#allocation0], 3392
    %v3036 = vld [vmem:[%s3035] ss:$8 sm:$0xf]
    %s3037 = scalar_lea.vmem [#allocation0], 3392
    %v3038 = vld [vmem:[%s3037] ss:$8 sm:$0xf0]
    %vm3039 = vcmask 1047556
    %v3040 = vsel %vm3039, %v3038, %v3036
    %vm3041 = vcmask 400384
    %s3042 = scalar_lea.vmem %s1, 424
    %3043 = vst.msk [vmem:[%s3042] sm:$0xff] %vm3041, %v3040
    %s3044 = scalar_lea.vmem [#allocation0], 3456
    %v3045 = vld [vmem:[%s3044] ss:$8 sm:$0xf]
    %s3046 = scalar_lea.vmem [#allocation0], 3456
    %v3047 = vld [vmem:[%s3046] ss:$8 sm:$0xf0]
    %vm3048 = vcmask 1047556
    %v3049 = vsel %vm3048, %v3047, %v3045
    %vm3050 = vcmask 400384
    %s3051 = scalar_lea.vmem %s1, 432
    %3052 = vst.msk [vmem:[%s3051] sm:$0xff] %vm3050, %v3049
    %s3053 = scalar_lea.vmem [#allocation0], 3520
    %v3054 = vld [vmem:[%s3053] ss:$8 sm:$0xf]
    %s3055 = scalar_lea.vmem [#allocation0], 3520
    %v3056 = vld [vmem:[%s3055] ss:$8 sm:$0xf0]
    %vm3057 = vcmask 1047556
    %v3058 = vsel %vm3057, %v3056, %v3054
    %vm3059 = vcmask 400384
    %s3060 = scalar_lea.vmem %s1, 440
    %3061 = vst.msk [vmem:[%s3060] sm:$0xff] %vm3059, %v3058
    %s3062 = scalar_lea.vmem [#allocation0], 3584
    %v3063 = vld [vmem:[%s3062] ss:$8 sm:$0xf]
    %s3064 = scalar_lea.vmem [#allocation0], 3584
    %v3065 = vld [vmem:[%s3064] ss:$8 sm:$0xf0]
    %vm3066 = vcmask 1047556
    %v3067 = vsel %vm3066, %v3065, %v3063
    %vm3068 = vcmask 400384
    %s3069 = scalar_lea.vmem %s1, 448
    %3070 = vst.msk [vmem:[%s3069] sm:$0xff] %vm3068, %v3067
    %s3071 = scalar_lea.vmem [#allocation0], 3648
    %v3072 = vld [vmem:[%s3071] ss:$8 sm:$0xf]
    %s3073 = scalar_lea.vmem [#allocation0], 3648
    %v3074 = vld [vmem:[%s3073] ss:$8 sm:$0xf0]
    %vm3075 = vcmask 1047556
    %v3076 = vsel %vm3075, %v3074, %v3072
    %vm3077 = vcmask 400384
    %s3078 = scalar_lea.vmem %s1, 456
    %3079 = vst.msk [vmem:[%s3078] sm:$0xff] %vm3077, %v3076
    %s3080 = scalar_lea.vmem [#allocation0], 3712
    %v3081 = vld [vmem:[%s3080] ss:$8 sm:$0xf]
    %s3082 = scalar_lea.vmem [#allocation0], 3712
    %v3083 = vld [vmem:[%s3082] ss:$8 sm:$0xf0]
    %vm3084 = vcmask 1047556
    %v3085 = vsel %vm3084, %v3083, %v3081
    %vm3086 = vcmask 400384
    %s3087 = scalar_lea.vmem %s1, 464
    %3088 = vst.msk [vmem:[%s3087] sm:$0xff] %vm3086, %v3085
    %s3089 = scalar_lea.vmem [#allocation0], 3776
    %v3090 = vld [vmem:[%s3089] ss:$8 sm:$0xf]
    %s3091 = scalar_lea.vmem [#allocation0], 3776
    %v3092 = vld [vmem:[%s3091] ss:$8 sm:$0xf0]
    %vm3093 = vcmask 1047556
    %v3094 = vsel %vm3093, %v3092, %v3090
    %vm3095 = vcmask 400384
    %s3096 = scalar_lea.vmem %s1, 472
    %3097 = vst.msk [vmem:[%s3096] sm:$0xff] %vm3095, %v3094
    %s3098 = scalar_lea.vmem [#allocation0], 3840
    %v3099 = vld [vmem:[%s3098] ss:$8 sm:$0xf]
    %s3100 = scalar_lea.vmem [#allocation0], 3840
    %v3101 = vld [vmem:[%s3100] ss:$8 sm:$0xf0]
    %vm3102 = vcmask 1047556
    %v3103 = vsel %vm3102, %v3101, %v3099
    %vm3104 = vcmask 400384
    %s3105 = scalar_lea.vmem %s1, 480
    %3106 = vst.msk [vmem:[%s3105] sm:$0xff] %vm3104, %v3103
    %s3107 = scalar_lea.vmem [#allocation0], 3904
    %v3108 = vld [vmem:[%s3107] ss:$8 sm:$0xf]
    %s3109 = scalar_lea.vmem [#allocation0], 3904
    %v3110 = vld [vmem:[%s3109] ss:$8 sm:$0xf0]
    %vm3111 = vcmask 1047556
    %v3112 = vsel %vm3111, %v3110, %v3108
    %vm3113 = vcmask 400384
    %s3114 = scalar_lea.vmem %s1, 488
    %3115 = vst.msk [vmem:[%s3114] sm:$0xff] %vm3113, %v3112
    %s3116 = scalar_lea.vmem [#allocation0], 3968
    %v3117 = vld [vmem:[%s3116] ss:$8 sm:$0xf]
    %s3118 = scalar_lea.vmem [#allocation0], 3968
    %v3119 = vld [vmem:[%s3118] ss:$8 sm:$0xf0]
    %vm3120 = vcmask 1047556
    %v3121 = vsel %vm3120, %v3119, %v3117
    %vm3122 = vcmask 400384
    %s3123 = scalar_lea.vmem %s1, 496
    %3124 = vst.msk [vmem:[%s3123] sm:$0xff] %vm3122, %v3121
    %s3125 = scalar_lea.vmem [#allocation0], 4032
    %v3126 = vld [vmem:[%s3125] ss:$8 sm:$0xf]
    %s3127 = scalar_lea.vmem [#allocation0], 4032
    %v3128 = vld [vmem:[%s3127] ss:$8 sm:$0xf0]
    %vm3129 = vcmask 1047556
    %v3130 = vsel %vm3129, %v3128, %v3126
    %vm3131 = vcmask 400384
    %s3132 = scalar_lea.vmem %s1, 504
    %3133 = vst.msk [vmem:[%s3132] sm:$0xff] %vm3131, %v3130
    %s3134 = scalar_lea.vmem [#allocation0], 1
    %v3135 = vld [vmem:[%s3134] ss:$8 sm:$0xf]
    %s3136 = scalar_lea.vmem [#allocation0], 1
    %v3137 = vld [vmem:[%s3136] ss:$8 sm:$0xf0]
    %vm3138 = vcmask 1047556
    %v3139 = vsel %vm3138, %v3137, %v3135
    %3140 = vrot.lane.b32.xlu0 %v3139, 49
    %v3141 = vpop.permute.xlu0 %3140
    %vm3142 = vcmask 802184
    %3143 = vst.msk [vmem:[%s1] sm:$0xff] %vm3142, %v3141
    %s3144 = scalar_lea.vmem [#allocation0], 257
    %v3145 = vld [vmem:[%s3144] ss:$8 sm:$0xf]
    %s3146 = scalar_lea.vmem [#allocation0], 257
    %v3147 = vld [vmem:[%s3146] ss:$8 sm:$0xf0]
    %vm3148 = vcmask 1047556
    %v3149 = vsel %vm3148, %v3147, %v3145
    %3150 = vrot.lane.b32.xlu0 %v3149, 49
    %v3151 = vpop.permute.xlu0 %3150
    %vm3152 = vcmask 802184
    %s3153 = scalar_lea.vmem %s1, 32
    %3154 = vst.msk [vmem:[%s3153] sm:$0xff] %vm3152, %v3151
    %s3155 = scalar_lea.vmem [#allocation0], 513
    %v3156 = vld [vmem:[%s3155] ss:$8 sm:$0xf]
    %s3157 = scalar_lea.vmem [#allocation0], 513
    %v3158 = vld [vmem:[%s3157] ss:$8 sm:$0xf0]
    %vm3159 = vcmask 1047556
    %v3160 = vsel %vm3159, %v3158, %v3156
    %3161 = vrot.lane.b32.xlu0 %v3160, 49
    %v3162 = vpop.permute.xlu0 %3161
    %vm3163 = vcmask 802184
    %s3164 = scalar_lea.vmem %s1, 64
    %3165 = vst.msk [vmem:[%s3164] sm:$0xff] %vm3163, %v3162
    %s3166 = scalar_lea.vmem [#allocation0], 769
    %v3167 = vld [vmem:[%s3166] ss:$8 sm:$0xf]
    %s3168 = scalar_lea.vmem [#allocation0], 769
    %v3169 = vld [vmem:[%s3168] ss:$8 sm:$0xf0]
    %vm3170 = vcmask 1047556
    %v3171 = vsel %vm3170, %v3169, %v3167
    %3172 = vrot.lane.b32.xlu0 %v3171, 49
    %v3173 = vpop.permute.xlu0 %3172
    %vm3174 = vcmask 802184
    %s3175 = scalar_lea.vmem %s1, 96
    %3176 = vst.msk [vmem:[%s3175] sm:$0xff] %vm3174, %v3173
    %s3177 = scalar_lea.vmem [#allocation0], 1025
    %v3178 = vld [vmem:[%s3177] ss:$8 sm:$0xf]
    %s3179 = scalar_lea.vmem [#allocation0], 1025
    %v3180 = vld [vmem:[%s3179] ss:$8 sm:$0xf0]
    %vm3181 = vcmask 1047556
    %v3182 = vsel %vm3181, %v3180, %v3178
    %3183 = vrot.lane.b32.xlu0 %v3182, 49
    %v3184 = vpop.permute.xlu0 %3183
    %vm3185 = vcmask 802184
    %s3186 = scalar_lea.vmem %s1, 128
    %3187 = vst.msk [vmem:[%s3186] sm:$0xff] %vm3185, %v3184
    %s3188 = scalar_lea.vmem [#allocation0], 1281
    %v3189 = vld [vmem:[%s3188] ss:$8 sm:$0xf]
    %s3190 = scalar_lea.vmem [#allocation0], 1281
    %v3191 = vld [vmem:[%s3190] ss:$8 sm:$0xf0]
    %vm3192 = vcmask 1047556
    %v3193 = vsel %vm3192, %v3191, %v3189
    %3194 = vrot.lane.b32.xlu0 %v3193, 49
    %v3195 = vpop.permute.xlu0 %3194
    %vm3196 = vcmask 802184
    %s3197 = scalar_lea.vmem %s1, 160
    %3198 = vst.msk [vmem:[%s3197] sm:$0xff] %vm3196, %v3195
    %s3199 = scalar_lea.vmem [#allocation0], 1537
    %v3200 = vld [vmem:[%s3199] ss:$8 sm:$0xf]
    %s3201 = scalar_lea.vmem [#allocation0], 1537
    %v3202 = vld [vmem:[%s3201] ss:$8 sm:$0xf0]
    %vm3203 = vcmask 1047556
    %v3204 = vsel %vm3203, %v3202, %v3200
    %3205 = vrot.lane.b32.xlu0 %v3204, 49
    %v3206 = vpop.permute.xlu0 %3205
    %vm3207 = vcmask 802184
    %s3208 = scalar_lea.vmem %s1, 192
    %3209 = vst.msk [vmem:[%s3208] sm:$0xff] %vm3207, %v3206
    %s3210 = scalar_lea.vmem [#allocation0], 1793
    %v3211 = vld [vmem:[%s3210] ss:$8 sm:$0xf]
    %s3212 = scalar_lea.vmem [#allocation0], 1793
    %v3213 = vld [vmem:[%s3212] ss:$8 sm:$0xf0]
    %vm3214 = vcmask 1047556
    %v3215 = vsel %vm3214, %v3213, %v3211
    %3216 = vrot.lane.b32.xlu0 %v3215, 49
    %v3217 = vpop.permute.xlu0 %3216
    %vm3218 = vcmask 802184
    %s3219 = scalar_lea.vmem %s1, 224
    %3220 = vst.msk [vmem:[%s3219] sm:$0xff] %vm3218, %v3217
    %s3221 = scalar_lea.vmem [#allocation0], 2049
    %v3222 = vld [vmem:[%s3221] ss:$8 sm:$0xf]
    %s3223 = scalar_lea.vmem [#allocation0], 2049
    %v3224 = vld [vmem:[%s3223] ss:$8 sm:$0xf0]
    %vm3225 = vcmask 1047556
    %v3226 = vsel %vm3225, %v3224, %v3222
    %3227 = vrot.lane.b32.xlu0 %v3226, 49
    %v3228 = vpop.permute.xlu0 %3227
    %vm3229 = vcmask 802184
    %s3230 = scalar_lea.vmem %s1, 256
    %3231 = vst.msk [vmem:[%s3230] sm:$0xff] %vm3229, %v3228
    %s3232 = scalar_lea.vmem [#allocation0], 2305
    %v3233 = vld [vmem:[%s3232] ss:$8 sm:$0xf]
    %s3234 = scalar_lea.vmem [#allocation0], 2305
    %v3235 = vld [vmem:[%s3234] ss:$8 sm:$0xf0]
    %vm3236 = vcmask 1047556
    %v3237 = vsel %vm3236, %v3235, %v3233
    %3238 = vrot.lane.b32.xlu0 %v3237, 49
    %v3239 = vpop.permute.xlu0 %3238
    %vm3240 = vcmask 802184
    %s3241 = scalar_lea.vmem %s1, 288
    %3242 = vst.msk [vmem:[%s3241] sm:$0xff] %vm3240, %v3239
    %s3243 = scalar_lea.vmem [#allocation0], 2561
    %v3244 = vld [vmem:[%s3243] ss:$8 sm:$0xf]
    %s3245 = scalar_lea.vmem [#allocation0], 2561
    %v3246 = vld [vmem:[%s3245] ss:$8 sm:$0xf0]
    %vm3247 = vcmask 1047556
    %v3248 = vsel %vm3247, %v3246, %v3244
    %3249 = vrot.lane.b32.xlu0 %v3248, 49
    %v3250 = vpop.permute.xlu0 %3249
    %vm3251 = vcmask 802184
    %s3252 = scalar_lea.vmem %s1, 320
    %3253 = vst.msk [vmem:[%s3252] sm:$0xff] %vm3251, %v3250
    %s3254 = scalar_lea.vmem [#allocation0], 2817
    %v3255 = vld [vmem:[%s3254] ss:$8 sm:$0xf]
    %s3256 = scalar_lea.vmem [#allocation0], 2817
    %v3257 = vld [vmem:[%s3256] ss:$8 sm:$0xf0]
    %vm3258 = vcmask 1047556
    %v3259 = vsel %vm3258, %v3257, %v3255
    %3260 = vrot.lane.b32.xlu0 %v3259, 49
    %v3261 = vpop.permute.xlu0 %3260
    %vm3262 = vcmask 802184
    %s3263 = scalar_lea.vmem %s1, 352
    %3264 = vst.msk [vmem:[%s3263] sm:$0xff] %vm3262, %v3261
    %s3265 = scalar_lea.vmem [#allocation0], 3073
    %v3266 = vld [vmem:[%s3265] ss:$8 sm:$0xf]
    %s3267 = scalar_lea.vmem [#allocation0], 3073
    %v3268 = vld [vmem:[%s3267] ss:$8 sm:$0xf0]
    %vm3269 = vcmask 1047556
    %v3270 = vsel %vm3269, %v3268, %v3266
    %3271 = vrot.lane.b32.xlu0 %v3270, 49
    %v3272 = vpop.permute.xlu0 %3271
    %vm3273 = vcmask 802184
    %s3274 = scalar_lea.vmem %s1, 384
    %3275 = vst.msk [vmem:[%s3274] sm:$0xff] %vm3273, %v3272
    %s3276 = scalar_lea.vmem [#allocation0], 3329
    %v3277 = vld [vmem:[%s3276] ss:$8 sm:$0xf]
    %s3278 = scalar_lea.vmem [#allocation0], 3329
    %v3279 = vld [vmem:[%s3278] ss:$8 sm:$0xf0]
    %vm3280 = vcmask 1047556
    %v3281 = vsel %vm3280, %v3279, %v3277
    %3282 = vrot.lane.b32.xlu0 %v3281, 49
    %v3283 = vpop.permute.xlu0 %3282
    %vm3284 = vcmask 802184
    %s3285 = scalar_lea.vmem %s1, 416
    %3286 = vst.msk [vmem:[%s3285] sm:$0xff] %vm3284, %v3283
    %s3287 = scalar_lea.vmem [#allocation0], 3585
    %v3288 = vld [vmem:[%s3287] ss:$8 sm:$0xf]
    %s3289 = scalar_lea.vmem [#allocation0], 3585
    %v3290 = vld [vmem:[%s3289] ss:$8 sm:$0xf0]
    %vm3291 = vcmask 1047556
    %v3292 = vsel %vm3291, %v3290, %v3288
    %3293 = vrot.lane.b32.xlu0 %v3292, 49
    %v3294 = vpop.permute.xlu0 %3293
    %vm3295 = vcmask 802184
    %s3296 = scalar_lea.vmem %s1, 448
    %3297 = vst.msk [vmem:[%s3296] sm:$0xff] %vm3295, %v3294
    %s3298 = scalar_lea.vmem [#allocation0], 3841
    %v3299 = vld [vmem:[%s3298] ss:$8 sm:$0xf]
    %s3300 = scalar_lea.vmem [#allocation0], 3841
    %v3301 = vld [vmem:[%s3300] ss:$8 sm:$0xf0]
    %vm3302 = vcmask 1047556
    %v3303 = vsel %vm3302, %v3301, %v3299
    %3304 = vrot.lane.b32.xlu0 %v3303, 49
    %v3305 = vpop.permute.xlu0 %3304
    %vm3306 = vcmask 802184
    %s3307 = scalar_lea.vmem %s1, 480
    %3308 = vst.msk [vmem:[%s3307] sm:$0xff] %vm3306, %v3305
    %s3309 = scalar_lea.vmem [#allocation0], 65
    %v3310 = vld [vmem:[%s3309] ss:$8 sm:$0xf]
    %s3311 = scalar_lea.vmem [#allocation0], 65
    %v3312 = vld [vmem:[%s3311] ss:$8 sm:$0xf0]
    %vm3313 = vcmask 1047556
    %v3314 = vsel %vm3313, %v3312, %v3310
    %3315 = vrot.lane.b32.xlu0 %v3314, 49
    %v3316 = vpop.permute.xlu0 %3315
    %vm3317 = vcmask 802184
    %s3318 = scalar_lea.vmem %s1, 8
    %3319 = vst.msk [vmem:[%s3318] sm:$0xff] %vm3317, %v3316
    %s3320 = scalar_lea.vmem [#allocation0], 321
    %v3321 = vld [vmem:[%s3320] ss:$8 sm:$0xf]
    %s3322 = scalar_lea.vmem [#allocation0], 321
    %v3323 = vld [vmem:[%s3322] ss:$8 sm:$0xf0]
    %vm3324 = vcmask 1047556
    %v3325 = vsel %vm3324, %v3323, %v3321
    %3326 = vrot.lane.b32.xlu0 %v3325, 49
    %v3327 = vpop.permute.xlu0 %3326
    %vm3328 = vcmask 802184
    %s3329 = scalar_lea.vmem %s1, 40
    %3330 = vst.msk [vmem:[%s3329] sm:$0xff] %vm3328, %v3327
    %s3331 = scalar_lea.vmem [#allocation0], 577
    %v3332 = vld [vmem:[%s3331] ss:$8 sm:$0xf]
    %s3333 = scalar_lea.vmem [#allocation0], 577
    %v3334 = vld [vmem:[%s3333] ss:$8 sm:$0xf0]
    %vm3335 = vcmask 1047556
    %v3336 = vsel %vm3335, %v3334, %v3332
    %3337 = vrot.lane.b32.xlu0 %v3336, 49
    %v3338 = vpop.permute.xlu0 %3337
    %vm3339 = vcmask 802184
    %s3340 = scalar_lea.vmem %s1, 72
    %3341 = vst.msk [vmem:[%s3340] sm:$0xff] %vm3339, %v3338
    %s3342 = scalar_lea.vmem [#allocation0], 833
    %v3343 = vld [vmem:[%s3342] ss:$8 sm:$0xf]
    %s3344 = scalar_lea.vmem [#allocation0], 833
    %v3345 = vld [vmem:[%s3344] ss:$8 sm:$0xf0]
    %vm3346 = vcmask 1047556
    %v3347 = vsel %vm3346, %v3345, %v3343
    %3348 = vrot.lane.b32.xlu0 %v3347, 49
    %v3349 = vpop.permute.xlu0 %3348
    %vm3350 = vcmask 802184
    %s3351 = scalar_lea.vmem %s1, 104
    %3352 = vst.msk [vmem:[%s3351] sm:$0xff] %vm3350, %v3349
    %s3353 = scalar_lea.vmem [#allocation0], 1089
    %v3354 = vld [vmem:[%s3353] ss:$8 sm:$0xf]
    %s3355 = scalar_lea.vmem [#allocation0], 1089
    %v3356 = vld [vmem:[%s3355] ss:$8 sm:$0xf0]
    %vm3357 = vcmask 1047556
    %v3358 = vsel %vm3357, %v3356, %v3354
    %3359 = vrot.lane.b32.xlu0 %v3358, 49
    %v3360 = vpop.permute.xlu0 %3359
    %vm3361 = vcmask 802184
    %s3362 = scalar_lea.vmem %s1, 136
    %3363 = vst.msk [vmem:[%s3362] sm:$0xff] %vm3361, %v3360
    %s3364 = scalar_lea.vmem [#allocation0], 1345
    %v3365 = vld [vmem:[%s3364] ss:$8 sm:$0xf]
    %s3366 = scalar_lea.vmem [#allocation0], 1345
    %v3367 = vld [vmem:[%s3366] ss:$8 sm:$0xf0]
    %vm3368 = vcmask 1047556
    %v3369 = vsel %vm3368, %v3367, %v3365
    %3370 = vrot.lane.b32.xlu0 %v3369, 49
    %v3371 = vpop.permute.xlu0 %3370
    %vm3372 = vcmask 802184
    %s3373 = scalar_lea.vmem %s1, 168
    %3374 = vst.msk [vmem:[%s3373] sm:$0xff] %vm3372, %v3371
    %s3375 = scalar_lea.vmem [#allocation0], 1601
    %v3376 = vld [vmem:[%s3375] ss:$8 sm:$0xf]
    %s3377 = scalar_lea.vmem [#allocation0], 1601
    %v3378 = vld [vmem:[%s3377] ss:$8 sm:$0xf0]
    %vm3379 = vcmask 1047556
    %v3380 = vsel %vm3379, %v3378, %v3376
    %3381 = vrot.lane.b32.xlu0 %v3380, 49
    %v3382 = vpop.permute.xlu0 %3381
    %vm3383 = vcmask 802184
    %s3384 = scalar_lea.vmem %s1, 200
    %3385 = vst.msk [vmem:[%s3384] sm:$0xff] %vm3383, %v3382
    %s3386 = scalar_lea.vmem [#allocation0], 1857
    %v3387 = vld [vmem:[%s3386] ss:$8 sm:$0xf]
    %s3388 = scalar_lea.vmem [#allocation0], 1857
    %v3389 = vld [vmem:[%s3388] ss:$8 sm:$0xf0]
    %vm3390 = vcmask 1047556
    %v3391 = vsel %vm3390, %v3389, %v3387
    %3392 = vrot.lane.b32.xlu0 %v3391, 49
    %v3393 = vpop.permute.xlu0 %3392
    %vm3394 = vcmask 802184
    %s3395 = scalar_lea.vmem %s1, 232
    %3396 = vst.msk [vmem:[%s3395] sm:$0xff] %vm3394, %v3393
    %s3397 = scalar_lea.vmem [#allocation0], 2113
    %v3398 = vld [vmem:[%s3397] ss:$8 sm:$0xf]
    %s3399 = scalar_lea.vmem [#allocation0], 2113
    %v3400 = vld [vmem:[%s3399] ss:$8 sm:$0xf0]
    %vm3401 = vcmask 1047556
    %v3402 = vsel %vm3401, %v3400, %v3398
    %3403 = vrot.lane.b32.xlu0 %v3402, 49
    %v3404 = vpop.permute.xlu0 %3403
    %vm3405 = vcmask 802184
    %s3406 = scalar_lea.vmem %s1, 264
    %3407 = vst.msk [vmem:[%s3406] sm:$0xff] %vm3405, %v3404
    %s3408 = scalar_lea.vmem [#allocation0], 2369
    %v3409 = vld [vmem:[%s3408] ss:$8 sm:$0xf]
    %s3410 = scalar_lea.vmem [#allocation0], 2369
    %v3411 = vld [vmem:[%s3410] ss:$8 sm:$0xf0]
    %vm3412 = vcmask 1047556
    %v3413 = vsel %vm3412, %v3411, %v3409
    %3414 = vrot.lane.b32.xlu0 %v3413, 49
    %v3415 = vpop.permute.xlu0 %3414
    %vm3416 = vcmask 802184
    %s3417 = scalar_lea.vmem %s1, 296
    %3418 = vst.msk [vmem:[%s3417] sm:$0xff] %vm3416, %v3415
    %s3419 = scalar_lea.vmem [#allocation0], 2625
    %v3420 = vld [vmem:[%s3419] ss:$8 sm:$0xf]
    %s3421 = scalar_lea.vmem [#allocation0], 2625
    %v3422 = vld [vmem:[%s3421] ss:$8 sm:$0xf0]
    %vm3423 = vcmask 1047556
    %v3424 = vsel %vm3423, %v3422, %v3420
    %3425 = vrot.lane.b32.xlu0 %v3424, 49
    %v3426 = vpop.permute.xlu0 %3425
    %vm3427 = vcmask 802184
    %s3428 = scalar_lea.vmem %s1, 328
    %3429 = vst.msk [vmem:[%s3428] sm:$0xff] %vm3427, %v3426
    %s3430 = scalar_lea.vmem [#allocation0], 2881
    %v3431 = vld [vmem:[%s3430] ss:$8 sm:$0xf]
    %s3432 = scalar_lea.vmem [#allocation0], 2881
    %v3433 = vld [vmem:[%s3432] ss:$8 sm:$0xf0]
    %vm3434 = vcmask 1047556
    %v3435 = vsel %vm3434, %v3433, %v3431
    %3436 = vrot.lane.b32.xlu0 %v3435, 49
    %v3437 = vpop.permute.xlu0 %3436
    %vm3438 = vcmask 802184
    %s3439 = scalar_lea.vmem %s1, 360
    %3440 = vst.msk [vmem:[%s3439] sm:$0xff] %vm3438, %v3437
    %s3441 = scalar_lea.vmem [#allocation0], 3137
    %v3442 = vld [vmem:[%s3441] ss:$8 sm:$0xf]
    %s3443 = scalar_lea.vmem [#allocation0], 3137
    %v3444 = vld [vmem:[%s3443] ss:$8 sm:$0xf0]
    %vm3445 = vcmask 1047556
    %v3446 = vsel %vm3445, %v3444, %v3442
    %3447 = vrot.lane.b32.xlu0 %v3446, 49
    %v3448 = vpop.permute.xlu0 %3447
    %vm3449 = vcmask 802184
    %s3450 = scalar_lea.vmem %s1, 392
    %3451 = vst.msk [vmem:[%s3450] sm:$0xff] %vm3449, %v3448
    %s3452 = scalar_lea.vmem [#allocation0], 3393
    %v3453 = vld [vmem:[%s3452] ss:$8 sm:$0xf]
    %s3454 = scalar_lea.vmem [#allocation0], 3393
    %v3455 = vld [vmem:[%s3454] ss:$8 sm:$0xf0]
    %vm3456 = vcmask 1047556
    %v3457 = vsel %vm3456, %v3455, %v3453
    %3458 = vrot.lane.b32.xlu0 %v3457, 49
    %v3459 = vpop.permute.xlu0 %3458
    %vm3460 = vcmask 802184
    %s3461 = scalar_lea.vmem %s1, 424
    %3462 = vst.msk [vmem:[%s3461] sm:$0xff] %vm3460, %v3459
    %s3463 = scalar_lea.vmem [#allocation0], 3649
    %v3464 = vld [vmem:[%s3463] ss:$8 sm:$0xf]
    %s3465 = scalar_lea.vmem [#allocation0], 3649
    %v3466 = vld [vmem:[%s3465] ss:$8 sm:$0xf0]
    %vm3467 = vcmask 1047556
    %v3468 = vsel %vm3467, %v3466, %v3464
    %3469 = vrot.lane.b32.xlu0 %v3468, 49
    %v3470 = vpop.permute.xlu0 %3469
    %vm3471 = vcmask 802184
    %s3472 = scalar_lea.vmem %s1, 456
    %3473 = vst.msk [vmem:[%s3472] sm:$0xff] %vm3471, %v3470
    %s3474 = scalar_lea.vmem [#allocation0], 3905
    %v3475 = vld [vmem:[%s3474] ss:$8 sm:$0xf]
    %s3476 = scalar_lea.vmem [#allocation0], 3905
    %v3477 = vld [vmem:[%s3476] ss:$8 sm:$0xf0]
    %vm3478 = vcmask 1047556
    %v3479 = vsel %vm3478, %v3477, %v3475
    %3480 = vrot.lane.b32.xlu0 %v3479, 49
    %v3481 = vpop.permute.xlu0 %3480
    %vm3482 = vcmask 802184
    %s3483 = scalar_lea.vmem %s1, 488
    %3484 = vst.msk [vmem:[%s3483] sm:$0xff] %vm3482, %v3481
    %s3485 = scalar_lea.vmem [#allocation0], 129
    %v3486 = vld [vmem:[%s3485] ss:$8 sm:$0xf]
    %s3487 = scalar_lea.vmem [#allocation0], 129
    %v3488 = vld [vmem:[%s3487] ss:$8 sm:$0xf0]
    %vm3489 = vcmask 1047556
    %v3490 = vsel %vm3489, %v3488, %v3486
    %3491 = vrot.lane.b32.xlu0 %v3490, 49
    %v3492 = vpop.permute.xlu0 %3491
    %vm3493 = vcmask 802184
    %s3494 = scalar_lea.vmem %s1, 16
    %3495 = vst.msk [vmem:[%s3494] sm:$0xff] %vm3493, %v3492
    %s3496 = scalar_lea.vmem [#allocation0], 385
    %v3497 = vld [vmem:[%s3496] ss:$8 sm:$0xf]
    %s3498 = scalar_lea.vmem [#allocation0], 385
    %v3499 = vld [vmem:[%s3498] ss:$8 sm:$0xf0]
    %vm3500 = vcmask 1047556
    %v3501 = vsel %vm3500, %v3499, %v3497
    %3502 = vrot.lane.b32.xlu0 %v3501, 49
    %v3503 = vpop.permute.xlu0 %3502
    %vm3504 = vcmask 802184
    %s3505 = scalar_lea.vmem %s1, 48
    %3506 = vst.msk [vmem:[%s3505] sm:$0xff] %vm3504, %v3503
    %s3507 = scalar_lea.vmem [#allocation0], 641
    %v3508 = vld [vmem:[%s3507] ss:$8 sm:$0xf]
    %s3509 = scalar_lea.vmem [#allocation0], 641
    %v3510 = vld [vmem:[%s3509] ss:$8 sm:$0xf0]
    %vm3511 = vcmask 1047556
    %v3512 = vsel %vm3511, %v3510, %v3508
    %3513 = vrot.lane.b32.xlu0 %v3512, 49
    %v3514 = vpop.permute.xlu0 %3513
    %vm3515 = vcmask 802184
    %s3516 = scalar_lea.vmem %s1, 80
    %3517 = vst.msk [vmem:[%s3516] sm:$0xff] %vm3515, %v3514
    %s3518 = scalar_lea.vmem [#allocation0], 897
    %v3519 = vld [vmem:[%s3518] ss:$8 sm:$0xf]
    %s3520 = scalar_lea.vmem [#allocation0], 897
    %v3521 = vld [vmem:[%s3520] ss:$8 sm:$0xf0]
    %vm3522 = vcmask 1047556
    %v3523 = vsel %vm3522, %v3521, %v3519
    %3524 = vrot.lane.b32.xlu0 %v3523, 49
    %v3525 = vpop.permute.xlu0 %3524
    %vm3526 = vcmask 802184
    %s3527 = scalar_lea.vmem %s1, 112
    %3528 = vst.msk [vmem:[%s3527] sm:$0xff] %vm3526, %v3525
    %s3529 = scalar_lea.vmem [#allocation0], 1153
    %v3530 = vld [vmem:[%s3529] ss:$8 sm:$0xf]
    %s3531 = scalar_lea.vmem [#allocation0], 1153
    %v3532 = vld [vmem:[%s3531] ss:$8 sm:$0xf0]
    %vm3533 = vcmask 1047556
    %v3534 = vsel %vm3533, %v3532, %v3530
    %3535 = vrot.lane.b32.xlu0 %v3534, 49
    %v3536 = vpop.permute.xlu0 %3535
    %vm3537 = vcmask 802184
    %s3538 = scalar_lea.vmem %s1, 144
    %3539 = vst.msk [vmem:[%s3538] sm:$0xff] %vm3537, %v3536
    %s3540 = scalar_lea.vmem [#allocation0], 1409
    %v3541 = vld [vmem:[%s3540] ss:$8 sm:$0xf]
    %s3542 = scalar_lea.vmem [#allocation0], 1409
    %v3543 = vld [vmem:[%s3542] ss:$8 sm:$0xf0]
    %vm3544 = vcmask 1047556
    %v3545 = vsel %vm3544, %v3543, %v3541
    %3546 = vrot.lane.b32.xlu0 %v3545, 49
    %v3547 = vpop.permute.xlu0 %3546
    %vm3548 = vcmask 802184
    %s3549 = scalar_lea.vmem %s1, 176
    %3550 = vst.msk [vmem:[%s3549] sm:$0xff] %vm3548, %v3547
    %s3551 = scalar_lea.vmem [#allocation0], 1665
    %v3552 = vld [vmem:[%s3551] ss:$8 sm:$0xf]
    %s3553 = scalar_lea.vmem [#allocation0], 1665
    %v3554 = vld [vmem:[%s3553] ss:$8 sm:$0xf0]
    %vm3555 = vcmask 1047556
    %v3556 = vsel %vm3555, %v3554, %v3552
    %3557 = vrot.lane.b32.xlu0 %v3556, 49
    %v3558 = vpop.permute.xlu0 %3557
    %vm3559 = vcmask 802184
    %s3560 = scalar_lea.vmem %s1, 208
    %3561 = vst.msk [vmem:[%s3560] sm:$0xff] %vm3559, %v3558
    %s3562 = scalar_lea.vmem [#allocation0], 1921
    %v3563 = vld [vmem:[%s3562] ss:$8 sm:$0xf]
    %s3564 = scalar_lea.vmem [#allocation0], 1921
    %v3565 = vld [vmem:[%s3564] ss:$8 sm:$0xf0]
    %vm3566 = vcmask 1047556
    %v3567 = vsel %vm3566, %v3565, %v3563
    %3568 = vrot.lane.b32.xlu0 %v3567, 49
    %v3569 = vpop.permute.xlu0 %3568
    %vm3570 = vcmask 802184
    %s3571 = scalar_lea.vmem %s1, 240
    %3572 = vst.msk [vmem:[%s3571] sm:$0xff] %vm3570, %v3569
    %s3573 = scalar_lea.vmem [#allocation0], 2177
    %v3574 = vld [vmem:[%s3573] ss:$8 sm:$0xf]
    %s3575 = scalar_lea.vmem [#allocation0], 2177
    %v3576 = vld [vmem:[%s3575] ss:$8 sm:$0xf0]
    %vm3577 = vcmask 1047556
    %v3578 = vsel %vm3577, %v3576, %v3574
    %3579 = vrot.lane.b32.xlu0 %v3578, 49
    %v3580 = vpop.permute.xlu0 %3579
    %vm3581 = vcmask 802184
    %s3582 = scalar_lea.vmem %s1, 272
    %3583 = vst.msk [vmem:[%s3582] sm:$0xff] %vm3581, %v3580
    %s3584 = scalar_lea.vmem [#allocation0], 2433
    %v3585 = vld [vmem:[%s3584] ss:$8 sm:$0xf]
    %s3586 = scalar_lea.vmem [#allocation0], 2433
    %v3587 = vld [vmem:[%s3586] ss:$8 sm:$0xf0]
    %vm3588 = vcmask 1047556
    %v3589 = vsel %vm3588, %v3587, %v3585
    %3590 = vrot.lane.b32.xlu0 %v3589, 49
    %v3591 = vpop.permute.xlu0 %3590
    %vm3592 = vcmask 802184
    %s3593 = scalar_lea.vmem %s1, 304
    %3594 = vst.msk [vmem:[%s3593] sm:$0xff] %vm3592, %v3591
    %s3595 = scalar_lea.vmem [#allocation0], 2689
    %v3596 = vld [vmem:[%s3595] ss:$8 sm:$0xf]
    %s3597 = scalar_lea.vmem [#allocation0], 2689
    %v3598 = vld [vmem:[%s3597] ss:$8 sm:$0xf0]
    %vm3599 = vcmask 1047556
    %v3600 = vsel %vm3599, %v3598, %v3596
    %3601 = vrot.lane.b32.xlu0 %v3600, 49
    %v3602 = vpop.permute.xlu0 %3601
    %vm3603 = vcmask 802184
    %s3604 = scalar_lea.vmem %s1, 336
    %3605 = vst.msk [vmem:[%s3604] sm:$0xff] %vm3603, %v3602
    %s3606 = scalar_lea.vmem [#allocation0], 2945
    %v3607 = vld [vmem:[%s3606] ss:$8 sm:$0xf]
    %s3608 = scalar_lea.vmem [#allocation0], 2945
    %v3609 = vld [vmem:[%s3608] ss:$8 sm:$0xf0]
    %vm3610 = vcmask 1047556
    %v3611 = vsel %vm3610, %v3609, %v3607
    %3612 = vrot.lane.b32.xlu0 %v3611, 49
    %v3613 = vpop.permute.xlu0 %3612
    %vm3614 = vcmask 802184
    %s3615 = scalar_lea.vmem %s1, 368
    %3616 = vst.msk [vmem:[%s3615] sm:$0xff] %vm3614, %v3613
    %s3617 = scalar_lea.vmem [#allocation0], 3201
    %v3618 = vld [vmem:[%s3617] ss:$8 sm:$0xf]
    %s3619 = scalar_lea.vmem [#allocation0], 3201
    %v3620 = vld [vmem:[%s3619] ss:$8 sm:$0xf0]
    %vm3621 = vcmask 1047556
    %v3622 = vsel %vm3621, %v3620, %v3618
    %3623 = vrot.lane.b32.xlu0 %v3622, 49
    %v3624 = vpop.permute.xlu0 %3623
    %vm3625 = vcmask 802184
    %s3626 = scalar_lea.vmem %s1, 400
    %3627 = vst.msk [vmem:[%s3626] sm:$0xff] %vm3625, %v3624
    %s3628 = scalar_lea.vmem [#allocation0], 3457
    %v3629 = vld [vmem:[%s3628] ss:$8 sm:$0xf]
    %s3630 = scalar_lea.vmem [#allocation0], 3457
    %v3631 = vld [vmem:[%s3630] ss:$8 sm:$0xf0]
    %vm3632 = vcmask 1047556
    %v3633 = vsel %vm3632, %v3631, %v3629
    %3634 = vrot.lane.b32.xlu0 %v3633, 49
    %v3635 = vpop.permute.xlu0 %3634
    %vm3636 = vcmask 802184
    %s3637 = scalar_lea.vmem %s1, 432
    %3638 = vst.msk [vmem:[%s3637] sm:$0xff] %vm3636, %v3635
    %s3639 = scalar_lea.vmem [#allocation0], 3713
    %v3640 = vld [vmem:[%s3639] ss:$8 sm:$0xf]
    %s3641 = scalar_lea.vmem [#allocation0], 3713
    %v3642 = vld [vmem:[%s3641] ss:$8 sm:$0xf0]
    %vm3643 = vcmask 1047556
    %v3644 = vsel %vm3643, %v3642, %v3640
    %3645 = vrot.lane.b32.xlu0 %v3644, 49
    %v3646 = vpop.permute.xlu0 %3645
    %vm3647 = vcmask 802184
    %s3648 = scalar_lea.vmem %s1, 464
    %3649 = vst.msk [vmem:[%s3648] sm:$0xff] %vm3647, %v3646
    %s3650 = scalar_lea.vmem [#allocation0], 3969
    %v3651 = vld [vmem:[%s3650] ss:$8 sm:$0xf]
    %s3652 = scalar_lea.vmem [#allocation0], 3969
    %v3653 = vld [vmem:[%s3652] ss:$8 sm:$0xf0]
    %vm3654 = vcmask 1047556
    %v3655 = vsel %vm3654, %v3653, %v3651
    %3656 = vrot.lane.b32.xlu0 %v3655, 49
    %v3657 = vpop.permute.xlu0 %3656
    %vm3658 = vcmask 802184
    %s3659 = scalar_lea.vmem %s1, 496
    %3660 = vst.msk [vmem:[%s3659] sm:$0xff] %vm3658, %v3657
    %s3661 = scalar_lea.vmem [#allocation0], 193
    %v3662 = vld [vmem:[%s3661] ss:$8 sm:$0xf]
    %s3663 = scalar_lea.vmem [#allocation0], 193
    %v3664 = vld [vmem:[%s3663] ss:$8 sm:$0xf0]
    %vm3665 = vcmask 1047556
    %v3666 = vsel %vm3665, %v3664, %v3662
    %3667 = vrot.lane.b32.xlu0 %v3666, 49
    %v3668 = vpop.permute.xlu0 %3667
    %vm3669 = vcmask 802184
    %s3670 = scalar_lea.vmem %s1, 24
    %3671 = vst.msk [vmem:[%s3670] sm:$0xff] %vm3669, %v3668
    %s3672 = scalar_lea.vmem [#allocation0], 449
    %v3673 = vld [vmem:[%s3672] ss:$8 sm:$0xf]
    %s3674 = scalar_lea.vmem [#allocation0], 449
    %v3675 = vld [vmem:[%s3674] ss:$8 sm:$0xf0]
    %vm3676 = vcmask 1047556
    %v3677 = vsel %vm3676, %v3675, %v3673
    %3678 = vrot.lane.b32.xlu0 %v3677, 49
    %v3679 = vpop.permute.xlu0 %3678
    %vm3680 = vcmask 802184
    %s3681 = scalar_lea.vmem %s1, 56
    %3682 = vst.msk [vmem:[%s3681] sm:$0xff] %vm3680, %v3679
    %s3683 = scalar_lea.vmem [#allocation0], 705
    %v3684 = vld [vmem:[%s3683] ss:$8 sm:$0xf]
    %s3685 = scalar_lea.vmem [#allocation0], 705
    %v3686 = vld [vmem:[%s3685] ss:$8 sm:$0xf0]
    %vm3687 = vcmask 1047556
    %v3688 = vsel %vm3687, %v3686, %v3684
    %3689 = vrot.lane.b32.xlu0 %v3688, 49
    %v3690 = vpop.permute.xlu0 %3689
    %vm3691 = vcmask 802184
    %s3692 = scalar_lea.vmem %s1, 88
    %3693 = vst.msk [vmem:[%s3692] sm:$0xff] %vm3691, %v3690
    %s3694 = scalar_lea.vmem [#allocation0], 961
    %v3695 = vld [vmem:[%s3694] ss:$8 sm:$0xf]
    %s3696 = scalar_lea.vmem [#allocation0], 961
    %v3697 = vld [vmem:[%s3696] ss:$8 sm:$0xf0]
    %vm3698 = vcmask 1047556
    %v3699 = vsel %vm3698, %v3697, %v3695
    %3700 = vrot.lane.b32.xlu0 %v3699, 49
    %v3701 = vpop.permute.xlu0 %3700
    %vm3702 = vcmask 802184
    %s3703 = scalar_lea.vmem %s1, 120
    %3704 = vst.msk [vmem:[%s3703] sm:$0xff] %vm3702, %v3701
    %s3705 = scalar_lea.vmem [#allocation0], 1217
    %v3706 = vld [vmem:[%s3705] ss:$8 sm:$0xf]
    %s3707 = scalar_lea.vmem [#allocation0], 1217
    %v3708 = vld [vmem:[%s3707] ss:$8 sm:$0xf0]
    %vm3709 = vcmask 1047556
    %v3710 = vsel %vm3709, %v3708, %v3706
    %3711 = vrot.lane.b32.xlu0 %v3710, 49
    %v3712 = vpop.permute.xlu0 %3711
    %vm3713 = vcmask 802184
    %s3714 = scalar_lea.vmem %s1, 152
    %3715 = vst.msk [vmem:[%s3714] sm:$0xff] %vm3713, %v3712
    %s3716 = scalar_lea.vmem [#allocation0], 1473
    %v3717 = vld [vmem:[%s3716] ss:$8 sm:$0xf]
    %s3718 = scalar_lea.vmem [#allocation0], 1473
    %v3719 = vld [vmem:[%s3718] ss:$8 sm:$0xf0]
    %vm3720 = vcmask 1047556
    %v3721 = vsel %vm3720, %v3719, %v3717
    %3722 = vrot.lane.b32.xlu0 %v3721, 49
    %v3723 = vpop.permute.xlu0 %3722
    %vm3724 = vcmask 802184
    %s3725 = scalar_lea.vmem %s1, 184
    %3726 = vst.msk [vmem:[%s3725] sm:$0xff] %vm3724, %v3723
    %s3727 = scalar_lea.vmem [#allocation0], 1729
    %v3728 = vld [vmem:[%s3727] ss:$8 sm:$0xf]
    %s3729 = scalar_lea.vmem [#allocation0], 1729
    %v3730 = vld [vmem:[%s3729] ss:$8 sm:$0xf0]
    %vm3731 = vcmask 1047556
    %v3732 = vsel %vm3731, %v3730, %v3728
    %3733 = vrot.lane.b32.xlu0 %v3732, 49
    %v3734 = vpop.permute.xlu0 %3733
    %vm3735 = vcmask 802184
    %s3736 = scalar_lea.vmem %s1, 216
    %3737 = vst.msk [vmem:[%s3736] sm:$0xff] %vm3735, %v3734
    %s3738 = scalar_lea.vmem [#allocation0], 1985
    %v3739 = vld [vmem:[%s3738] ss:$8 sm:$0xf]
    %s3740 = scalar_lea.vmem [#allocation0], 1985
    %v3741 = vld [vmem:[%s3740] ss:$8 sm:$0xf0]
    %vm3742 = vcmask 1047556
    %v3743 = vsel %vm3742, %v3741, %v3739
    %3744 = vrot.lane.b32.xlu0 %v3743, 49
    %v3745 = vpop.permute.xlu0 %3744
    %vm3746 = vcmask 802184
    %s3747 = scalar_lea.vmem %s1, 248
    %3748 = vst.msk [vmem:[%s3747] sm:$0xff] %vm3746, %v3745
    %s3749 = scalar_lea.vmem [#allocation0], 2241
    %v3750 = vld [vmem:[%s3749] ss:$8 sm:$0xf]
    %s3751 = scalar_lea.vmem [#allocation0], 2241
    %v3752 = vld [vmem:[%s3751] ss:$8 sm:$0xf0]
    %vm3753 = vcmask 1047556
    %v3754 = vsel %vm3753, %v3752, %v3750
    %3755 = vrot.lane.b32.xlu0 %v3754, 49
    %v3756 = vpop.permute.xlu0 %3755
    %vm3757 = vcmask 802184
    %s3758 = scalar_lea.vmem %s1, 280
    %3759 = vst.msk [vmem:[%s3758] sm:$0xff] %vm3757, %v3756
    %s3760 = scalar_lea.vmem [#allocation0], 2497
    %v3761 = vld [vmem:[%s3760] ss:$8 sm:$0xf]
    %s3762 = scalar_lea.vmem [#allocation0], 2497
    %v3763 = vld [vmem:[%s3762] ss:$8 sm:$0xf0]
    %vm3764 = vcmask 1047556
    %v3765 = vsel %vm3764, %v3763, %v3761
    %3766 = vrot.lane.b32.xlu0 %v3765, 49
    %v3767 = vpop.permute.xlu0 %3766
    %vm3768 = vcmask 802184
    %s3769 = scalar_lea.vmem %s1, 312
    %3770 = vst.msk [vmem:[%s3769] sm:$0xff] %vm3768, %v3767
    %s3771 = scalar_lea.vmem [#allocation0], 2753
    %v3772 = vld [vmem:[%s3771] ss:$8 sm:$0xf]
    %s3773 = scalar_lea.vmem [#allocation0], 2753
    %v3774 = vld [vmem:[%s3773] ss:$8 sm:$0xf0]
    %vm3775 = vcmask 1047556
    %v3776 = vsel %vm3775, %v3774, %v3772
    %3777 = vrot.lane.b32.xlu0 %v3776, 49
    %v3778 = vpop.permute.xlu0 %3777
    %vm3779 = vcmask 802184
    %s3780 = scalar_lea.vmem %s1, 344
    %3781 = vst.msk [vmem:[%s3780] sm:$0xff] %vm3779, %v3778
    %s3782 = scalar_lea.vmem [#allocation0], 3009
    %v3783 = vld [vmem:[%s3782] ss:$8 sm:$0xf]
    %s3784 = scalar_lea.vmem [#allocation0], 3009
    %v3785 = vld [vmem:[%s3784] ss:$8 sm:$0xf0]
    %vm3786 = vcmask 1047556
    %v3787 = vsel %vm3786, %v3785, %v3783
    %3788 = vrot.lane.b32.xlu0 %v3787, 49
    %v3789 = vpop.permute.xlu0 %3788
    %vm3790 = vcmask 802184
    %s3791 = scalar_lea.vmem %s1, 376
    %3792 = vst.msk [vmem:[%s3791] sm:$0xff] %vm3790, %v3789
    %s3793 = scalar_lea.vmem [#allocation0], 3265
    %v3794 = vld [vmem:[%s3793] ss:$8 sm:$0xf]
    %s3795 = scalar_lea.vmem [#allocation0], 3265
    %v3796 = vld [vmem:[%s3795] ss:$8 sm:$0xf0]
    %vm3797 = vcmask 1047556
    %v3798 = vsel %vm3797, %v3796, %v3794
    %3799 = vrot.lane.b32.xlu0 %v3798, 49
    %v3800 = vpop.permute.xlu0 %3799
    %vm3801 = vcmask 802184
    %s3802 = scalar_lea.vmem %s1, 408
    %3803 = vst.msk [vmem:[%s3802] sm:$0xff] %vm3801, %v3800
    %s3804 = scalar_lea.vmem [#allocation0], 3521
    %v3805 = vld [vmem:[%s3804] ss:$8 sm:$0xf]
    %s3806 = scalar_lea.vmem [#allocation0], 3521
    %v3807 = vld [vmem:[%s3806] ss:$8 sm:$0xf0]
    %vm3808 = vcmask 1047556
    %v3809 = vsel %vm3808, %v3807, %v3805
    %3810 = vrot.lane.b32.xlu0 %v3809, 49
    %v3811 = vpop.permute.xlu0 %3810
    %vm3812 = vcmask 802184
    %s3813 = scalar_lea.vmem %s1, 440
    %3814 = vst.msk [vmem:[%s3813] sm:$0xff] %vm3812, %v3811
    %s3815 = scalar_lea.vmem [#allocation0], 3777
    %v3816 = vld [vmem:[%s3815] ss:$8 sm:$0xf]
    %s3817 = scalar_lea.vmem [#allocation0], 3777
    %v3818 = vld [vmem:[%s3817] ss:$8 sm:$0xf0]
    %vm3819 = vcmask 1047556
    %v3820 = vsel %vm3819, %v3818, %v3816
    %3821 = vrot.lane.b32.xlu0 %v3820, 49
    %v3822 = vpop.permute.xlu0 %3821
    %vm3823 = vcmask 802184
    %s3824 = scalar_lea.vmem %s1, 472
    %3825 = vst.msk [vmem:[%s3824] sm:$0xff] %vm3823, %v3822
    %s3826 = scalar_lea.vmem [#allocation0], 4033
    %v3827 = vld [vmem:[%s3826] ss:$8 sm:$0xf]
    %s3828 = scalar_lea.vmem [#allocation0], 4033
    %v3829 = vld [vmem:[%s3828] ss:$8 sm:$0xf0]
    %vm3830 = vcmask 1047556
    %v3831 = vsel %vm3830, %v3829, %v3827
    %3832 = vrot.lane.b32.xlu0 %v3831, 49
    %v3833 = vpop.permute.xlu0 %3832
    %vm3834 = vcmask 802184
    %s3835 = scalar_lea.vmem %s1, 504
    %3836 = vst.msk [vmem:[%s3835] sm:$0xff] %vm3834, %v3833

// kernel: autoencoder_forward.1
$region0: #{autoencoder_forward.1}
  #allocation0 [shape = 'u32[]', space=smem, size = 0x4, offset = 0x4, fixed_abs, tag = 'smem constant byte address 0x4 - core index']
  #allocation1 [shape = 'u32[144,128]{1,0:T(1,128)}', space=vmem, size = 0x12000, scoped, tag = 'internal scratch']
  %s0 = inlined_call_operand.vmem [shape: f32[27,392], index: 0, kind: input, shape index: {}]
  %s1 = inlined_call_operand.vmem [shape: f32[8,27], index: 1, kind: input, shape index: {}]
  %s2 = inlined_call_operand.vmem [shape: f32[8,1], index: 2, kind: input, shape index: {}]
  %s3 = inlined_call_operand.vmem [shape: f32[9,16,8], index: 3, kind: input, shape index: {}]
  %s4 = inlined_call_operand.vmem [shape: f32[9,1,98], index: 4, kind: input, shape index: {}]
  %s5 = inlined_call_operand.vmem [shape: f32[16,2], index: 5, kind: input, shape index: {}]
  %s6 = inlined_call_operand.vmem [shape: f32[32,784], index: 6, kind: input, shape index: {}]
  %s7 = inlined_call_operand.vmem [shape: f32[32,1], index: 7, kind: input, shape index: {}]
  %s8 = inlined_call_operand.vmem [shape: f32[784,16], index: 8, kind: input, shape index: {}]
  %s9 = inlined_call_operand.vmem [shape: f32[784,98], index: 9, kind: input, shape index: {}]
  %s10 = inlined_call_operand.vmem [shape: f32[98,2], index: 10, kind: input, shape index: {}]
  %s11 = inlined_call_operand.vmem [shape: f32[2,98], index: 11, kind: input, shape index: {}]
  %s12 = inlined_call_operand.vmem [shape: f32[32,16,98], index: 12, kind: input, shape index: {}]
  %s13 = inlined_call_operand.vmem [shape: f32[16,2], index: 13, kind: input, shape index: {}]
  %s14 = inlined_call_operand.vmem [shape: f32[9,8,16], index: 14, kind: input, shape index: {}]
  %s15 = inlined_call_operand.vmem [shape: f32[9,1,98], index: 15, kind: input, shape index: {}]
  %s16 = inlined_call_operand.vmem [shape: f32[4,98,392], index: 16, kind: input, shape index: {}]
  %s17 = inlined_call_operand.vmem [shape: f32[8,2], index: 17, kind: input, shape index: {}]
  %s18 = inlined_call_operand.vmem [shape: f32[9,3,8], index: 18, kind: input, shape index: {}]
  %s19 = inlined_call_operand.vmem [shape: f32[9,1,392], index: 19, kind: input, shape index: {}]
  %s20 = inlined_call_operand.vmem [shape: f32[3,1], index: 20, kind: input, shape index: {}]
  %s21 = inlined_call_operand.vmem [shape: f32[4,3,392], index: 21, kind: output, shape index: {}]
  %s22 = sld [smem:[#allocation0]]
  $region94: #{autoencoder_forward.1} parent=0
    _
  %s24 = ssub.s32 1, %s22
  %s25 = scalar_select 0, %s24, %s22
  // Predicated region
  $region2: #{autoencoder_forward.1} parent=0 // pred_check
    _
  $region3: #{autoencoder_forward.1} parent=0 // pred_check_branch
    %27 = sbr.rel (0) target = $region5
  $region4: #{autoencoder_forward.1} parent=0 // pred_region
    _
  $region5: #{autoencoder_forward.1} parent=0 // pred_fallthru
    _
  // Predicated region
  $region6: #{autoencoder_forward.1} parent=0 // pred_check
    _
  $region7: #{autoencoder_forward.1} parent=0 // pred_check_branch
    %29 = sbr.rel (0) target = $region9
  $region8: #{autoencoder_forward.1} parent=0 // pred_region
    _
  $region9: #{autoencoder_forward.1} parent=0 // pred_fallthru
    _
  // Predicated region
  $region10: #{autoencoder_forward.1} parent=0 // pred_check
    _
  $region11: #{autoencoder_forward.1} parent=0 // pred_check_branch
    %31 = sbr.rel (0) target = $region13
  $region12: #{autoencoder_forward.1} parent=0 // pred_region
    _
  $region13: #{autoencoder_forward.1} parent=0 // pred_fallthru
    _
  // Predicated region
  $region14: #{autoencoder_forward.1} parent=0 // pred_check
    _
  $region15: #{autoencoder_forward.1} parent=0 // pred_check_branch
    %33 = sbr.rel (0) target = $region17
  $region16: #{autoencoder_forward.1} parent=0 // pred_region
    _
  $region17: #{autoencoder_forward.1} parent=0 // pred_fallthru
    _
  // Predicated region
  $region18: #{autoencoder_forward.1} parent=0 // pred_check
    _
  $region19: #{autoencoder_forward.1} parent=0 // pred_check_branch
    %35 = sbr.rel (0) target = $region21
  $region20: #{autoencoder_forward.1} parent=0 // pred_region
    _
  $region21: #{autoencoder_forward.1} parent=0 // pred_fallthru
    _
  // Predicated region
  $region22: #{autoencoder_forward.1} parent=0 // pred_check
    _
  $region23: #{autoencoder_forward.1} parent=0 // pred_check_branch
    %37 = sbr.rel (0) target = $region25
  $region24: #{autoencoder_forward.1} parent=0 // pred_region
    _
  $region25: #{autoencoder_forward.1} parent=0 // pred_fallthru
    _
  // Predicated region
  $region26: #{autoencoder_forward.1} parent=0 // pred_check
    _
  $region27: #{autoencoder_forward.1} parent=0 // pred_check_branch
    %39 = sbr.rel (0) target = $region29
  $region28: #{autoencoder_forward.1} parent=0 // pred_region
    _
  $region29: #{autoencoder_forward.1} parent=0 // pred_fallthru
    _
  // Predicated region
  $region30: #{autoencoder_forward.1} parent=0 // pred_check
    _
  $region31: #{autoencoder_forward.1} parent=0 // pred_check_branch
    %41 = sbr.rel (0) target = $region33
  $region32: #{autoencoder_forward.1} parent=0 // pred_region
    _
  $region33: #{autoencoder_forward.1} parent=0 // pred_fallthru
    _
  // Predicated region
  $region34: #{autoencoder_forward.1} parent=0 // pred_check
    _
  $region35: #{autoencoder_forward.1} parent=0 // pred_check_branch
    %43 = sbr.rel (0) target = $region37
  $region36: #{autoencoder_forward.1} parent=0 // pred_region
    _
  $region37: #{autoencoder_forward.1} parent=0 // pred_fallthru
    _
  // Predicated region
  $region38: #{autoencoder_forward.1} parent=0 // pred_check
    _
  $region39: #{autoencoder_forward.1} parent=0 // pred_check_branch
    %45 = sbr.rel (0) target = $region41
  $region40: #{autoencoder_forward.1} parent=0 // pred_region
    _
  $region41: #{autoencoder_forward.1} parent=0 // pred_fallthru
    _
  // Predicated region
  $region42: #{autoencoder_forward.1} parent=0 // pred_check
    _
  $region43: #{autoencoder_forward.1} parent=0 // pred_check_branch
    %47 = sbr.rel (0) target = $region45
  $region44: #{autoencoder_forward.1} parent=0 // pred_region
    _
  $region45: #{autoencoder_forward.1} parent=0 // pred_fallthru
    _
  // Predicated region
  $region46: #{autoencoder_forward.1} parent=0 // pred_check
    _
  $region47: #{autoencoder_forward.1} parent=0 // pred_check_branch
    %49 = sbr.rel (0) target = $region49
  $region48: #{autoencoder_forward.1} parent=0 // pred_region
    _
  $region49: #{autoencoder_forward.1} parent=0 // pred_fallthru
    _
  // Predicated region
  $region50: #{autoencoder_forward.1} parent=0 // pred_check
    _
  $region51: #{autoencoder_forward.1} parent=0 // pred_check_branch
    %51 = sbr.rel (0) target = $region53
  $region52: #{autoencoder_forward.1} parent=0 // pred_region
    _
  $region53: #{autoencoder_forward.1} parent=0 // pred_fallthru
    _
  // Predicated region
  $region54: #{autoencoder_forward.1} parent=0 // pred_check
    _
  $region55: #{autoencoder_forward.1} parent=0 // pred_check_branch
    %53 = sbr.rel (0) target = $region57
  $region56: #{autoencoder_forward.1} parent=0 // pred_region
    _
  $region57: #{autoencoder_forward.1} parent=0 // pred_fallthru
    _
  // Predicated region
  $region58: #{autoencoder_forward.1} parent=0 // pred_check
    _
  $region59: #{autoencoder_forward.1} parent=0 // pred_check_branch
    %55 = sbr.rel (0) target = $region61
  $region60: #{autoencoder_forward.1} parent=0 // pred_region
    _
  $region61: #{autoencoder_forward.1} parent=0 // pred_fallthru
    _
  // Predicated region
  $region62: #{autoencoder_forward.1} parent=0 // pred_check
    _
  $region63: #{autoencoder_forward.1} parent=0 // pred_check_branch
    %57 = sbr.rel (0) target = $region65
  $region64: #{autoencoder_forward.1} parent=0 // pred_region
    _
  $region65: #{autoencoder_forward.1} parent=0 // pred_fallthru
    _
  // Predicated region
  $region66: #{autoencoder_forward.1} parent=0 // pred_check
    _
  $region67: #{autoencoder_forward.1} parent=0 // pred_check_branch
    %59 = sbr.rel (0) target = $region69
  $region68: #{autoencoder_forward.1} parent=0 // pred_region
    _
  $region69: #{autoencoder_forward.1} parent=0 // pred_fallthru
    _
  // Predicated region
  $region70: #{autoencoder_forward.1} parent=0 // pred_check
    _
  $region71: #{autoencoder_forward.1} parent=0 // pred_check_branch
    %61 = sbr.rel (0) target = $region73
  $region72: #{autoencoder_forward.1} parent=0 // pred_region
    _
  $region73: #{autoencoder_forward.1} parent=0 // pred_fallthru
    _
  // Predicated region
  $region74: #{autoencoder_forward.1} parent=0 // pred_check
    _
  $region75: #{autoencoder_forward.1} parent=0 // pred_check_branch
    %63 = sbr.rel (0) target = $region77
  $region76: #{autoencoder_forward.1} parent=0 // pred_region
    _
  $region77: #{autoencoder_forward.1} parent=0 // pred_fallthru
    _
  // Predicated region
  $region78: #{autoencoder_forward.1} parent=0 // pred_check
    _
  $region79: #{autoencoder_forward.1} parent=0 // pred_check_branch
    %65 = sbr.rel (0) target = $region81
  $region80: #{autoencoder_forward.1} parent=0 // pred_region
    _
  $region81: #{autoencoder_forward.1} parent=0 // pred_fallthru
    _
  // Predicated region
  $region82: #{autoencoder_forward.1} parent=0 // pred_check
    _
  $region83: #{autoencoder_forward.1} parent=0 // pred_check_branch
    %67 = sbr.rel (0) target = $region85
  $region84: #{autoencoder_forward.1} parent=0 // pred_region
    _
  $region85: #{autoencoder_forward.1} parent=0 // pred_fallthru
    _
  %v68 = vld [vmem:[%s1] sm:$0xff]
  %v69 = vld [vmem:[%s0] sm:$0xff]
  %v70 = vld [vmem:[%s0 + $0x8] sm:$0xff]
  %v71 = vld [vmem:[%s0 + $0x10] sm:$0xff]
  %v72 = vld [vmem:[%s0 + $0x18] sm:$0xff]
  %v73 = vld [vmem:[%s0 + $0x20] sm:$0xff]
  %v74 = vld [vmem:[%s0 + $0x28] sm:$0xff]
  %v75 = vld [vmem:[%s0 + $0x30] sm:$0xff]
  %v76 = vld [vmem:[%s0 + $0x38] sm:$0xff]
  %v77 = vld [vmem:[%s0 + $0x40] sm:$0xff]
  %v78 = vld [vmem:[%s0 + $0x48] sm:$0xff]
  %v79 = vld [vmem:[%s0 + $0x50] sm:$0xff]
  %v80 = vld [vmem:[%s0 + $0x58] sm:$0xff]
  %v81 = vld [vmem:[%s0 + $0x60] sm:$0x7]
  %v82 = vld [vmem:[%s0 + $0x68] sm:$0x7]
  %v83 = vld [vmem:[%s0 + $0x70] sm:$0x7]
  %v84 = vld [vmem:[%s0 + $0x78] sm:$0x7]
  %v85 = vld [vmem:[%s2] sm:$0xff]
  %87 = vset.pattern.permute.xlu0 0
  %88 = vperm.xlu0 %87, %v85
  %v89 = vpop.permute.xlu0 %88
  %vm91 = vcmask 220160
  %v93 = vsel %vm91, %v68, 0
  %vm95 = vcmask 1042432
  %v97 = vsel %vm95, %v81, 0
  %v100 = vsel %vm95, %v82, 0
  %v103 = vsel %vm95, %v83, 0
  %v106 = vsel %vm95, %v84, 0
  %108 = vmatprep.subr.mxu0 0.0
  %109 = vmatpush1.msra.mxu0 0.0
  %110 = vmatprep.subr.mxu0 0.0
  %111 = vmatpush1.msra.mxu0 0.0
  %112 = vmatprep.subr.mxu0 0.0
  %113 = vmatpush1.msra.mxu0 0.0
  %114 = vmatprep.subr.mxu0 0.0
  %115 = vmatpush1.msra.mxu0 0.0
  %116 = vmatprep.subr.mxu0 0.0
  %117 = vmatpush1.msra.mxu0 0.0
  %118 = vmatprep.subr.mxu0 0.0
  %119 = vmatpush1.msra.mxu0 0.0
  %120 = vmatprep.subr.mxu0 0.0
  %121 = vmatpush1.msra.mxu0 0.0
  %122 = vmatprep.subr.mxu0 0.0
  %123 = vmatpush1.msra.mxu0 0.0
  %124 = vmatprep.subr.mxu0 0.0
  %125 = vmatpush1.msra.mxu0 0.0
  %126 = vmatprep.subr.mxu0 0.0
  %127 = vmatpush1.msra.mxu0 0.0
  %128 = vmatprep.subr.mxu0 0.0
  %129 = vmatpush1.msra.mxu0 0.0
  %130 = vmatprep.subr.mxu0 0.0
  %131 = vmatpush1.msra.mxu0 0.0
  %132 = vmatprep.subr.mxu0 %v100
  %133 = vmatpush1.msra.mxu0 %v97
  %134 = vmatprep.subr.mxu0 %v78
  %135 = vmatpush1.msra.mxu0 %v77
  %136 = vmatprep.subr.mxu0 %v74
  %137 = vmatpush1.msra.mxu0 %v73
  %138 = vmatprep.subr.mxu0 %v70
  %139 = vmatpush1.msra.mxu0 %v69
  %140 = vmatprep.subr.mxu0 0.0
  %141 = vmatpush2.msra.mxu0 0.0
  %142 = vmatprep.subr.mxu0 0.0
  %143 = vmatpush2.msra.mxu0 0.0
  %144 = vmatprep.subr.mxu0 0.0
  %145 = vmatpush2.msra.mxu0 0.0
  %146 = vmatprep.subr.mxu0 0.0
  %147 = vmatpush2.msra.mxu0 0.0
  %148 = vmatprep.subr.mxu0 0.0
  %149 = vmatpush2.msra.mxu0 0.0
  %150 = vmatprep.subr.mxu0 0.0
  %151 = vmatpush2.msra.mxu0 0.0
  %152 = vmatprep.subr.mxu0 0.0
  %153 = vmatpush2.msra.mxu0 0.0
  %154 = vmatprep.subr.mxu0 0.0
  %155 = vmatpush2.msra.mxu0 0.0
  %156 = vmatprep.subr.mxu0 0.0
  %157 = vmatpush2.msra.mxu0 0.0
  %158 = vmatprep.subr.mxu0 0.0
  %159 = vmatpush2.msra.mxu0 0.0
  %160 = vmatprep.subr.mxu0 0.0
  %161 = vmatpush2.msra.mxu0 0.0
  %162 = vmatprep.subr.mxu0 0.0
  %163 = vmatpush2.msra.mxu0 0.0
  %164 = vmatprep.subr.mxu0 0.0
  %165 = vmatpush2.msra.mxu0 0.0
  %166 = vmatprep.subr.mxu0 0.0
  %167 = vmatpush2.msra.mxu0 0.0
  %168 = vmatprep.subr.mxu0 0.0
  %169 = vmatpush2.msra.mxu0 0.0
  %170 = vmatprep.subr.mxu0 0.0
  %171 = vmatpush2.msra.mxu0 0.0
  %172 = vmatprep.mubr.f32.mxu0 0.0
  %173 = vmatmul.mubr.f32.gmra.mxu0 %v93
  %v174 = vpop.f32.mrf.mxu0
  %v175 = vadd.f32 %v89, %v174
  %v176 = vpop.f32.mrf.mxu0
  %v177 = vadd.f32 %v89, %v176
  %178 = vdwg.mxu0
  %179 = vmatprep.subr.mxu0 0.0
  %180 = vmatpush1.msra.mxu0 0.0
  %181 = vmatprep.subr.mxu0 0.0
  %182 = vmatpush1.msra.mxu0 0.0
  %183 = vmatprep.subr.mxu0 0.0
  %184 = vmatpush1.msra.mxu0 0.0
  %185 = vmatprep.subr.mxu0 0.0
  %186 = vmatpush1.msra.mxu0 0.0
  %187 = vmatprep.subr.mxu0 0.0
  %188 = vmatpush1.msra.mxu0 0.0
  %189 = vmatprep.subr.mxu0 0.0
  %190 = vmatpush1.msra.mxu0 0.0
  %191 = vmatprep.subr.mxu0 0.0
  %192 = vmatpush1.msra.mxu0 0.0
  %193 = vmatprep.subr.mxu0 0.0
  %194 = vmatpush1.msra.mxu0 0.0
  %195 = vmatprep.subr.mxu0 0.0
  %196 = vmatpush1.msra.mxu0 0.0
  %197 = vmatprep.subr.mxu0 0.0
  %198 = vmatpush1.msra.mxu0 0.0
  %199 = vmatprep.subr.mxu0 0.0
  %200 = vmatpush1.msra.mxu0 0.0
  %201 = vmatprep.subr.mxu0 0.0
  %202 = vmatpush1.msra.mxu0 0.0
  %203 = vmatprep.subr.mxu0 %v106
  %204 = vmatpush1.msra.mxu0 %v103
  %205 = vmatprep.subr.mxu0 %v80
  %206 = vmatpush1.msra.mxu0 %v79
  %207 = vmatprep.subr.mxu0 %v76
  %208 = vmatpush1.msra.mxu0 %v75
  %209 = vmatprep.subr.mxu0 %v72
  %210 = vmatpush1.msra.mxu0 %v71
  %211 = vmatprep.subr.mxu0 0.0
  %212 = vmatpush2.msra.mxu0 0.0
  %213 = vmatprep.subr.mxu0 0.0
  %214 = vmatpush2.msra.mxu0 0.0
  %215 = vmatprep.subr.mxu0 0.0
  %216 = vmatpush2.msra.mxu0 0.0
  %217 = vmatprep.subr.mxu0 0.0
  %218 = vmatpush2.msra.mxu0 0.0
  %219 = vmatprep.subr.mxu0 0.0
  %220 = vmatpush2.msra.mxu0 0.0
  %221 = vmatprep.subr.mxu0 0.0
  %222 = vmatpush2.msra.mxu0 0.0
  %223 = vmatprep.subr.mxu0 0.0
  %224 = vmatpush2.msra.mxu0 0.0
  %225 = vmatprep.subr.mxu0 0.0
  %226 = vmatpush2.msra.mxu0 0.0
  %227 = vmatprep.subr.mxu0 0.0
  %228 = vmatpush2.msra.mxu0 0.0
  %229 = vmatprep.subr.mxu0 0.0
  %230 = vmatpush2.msra.mxu0 0.0
  %231 = vmatprep.subr.mxu0 0.0
  %232 = vmatpush2.msra.mxu0 0.0
  %233 = vmatprep.subr.mxu0 0.0
  %234 = vmatpush2.msra.mxu0 0.0
  %235 = vmatprep.subr.mxu0 0.0
  %236 = vmatpush2.msra.mxu0 0.0
  %237 = vmatprep.subr.mxu0 0.0
  %238 = vmatpush2.msra.mxu0 0.0
  %239 = vmatprep.subr.mxu0 0.0
  %240 = vmatpush2.msra.mxu0 0.0
  %241 = vmatprep.subr.mxu0 0.0
  %242 = vmatpush2.msra.mxu0 0.0
  %243 = vmatprep.mubr.f32.mxu0 0.0
  %244 = vmatmul.mubr.f32.gmra.mxu0 %v93
  %v245 = vpop.f32.mrf.mxu0
  %v246 = vadd.f32 %v89, %v245
  %v247 = vpop.f32.mrf.mxu0
  %v248 = vadd.f32 %v89, %v247
  %249 = vdwg.mxu0
  %v250 = vmax.f32 %v175, 0.0
  %v251 = vmax.f32 %v177, 0.0
  %v252 = vmax.f32 %v246, 0.0
  %v253 = vmax.f32 %v248, 0.0
  %255 = vrot.lane.b32.xlu0 %v252, 98
  %v256 = vpop.permute.xlu0 %255
  %vm258 = vcmask 64512
  %v259 = vsel %vm258, 0.0, %v256
  %v260 = vld [vmem:[%s4] sm:$0x1]
  %v262 = vlaneseq
  %v263 = vshrl.u32 %v262, 7
  %v264 = vsub.s32 0, %v263
  %v265 = vrot.slane %v260, %v264
  %v267 = vmul.f32 %v259, %v265
  %v268 = vld [vmem:[%s3] sm:$0xff]
  %v269 = vld [vmem:[%s3 + $0x8] sm:$0xff]
  %271 = vrot.lane.b32.xlu0 %v251, 67
  %v272 = vpop.permute.xlu0 %271
  %273 = vrot.lane.b32.xlu0 %v252, 67
  %v274 = vpop.permute.xlu0 %273
  %vm275 = vcmask 547840
  %v276 = vsel %vm275, %v272, %v274
  %vm278 = vcmask 56320
  %v279 = vsel %vm278, 0.0, %v276
  %s280 = scalar_lea.vmem %s4, 1
  %v281 = vld [vmem:[%s280] sm:$0x1]
  %v283 = vlaneseq
  %v284 = vshrl.u32 %v283, 7
  %v285 = vsub.s32 0, %v284
  %v286 = vrot.slane %v281, %v285
  %v288 = vmul.f32 %v279, %v286
  %s289 = scalar_lea.vmem %s3, 16
  %v290 = vld [vmem:[%s289] sm:$0xff]
  %v291 = vld [vmem:[%s289 + $0x8] sm:$0xff]
  %v293 = vsel %vm258, %v290, 0
  %v296 = vsel %vm258, %v291, 0
  %298 = vmatprep.subr.mxu0 0.0
  %299 = vmatpush1.msra.mxu0 0.0
  %300 = vmatprep.subr.mxu0 0.0
  %301 = vmatpush1.msra.mxu0 0.0
  %302 = vmatprep.subr.mxu0 0.0
  %303 = vmatpush1.msra.mxu0 0.0
  %304 = vmatprep.subr.mxu0 0.0
  %305 = vmatpush1.msra.mxu0 0.0
  %306 = vmatprep.subr.mxu0 0.0
  %307 = vmatpush1.msra.mxu0 0.0
  %308 = vmatprep.subr.mxu0 0.0
  %309 = vmatpush1.msra.mxu0 0.0
  %310 = vmatprep.subr.mxu0 0.0
  %311 = vmatpush1.msra.mxu0 0.0
  %312 = vmatprep.subr.mxu0 0.0
  %313 = vmatpush1.msra.mxu0 0.0
  %314 = vmatprep.subr.mxu0 0.0
  %315 = vmatpush1.msra.mxu0 0.0
  %316 = vmatprep.subr.mxu0 0.0
  %317 = vmatpush1.msra.mxu0 0.0
  %318 = vmatprep.subr.mxu0 0.0
  %319 = vmatpush1.msra.mxu0 0.0
  %320 = vmatprep.subr.mxu0 0.0
  %321 = vmatpush1.msra.mxu0 0.0
  %322 = vmatprep.subr.mxu0 0.0
  %323 = vmatpush1.msra.mxu0 0.0
  %324 = vmatprep.subr.mxu0 0.0
  %325 = vmatpush1.msra.mxu0 0.0
  %326 = vmatprep.subr.mxu0 0.0
  %327 = vmatpush1.msra.mxu0 0.0
  %328 = vmatprep.subr.mxu0 0.0
  %329 = vmatpush1.msra.mxu0 %v288
  %330 = vmatprep.subr.mxu0 0.0
  %331 = vmatpush2.msra.mxu0 0.0
  %332 = vmatprep.subr.mxu0 0.0
  %333 = vmatpush2.msra.mxu0 0.0
  %334 = vmatprep.subr.mxu0 0.0
  %335 = vmatpush2.msra.mxu0 0.0
  %336 = vmatprep.subr.mxu0 0.0
  %337 = vmatpush2.msra.mxu0 0.0
  %338 = vmatprep.subr.mxu0 0.0
  %339 = vmatpush2.msra.mxu0 0.0
  %340 = vmatprep.subr.mxu0 0.0
  %341 = vmatpush2.msra.mxu0 0.0
  %342 = vmatprep.subr.mxu0 0.0
  %343 = vmatpush2.msra.mxu0 0.0
  %344 = vmatprep.subr.mxu0 0.0
  %345 = vmatpush2.msra.mxu0 0.0
  %346 = vmatprep.subr.mxu0 0.0
  %347 = vmatpush2.msra.mxu0 0.0
  %348 = vmatprep.subr.mxu0 0.0
  %349 = vmatpush2.msra.mxu0 0.0
  %350 = vmatprep.subr.mxu0 0.0
  %351 = vmatpush2.msra.mxu0 0.0
  %352 = vmatprep.subr.mxu0 0.0
  %353 = vmatpush2.msra.mxu0 0.0
  %354 = vmatprep.subr.mxu0 0.0
  %355 = vmatpush2.msra.mxu0 0.0
  %356 = vmatprep.subr.mxu0 0.0
  %357 = vmatpush2.msra.mxu0 0.0
  %358 = vmatprep.subr.mxu0 0.0
  %359 = vmatpush2.msra.mxu0 0.0
  %360 = vmatprep.subr.mxu0 0.0
  %361 = vmatpush2.msra.mxu0 0.0
  %362 = vmatprep.mubr.f32.mxu0 0.0
  %363 = vmatmul.mubr.f32.gmra.mxu0 %v293
  %v364 = vpop.f32.mrf.mxu0
  %v365 = vadd.f32 0.0, %v364
  %v366 = vpop.f32.mrf.mxu0
  %367 = vmatprep.mubr.f32.mxu0 0.0
  %368 = vmatmul.mubr.f32.gmra.mxu0 %v296
  %v369 = vpop.f32.mrf.mxu0
  %v370 = vadd.f32 0.0, %v369
  %v371 = vpop.f32.mrf.mxu0
  %372 = vdwg.mxu0
  %v374 = vsel %vm258, %v268, 0
  %v377 = vsel %vm258, %v269, 0
  %379 = vmatprep.subr.mxu0 0.0
  %380 = vmatpush1.msra.mxu0 0.0
  %381 = vmatprep.subr.mxu0 0.0
  %382 = vmatpush1.msra.mxu0 0.0
  %383 = vmatprep.subr.mxu0 0.0
  %384 = vmatpush1.msra.mxu0 0.0
  %385 = vmatprep.subr.mxu0 0.0
  %386 = vmatpush1.msra.mxu0 0.0
  %387 = vmatprep.subr.mxu0 0.0
  %388 = vmatpush1.msra.mxu0 0.0
  %389 = vmatprep.subr.mxu0 0.0
  %390 = vmatpush1.msra.mxu0 0.0
  %391 = vmatprep.subr.mxu0 0.0
  %392 = vmatpush1.msra.mxu0 0.0
  %393 = vmatprep.subr.mxu0 0.0
  %394 = vmatpush1.msra.mxu0 0.0
  %395 = vmatprep.subr.mxu0 0.0
  %396 = vmatpush1.msra.mxu0 0.0
  %397 = vmatprep.subr.mxu0 0.0
  %398 = vmatpush1.msra.mxu0 0.0
  %399 = vmatprep.subr.mxu0 0.0
  %400 = vmatpush1.msra.mxu0 0.0
  %401 = vmatprep.subr.mxu0 0.0
  %402 = vmatpush1.msra.mxu0 0.0
  %403 = vmatprep.subr.mxu0 0.0
  %404 = vmatpush1.msra.mxu0 0.0
  %405 = vmatprep.subr.mxu0 0.0
  %406 = vmatpush1.msra.mxu0 0.0
  %407 = vmatprep.subr.mxu0 0.0
  %408 = vmatpush1.msra.mxu0 0.0
  %409 = vmatprep.subr.mxu0 0.0
  %410 = vmatpush1.msra.mxu0 %v267
  %411 = vmatprep.subr.mxu0 0.0
  %412 = vmatpush2.msra.mxu0 0.0
  %413 = vmatprep.subr.mxu0 0.0
  %414 = vmatpush2.msra.mxu0 0.0
  %415 = vmatprep.subr.mxu0 0.0
  %416 = vmatpush2.msra.mxu0 0.0
  %417 = vmatprep.subr.mxu0 0.0
  %418 = vmatpush2.msra.mxu0 0.0
  %419 = vmatprep.subr.mxu0 0.0
  %420 = vmatpush2.msra.mxu0 0.0
  %421 = vmatprep.subr.mxu0 0.0
  %422 = vmatpush2.msra.mxu0 0.0
  %423 = vmatprep.subr.mxu0 0.0
  %424 = vmatpush2.msra.mxu0 0.0
  %425 = vmatprep.subr.mxu0 0.0
  %426 = vmatpush2.msra.mxu0 0.0
  %427 = vmatprep.subr.mxu0 0.0
  %428 = vmatpush2.msra.mxu0 0.0
  %429 = vmatprep.subr.mxu0 0.0
  %430 = vmatpush2.msra.mxu0 0.0
  %431 = vmatprep.subr.mxu0 0.0
  %432 = vmatpush2.msra.mxu0 0.0
  %433 = vmatprep.subr.mxu0 0.0
  %434 = vmatpush2.msra.mxu0 0.0
  %435 = vmatprep.subr.mxu0 0.0
  %436 = vmatpush2.msra.mxu0 0.0
  %437 = vmatprep.subr.mxu0 0.0
  %438 = vmatpush2.msra.mxu0 0.0
  %439 = vmatprep.subr.mxu0 0.0
  %440 = vmatpush2.msra.mxu0 0.0
  %441 = vmatprep.subr.mxu0 0.0
  %442 = vmatpush2.msra.mxu0 0.0
  %443 = vmatprep.mubr.f32.mxu0 0.0
  %444 = vmatmul.mubr.f32.gmra.mxu0 %v374
  %v445 = vpop.f32.mrf.mxu0
  %v446 = vadd.f32 %v365, %v445
  %v447 = vpop.f32.mrf.mxu0
  %448 = vmatprep.mubr.f32.mxu0 0.0
  %449 = vmatmul.mubr.f32.gmra.mxu0 %v377
  %v450 = vpop.f32.mrf.mxu0
  %v451 = vadd.f32 %v370, %v450
  %v452 = vpop.f32.mrf.mxu0
  %453 = vdwg.mxu0
  %455 = vrot.lane.b32.xlu0 %v252, 97
  %v456 = vpop.permute.xlu0 %455
  %457 = vrot.lane.b32.xlu0 %v253, 97
  %v458 = vpop.permute.xlu0 %457
  %vm459 = vcmask 793600
  %v460 = vsel %vm459, %v456, %v458
  %v462 = vsel %vm278, 0.0, %v460
  %s463 = scalar_lea.vmem %s4, 2
  %v464 = vld [vmem:[%s463] sm:$0x1]
  %v466 = vlaneseq
  %v467 = vshrl.u32 %v466, 7
  %v468 = vsub.s32 0, %v467
  %v469 = vrot.slane %v464, %v468
  %v471 = vmul.f32 %v462, %v469
  %s472 = scalar_lea.vmem %s3, 32
  %v473 = vld [vmem:[%s472] sm:$0xff]
  %v474 = vld [vmem:[%s472 + $0x8] sm:$0xff]
  %v476 = vsel %vm258, %v473, 0
  %v479 = vsel %vm258, %v474, 0
  %481 = vmatprep.subr.mxu0 0.0
  %482 = vmatpush1.msra.mxu0 0.0
  %483 = vmatprep.subr.mxu0 0.0
  %484 = vmatpush1.msra.mxu0 0.0
  %485 = vmatprep.subr.mxu0 0.0
  %486 = vmatpush1.msra.mxu0 0.0
  %487 = vmatprep.subr.mxu0 0.0
  %488 = vmatpush1.msra.mxu0 0.0
  %489 = vmatprep.subr.mxu0 0.0
  %490 = vmatpush1.msra.mxu0 0.0
  %491 = vmatprep.subr.mxu0 0.0
  %492 = vmatpush1.msra.mxu0 0.0
  %493 = vmatprep.subr.mxu0 0.0
  %494 = vmatpush1.msra.mxu0 0.0
  %495 = vmatprep.subr.mxu0 0.0
  %496 = vmatpush1.msra.mxu0 0.0
  %497 = vmatprep.subr.mxu0 0.0
  %498 = vmatpush1.msra.mxu0 0.0
  %499 = vmatprep.subr.mxu0 0.0
  %500 = vmatpush1.msra.mxu0 0.0
  %501 = vmatprep.subr.mxu0 0.0
  %502 = vmatpush1.msra.mxu0 0.0
  %503 = vmatprep.subr.mxu0 0.0
  %504 = vmatpush1.msra.mxu0 0.0
  %505 = vmatprep.subr.mxu0 0.0
  %506 = vmatpush1.msra.mxu0 0.0
  %507 = vmatprep.subr.mxu0 0.0
  %508 = vmatpush1.msra.mxu0 0.0
  %509 = vmatprep.subr.mxu0 0.0
  %510 = vmatpush1.msra.mxu0 0.0
  %511 = vmatprep.subr.mxu0 0.0
  %512 = vmatpush1.msra.mxu0 %v471
  %513 = vmatprep.subr.mxu0 0.0
  %514 = vmatpush2.msra.mxu0 0.0
  %515 = vmatprep.subr.mxu0 0.0
  %516 = vmatpush2.msra.mxu0 0.0
  %517 = vmatprep.subr.mxu0 0.0
  %518 = vmatpush2.msra.mxu0 0.0
  %519 = vmatprep.subr.mxu0 0.0
  %520 = vmatpush2.msra.mxu0 0.0
  %521 = vmatprep.subr.mxu0 0.0
  %522 = vmatpush2.msra.mxu0 0.0
  %523 = vmatprep.subr.mxu0 0.0
  %524 = vmatpush2.msra.mxu0 0.0
  %525 = vmatprep.subr.mxu0 0.0
  %526 = vmatpush2.msra.mxu0 0.0
  %527 = vmatprep.subr.mxu0 0.0
  %528 = vmatpush2.msra.mxu0 0.0
  %529 = vmatprep.subr.mxu0 0.0
  %530 = vmatpush2.msra.mxu0 0.0
  %531 = vmatprep.subr.mxu0 0.0
  %532 = vmatpush2.msra.mxu0 0.0
  %533 = vmatprep.subr.mxu0 0.0
  %534 = vmatpush2.msra.mxu0 0.0
  %535 = vmatprep.subr.mxu0 0.0
  %536 = vmatpush2.msra.mxu0 0.0
  %537 = vmatprep.subr.mxu0 0.0
  %538 = vmatpush2.msra.mxu0 0.0
  %539 = vmatprep.subr.mxu0 0.0
  %540 = vmatpush2.msra.mxu0 0.0
  %541 = vmatprep.subr.mxu0 0.0
  %542 = vmatpush2.msra.mxu0 0.0
  %543 = vmatprep.subr.mxu0 0.0
  %544 = vmatpush2.msra.mxu0 0.0
  %545 = vmatprep.mubr.f32.mxu0 0.0
  %546 = vmatmul.mubr.f32.gmra.mxu0 %v476
  %v547 = vpop.f32.mrf.mxu0
  %v548 = vadd.f32 0.0, %v547
  %v549 = vpop.f32.mrf.mxu0
  %550 = vmatprep.mubr.f32.mxu0 0.0
  %551 = vmatmul.mubr.f32.gmra.mxu0 %v479
  %v552 = vpop.f32.mrf.mxu0
  %v553 = vadd.f32 0.0, %v552
  %v554 = vpop.f32.mrf.mxu0
  %555 = vdwg.mxu0
  %v556 = vadd.f32 %v446, %v548
  %v557 = vadd.f32 %v451, %v553
  %559 = vrot.lane.b32.xlu0 %v250, 31
  %v560 = vpop.permute.xlu0 %559
  %561 = vrot.lane.b32.xlu0 %v251, 31
  %v562 = vpop.permute.xlu0 %561
  %vm563 = vcmask 252928
  %v564 = vsel %vm563, %v560, %v562
  %vm566 = vcmask 7168
  %v567 = vsel %vm566, 0.0, %v564
  %s568 = scalar_lea.vmem %s4, 3
  %v569 = vld [vmem:[%s568] sm:$0x1]
  %v571 = vlaneseq
  %v572 = vshrl.u32 %v571, 7
  %v573 = vsub.s32 0, %v572
  %v574 = vrot.slane %v569, %v573
  %v576 = vmul.f32 %v567, %v574
  %s577 = scalar_lea.vmem %s3, 48
  %v578 = vld [vmem:[%s577] sm:$0xff]
  %v579 = vld [vmem:[%s577 + $0x8] sm:$0xff]
  %v581 = vsel %vm258, %v578, 0
  %v584 = vsel %vm258, %v579, 0
  %586 = vmatprep.subr.mxu0 0.0
  %587 = vmatpush1.msra.mxu0 0.0
  %588 = vmatprep.subr.mxu0 0.0
  %589 = vmatpush1.msra.mxu0 0.0
  %590 = vmatprep.subr.mxu0 0.0
  %591 = vmatpush1.msra.mxu0 0.0
  %592 = vmatprep.subr.mxu0 0.0
  %593 = vmatpush1.msra.mxu0 0.0
  %594 = vmatprep.subr.mxu0 0.0
  %595 = vmatpush1.msra.mxu0 0.0
  %596 = vmatprep.subr.mxu0 0.0
  %597 = vmatpush1.msra.mxu0 0.0
  %598 = vmatprep.subr.mxu0 0.0
  %599 = vmatpush1.msra.mxu0 0.0
  %600 = vmatprep.subr.mxu0 0.0
  %601 = vmatpush1.msra.mxu0 0.0
  %602 = vmatprep.subr.mxu0 0.0
  %603 = vmatpush1.msra.mxu0 0.0
  %604 = vmatprep.subr.mxu0 0.0
  %605 = vmatpush1.msra.mxu0 0.0
  %606 = vmatprep.subr.mxu0 0.0
  %607 = vmatpush1.msra.mxu0 0.0
  %608 = vmatprep.subr.mxu0 0.0
  %609 = vmatpush1.msra.mxu0 0.0
  %610 = vmatprep.subr.mxu0 0.0
  %611 = vmatpush1.msra.mxu0 0.0
  %612 = vmatprep.subr.mxu0 0.0
  %613 = vmatpush1.msra.mxu0 0.0
  %614 = vmatprep.subr.mxu0 0.0
  %615 = vmatpush1.msra.mxu0 0.0
  %616 = vmatprep.subr.mxu0 0.0
  %617 = vmatpush1.msra.mxu0 %v576
  %618 = vmatprep.subr.mxu0 0.0
  %619 = vmatpush2.msra.mxu0 0.0
  %620 = vmatprep.subr.mxu0 0.0
  %621 = vmatpush2.msra.mxu0 0.0
  %622 = vmatprep.subr.mxu0 0.0
  %623 = vmatpush2.msra.mxu0 0.0
  %624 = vmatprep.subr.mxu0 0.0
  %625 = vmatpush2.msra.mxu0 0.0
  %626 = vmatprep.subr.mxu0 0.0
  %627 = vmatpush2.msra.mxu0 0.0
  %628 = vmatprep.subr.mxu0 0.0
  %629 = vmatpush2.msra.mxu0 0.0
  %630 = vmatprep.subr.mxu0 0.0
  %631 = vmatpush2.msra.mxu0 0.0
  %632 = vmatprep.subr.mxu0 0.0
  %633 = vmatpush2.msra.mxu0 0.0
  %634 = vmatprep.subr.mxu0 0.0
  %635 = vmatpush2.msra.mxu0 0.0
  %636 = vmatprep.subr.mxu0 0.0
  %637 = vmatpush2.msra.mxu0 0.0
  %638 = vmatprep.subr.mxu0 0.0
  %639 = vmatpush2.msra.mxu0 0.0
  %640 = vmatprep.subr.mxu0 0.0
  %641 = vmatpush2.msra.mxu0 0.0
  %642 = vmatprep.subr.mxu0 0.0
  %643 = vmatpush2.msra.mxu0 0.0
  %644 = vmatprep.subr.mxu0 0.0
  %645 = vmatpush2.msra.mxu0 0.0
  %646 = vmatprep.subr.mxu0 0.0
  %647 = vmatpush2.msra.mxu0 0.0
  %648 = vmatprep.subr.mxu0 0.0
  %649 = vmatpush2.msra.mxu0 0.0
  %650 = vmatprep.mubr.f32.mxu0 0.0
  %651 = vmatmul.mubr.f32.gmra.mxu0 %v581
  %v652 = vpop.f32.mrf.mxu0
  %v653 = vadd.f32 0.0, %v652
  %v654 = vpop.f32.mrf.mxu0
  %655 = vmatprep.mubr.f32.mxu0 0.0
  %656 = vmatmul.mubr.f32.gmra.mxu0 %v584
  %v657 = vpop.f32.mrf.mxu0
  %v658 = vadd.f32 0.0, %v657
  %v659 = vpop.f32.mrf.mxu0
  %660 = vdwg.mxu0
  %v661 = vadd.f32 %v556, %v653
  %v662 = vadd.f32 %v557, %v658
  %s663 = scalar_lea.vmem %s3, 64
  %v664 = vld [vmem:[%s663] sm:$0xff]
  %v665 = vld [vmem:[%s663 + $0x8] sm:$0xff]
  %v667 = vsel %vm258, %v664, 0
  %v670 = vsel %vm258, %v665, 0
  %672 = vmatprep.subr.mxu0 0.0
  %673 = vmatpush1.msra.mxu0 0.0
  %674 = vmatprep.subr.mxu0 0.0
  %675 = vmatpush1.msra.mxu0 0.0
  %676 = vmatprep.subr.mxu0 0.0
  %677 = vmatpush1.msra.mxu0 0.0
  %678 = vmatprep.subr.mxu0 0.0
  %679 = vmatpush1.msra.mxu0 0.0
  %680 = vmatprep.subr.mxu0 0.0
  %681 = vmatpush1.msra.mxu0 0.0
  %682 = vmatprep.subr.mxu0 0.0
  %683 = vmatpush1.msra.mxu0 0.0
  %684 = vmatprep.subr.mxu0 0.0
  %685 = vmatpush1.msra.mxu0 0.0
  %686 = vmatprep.subr.mxu0 0.0
  %687 = vmatpush1.msra.mxu0 0.0
  %688 = vmatprep.subr.mxu0 0.0
  %689 = vmatpush1.msra.mxu0 0.0
  %690 = vmatprep.subr.mxu0 0.0
  %691 = vmatpush1.msra.mxu0 0.0
  %692 = vmatprep.subr.mxu0 0.0
  %693 = vmatpush1.msra.mxu0 0.0
  %694 = vmatprep.subr.mxu0 0.0
  %695 = vmatpush1.msra.mxu0 0.0
  %696 = vmatprep.subr.mxu0 0.0
  %697 = vmatpush1.msra.mxu0 0.0
  %698 = vmatprep.subr.mxu0 0.0
  %699 = vmatpush1.msra.mxu0 0.0
  %700 = vmatprep.subr.mxu0 0.0
  %701 = vmatpush1.msra.mxu0 0.0
  %702 = vmatprep.subr.mxu0 0.0
  %703 = vmatpush1.msra.mxu0 %v250
  %704 = vmatprep.subr.mxu0 0.0
  %705 = vmatpush2.msra.mxu0 0.0
  %706 = vmatprep.subr.mxu0 0.0
  %707 = vmatpush2.msra.mxu0 0.0
  %708 = vmatprep.subr.mxu0 0.0
  %709 = vmatpush2.msra.mxu0 0.0
  %710 = vmatprep.subr.mxu0 0.0
  %711 = vmatpush2.msra.mxu0 0.0
  %712 = vmatprep.subr.mxu0 0.0
  %713 = vmatpush2.msra.mxu0 0.0
  %714 = vmatprep.subr.mxu0 0.0
  %715 = vmatpush2.msra.mxu0 0.0
  %716 = vmatprep.subr.mxu0 0.0
  %717 = vmatpush2.msra.mxu0 0.0
  %718 = vmatprep.subr.mxu0 0.0
  %719 = vmatpush2.msra.mxu0 0.0
  %720 = vmatprep.subr.mxu0 0.0
  %721 = vmatpush2.msra.mxu0 0.0
  %722 = vmatprep.subr.mxu0 0.0
  %723 = vmatpush2.msra.mxu0 0.0
  %724 = vmatprep.subr.mxu0 0.0
  %725 = vmatpush2.msra.mxu0 0.0
  %726 = vmatprep.subr.mxu0 0.0
  %727 = vmatpush2.msra.mxu0 0.0
  %728 = vmatprep.subr.mxu0 0.0
  %729 = vmatpush2.msra.mxu0 0.0
  %730 = vmatprep.subr.mxu0 0.0
  %731 = vmatpush2.msra.mxu0 0.0
  %732 = vmatprep.subr.mxu0 0.0
  %733 = vmatpush2.msra.mxu0 0.0
  %734 = vmatprep.subr.mxu0 0.0
  %735 = vmatpush2.msra.mxu0 0.0
  %736 = vmatprep.mubr.f32.mxu0 0.0
  %737 = vmatmul.mubr.f32.gmra.mxu0 %v667
  %v738 = vpop.f32.mrf.mxu0
  %v739 = vadd.f32 0.0, %v738
  %v740 = vpop.f32.mrf.mxu0
  %741 = vmatprep.mubr.f32.mxu0 0.0
  %742 = vmatmul.mubr.f32.gmra.mxu0 %v670
  %v743 = vpop.f32.mrf.mxu0
  %v744 = vadd.f32 0.0, %v743
  %v745 = vpop.f32.mrf.mxu0
  %746 = vdwg.mxu0
  %v747 = vadd.f32 %v661, %v739
  %v748 = vadd.f32 %v662, %v744
  %s749 = scalar_lea.vmem %s3, 80
  %v750 = vld [vmem:[%s749] sm:$0xff]
  %v751 = vld [vmem:[%s749 + $0x8] sm:$0xff]
  %752 = vrot.lane.b32.xlu0 %v250, 30
  %v753 = vpop.permute.xlu0 %752
  %754 = vrot.lane.b32.xlu0 %v251, 30
  %v755 = vpop.permute.xlu0 %754
  %vm756 = vcmask 244736
  %v757 = vsel %vm756, %v753, %v755
  %v760 = vsel %vm258, %v750, 0
  %v763 = vsel %vm258, %v751, 0
  %765 = vmatprep.subr.mxu0 0.0
  %766 = vmatpush1.msra.mxu0 0.0
  %767 = vmatprep.subr.mxu0 0.0
  %768 = vmatpush1.msra.mxu0 0.0
  %769 = vmatprep.subr.mxu0 0.0
  %770 = vmatpush1.msra.mxu0 0.0
  %771 = vmatprep.subr.mxu0 0.0
  %772 = vmatpush1.msra.mxu0 0.0
  %773 = vmatprep.subr.mxu0 0.0
  %774 = vmatpush1.msra.mxu0 0.0
  %775 = vmatprep.subr.mxu0 0.0
  %776 = vmatpush1.msra.mxu0 0.0
  %777 = vmatprep.subr.mxu0 0.0
  %778 = vmatpush1.msra.mxu0 0.0
  %779 = vmatprep.subr.mxu0 0.0
  %780 = vmatpush1.msra.mxu0 0.0
  %781 = vmatprep.subr.mxu0 0.0
  %782 = vmatpush1.msra.mxu0 0.0
  %783 = vmatprep.subr.mxu0 0.0
  %784 = vmatpush1.msra.mxu0 0.0
  %785 = vmatprep.subr.mxu0 0.0
  %786 = vmatpush1.msra.mxu0 0.0
  %787 = vmatprep.subr.mxu0 0.0
  %788 = vmatpush1.msra.mxu0 0.0
  %789 = vmatprep.subr.mxu0 0.0
  %790 = vmatpush1.msra.mxu0 0.0
  %791 = vmatprep.subr.mxu0 0.0
  %792 = vmatpush1.msra.mxu0 0.0
  %793 = vmatprep.subr.mxu0 0.0
  %794 = vmatpush1.msra.mxu0 0.0
  %795 = vmatprep.subr.mxu0 0.0
  %796 = vmatpush1.msra.mxu0 %v757
  %797 = vmatprep.subr.mxu0 0.0
  %798 = vmatpush2.msra.mxu0 0.0
  %799 = vmatprep.subr.mxu0 0.0
  %800 = vmatpush2.msra.mxu0 0.0
  %801 = vmatprep.subr.mxu0 0.0
  %802 = vmatpush2.msra.mxu0 0.0
  %803 = vmatprep.subr.mxu0 0.0
  %804 = vmatpush2.msra.mxu0 0.0
  %805 = vmatprep.subr.mxu0 0.0
  %806 = vmatpush2.msra.mxu0 0.0
  %807 = vmatprep.subr.mxu0 0.0
  %808 = vmatpush2.msra.mxu0 0.0
  %809 = vmatprep.subr.mxu0 0.0
  %810 = vmatpush2.msra.mxu0 0.0
  %811 = vmatprep.subr.mxu0 0.0
  %812 = vmatpush2.msra.mxu0 0.0
  %813 = vmatprep.subr.mxu0 0.0
  %814 = vmatpush2.msra.mxu0 0.0
  %815 = vmatprep.subr.mxu0 0.0
  %816 = vmatpush2.msra.mxu0 0.0
  %817 = vmatprep.subr.mxu0 0.0
  %818 = vmatpush2.msra.mxu0 0.0
  %819 = vmatprep.subr.mxu0 0.0
  %820 = vmatpush2.msra.mxu0 0.0
  %821 = vmatprep.subr.mxu0 0.0
  %822 = vmatpush2.msra.mxu0 0.0
  %823 = vmatprep.subr.mxu0 0.0
  %824 = vmatpush2.msra.mxu0 0.0
  %825 = vmatprep.subr.mxu0 0.0
  %826 = vmatpush2.msra.mxu0 0.0
  %827 = vmatprep.subr.mxu0 0.0
  %828 = vmatpush2.msra.mxu0 0.0
  %829 = vmatprep.mubr.f32.mxu0 0.0
  %830 = vmatmul.mubr.f32.gmra.mxu0 %v760
  %v831 = vpop.f32.mrf.mxu0
  %v832 = vadd.f32 0.0, %v831
  %v833 = vpop.f32.mrf.mxu0
  %834 = vmatprep.mubr.f32.mxu0 0.0
  %835 = vmatmul.mubr.f32.gmra.mxu0 %v763
  %v836 = vpop.f32.mrf.mxu0
  %v837 = vadd.f32 0.0, %v836
  %v838 = vpop.f32.mrf.mxu0
  %839 = vdwg.mxu0
  %v840 = vadd.f32 %v747, %v832
  %v841 = vadd.f32 %v748, %v837
  %842 = vrot.lane.b32.xlu0 %v252, 91
  %v843 = vpop.permute.xlu0 %842
  %844 = vrot.lane.b32.xlu0 %v253, 91
  %v845 = vpop.permute.xlu0 %844
  %vm846 = vcmask 744448
  %v847 = vsel %vm846, %v843, %v845
  %v849 = vsel %vm566, 0.0, %v847
  %s850 = scalar_lea.vmem %s4, 6
  %v851 = vld [vmem:[%s850] sm:$0x1]
  %v853 = vlaneseq
  %v854 = vshrl.u32 %v853, 7
  %v855 = vsub.s32 0, %v854
  %v856 = vrot.slane %v851, %v855
  %v858 = vmul.f32 %v849, %v856
  %s859 = scalar_lea.vmem %s3, 96
  %v860 = vld [vmem:[%s859] sm:$0xff]
  %v861 = vld [vmem:[%s859 + $0x8] sm:$0xff]
  %v863 = vsel %vm258, %v860, 0
  %v866 = vsel %vm258, %v861, 0
  %868 = vmatprep.subr.mxu0 0.0
  %869 = vmatpush1.msra.mxu0 0.0
  %870 = vmatprep.subr.mxu0 0.0
  %871 = vmatpush1.msra.mxu0 0.0
  %872 = vmatprep.subr.mxu0 0.0
  %873 = vmatpush1.msra.mxu0 0.0
  %874 = vmatprep.subr.mxu0 0.0
  %875 = vmatpush1.msra.mxu0 0.0
  %876 = vmatprep.subr.mxu0 0.0
  %877 = vmatpush1.msra.mxu0 0.0
  %878 = vmatprep.subr.mxu0 0.0
  %879 = vmatpush1.msra.mxu0 0.0
  %880 = vmatprep.subr.mxu0 0.0
  %881 = vmatpush1.msra.mxu0 0.0
  %882 = vmatprep.subr.mxu0 0.0
  %883 = vmatpush1.msra.mxu0 0.0
  %884 = vmatprep.subr.mxu0 0.0
  %885 = vmatpush1.msra.mxu0 0.0
  %886 = vmatprep.subr.mxu0 0.0
  %887 = vmatpush1.msra.mxu0 0.0
  %888 = vmatprep.subr.mxu0 0.0
  %889 = vmatpush1.msra.mxu0 0.0
  %890 = vmatprep.subr.mxu0 0.0
  %891 = vmatpush1.msra.mxu0 0.0
  %892 = vmatprep.subr.mxu0 0.0
  %893 = vmatpush1.msra.mxu0 0.0
  %894 = vmatprep.subr.mxu0 0.0
  %895 = vmatpush1.msra.mxu0 0.0
  %896 = vmatprep.subr.mxu0 0.0
  %897 = vmatpush1.msra.mxu0 0.0
  %898 = vmatprep.subr.mxu0 0.0
  %899 = vmatpush1.msra.mxu0 %v858
  %900 = vmatprep.subr.mxu0 0.0
  %901 = vmatpush2.msra.mxu0 0.0
  %902 = vmatprep.subr.mxu0 0.0
  %903 = vmatpush2.msra.mxu0 0.0
  %904 = vmatprep.subr.mxu0 0.0
  %905 = vmatpush2.msra.mxu0 0.0
  %906 = vmatprep.subr.mxu0 0.0
  %907 = vmatpush2.msra.mxu0 0.0
  %908 = vmatprep.subr.mxu0 0.0
  %909 = vmatpush2.msra.mxu0 0.0
  %910 = vmatprep.subr.mxu0 0.0
  %911 = vmatpush2.msra.mxu0 0.0
  %912 = vmatprep.subr.mxu0 0.0
  %913 = vmatpush2.msra.mxu0 0.0
  %914 = vmatprep.subr.mxu0 0.0
  %915 = vmatpush2.msra.mxu0 0.0
  %916 = vmatprep.subr.mxu0 0.0
  %917 = vmatpush2.msra.mxu0 0.0
  %918 = vmatprep.subr.mxu0 0.0
  %919 = vmatpush2.msra.mxu0 0.0
  %920 = vmatprep.subr.mxu0 0.0
  %921 = vmatpush2.msra.mxu0 0.0
  %922 = vmatprep.subr.mxu0 0.0
  %923 = vmatpush2.msra.mxu0 0.0
  %924 = vmatprep.subr.mxu0 0.0
  %925 = vmatpush2.msra.mxu0 0.0
  %926 = vmatprep.subr.mxu0 0.0
  %927 = vmatpush2.msra.mxu0 0.0
  %928 = vmatprep.subr.mxu0 0.0
  %929 = vmatpush2.msra.mxu0 0.0
  %930 = vmatprep.subr.mxu0 0.0
  %931 = vmatpush2.msra.mxu0 0.0
  %932 = vmatprep.mubr.f32.mxu0 0.0
  %933 = vmatmul.mubr.f32.gmra.mxu0 %v863
  %v934 = vpop.f32.mrf.mxu0
  %v935 = vadd.f32 0.0, %v934
  %v936 = vpop.f32.mrf.mxu0
  %937 = vmatprep.mubr.f32.mxu0 0.0
  %938 = vmatmul.mubr.f32.gmra.mxu0 %v866
  %v939 = vpop.f32.mrf.mxu0
  %v940 = vadd.f32 0.0, %v939
  %v941 = vpop.f32.mrf.mxu0
  %942 = vdwg.mxu0
  %v943 = vadd.f32 %v840, %v935
  %v944 = vadd.f32 %v841, %v940
  %s945 = scalar_lea.vmem %s3, 112
  %v946 = vld [vmem:[%s945] sm:$0xff]
  %v947 = vld [vmem:[%s945 + $0x8] sm:$0xff]
  %948 = vrot.lane.b32.xlu0 %v251, 60
  %v949 = vpop.permute.xlu0 %948
  %950 = vrot.lane.b32.xlu0 %v252, 60
  %v951 = vpop.permute.xlu0 %950
  %vm952 = vcmask 490496
  %v953 = vsel %vm952, %v949, %v951
  %v956 = vsel %vm258, %v946, 0
  %v959 = vsel %vm258, %v947, 0
  %961 = vmatprep.subr.mxu0 0.0
  %962 = vmatpush1.msra.mxu0 0.0
  %963 = vmatprep.subr.mxu0 0.0
  %964 = vmatpush1.msra.mxu0 0.0
  %965 = vmatprep.subr.mxu0 0.0
  %966 = vmatpush1.msra.mxu0 0.0
  %967 = vmatprep.subr.mxu0 0.0
  %968 = vmatpush1.msra.mxu0 0.0
  %969 = vmatprep.subr.mxu0 0.0
  %970 = vmatpush1.msra.mxu0 0.0
  %971 = vmatprep.subr.mxu0 0.0
  %972 = vmatpush1.msra.mxu0 0.0
  %973 = vmatprep.subr.mxu0 0.0
  %974 = vmatpush1.msra.mxu0 0.0
  %975 = vmatprep.subr.mxu0 0.0
  %976 = vmatpush1.msra.mxu0 0.0
  %977 = vmatprep.subr.mxu0 0.0
  %978 = vmatpush1.msra.mxu0 0.0
  %979 = vmatprep.subr.mxu0 0.0
  %980 = vmatpush1.msra.mxu0 0.0
  %981 = vmatprep.subr.mxu0 0.0
  %982 = vmatpush1.msra.mxu0 0.0
  %983 = vmatprep.subr.mxu0 0.0
  %984 = vmatpush1.msra.mxu0 0.0
  %985 = vmatprep.subr.mxu0 0.0
  %986 = vmatpush1.msra.mxu0 0.0
  %987 = vmatprep.subr.mxu0 0.0
  %988 = vmatpush1.msra.mxu0 0.0
  %989 = vmatprep.subr.mxu0 0.0
  %990 = vmatpush1.msra.mxu0 0.0
  %991 = vmatprep.subr.mxu0 0.0
  %992 = vmatpush1.msra.mxu0 %v953
  %993 = vmatprep.subr.mxu0 0.0
  %994 = vmatpush2.msra.mxu0 0.0
  %995 = vmatprep.subr.mxu0 0.0
  %996 = vmatpush2.msra.mxu0 0.0
  %997 = vmatprep.subr.mxu0 0.0
  %998 = vmatpush2.msra.mxu0 0.0
  %999 = vmatprep.subr.mxu0 0.0
  %1000 = vmatpush2.msra.mxu0 0.0
  %1001 = vmatprep.subr.mxu0 0.0
  %1002 = vmatpush2.msra.mxu0 0.0
  %1003 = vmatprep.subr.mxu0 0.0
  %1004 = vmatpush2.msra.mxu0 0.0
  %1005 = vmatprep.subr.mxu0 0.0
  %1006 = vmatpush2.msra.mxu0 0.0
  %1007 = vmatprep.subr.mxu0 0.0
  %1008 = vmatpush2.msra.mxu0 0.0
  %1009 = vmatprep.subr.mxu0 0.0
  %1010 = vmatpush2.msra.mxu0 0.0
  %1011 = vmatprep.subr.mxu0 0.0
  %1012 = vmatpush2.msra.mxu0 0.0
  %1013 = vmatprep.subr.mxu0 0.0
  %1014 = vmatpush2.msra.mxu0 0.0
  %1015 = vmatprep.subr.mxu0 0.0
  %1016 = vmatpush2.msra.mxu0 0.0
  %1017 = vmatprep.subr.mxu0 0.0
  %1018 = vmatpush2.msra.mxu0 0.0
  %1019 = vmatprep.subr.mxu0 0.0
  %1020 = vmatpush2.msra.mxu0 0.0
  %1021 = vmatprep.subr.mxu0 0.0
  %1022 = vmatpush2.msra.mxu0 0.0
  %1023 = vmatprep.subr.mxu0 0.0
  %1024 = vmatpush2.msra.mxu0 0.0
  %1025 = vmatprep.mubr.f32.mxu0 0.0
  %1026 = vmatmul.mubr.f32.gmra.mxu0 %v956
  %v1027 = vpop.f32.mrf.mxu0
  %v1028 = vadd.f32 0.0, %v1027
  %v1029 = vpop.f32.mrf.mxu0
  %1030 = vmatprep.mubr.f32.mxu0 0.0
  %1031 = vmatmul.mubr.f32.gmra.mxu0 %v959
  %v1032 = vpop.f32.mrf.mxu0
  %v1033 = vadd.f32 0.0, %v1032
  %v1034 = vpop.f32.mrf.mxu0
  %1035 = vdwg.mxu0
  %v1036 = vadd.f32 %v943, %v1028
  %v1037 = vadd.f32 %v944, %v1033
  %s1038 = scalar_lea.vmem %s3, 128
  %v1039 = vld [vmem:[%s1038] sm:$0xff]
  %v1040 = vld [vmem:[%s1038 + $0x8] sm:$0xff]
  %1041 = vrot.lane.b32.xlu0 %v252, 90
  %v1042 = vpop.permute.xlu0 %1041
  %1043 = vrot.lane.b32.xlu0 %v253, 90
  %v1044 = vpop.permute.xlu0 %1043
  %vm1045 = vcmask 736256
  %v1046 = vsel %vm1045, %v1042, %v1044
  %v1049 = vsel %vm258, %v1039, 0
  %v1052 = vsel %vm258, %v1040, 0
  %1054 = vmatprep.subr.mxu0 0.0
  %1055 = vmatpush1.msra.mxu0 0.0
  %1056 = vmatprep.subr.mxu0 0.0
  %1057 = vmatpush1.msra.mxu0 0.0
  %1058 = vmatprep.subr.mxu0 0.0
  %1059 = vmatpush1.msra.mxu0 0.0
  %1060 = vmatprep.subr.mxu0 0.0
  %1061 = vmatpush1.msra.mxu0 0.0
  %1062 = vmatprep.subr.mxu0 0.0
  %1063 = vmatpush1.msra.mxu0 0.0
  %1064 = vmatprep.subr.mxu0 0.0
  %1065 = vmatpush1.msra.mxu0 0.0
  %1066 = vmatprep.subr.mxu0 0.0
  %1067 = vmatpush1.msra.mxu0 0.0
  %1068 = vmatprep.subr.mxu0 0.0
  %1069 = vmatpush1.msra.mxu0 0.0
  %1070 = vmatprep.subr.mxu0 0.0
  %1071 = vmatpush1.msra.mxu0 0.0
  %1072 = vmatprep.subr.mxu0 0.0
  %1073 = vmatpush1.msra.mxu0 0.0
  %1074 = vmatprep.subr.mxu0 0.0
  %1075 = vmatpush1.msra.mxu0 0.0
  %1076 = vmatprep.subr.mxu0 0.0
  %1077 = vmatpush1.msra.mxu0 0.0
  %1078 = vmatprep.subr.mxu0 0.0
  %1079 = vmatpush1.msra.mxu0 0.0
  %1080 = vmatprep.subr.mxu0 0.0
  %1081 = vmatpush1.msra.mxu0 0.0
  %1082 = vmatprep.subr.mxu0 0.0
  %1083 = vmatpush1.msra.mxu0 0.0
  %1084 = vmatprep.subr.mxu0 0.0
  %1085 = vmatpush1.msra.mxu0 %v1046
  %1086 = vmatprep.subr.mxu0 0.0
  %1087 = vmatpush2.msra.mxu0 0.0
  %1088 = vmatprep.subr.mxu0 0.0
  %1089 = vmatpush2.msra.mxu0 0.0
  %1090 = vmatprep.subr.mxu0 0.0
  %1091 = vmatpush2.msra.mxu0 0.0
  %1092 = vmatprep.subr.mxu0 0.0
  %1093 = vmatpush2.msra.mxu0 0.0
  %1094 = vmatprep.subr.mxu0 0.0
  %1095 = vmatpush2.msra.mxu0 0.0
  %1096 = vmatprep.subr.mxu0 0.0
  %1097 = vmatpush2.msra.mxu0 0.0
  %1098 = vmatprep.subr.mxu0 0.0
  %1099 = vmatpush2.msra.mxu0 0.0
  %1100 = vmatprep.subr.mxu0 0.0
  %1101 = vmatpush2.msra.mxu0 0.0
  %1102 = vmatprep.subr.mxu0 0.0
  %1103 = vmatpush2.msra.mxu0 0.0
  %1104 = vmatprep.subr.mxu0 0.0
  %1105 = vmatpush2.msra.mxu0 0.0
  %1106 = vmatprep.subr.mxu0 0.0
  %1107 = vmatpush2.msra.mxu0 0.0
  %1108 = vmatprep.subr.mxu0 0.0
  %1109 = vmatpush2.msra.mxu0 0.0
  %1110 = vmatprep.subr.mxu0 0.0
  %1111 = vmatpush2.msra.mxu0 0.0
  %1112 = vmatprep.subr.mxu0 0.0
  %1113 = vmatpush2.msra.mxu0 0.0
  %1114 = vmatprep.subr.mxu0 0.0
  %1115 = vmatpush2.msra.mxu0 0.0
  %1116 = vmatprep.subr.mxu0 0.0
  %1117 = vmatpush2.msra.mxu0 0.0
  %1118 = vmatprep.mubr.f32.mxu0 0.0
  %1119 = vmatmul.mubr.f32.gmra.mxu0 %v1049
  %v1120 = vpop.f32.mrf.mxu0
  %v1121 = vadd.f32 0.0, %v1120
  %v1122 = vpop.f32.mrf.mxu0
  %1123 = vmatprep.mubr.f32.mxu0 0.0
  %1124 = vmatmul.mubr.f32.gmra.mxu0 %v1052
  %v1125 = vpop.f32.mrf.mxu0
  %v1126 = vadd.f32 0.0, %v1125
  %v1127 = vpop.f32.mrf.mxu0
  %1128 = vdwg.mxu0
  %v1129 = vadd.f32 %v1036, %v1121
  %v1130 = vadd.f32 %v1037, %v1126
  %v1131 = vld [vmem:[%s5] sm:$0xff]
  %v1132 = vld [vmem:[%s5 + $0x8] sm:$0xff]
  %vm1133 = vcmask 801792
  %v1134 = vsel %vm1133, %v1129, 0.0
  %1135 = vadd.xlane.f32.xlu0 %v1134
  %v1136 = vpop.xlane.xlu0 %1135
  %v1137 = vsel %vm1133, %v1130, 0.0
  %1138 = vadd.xlane.f32.xlu0 %v1137
  %v1139 = vpop.xlane.xlu0 %1138
  %v1140 = vrcp.pop 98.0
  %v1141 = vmul.f32 %v1136, %v1140
  %v1142 = vmul.f32 %v1139, %v1140
  %v1143 = vsub.f32 %v1129, %v1141
  %v1144 = vsub.f32 %v1130, %v1142
  %v1145 = vmul.f32 %v1143, %v1143
  %v1146 = vmul.f32 %v1144, %v1144
  %v1147 = vsel %vm1133, %v1145, 0.0
  %1148 = vadd.xlane.f32.xlu0 %v1147
  %v1149 = vpop.xlane.xlu0 %1148
  %v1150 = vsel %vm1133, %v1146, 0.0
  %1151 = vadd.xlane.f32.xlu0 %v1150
  %v1152 = vpop.xlane.xlu0 %1151
  %v1153 = vmul.f32 %v1149, %v1140
  %v1154 = vmul.f32 %v1152, %v1140
  %v1155 = vadd.f32 %v1153, 1e-05
  %v1156 = vadd.f32 %v1154, 1e-05
  %v1157 = vrsqrt.pop %v1155
  %v1158 = vrsqrt.pop %v1156
  %v1159 = vmul.f32 %v1131, %v1157
  %v1160 = vmul.f32 %v1132, %v1158
  %1162 = vset.pattern.permute.xlu0 0
  %1163 = vperm.xlu0 %1162, %v1159
  %v1164 = vpop.permute.xlu0 %1163
  %1167 = vset.pattern.permute.xlu0 0
  %1168 = vperm.xlu0 %1167, %v1160
  %v1169 = vpop.permute.xlu0 %1168
  %v1171 = vmul.f32 %v1143, %v1164
  %v1172 = vmul.f32 %v1144, %v1169
  %1174 = vset.pattern.permute.xlu0 1
  %1175 = vperm.xlu0 %1174, %v1131
  %v1176 = vpop.permute.xlu0 %1175
  %1179 = vset.pattern.permute.xlu0 1
  %1180 = vperm.xlu0 %1179, %v1132
  %v1181 = vpop.permute.xlu0 %1180
  %v1183 = vadd.f32 %v1171, %v1176
  %v1184 = vadd.f32 %v1172, %v1181
  %v1185 = vmax.f32 %v1183, 0.0
  %v1186 = vmax.f32 %v1184, 0.0
  %v1187 = vld [vmem:[%s8] sm:$0xff]
  %v1188 = vld [vmem:[%s8 + $0x8] sm:$0xff]
  %v1189 = vld [vmem:[%s8 + $0x10] sm:$0xff]
  %v1190 = vld [vmem:[%s8 + $0x18] sm:$0xff]
  %v1191 = vld [vmem:[%s8 + $0x20] sm:$0xff]
  %v1192 = vld [vmem:[%s8 + $0x28] sm:$0xff]
  %v1193 = vld [vmem:[%s8 + $0x30] sm:$0xff]
  %v1194 = vld [vmem:[%s8 + $0x38] sm:$0xff]
  %v1195 = vld [vmem:[%s8 + $0x40] sm:$0xff]
  %v1196 = vld [vmem:[%s8 + $0x48] sm:$0xff]
  %v1197 = vld [vmem:[%s8 + $0x50] sm:$0xff]
  %v1198 = vld [vmem:[%s8 + $0x58] sm:$0xff]
  %v1199 = vld [vmem:[%s8 + $0x60] sm:$0xff]
  %v1200 = vld [vmem:[%s8 + $0x68] sm:$0xff]
  %v1201 = vld [vmem:[%s8 + $0x70] sm:$0xff]
  %v1202 = vld [vmem:[%s8 + $0x78] sm:$0xff]
  %v1203 = vld [vmem:[%s8 + $0x80] sm:$0xff]
  %v1204 = vld [vmem:[%s8 + $0x88] sm:$0xff]
  %v1205 = vld [vmem:[%s8 + $0x90] sm:$0xff]
  %v1206 = vld [vmem:[%s8 + $0x98] sm:$0xff]
  %v1207 = vld [vmem:[%s8 + $0xa0] sm:$0xff]
  %v1208 = vld [vmem:[%s8 + $0xa8] sm:$0xff]
  %v1209 = vld [vmem:[%s8 + $0xb0] sm:$0xff]
  %v1210 = vld [vmem:[%s8 + $0xb8] sm:$0xff]
  %v1211 = vld [vmem:[%s8 + $0xc0] sm:$0xff]
  %v1212 = vld [vmem:[%s8 + $0xc8] sm:$0xff]
  %v1213 = vld [vmem:[%s8 + $0xd0] sm:$0xff]
  %v1214 = vld [vmem:[%s8 + $0xd8] sm:$0xff]
  %v1215 = vld [vmem:[%s8 + $0xe0] sm:$0xff]
  %v1216 = vld [vmem:[%s8 + $0xe8] sm:$0xff]
  %v1217 = vld [vmem:[%s8 + $0xf0] sm:$0xff]
  %v1218 = vld [vmem:[%s8 + $0xf8] sm:$0xff]
  %v1219 = vld [vmem:[%s8 + $0x100] sm:$0xff]
  %v1220 = vld [vmem:[%s8 + $0x108] sm:$0xff]
  %v1221 = vld [vmem:[%s8 + $0x110] sm:$0xff]
  %v1222 = vld [vmem:[%s8 + $0x118] sm:$0xff]
  %v1223 = vld [vmem:[%s8 + $0x120] sm:$0xff]
  %v1224 = vld [vmem:[%s8 + $0x128] sm:$0xff]
  %v1225 = vld [vmem:[%s8 + $0x130] sm:$0xff]
  %v1226 = vld [vmem:[%s8 + $0x138] sm:$0xff]
  %v1227 = vld [vmem:[%s8 + $0x140] sm:$0xff]
  %v1228 = vld [vmem:[%s8 + $0x148] sm:$0xff]
  %v1229 = vld [vmem:[%s8 + $0x150] sm:$0xff]
  %v1230 = vld [vmem:[%s8 + $0x158] sm:$0xff]
  %v1231 = vld [vmem:[%s8 + $0x160] sm:$0xff]
  %v1232 = vld [vmem:[%s8 + $0x168] sm:$0xff]
  %v1233 = vld [vmem:[%s8 + $0x170] sm:$0xff]
  %v1234 = vld [vmem:[%s8 + $0x178] sm:$0xff]
  %v1235 = vld [vmem:[%s8 + $0x180] sm:$0xff]
  %v1236 = vld [vmem:[%s8 + $0x188] sm:$0xff]
  %v1237 = vld [vmem:[%s8 + $0x190] sm:$0xff]
  %v1238 = vld [vmem:[%s8 + $0x198] sm:$0xff]
  %v1239 = vld [vmem:[%s8 + $0x1a0] sm:$0xff]
  %v1240 = vld [vmem:[%s8 + $0x1a8] sm:$0xff]
  %v1241 = vld [vmem:[%s8 + $0x1b0] sm:$0xff]
  %v1242 = vld [vmem:[%s8 + $0x1b8] sm:$0xff]
  %v1243 = vld [vmem:[%s8 + $0x1c0] sm:$0xff]
  %v1244 = vld [vmem:[%s8 + $0x1c8] sm:$0xff]
  %v1245 = vld [vmem:[%s8 + $0x1d0] sm:$0xff]
  %v1246 = vld [vmem:[%s8 + $0x1d8] sm:$0xff]
  %v1247 = vld [vmem:[%s8 + $0x1e0] sm:$0xff]
  %v1248 = vld [vmem:[%s8 + $0x1e8] sm:$0xff]
  %v1249 = vld [vmem:[%s8 + $0x1f0] sm:$0xff]
  %v1250 = vld [vmem:[%s8 + $0x1f8] sm:$0xff]
  %v1251 = vld [vmem:[%s8 + $0x200] sm:$0xff]
  %v1252 = vld [vmem:[%s8 + $0x208] sm:$0xff]
  %v1253 = vld [vmem:[%s8 + $0x210] sm:$0xff]
  %v1254 = vld [vmem:[%s8 + $0x218] sm:$0xff]
  %v1255 = vld [vmem:[%s8 + $0x220] sm:$0xff]
  %v1256 = vld [vmem:[%s8 + $0x228] sm:$0xff]
  %v1257 = vld [vmem:[%s8 + $0x230] sm:$0xff]
  %v1258 = vld [vmem:[%s8 + $0x238] sm:$0xff]
  %v1259 = vld [vmem:[%s8 + $0x240] sm:$0xff]
  %v1260 = vld [vmem:[%s8 + $0x248] sm:$0xff]
  %v1261 = vld [vmem:[%s8 + $0x250] sm:$0xff]
  %v1262 = vld [vmem:[%s8 + $0x258] sm:$0xff]
  %v1263 = vld [vmem:[%s8 + $0x260] sm:$0xff]
  %v1264 = vld [vmem:[%s8 + $0x268] sm:$0xff]
  %v1265 = vld [vmem:[%s8 + $0x270] sm:$0xff]
  %v1266 = vld [vmem:[%s8 + $0x278] sm:$0xff]
  %v1267 = vld [vmem:[%s8 + $0x280] sm:$0xff]
  %v1268 = vld [vmem:[%s8 + $0x288] sm:$0xff]
  %v1269 = vld [vmem:[%s8 + $0x290] sm:$0xff]
  %v1270 = vld [vmem:[%s8 + $0x298] sm:$0xff]
  %v1271 = vld [vmem:[%s8 + $0x2a0] sm:$0xff]
  %v1272 = vld [vmem:[%s8 + $0x2a8] sm:$0xff]
  %v1273 = vld [vmem:[%s8 + $0x2b0] sm:$0xff]
  %v1274 = vld [vmem:[%s8 + $0x2b8] sm:$0xff]
  %v1275 = vld [vmem:[%s8 + $0x2c0] sm:$0xff]
  %v1276 = vld [vmem:[%s8 + $0x2c8] sm:$0xff]
  %v1277 = vld [vmem:[%s8 + $0x2d0] sm:$0xff]
  %v1278 = vld [vmem:[%s8 + $0x2d8] sm:$0xff]
  %v1279 = vld [vmem:[%s8 + $0x2e0] sm:$0xff]
  %v1280 = vld [vmem:[%s8 + $0x2e8] sm:$0xff]
  %v1281 = vld [vmem:[%s8 + $0x2f0] sm:$0xff]
  %v1282 = vld [vmem:[%s8 + $0x2f8] sm:$0xff]
  %v1283 = vld [vmem:[%s8 + $0x300] sm:$0xff]
  %v1284 = vld [vmem:[%s8 + $0x308] sm:$0xff]
  %vm1285 = vcmask 130048
  %v1287 = vsel %vm1285, %v1187, 0
  %v1290 = vsel %vm1285, %v1188, 0
  %v1293 = vsel %vm1285, %v1189, 0
  %v1296 = vsel %vm1285, %v1190, 0
  %v1299 = vsel %vm1285, %v1191, 0
  %v1302 = vsel %vm1285, %v1192, 0
  %v1305 = vsel %vm1285, %v1193, 0
  %v1308 = vsel %vm1285, %v1194, 0
  %v1311 = vsel %vm1285, %v1195, 0
  %v1314 = vsel %vm1285, %v1196, 0
  %v1317 = vsel %vm1285, %v1197, 0
  %v1320 = vsel %vm1285, %v1198, 0
  %v1323 = vsel %vm1285, %v1199, 0
  %v1326 = vsel %vm1285, %v1200, 0
  %v1329 = vsel %vm1285, %v1201, 0
  %v1332 = vsel %vm1285, %v1202, 0
  %v1335 = vsel %vm1285, %v1203, 0
  %v1338 = vsel %vm1285, %v1204, 0
  %v1341 = vsel %vm1285, %v1205, 0
  %v1344 = vsel %vm1285, %v1206, 0
  %v1347 = vsel %vm1285, %v1207, 0
  %v1350 = vsel %vm1285, %v1208, 0
  %v1353 = vsel %vm1285, %v1209, 0
  %v1356 = vsel %vm1285, %v1210, 0
  %v1359 = vsel %vm1285, %v1211, 0
  %v1362 = vsel %vm1285, %v1212, 0
  %v1365 = vsel %vm1285, %v1213, 0
  %v1368 = vsel %vm1285, %v1214, 0
  %v1371 = vsel %vm1285, %v1215, 0
  %v1374 = vsel %vm1285, %v1216, 0
  %v1377 = vsel %vm1285, %v1217, 0
  %v1380 = vsel %vm1285, %v1218, 0
  %v1383 = vsel %vm1285, %v1219, 0
  %v1386 = vsel %vm1285, %v1220, 0
  %v1389 = vsel %vm1285, %v1221, 0
  %v1392 = vsel %vm1285, %v1222, 0
  %v1395 = vsel %vm1285, %v1223, 0
  %v1398 = vsel %vm1285, %v1224, 0
  %v1401 = vsel %vm1285, %v1225, 0
  %v1404 = vsel %vm1285, %v1226, 0
  %v1407 = vsel %vm1285, %v1227, 0
  %v1410 = vsel %vm1285, %v1228, 0
  %v1413 = vsel %vm1285, %v1229, 0
  %v1416 = vsel %vm1285, %v1230, 0
  %v1419 = vsel %vm1285, %v1231, 0
  %v1422 = vsel %vm1285, %v1232, 0
  %v1425 = vsel %vm1285, %v1233, 0
  %v1428 = vsel %vm1285, %v1234, 0
  %v1431 = vsel %vm1285, %v1235, 0
  %v1434 = vsel %vm1285, %v1236, 0
  %v1437 = vsel %vm1285, %v1237, 0
  %v1440 = vsel %vm1285, %v1238, 0
  %v1443 = vsel %vm1285, %v1239, 0
  %v1446 = vsel %vm1285, %v1240, 0
  %v1449 = vsel %vm1285, %v1241, 0
  %v1452 = vsel %vm1285, %v1242, 0
  %v1455 = vsel %vm1285, %v1243, 0
  %v1458 = vsel %vm1285, %v1244, 0
  %v1461 = vsel %vm1285, %v1245, 0
  %v1464 = vsel %vm1285, %v1246, 0
  %v1467 = vsel %vm1285, %v1247, 0
  %v1470 = vsel %vm1285, %v1248, 0
  %v1473 = vsel %vm1285, %v1249, 0
  %v1476 = vsel %vm1285, %v1250, 0
  %v1479 = vsel %vm1285, %v1251, 0
  %v1482 = vsel %vm1285, %v1252, 0
  %v1485 = vsel %vm1285, %v1253, 0
  %v1488 = vsel %vm1285, %v1254, 0
  %v1491 = vsel %vm1285, %v1255, 0
  %v1494 = vsel %vm1285, %v1256, 0
  %v1497 = vsel %vm1285, %v1257, 0
  %v1500 = vsel %vm1285, %v1258, 0
  %v1503 = vsel %vm1285, %v1259, 0
  %v1506 = vsel %vm1285, %v1260, 0
  %v1509 = vsel %vm1285, %v1261, 0
  %v1512 = vsel %vm1285, %v1262, 0
  %v1515 = vsel %vm1285, %v1263, 0
  %v1518 = vsel %vm1285, %v1264, 0
  %v1521 = vsel %vm1285, %v1265, 0
  %v1524 = vsel %vm1285, %v1266, 0
  %v1527 = vsel %vm1285, %v1267, 0
  %v1530 = vsel %vm1285, %v1268, 0
  %v1533 = vsel %vm1285, %v1269, 0
  %v1536 = vsel %vm1285, %v1270, 0
  %v1539 = vsel %vm1285, %v1271, 0
  %v1542 = vsel %vm1285, %v1272, 0
  %v1545 = vsel %vm1285, %v1273, 0
  %v1548 = vsel %vm1285, %v1274, 0
  %v1551 = vsel %vm1285, %v1275, 0
  %v1554 = vsel %vm1285, %v1276, 0
  %v1557 = vsel %vm1285, %v1277, 0
  %v1560 = vsel %vm1285, %v1278, 0
  %v1563 = vsel %vm1285, %v1279, 0
  %v1566 = vsel %vm1285, %v1280, 0
  %v1569 = vsel %vm1285, %v1281, 0
  %v1572 = vsel %vm1285, %v1282, 0
  %v1575 = vsel %vm1285, %v1283, 0
  %v1578 = vsel %vm1285, %v1284, 0
  %1580 = vmatprep.subr.mxu0 0.0
  %1581 = vmatpush1.msra.mxu0 0.0
  %1582 = vmatprep.subr.mxu0 0.0
  %1583 = vmatpush1.msra.mxu0 0.0
  %1584 = vmatprep.subr.mxu0 0.0
  %1585 = vmatpush1.msra.mxu0 0.0
  %1586 = vmatprep.subr.mxu0 0.0
  %1587 = vmatpush1.msra.mxu0 0.0
  %1588 = vmatprep.subr.mxu0 0.0
  %1589 = vmatpush1.msra.mxu0 0.0
  %1590 = vmatprep.subr.mxu0 0.0
  %1591 = vmatpush1.msra.mxu0 0.0
  %1592 = vmatprep.subr.mxu0 0.0
  %1593 = vmatpush1.msra.mxu0 0.0
  %1594 = vmatprep.subr.mxu0 0.0
  %1595 = vmatpush1.msra.mxu0 0.0
  %1596 = vmatprep.subr.mxu0 0.0
  %1597 = vmatpush1.msra.mxu0 0.0
  %1598 = vmatprep.subr.mxu0 0.0
  %1599 = vmatpush1.msra.mxu0 0.0
  %1600 = vmatprep.subr.mxu0 0.0
  %1601 = vmatpush1.msra.mxu0 0.0
  %1602 = vmatprep.subr.mxu0 0.0
  %1603 = vmatpush1.msra.mxu0 0.0
  %1604 = vmatprep.subr.mxu0 0.0
  %1605 = vmatpush1.msra.mxu0 0.0
  %1606 = vmatprep.subr.mxu0 0.0
  %1607 = vmatpush1.msra.mxu0 0.0
  %1608 = vmatprep.subr.mxu0 0.0
  %1609 = vmatpush1.msra.mxu0 %v1186
  %1610 = vmatprep.subr.mxu0 0.0
  %1611 = vmatpush1.msra.mxu0 %v1185
  %1612 = vmatprep.subr.mxu0 0.0
  %1613 = vmatpush2.msra.mxu0 0.0
  %1614 = vmatprep.subr.mxu0 0.0
  %1615 = vmatpush2.msra.mxu0 0.0
  %1616 = vmatprep.subr.mxu0 0.0
  %1617 = vmatpush2.msra.mxu0 0.0
  %1618 = vmatprep.subr.mxu0 0.0
  %1619 = vmatpush2.msra.mxu0 0.0
  %1620 = vmatprep.subr.mxu0 0.0
  %1621 = vmatpush2.msra.mxu0 0.0
  %1622 = vmatprep.subr.mxu0 0.0
  %1623 = vmatpush2.msra.mxu0 0.0
  %1624 = vmatprep.subr.mxu0 0.0
  %1625 = vmatpush2.msra.mxu0 0.0
  %1626 = vmatprep.subr.mxu0 0.0
  %1627 = vmatpush2.msra.mxu0 0.0
  %1628 = vmatprep.subr.mxu0 0.0
  %1629 = vmatpush2.msra.mxu0 0.0
  %1630 = vmatprep.subr.mxu0 0.0
  %1631 = vmatpush2.msra.mxu0 0.0
  %1632 = vmatprep.subr.mxu0 0.0
  %1633 = vmatpush2.msra.mxu0 0.0
  %1634 = vmatprep.subr.mxu0 0.0
  %1635 = vmatpush2.msra.mxu0 0.0
  %1636 = vmatprep.subr.mxu0 0.0
  %1637 = vmatpush2.msra.mxu0 0.0
  %1638 = vmatprep.subr.mxu0 0.0
  %1639 = vmatpush2.msra.mxu0 0.0
  %1640 = vmatprep.subr.mxu0 0.0
  %1641 = vmatpush2.msra.mxu0 0.0
  %1642 = vmatprep.subr.mxu0 0.0
  %1643 = vmatpush2.msra.mxu0 0.0
  %1644 = vmatprep.mubr.f32.mxu0 0.0
  %1645 = vmatmul.mubr.f32.gmra.mxu0 %v1287
  %v1646 = vpop.f32.mrf.mxu0
  %v1647 = vadd.f32 0.0, %v1646
  %v1648 = vpop.f32.mrf.mxu0
  %1649 = vmatprep.mubr.f32.mxu0 0.0
  %1650 = vmatmul.mubr.f32.gmra.mxu0 %v1290
  %v1651 = vpop.f32.mrf.mxu0
  %v1652 = vadd.f32 0.0, %v1651
  %v1653 = vpop.f32.mrf.mxu0
  %1654 = vmatprep.mubr.f32.mxu0 0.0
  %1655 = vmatmul.mubr.f32.gmra.mxu0 %v1293
  %v1656 = vpop.f32.mrf.mxu0
  %v1657 = vadd.f32 0.0, %v1656
  %v1658 = vpop.f32.mrf.mxu0
  %1659 = vmatprep.mubr.f32.mxu0 0.0
  %1660 = vmatmul.mubr.f32.gmra.mxu0 %v1296
  %v1661 = vpop.f32.mrf.mxu0
  %v1662 = vadd.f32 0.0, %v1661
  %v1663 = vpop.f32.mrf.mxu0
  %1664 = vmatprep.mubr.f32.mxu0 0.0
  %1665 = vmatmul.mubr.f32.gmra.mxu0 %v1299
  %v1666 = vpop.f32.mrf.mxu0
  %v1667 = vadd.f32 0.0, %v1666
  %v1668 = vpop.f32.mrf.mxu0
  %1669 = vmatprep.mubr.f32.mxu0 0.0
  %1670 = vmatmul.mubr.f32.gmra.mxu0 %v1302
  %v1671 = vpop.f32.mrf.mxu0
  %v1672 = vadd.f32 0.0, %v1671
  %v1673 = vpop.f32.mrf.mxu0
  %1674 = vmatprep.mubr.f32.mxu0 0.0
  %1675 = vmatmul.mubr.f32.gmra.mxu0 %v1305
  %v1676 = vpop.f32.mrf.mxu0
  %v1677 = vadd.f32 0.0, %v1676
  %v1678 = vpop.f32.mrf.mxu0
  %1679 = vmatprep.mubr.f32.mxu0 0.0
  %1680 = vmatmul.mubr.f32.gmra.mxu0 %v1308
  %v1681 = vpop.f32.mrf.mxu0
  %v1682 = vadd.f32 0.0, %v1681
  %v1683 = vpop.f32.mrf.mxu0
  %1684 = vmatprep.mubr.f32.mxu0 0.0
  %1685 = vmatmul.mubr.f32.gmra.mxu0 %v1311
  %v1686 = vpop.f32.mrf.mxu0
  %v1687 = vadd.f32 0.0, %v1686
  %v1688 = vpop.f32.mrf.mxu0
  %1689 = vmatprep.mubr.f32.mxu0 0.0
  %1690 = vmatmul.mubr.f32.gmra.mxu0 %v1314
  %v1691 = vpop.f32.mrf.mxu0
  %v1692 = vadd.f32 0.0, %v1691
  %v1693 = vpop.f32.mrf.mxu0
  %1694 = vmatprep.mubr.f32.mxu0 0.0
  %1695 = vmatmul.mubr.f32.gmra.mxu0 %v1317
  %v1696 = vpop.f32.mrf.mxu0
  %v1697 = vadd.f32 0.0, %v1696
  %v1698 = vpop.f32.mrf.mxu0
  %1699 = vmatprep.mubr.f32.mxu0 0.0
  %1700 = vmatmul.mubr.f32.gmra.mxu0 %v1320
  %v1701 = vpop.f32.mrf.mxu0
  %v1702 = vadd.f32 0.0, %v1701
  %v1703 = vpop.f32.mrf.mxu0
  %1704 = vmatprep.mubr.f32.mxu0 0.0
  %1705 = vmatmul.mubr.f32.gmra.mxu0 %v1323
  %v1706 = vpop.f32.mrf.mxu0
  %v1707 = vadd.f32 0.0, %v1706
  %v1708 = vpop.f32.mrf.mxu0
  %1709 = vmatprep.mubr.f32.mxu0 0.0
  %1710 = vmatmul.mubr.f32.gmra.mxu0 %v1326
  %v1711 = vpop.f32.mrf.mxu0
  %v1712 = vadd.f32 0.0, %v1711
  %v1713 = vpop.f32.mrf.mxu0
  %1714 = vmatprep.mubr.f32.mxu0 0.0
  %1715 = vmatmul.mubr.f32.gmra.mxu0 %v1329
  %v1716 = vpop.f32.mrf.mxu0
  %v1717 = vadd.f32 0.0, %v1716
  %v1718 = vpop.f32.mrf.mxu0
  %1719 = vmatprep.mubr.f32.mxu0 0.0
  %1720 = vmatmul.mubr.f32.gmra.mxu0 %v1332
  %v1721 = vpop.f32.mrf.mxu0
  %v1722 = vadd.f32 0.0, %v1721
  %v1723 = vpop.f32.mrf.mxu0
  %1724 = vmatprep.mubr.f32.mxu0 0.0
  %1725 = vmatmul.mubr.f32.gmra.mxu0 %v1335
  %v1726 = vpop.f32.mrf.mxu0
  %v1727 = vadd.f32 0.0, %v1726
  %v1728 = vpop.f32.mrf.mxu0
  %1729 = vmatprep.mubr.f32.mxu0 0.0
  %1730 = vmatmul.mubr.f32.gmra.mxu0 %v1338
  %v1731 = vpop.f32.mrf.mxu0
  %v1732 = vadd.f32 0.0, %v1731
  %v1733 = vpop.f32.mrf.mxu0
  %1734 = vmatprep.mubr.f32.mxu0 0.0
  %1735 = vmatmul.mubr.f32.gmra.mxu0 %v1341
  %v1736 = vpop.f32.mrf.mxu0
  %v1737 = vadd.f32 0.0, %v1736
  %v1738 = vpop.f32.mrf.mxu0
  %1739 = vmatprep.mubr.f32.mxu0 0.0
  %1740 = vmatmul.mubr.f32.gmra.mxu0 %v1344
  %v1741 = vpop.f32.mrf.mxu0
  %v1742 = vadd.f32 0.0, %v1741
  %v1743 = vpop.f32.mrf.mxu0
  %1744 = vmatprep.mubr.f32.mxu0 0.0
  %1745 = vmatmul.mubr.f32.gmra.mxu0 %v1347
  %v1746 = vpop.f32.mrf.mxu0
  %v1747 = vadd.f32 0.0, %v1746
  %v1748 = vpop.f32.mrf.mxu0
  %1749 = vmatprep.mubr.f32.mxu0 0.0
  %1750 = vmatmul.mubr.f32.gmra.mxu0 %v1350
  %v1751 = vpop.f32.mrf.mxu0
  %v1752 = vadd.f32 0.0, %v1751
  %v1753 = vpop.f32.mrf.mxu0
  %1754 = vmatprep.mubr.f32.mxu0 0.0
  %1755 = vmatmul.mubr.f32.gmra.mxu0 %v1353
  %v1756 = vpop.f32.mrf.mxu0
  %v1757 = vadd.f32 0.0, %v1756
  %v1758 = vpop.f32.mrf.mxu0
  %1759 = vmatprep.mubr.f32.mxu0 0.0
  %1760 = vmatmul.mubr.f32.gmra.mxu0 %v1356
  %v1761 = vpop.f32.mrf.mxu0
  %v1762 = vadd.f32 0.0, %v1761
  %v1763 = vpop.f32.mrf.mxu0
  %1764 = vmatprep.mubr.f32.mxu0 0.0
  %1765 = vmatmul.mubr.f32.gmra.mxu0 %v1359
  %v1766 = vpop.f32.mrf.mxu0
  %v1767 = vadd.f32 0.0, %v1766
  %v1768 = vpop.f32.mrf.mxu0
  %1769 = vmatprep.mubr.f32.mxu0 0.0
  %1770 = vmatmul.mubr.f32.gmra.mxu0 %v1362
  %v1771 = vpop.f32.mrf.mxu0
  %v1772 = vadd.f32 0.0, %v1771
  %v1773 = vpop.f32.mrf.mxu0
  %1774 = vmatprep.mubr.f32.mxu0 0.0
  %1775 = vmatmul.mubr.f32.gmra.mxu0 %v1365
  %v1776 = vpop.f32.mrf.mxu0
  %v1777 = vadd.f32 0.0, %v1776
  %v1778 = vpop.f32.mrf.mxu0
  %1779 = vmatprep.mubr.f32.mxu0 0.0
  %1780 = vmatmul.mubr.f32.gmra.mxu0 %v1368
  %v1781 = vpop.f32.mrf.mxu0
  %v1782 = vadd.f32 0.0, %v1781
  %v1783 = vpop.f32.mrf.mxu0
  %1784 = vmatprep.mubr.f32.mxu0 0.0
  %1785 = vmatmul.mubr.f32.gmra.mxu0 %v1371
  %v1786 = vpop.f32.mrf.mxu0
  %v1787 = vadd.f32 0.0, %v1786
  %v1788 = vpop.f32.mrf.mxu0
  %1789 = vmatprep.mubr.f32.mxu0 0.0
  %1790 = vmatmul.mubr.f32.gmra.mxu0 %v1374
  %v1791 = vpop.f32.mrf.mxu0
  %v1792 = vadd.f32 0.0, %v1791
  %v1793 = vpop.f32.mrf.mxu0
  %1794 = vmatprep.mubr.f32.mxu0 0.0
  %1795 = vmatmul.mubr.f32.gmra.mxu0 %v1377
  %v1796 = vpop.f32.mrf.mxu0
  %v1797 = vadd.f32 0.0, %v1796
  %v1798 = vpop.f32.mrf.mxu0
  %1799 = vmatprep.mubr.f32.mxu0 0.0
  %1800 = vmatmul.mubr.f32.gmra.mxu0 %v1380
  %v1801 = vpop.f32.mrf.mxu0
  %v1802 = vadd.f32 0.0, %v1801
  %v1803 = vpop.f32.mrf.mxu0
  %1804 = vmatprep.mubr.f32.mxu0 0.0
  %1805 = vmatmul.mubr.f32.gmra.mxu0 %v1383
  %v1806 = vpop.f32.mrf.mxu0
  %v1807 = vadd.f32 0.0, %v1806
  %v1808 = vpop.f32.mrf.mxu0
  %1809 = vmatprep.mubr.f32.mxu0 0.0
  %1810 = vmatmul.mubr.f32.gmra.mxu0 %v1386
  %v1811 = vpop.f32.mrf.mxu0
  %v1812 = vadd.f32 0.0, %v1811
  %v1813 = vpop.f32.mrf.mxu0
  %1814 = vmatprep.mubr.f32.mxu0 0.0
  %1815 = vmatmul.mubr.f32.gmra.mxu0 %v1389
  %v1816 = vpop.f32.mrf.mxu0
  %v1817 = vadd.f32 0.0, %v1816
  %v1818 = vpop.f32.mrf.mxu0
  %1819 = vmatprep.mubr.f32.mxu0 0.0
  %1820 = vmatmul.mubr.f32.gmra.mxu0 %v1392
  %v1821 = vpop.f32.mrf.mxu0
  %v1822 = vadd.f32 0.0, %v1821
  %v1823 = vpop.f32.mrf.mxu0
  %1824 = vmatprep.mubr.f32.mxu0 0.0
  %1825 = vmatmul.mubr.f32.gmra.mxu0 %v1395
  %v1826 = vpop.f32.mrf.mxu0
  %v1827 = vadd.f32 0.0, %v1826
  %v1828 = vpop.f32.mrf.mxu0
  %1829 = vmatprep.mubr.f32.mxu0 0.0
  %1830 = vmatmul.mubr.f32.gmra.mxu0 %v1398
  %v1831 = vpop.f32.mrf.mxu0
  %v1832 = vadd.f32 0.0, %v1831
  %v1833 = vpop.f32.mrf.mxu0
  %1834 = vmatprep.mubr.f32.mxu0 0.0
  %1835 = vmatmul.mubr.f32.gmra.mxu0 %v1401
  %v1836 = vpop.f32.mrf.mxu0
  %v1837 = vadd.f32 0.0, %v1836
  %v1838 = vpop.f32.mrf.mxu0
  %1839 = vmatprep.mubr.f32.mxu0 0.0
  %1840 = vmatmul.mubr.f32.gmra.mxu0 %v1404
  %v1841 = vpop.f32.mrf.mxu0
  %v1842 = vadd.f32 0.0, %v1841
  %v1843 = vpop.f32.mrf.mxu0
  %1844 = vmatprep.mubr.f32.mxu0 0.0
  %1845 = vmatmul.mubr.f32.gmra.mxu0 %v1407
  %v1846 = vpop.f32.mrf.mxu0
  %v1847 = vadd.f32 0.0, %v1846
  %v1848 = vpop.f32.mrf.mxu0
  %1849 = vmatprep.mubr.f32.mxu0 0.0
  %1850 = vmatmul.mubr.f32.gmra.mxu0 %v1410
  %v1851 = vpop.f32.mrf.mxu0
  %v1852 = vadd.f32 0.0, %v1851
  %v1853 = vpop.f32.mrf.mxu0
  %1854 = vmatprep.mubr.f32.mxu0 0.0
  %1855 = vmatmul.mubr.f32.gmra.mxu0 %v1413
  %v1856 = vpop.f32.mrf.mxu0
  %v1857 = vadd.f32 0.0, %v1856
  %v1858 = vpop.f32.mrf.mxu0
  %1859 = vmatprep.mubr.f32.mxu0 0.0
  %1860 = vmatmul.mubr.f32.gmra.mxu0 %v1416
  %v1861 = vpop.f32.mrf.mxu0
  %v1862 = vadd.f32 0.0, %v1861
  %v1863 = vpop.f32.mrf.mxu0
  %1864 = vmatprep.mubr.f32.mxu0 0.0
  %1865 = vmatmul.mubr.f32.gmra.mxu0 %v1419
  %v1866 = vpop.f32.mrf.mxu0
  %v1867 = vadd.f32 0.0, %v1866
  %v1868 = vpop.f32.mrf.mxu0
  %1869 = vmatprep.mubr.f32.mxu0 0.0
  %1870 = vmatmul.mubr.f32.gmra.mxu0 %v1422
  %v1871 = vpop.f32.mrf.mxu0
  %v1872 = vadd.f32 0.0, %v1871
  %v1873 = vpop.f32.mrf.mxu0
  %1874 = vmatprep.mubr.f32.mxu0 0.0
  %1875 = vmatmul.mubr.f32.gmra.mxu0 %v1425
  %v1876 = vpop.f32.mrf.mxu0
  %v1877 = vadd.f32 0.0, %v1876
  %v1878 = vpop.f32.mrf.mxu0
  %1879 = vmatprep.mubr.f32.mxu0 0.0
  %1880 = vmatmul.mubr.f32.gmra.mxu0 %v1428
  %v1881 = vpop.f32.mrf.mxu0
  %v1882 = vadd.f32 0.0, %v1881
  %v1883 = vpop.f32.mrf.mxu0
  %1884 = vmatprep.mubr.f32.mxu0 0.0
  %1885 = vmatmul.mubr.f32.gmra.mxu0 %v1431
  %v1886 = vpop.f32.mrf.mxu0
  %v1887 = vadd.f32 0.0, %v1886
  %v1888 = vpop.f32.mrf.mxu0
  %1889 = vmatprep.mubr.f32.mxu0 0.0
  %1890 = vmatmul.mubr.f32.gmra.mxu0 %v1434
  %v1891 = vpop.f32.mrf.mxu0
  %v1892 = vadd.f32 0.0, %v1891
  %v1893 = vpop.f32.mrf.mxu0
  %1894 = vmatprep.mubr.f32.mxu0 0.0
  %1895 = vmatmul.mubr.f32.gmra.mxu0 %v1437
  %v1896 = vpop.f32.mrf.mxu0
  %v1897 = vadd.f32 0.0, %v1896
  %v1898 = vpop.f32.mrf.mxu0
  %1899 = vmatprep.mubr.f32.mxu0 0.0
  %1900 = vmatmul.mubr.f32.gmra.mxu0 %v1440
  %v1901 = vpop.f32.mrf.mxu0
  %v1902 = vadd.f32 0.0, %v1901
  %v1903 = vpop.f32.mrf.mxu0
  %1904 = vmatprep.mubr.f32.mxu0 0.0
  %1905 = vmatmul.mubr.f32.gmra.mxu0 %v1443
  %v1906 = vpop.f32.mrf.mxu0
  %v1907 = vadd.f32 0.0, %v1906
  %v1908 = vpop.f32.mrf.mxu0
  %1909 = vmatprep.mubr.f32.mxu0 0.0
  %1910 = vmatmul.mubr.f32.gmra.mxu0 %v1446
  %v1911 = vpop.f32.mrf.mxu0
  %v1912 = vadd.f32 0.0, %v1911
  %v1913 = vpop.f32.mrf.mxu0
  %1914 = vmatprep.mubr.f32.mxu0 0.0
  %1915 = vmatmul.mubr.f32.gmra.mxu0 %v1449
  %v1916 = vpop.f32.mrf.mxu0
  %v1917 = vadd.f32 0.0, %v1916
  %v1918 = vpop.f32.mrf.mxu0
  %1919 = vmatprep.mubr.f32.mxu0 0.0
  %1920 = vmatmul.mubr.f32.gmra.mxu0 %v1452
  %v1921 = vpop.f32.mrf.mxu0
  %v1922 = vadd.f32 0.0, %v1921
  %v1923 = vpop.f32.mrf.mxu0
  %1924 = vmatprep.mubr.f32.mxu0 0.0
  %1925 = vmatmul.mubr.f32.gmra.mxu0 %v1455
  %v1926 = vpop.f32.mrf.mxu0
  %v1927 = vadd.f32 0.0, %v1926
  %v1928 = vpop.f32.mrf.mxu0
  %1929 = vmatprep.mubr.f32.mxu0 0.0
  %1930 = vmatmul.mubr.f32.gmra.mxu0 %v1458
  %v1931 = vpop.f32.mrf.mxu0
  %v1932 = vadd.f32 0.0, %v1931
  %v1933 = vpop.f32.mrf.mxu0
  %1934 = vmatprep.mubr.f32.mxu0 0.0
  %1935 = vmatmul.mubr.f32.gmra.mxu0 %v1461
  %v1936 = vpop.f32.mrf.mxu0
  %v1937 = vadd.f32 0.0, %v1936
  %v1938 = vpop.f32.mrf.mxu0
  %1939 = vmatprep.mubr.f32.mxu0 0.0
  %1940 = vmatmul.mubr.f32.gmra.mxu0 %v1464
  %v1941 = vpop.f32.mrf.mxu0
  %v1942 = vadd.f32 0.0, %v1941
  %v1943 = vpop.f32.mrf.mxu0
  %1944 = vmatprep.mubr.f32.mxu0 0.0
  %1945 = vmatmul.mubr.f32.gmra.mxu0 %v1467
  %v1946 = vpop.f32.mrf.mxu0
  %v1947 = vadd.f32 0.0, %v1946
  %v1948 = vpop.f32.mrf.mxu0
  %1949 = vmatprep.mubr.f32.mxu0 0.0
  %1950 = vmatmul.mubr.f32.gmra.mxu0 %v1470
  %v1951 = vpop.f32.mrf.mxu0
  %v1952 = vadd.f32 0.0, %v1951
  %v1953 = vpop.f32.mrf.mxu0
  %1954 = vmatprep.mubr.f32.mxu0 0.0
  %1955 = vmatmul.mubr.f32.gmra.mxu0 %v1473
  %v1956 = vpop.f32.mrf.mxu0
  %v1957 = vadd.f32 0.0, %v1956
  %v1958 = vpop.f32.mrf.mxu0
  %1959 = vmatprep.mubr.f32.mxu0 0.0
  %1960 = vmatmul.mubr.f32.gmra.mxu0 %v1476
  %v1961 = vpop.f32.mrf.mxu0
  %v1962 = vadd.f32 0.0, %v1961
  %v1963 = vpop.f32.mrf.mxu0
  %1964 = vmatprep.mubr.f32.mxu0 0.0
  %1965 = vmatmul.mubr.f32.gmra.mxu0 %v1479
  %v1966 = vpop.f32.mrf.mxu0
  %v1967 = vadd.f32 0.0, %v1966
  %v1968 = vpop.f32.mrf.mxu0
  %1969 = vmatprep.mubr.f32.mxu0 0.0
  %1970 = vmatmul.mubr.f32.gmra.mxu0 %v1482
  %v1971 = vpop.f32.mrf.mxu0
  %v1972 = vadd.f32 0.0, %v1971
  %v1973 = vpop.f32.mrf.mxu0
  %1974 = vmatprep.mubr.f32.mxu0 0.0
  %1975 = vmatmul.mubr.f32.gmra.mxu0 %v1485
  %v1976 = vpop.f32.mrf.mxu0
  %v1977 = vadd.f32 0.0, %v1976
  %v1978 = vpop.f32.mrf.mxu0
  %1979 = vmatprep.mubr.f32.mxu0 0.0
  %1980 = vmatmul.mubr.f32.gmra.mxu0 %v1488
  %v1981 = vpop.f32.mrf.mxu0
  %v1982 = vadd.f32 0.0, %v1981
  %v1983 = vpop.f32.mrf.mxu0
  %1984 = vmatprep.mubr.f32.mxu0 0.0
  %1985 = vmatmul.mubr.f32.gmra.mxu0 %v1491
  %v1986 = vpop.f32.mrf.mxu0
  %v1987 = vadd.f32 0.0, %v1986
  %v1988 = vpop.f32.mrf.mxu0
  %1989 = vmatprep.mubr.f32.mxu0 0.0
  %1990 = vmatmul.mubr.f32.gmra.mxu0 %v1494
  %v1991 = vpop.f32.mrf.mxu0
  %v1992 = vadd.f32 0.0, %v1991
  %v1993 = vpop.f32.mrf.mxu0
  %1994 = vmatprep.mubr.f32.mxu0 0.0
  %1995 = vmatmul.mubr.f32.gmra.mxu0 %v1497
  %v1996 = vpop.f32.mrf.mxu0
  %v1997 = vadd.f32 0.0, %v1996
  %v1998 = vpop.f32.mrf.mxu0
  %1999 = vmatprep.mubr.f32.mxu0 0.0
  %2000 = vmatmul.mubr.f32.gmra.mxu0 %v1500
  %v2001 = vpop.f32.mrf.mxu0
  %v2002 = vadd.f32 0.0, %v2001
  %v2003 = vpop.f32.mrf.mxu0
  %2004 = vmatprep.mubr.f32.mxu0 0.0
  %2005 = vmatmul.mubr.f32.gmra.mxu0 %v1503
  %v2006 = vpop.f32.mrf.mxu0
  %v2007 = vadd.f32 0.0, %v2006
  %v2008 = vpop.f32.mrf.mxu0
  %2009 = vmatprep.mubr.f32.mxu0 0.0
  %2010 = vmatmul.mubr.f32.gmra.mxu0 %v1506
  %v2011 = vpop.f32.mrf.mxu0
  %v2012 = vadd.f32 0.0, %v2011
  %v2013 = vpop.f32.mrf.mxu0
  %2014 = vmatprep.mubr.f32.mxu0 0.0
  %2015 = vmatmul.mubr.f32.gmra.mxu0 %v1509
  %v2016 = vpop.f32.mrf.mxu0
  %v2017 = vadd.f32 0.0, %v2016
  %v2018 = vpop.f32.mrf.mxu0
  %2019 = vmatprep.mubr.f32.mxu0 0.0
  %2020 = vmatmul.mubr.f32.gmra.mxu0 %v1512
  %v2021 = vpop.f32.mrf.mxu0
  %v2022 = vadd.f32 0.0, %v2021
  %v2023 = vpop.f32.mrf.mxu0
  %2024 = vmatprep.mubr.f32.mxu0 0.0
  %2025 = vmatmul.mubr.f32.gmra.mxu0 %v1515
  %v2026 = vpop.f32.mrf.mxu0
  %v2027 = vadd.f32 0.0, %v2026
  %v2028 = vpop.f32.mrf.mxu0
  %2029 = vmatprep.mubr.f32.mxu0 0.0
  %2030 = vmatmul.mubr.f32.gmra.mxu0 %v1518
  %v2031 = vpop.f32.mrf.mxu0
  %v2032 = vadd.f32 0.0, %v2031
  %v2033 = vpop.f32.mrf.mxu0
  %2034 = vmatprep.mubr.f32.mxu0 0.0
  %2035 = vmatmul.mubr.f32.gmra.mxu0 %v1521
  %v2036 = vpop.f32.mrf.mxu0
  %v2037 = vadd.f32 0.0, %v2036
  %v2038 = vpop.f32.mrf.mxu0
  %2039 = vmatprep.mubr.f32.mxu0 0.0
  %2040 = vmatmul.mubr.f32.gmra.mxu0 %v1524
  %v2041 = vpop.f32.mrf.mxu0
  %v2042 = vadd.f32 0.0, %v2041
  %v2043 = vpop.f32.mrf.mxu0
  %2044 = vmatprep.mubr.f32.mxu0 0.0
  %2045 = vmatmul.mubr.f32.gmra.mxu0 %v1527
  %v2046 = vpop.f32.mrf.mxu0
  %v2047 = vadd.f32 0.0, %v2046
  %v2048 = vpop.f32.mrf.mxu0
  %2049 = vmatprep.mubr.f32.mxu0 0.0
  %2050 = vmatmul.mubr.f32.gmra.mxu0 %v1530
  %v2051 = vpop.f32.mrf.mxu0
  %v2052 = vadd.f32 0.0, %v2051
  %v2053 = vpop.f32.mrf.mxu0
  %2054 = vmatprep.mubr.f32.mxu0 0.0
  %2055 = vmatmul.mubr.f32.gmra.mxu0 %v1533
  %v2056 = vpop.f32.mrf.mxu0
  %v2057 = vadd.f32 0.0, %v2056
  %v2058 = vpop.f32.mrf.mxu0
  %2059 = vmatprep.mubr.f32.mxu0 0.0
  %2060 = vmatmul.mubr.f32.gmra.mxu0 %v1536
  %v2061 = vpop.f32.mrf.mxu0
  %v2062 = vadd.f32 0.0, %v2061
  %v2063 = vpop.f32.mrf.mxu0
  %2064 = vmatprep.mubr.f32.mxu0 0.0
  %2065 = vmatmul.mubr.f32.gmra.mxu0 %v1539
  %v2066 = vpop.f32.mrf.mxu0
  %v2067 = vadd.f32 0.0, %v2066
  %v2068 = vpop.f32.mrf.mxu0
  %2069 = vmatprep.mubr.f32.mxu0 0.0
  %2070 = vmatmul.mubr.f32.gmra.mxu0 %v1542
  %v2071 = vpop.f32.mrf.mxu0
  %v2072 = vadd.f32 0.0, %v2071
  %v2073 = vpop.f32.mrf.mxu0
  %2074 = vmatprep.mubr.f32.mxu0 0.0
  %2075 = vmatmul.mubr.f32.gmra.mxu0 %v1545
  %v2076 = vpop.f32.mrf.mxu0
  %v2077 = vadd.f32 0.0, %v2076
  %v2078 = vpop.f32.mrf.mxu0
  %2079 = vmatprep.mubr.f32.mxu0 0.0
  %2080 = vmatmul.mubr.f32.gmra.mxu0 %v1548
  %v2081 = vpop.f32.mrf.mxu0
  %v2082 = vadd.f32 0.0, %v2081
  %v2083 = vpop.f32.mrf.mxu0
  %2084 = vmatprep.mubr.f32.mxu0 0.0
  %2085 = vmatmul.mubr.f32.gmra.mxu0 %v1551
  %v2086 = vpop.f32.mrf.mxu0
  %v2087 = vadd.f32 0.0, %v2086
  %v2088 = vpop.f32.mrf.mxu0
  %2089 = vmatprep.mubr.f32.mxu0 0.0
  %2090 = vmatmul.mubr.f32.gmra.mxu0 %v1554
  %v2091 = vpop.f32.mrf.mxu0
  %v2092 = vadd.f32 0.0, %v2091
  %v2093 = vpop.f32.mrf.mxu0
  %2094 = vmatprep.mubr.f32.mxu0 0.0
  %2095 = vmatmul.mubr.f32.gmra.mxu0 %v1557
  %v2096 = vpop.f32.mrf.mxu0
  %v2097 = vadd.f32 0.0, %v2096
  %v2098 = vpop.f32.mrf.mxu0
  %2099 = vmatprep.mubr.f32.mxu0 0.0
  %2100 = vmatmul.mubr.f32.gmra.mxu0 %v1560
  %v2101 = vpop.f32.mrf.mxu0
  %v2102 = vadd.f32 0.0, %v2101
  %v2103 = vpop.f32.mrf.mxu0
  %2104 = vmatprep.mubr.f32.mxu0 0.0
  %2105 = vmatmul.mubr.f32.gmra.mxu0 %v1563
  %v2106 = vpop.f32.mrf.mxu0
  %v2107 = vadd.f32 0.0, %v2106
  %v2108 = vpop.f32.mrf.mxu0
  %2109 = vmatprep.mubr.f32.mxu0 0.0
  %2110 = vmatmul.mubr.f32.gmra.mxu0 %v1566
  %v2111 = vpop.f32.mrf.mxu0
  %v2112 = vadd.f32 0.0, %v2111
  %v2113 = vpop.f32.mrf.mxu0
  %2114 = vmatprep.mubr.f32.mxu0 0.0
  %2115 = vmatmul.mubr.f32.gmra.mxu0 %v1569
  %v2116 = vpop.f32.mrf.mxu0
  %v2117 = vadd.f32 0.0, %v2116
  %v2118 = vpop.f32.mrf.mxu0
  %2119 = vmatprep.mubr.f32.mxu0 0.0
  %2120 = vmatmul.mubr.f32.gmra.mxu0 %v1572
  %v2121 = vpop.f32.mrf.mxu0
  %v2122 = vadd.f32 0.0, %v2121
  %v2123 = vpop.f32.mrf.mxu0
  %2124 = vmatprep.mubr.f32.mxu0 0.0
  %2125 = vmatmul.mubr.f32.gmra.mxu0 %v1575
  %v2126 = vpop.f32.mrf.mxu0
  %v2127 = vadd.f32 0.0, %v2126
  %v2128 = vpop.f32.mrf.mxu0
  %2129 = vmatprep.mubr.f32.mxu0 0.0
  %2130 = vmatmul.mubr.f32.gmra.mxu0 %v1578
  %v2131 = vpop.f32.mrf.mxu0
  %v2132 = vadd.f32 0.0, %v2131
  %v2133 = vpop.f32.mrf.mxu0
  %2134 = vdwg.mxu0
  %v2135 = vld [vmem:[%s9] sm:$0xff]
  %v2136 = vld [vmem:[%s9 + $0x8] sm:$0xff]
  %v2137 = vld [vmem:[%s9 + $0x10] sm:$0xff]
  %v2138 = vld [vmem:[%s9 + $0x18] sm:$0xff]
  %v2139 = vld [vmem:[%s9 + $0x20] sm:$0xff]
  %v2140 = vld [vmem:[%s9 + $0x28] sm:$0xff]
  %v2141 = vld [vmem:[%s9 + $0x30] sm:$0xff]
  %v2142 = vld [vmem:[%s9 + $0x38] sm:$0xff]
  %v2143 = vld [vmem:[%s9 + $0x40] sm:$0xff]
  %v2144 = vld [vmem:[%s9 + $0x48] sm:$0xff]
  %v2145 = vld [vmem:[%s9 + $0x50] sm:$0xff]
  %v2146 = vld [vmem:[%s9 + $0x58] sm:$0xff]
  %v2147 = vld [vmem:[%s9 + $0x60] sm:$0xff]
  %v2148 = vld [vmem:[%s9 + $0x68] sm:$0xff]
  %v2149 = vld [vmem:[%s9 + $0x70] sm:$0xff]
  %v2150 = vld [vmem:[%s9 + $0x78] sm:$0xff]
  %v2151 = vld [vmem:[%s9 + $0x80] sm:$0xff]
  %v2152 = vld [vmem:[%s9 + $0x88] sm:$0xff]
  %v2153 = vld [vmem:[%s9 + $0x90] sm:$0xff]
  %v2154 = vld [vmem:[%s9 + $0x98] sm:$0xff]
  %v2155 = vld [vmem:[%s9 + $0xa0] sm:$0xff]
  %v2156 = vld [vmem:[%s9 + $0xa8] sm:$0xff]
  %v2157 = vld [vmem:[%s9 + $0xb0] sm:$0xff]
  %v2158 = vld [vmem:[%s9 + $0xb8] sm:$0xff]
  %v2159 = vld [vmem:[%s9 + $0xc0] sm:$0xff]
  %v2160 = vld [vmem:[%s9 + $0xc8] sm:$0xff]
  %v2161 = vld [vmem:[%s9 + $0xd0] sm:$0xff]
  %v2162 = vld [vmem:[%s9 + $0xd8] sm:$0xff]
  %v2163 = vld [vmem:[%s9 + $0xe0] sm:$0xff]
  %v2164 = vld [vmem:[%s9 + $0xe8] sm:$0xff]
  %v2165 = vld [vmem:[%s9 + $0xf0] sm:$0xff]
  %v2166 = vld [vmem:[%s9 + $0xf8] sm:$0xff]
  %v2167 = vld [vmem:[%s9 + $0x100] sm:$0xff]
  %v2168 = vld [vmem:[%s9 + $0x108] sm:$0xff]
  %v2169 = vld [vmem:[%s9 + $0x110] sm:$0xff]
  %v2170 = vld [vmem:[%s9 + $0x118] sm:$0xff]
  %v2171 = vld [vmem:[%s9 + $0x120] sm:$0xff]
  %v2172 = vld [vmem:[%s9 + $0x128] sm:$0xff]
  %v2173 = vld [vmem:[%s9 + $0x130] sm:$0xff]
  %v2174 = vld [vmem:[%s9 + $0x138] sm:$0xff]
  %v2175 = vld [vmem:[%s9 + $0x140] sm:$0xff]
  %v2176 = vld [vmem:[%s9 + $0x148] sm:$0xff]
  %v2177 = vld [vmem:[%s9 + $0x150] sm:$0xff]
  %v2178 = vld [vmem:[%s9 + $0x158] sm:$0xff]
  %v2179 = vld [vmem:[%s9 + $0x160] sm:$0xff]
  %v2180 = vld [vmem:[%s9 + $0x168] sm:$0xff]
  %v2181 = vld [vmem:[%s9 + $0x170] sm:$0xff]
  %v2182 = vld [vmem:[%s9 + $0x178] sm:$0xff]
  %v2183 = vld [vmem:[%s9 + $0x180] sm:$0xff]
  %v2184 = vld [vmem:[%s9 + $0x188] sm:$0xff]
  %v2185 = vld [vmem:[%s9 + $0x190] sm:$0xff]
  %v2186 = vld [vmem:[%s9 + $0x198] sm:$0xff]
  %v2187 = vld [vmem:[%s9 + $0x1a0] sm:$0xff]
  %v2188 = vld [vmem:[%s9 + $0x1a8] sm:$0xff]
  %v2189 = vld [vmem:[%s9 + $0x1b0] sm:$0xff]
  %v2190 = vld [vmem:[%s9 + $0x1b8] sm:$0xff]
  %v2191 = vld [vmem:[%s9 + $0x1c0] sm:$0xff]
  %v2192 = vld [vmem:[%s9 + $0x1c8] sm:$0xff]
  %v2193 = vld [vmem:[%s9 + $0x1d0] sm:$0xff]
  %v2194 = vld [vmem:[%s9 + $0x1d8] sm:$0xff]
  %v2195 = vld [vmem:[%s9 + $0x1e0] sm:$0xff]
  %v2196 = vld [vmem:[%s9 + $0x1e8] sm:$0xff]
  %v2197 = vld [vmem:[%s9 + $0x1f0] sm:$0xff]
  %v2198 = vld [vmem:[%s9 + $0x1f8] sm:$0xff]
  %v2199 = vld [vmem:[%s9 + $0x200] sm:$0xff]
  %v2200 = vld [vmem:[%s9 + $0x208] sm:$0xff]
  %v2201 = vld [vmem:[%s9 + $0x210] sm:$0xff]
  %v2202 = vld [vmem:[%s9 + $0x218] sm:$0xff]
  %v2203 = vld [vmem:[%s9 + $0x220] sm:$0xff]
  %v2204 = vld [vmem:[%s9 + $0x228] sm:$0xff]
  %v2205 = vld [vmem:[%s9 + $0x230] sm:$0xff]
  %v2206 = vld [vmem:[%s9 + $0x238] sm:$0xff]
  %v2207 = vld [vmem:[%s9 + $0x240] sm:$0xff]
  %v2208 = vld [vmem:[%s9 + $0x248] sm:$0xff]
  %v2209 = vld [vmem:[%s9 + $0x250] sm:$0xff]
  %v2210 = vld [vmem:[%s9 + $0x258] sm:$0xff]
  %v2211 = vld [vmem:[%s9 + $0x260] sm:$0xff]
  %v2212 = vld [vmem:[%s9 + $0x268] sm:$0xff]
  %v2213 = vld [vmem:[%s9 + $0x270] sm:$0xff]
  %v2214 = vld [vmem:[%s9 + $0x278] sm:$0xff]
  %v2215 = vld [vmem:[%s9 + $0x280] sm:$0xff]
  %v2216 = vld [vmem:[%s9 + $0x288] sm:$0xff]
  %v2217 = vld [vmem:[%s9 + $0x290] sm:$0xff]
  %v2218 = vld [vmem:[%s9 + $0x298] sm:$0xff]
  %v2219 = vld [vmem:[%s9 + $0x2a0] sm:$0xff]
  %v2220 = vld [vmem:[%s9 + $0x2a8] sm:$0xff]
  %v2221 = vld [vmem:[%s9 + $0x2b0] sm:$0xff]
  %v2222 = vld [vmem:[%s9 + $0x2b8] sm:$0xff]
  %v2223 = vld [vmem:[%s9 + $0x2c0] sm:$0xff]
  %v2224 = vld [vmem:[%s9 + $0x2c8] sm:$0xff]
  %v2225 = vld [vmem:[%s9 + $0x2d0] sm:$0xff]
  %v2226 = vld [vmem:[%s9 + $0x2d8] sm:$0xff]
  %v2227 = vld [vmem:[%s9 + $0x2e0] sm:$0xff]
  %v2228 = vld [vmem:[%s9 + $0x2e8] sm:$0xff]
  %v2229 = vld [vmem:[%s9 + $0x2f0] sm:$0xff]
  %v2230 = vld [vmem:[%s9 + $0x2f8] sm:$0xff]
  %v2231 = vld [vmem:[%s9 + $0x300] sm:$0xff]
  %v2232 = vld [vmem:[%s9 + $0x308] sm:$0xff]
  %v2233 = vmul.f32 %v1647, %v2135
  %v2234 = vmul.f32 %v1652, %v2136
  %v2235 = vmul.f32 %v1657, %v2137
  %v2236 = vmul.f32 %v1662, %v2138
  %v2237 = vmul.f32 %v1667, %v2139
  %v2238 = vmul.f32 %v1672, %v2140
  %v2239 = vmul.f32 %v1677, %v2141
  %v2240 = vmul.f32 %v1682, %v2142
  %v2241 = vmul.f32 %v1687, %v2143
  %v2242 = vmul.f32 %v1692, %v2144
  %v2243 = vmul.f32 %v1697, %v2145
  %v2244 = vmul.f32 %v1702, %v2146
  %v2245 = vmul.f32 %v1707, %v2147
  %v2246 = vmul.f32 %v1712, %v2148
  %v2247 = vmul.f32 %v1717, %v2149
  %v2248 = vmul.f32 %v1722, %v2150
  %v2249 = vmul.f32 %v1727, %v2151
  %v2250 = vmul.f32 %v1732, %v2152
  %v2251 = vmul.f32 %v1737, %v2153
  %v2252 = vmul.f32 %v1742, %v2154
  %v2253 = vmul.f32 %v1747, %v2155
  %v2254 = vmul.f32 %v1752, %v2156
  %v2255 = vmul.f32 %v1757, %v2157
  %v2256 = vmul.f32 %v1762, %v2158
  %v2257 = vmul.f32 %v1767, %v2159
  %v2258 = vmul.f32 %v1772, %v2160
  %v2259 = vmul.f32 %v1777, %v2161
  %v2260 = vmul.f32 %v1782, %v2162
  %v2261 = vmul.f32 %v1787, %v2163
  %v2262 = vmul.f32 %v1792, %v2164
  %v2263 = vmul.f32 %v1797, %v2165
  %v2264 = vmul.f32 %v1802, %v2166
  %v2265 = vmul.f32 %v1807, %v2167
  %v2266 = vmul.f32 %v1812, %v2168
  %v2267 = vmul.f32 %v1817, %v2169
  %v2268 = vmul.f32 %v1822, %v2170
  %v2269 = vmul.f32 %v1827, %v2171
  %v2270 = vmul.f32 %v1832, %v2172
  %v2271 = vmul.f32 %v1837, %v2173
  %v2272 = vmul.f32 %v1842, %v2174
  %v2273 = vmul.f32 %v1847, %v2175
  %v2274 = vmul.f32 %v1852, %v2176
  %v2275 = vmul.f32 %v1857, %v2177
  %v2276 = vmul.f32 %v1862, %v2178
  %v2277 = vmul.f32 %v1867, %v2179
  %v2278 = vmul.f32 %v1872, %v2180
  %v2279 = vmul.f32 %v1877, %v2181
  %v2280 = vmul.f32 %v1882, %v2182
  %v2281 = vmul.f32 %v1887, %v2183
  %v2282 = vmul.f32 %v1892, %v2184
  %v2283 = vmul.f32 %v1897, %v2185
  %v2284 = vmul.f32 %v1902, %v2186
  %v2285 = vmul.f32 %v1907, %v2187
  %v2286 = vmul.f32 %v1912, %v2188
  %v2287 = vmul.f32 %v1917, %v2189
  %v2288 = vmul.f32 %v1922, %v2190
  %v2289 = vmul.f32 %v1927, %v2191
  %v2290 = vmul.f32 %v1932, %v2192
  %v2291 = vmul.f32 %v1937, %v2193
  %v2292 = vmul.f32 %v1942, %v2194
  %v2293 = vmul.f32 %v1947, %v2195
  %v2294 = vmul.f32 %v1952, %v2196
  %v2295 = vmul.f32 %v1957, %v2197
  %v2296 = vmul.f32 %v1962, %v2198
  %v2297 = vmul.f32 %v1967, %v2199
  %v2298 = vmul.f32 %v1972, %v2200
  %v2299 = vmul.f32 %v1977, %v2201
  %v2300 = vmul.f32 %v1982, %v2202
  %v2301 = vmul.f32 %v1987, %v2203
  %v2302 = vmul.f32 %v1992, %v2204
  %v2303 = vmul.f32 %v1997, %v2205
  %v2304 = vmul.f32 %v2002, %v2206
  %v2305 = vmul.f32 %v2007, %v2207
  %v2306 = vmul.f32 %v2012, %v2208
  %v2307 = vmul.f32 %v2017, %v2209
  %v2308 = vmul.f32 %v2022, %v2210
  %v2309 = vmul.f32 %v2027, %v2211
  %v2310 = vmul.f32 %v2032, %v2212
  %v2311 = vmul.f32 %v2037, %v2213
  %v2312 = vmul.f32 %v2042, %v2214
  %v2313 = vmul.f32 %v2047, %v2215
  %v2314 = vmul.f32 %v2052, %v2216
  %v2315 = vmul.f32 %v2057, %v2217
  %v2316 = vmul.f32 %v2062, %v2218
  %v2317 = vmul.f32 %v2067, %v2219
  %v2318 = vmul.f32 %v2072, %v2220
  %v2319 = vmul.f32 %v2077, %v2221
  %v2320 = vmul.f32 %v2082, %v2222
  %v2321 = vmul.f32 %v2087, %v2223
  %v2322 = vmul.f32 %v2092, %v2224
  %v2323 = vmul.f32 %v2097, %v2225
  %v2324 = vmul.f32 %v2102, %v2226
  %v2325 = vmul.f32 %v2107, %v2227
  %v2326 = vmul.f32 %v2112, %v2228
  %v2327 = vmul.f32 %v2117, %v2229
  %v2328 = vmul.f32 %v2122, %v2230
  %v2329 = vmul.f32 %v2127, %v2231
  %v2330 = vmul.f32 %v2132, %v2232
  %v2331 = vld [vmem:[%s10] sm:$0xff]
  %v2332 = vld [vmem:[%s10 + $0x8] sm:$0xff]
  %v2333 = vld [vmem:[%s10 + $0x10] sm:$0xff]
  %v2334 = vld [vmem:[%s10 + $0x18] sm:$0xff]
  %v2335 = vld [vmem:[%s10 + $0x20] sm:$0xff]
  %v2336 = vld [vmem:[%s10 + $0x28] sm:$0xff]
  %v2337 = vld [vmem:[%s10 + $0x30] sm:$0xff]
  %v2338 = vld [vmem:[%s10 + $0x38] sm:$0xff]
  %v2339 = vld [vmem:[%s10 + $0x40] sm:$0xff]
  %v2340 = vld [vmem:[%s10 + $0x48] sm:$0xff]
  %v2341 = vld [vmem:[%s10 + $0x50] sm:$0xff]
  %v2342 = vld [vmem:[%s10 + $0x58] sm:$0xff]
  %v2343 = vld [vmem:[%s10 + $0x60] sm:$0x3]
  %v2345 = vsel %vm1133, %v2233, 0
  %v2348 = vsel %vm1133, %v2234, 0
  %v2351 = vsel %vm1133, %v2235, 0
  %v2354 = vsel %vm1133, %v2236, 0
  %v2357 = vsel %vm1133, %v2237, 0
  %v2360 = vsel %vm1133, %v2238, 0
  %v2363 = vsel %vm1133, %v2239, 0
  %v2366 = vsel %vm1133, %v2240, 0
  %v2369 = vsel %vm1133, %v2241, 0
  %v2372 = vsel %vm1133, %v2242, 0
  %v2375 = vsel %vm1133, %v2243, 0
  %v2378 = vsel %vm1133, %v2244, 0
  %v2381 = vsel %vm1133, %v2245, 0
  %v2384 = vsel %vm1133, %v2246, 0
  %v2387 = vsel %vm1133, %v2247, 0
  %v2390 = vsel %vm1133, %v2248, 0
  %v2393 = vsel %vm1133, %v2249, 0
  %v2396 = vsel %vm1133, %v2250, 0
  %v2399 = vsel %vm1133, %v2251, 0
  %v2402 = vsel %vm1133, %v2252, 0
  %v2405 = vsel %vm1133, %v2253, 0
  %v2408 = vsel %vm1133, %v2254, 0
  %v2411 = vsel %vm1133, %v2255, 0
  %v2414 = vsel %vm1133, %v2256, 0
  %v2417 = vsel %vm1133, %v2257, 0
  %v2420 = vsel %vm1133, %v2258, 0
  %v2423 = vsel %vm1133, %v2259, 0
  %v2426 = vsel %vm1133, %v2260, 0
  %v2429 = vsel %vm1133, %v2261, 0
  %v2432 = vsel %vm1133, %v2262, 0
  %v2435 = vsel %vm1133, %v2263, 0
  %v2438 = vsel %vm1133, %v2264, 0
  %v2441 = vsel %vm1133, %v2265, 0
  %v2444 = vsel %vm1133, %v2266, 0
  %v2447 = vsel %vm1133, %v2267, 0
  %v2450 = vsel %vm1133, %v2268, 0
  %v2453 = vsel %vm1133, %v2269, 0
  %v2456 = vsel %vm1133, %v2270, 0
  %v2459 = vsel %vm1133, %v2271, 0
  %v2462 = vsel %vm1133, %v2272, 0
  %v2465 = vsel %vm1133, %v2273, 0
  %v2468 = vsel %vm1133, %v2274, 0
  %v2471 = vsel %vm1133, %v2275, 0
  %v2474 = vsel %vm1133, %v2276, 0
  %v2477 = vsel %vm1133, %v2277, 0
  %v2480 = vsel %vm1133, %v2278, 0
  %v2483 = vsel %vm1133, %v2279, 0
  %v2486 = vsel %vm1133, %v2280, 0
  %v2489 = vsel %vm1133, %v2281, 0
  %v2492 = vsel %vm1133, %v2282, 0
  %v2495 = vsel %vm1133, %v2283, 0
  %v2498 = vsel %vm1133, %v2284, 0
  %v2501 = vsel %vm1133, %v2285, 0
  %v2504 = vsel %vm1133, %v2286, 0
  %v2507 = vsel %vm1133, %v2287, 0
  %v2510 = vsel %vm1133, %v2288, 0
  %v2513 = vsel %vm1133, %v2289, 0
  %v2516 = vsel %vm1133, %v2290, 0
  %v2519 = vsel %vm1133, %v2291, 0
  %v2522 = vsel %vm1133, %v2292, 0
  %v2525 = vsel %vm1133, %v2293, 0
  %v2528 = vsel %vm1133, %v2294, 0
  %v2531 = vsel %vm1133, %v2295, 0
  %v2534 = vsel %vm1133, %v2296, 0
  %v2537 = vsel %vm1133, %v2297, 0
  %v2540 = vsel %vm1133, %v2298, 0
  %v2543 = vsel %vm1133, %v2299, 0
  %v2546 = vsel %vm1133, %v2300, 0
  %v2549 = vsel %vm1133, %v2301, 0
  %v2552 = vsel %vm1133, %v2302, 0
  %v2555 = vsel %vm1133, %v2303, 0
  %v2558 = vsel %vm1133, %v2304, 0
  %v2561 = vsel %vm1133, %v2305, 0
  %v2564 = vsel %vm1133, %v2306, 0
  %v2567 = vsel %vm1133, %v2307, 0
  %v2570 = vsel %vm1133, %v2308, 0
  %v2573 = vsel %vm1133, %v2309, 0
  %v2576 = vsel %vm1133, %v2310, 0
  %v2579 = vsel %vm1133, %v2311, 0
  %v2582 = vsel %vm1133, %v2312, 0
  %v2585 = vsel %vm1133, %v2313, 0
  %v2588 = vsel %vm1133, %v2314, 0
  %v2591 = vsel %vm1133, %v2315, 0
  %v2594 = vsel %vm1133, %v2316, 0
  %v2597 = vsel %vm1133, %v2317, 0
  %v2600 = vsel %vm1133, %v2318, 0
  %v2603 = vsel %vm1133, %v2319, 0
  %v2606 = vsel %vm1133, %v2320, 0
  %v2609 = vsel %vm1133, %v2321, 0
  %v2612 = vsel %vm1133, %v2322, 0
  %v2615 = vsel %vm1133, %v2323, 0
  %v2618 = vsel %vm1133, %v2324, 0
  %v2621 = vsel %vm1133, %v2325, 0
  %v2624 = vsel %vm1133, %v2326, 0
  %v2627 = vsel %vm1133, %v2327, 0
  %v2630 = vsel %vm1133, %v2328, 0
  %v2633 = vsel %vm1133, %v2329, 0
  %v2636 = vsel %vm1133, %v2330, 0
  %vm2638 = vcmask 1041408
  %v2640 = vsel %vm2638, %v2343, 0
  %2642 = vmatprep.subr.mxu0 0.0
  %2643 = vmatpush1.msra.mxu0 0.0
  %2644 = vmatprep.subr.mxu0 0.0
  %2645 = vmatpush1.msra.mxu0 0.0
  %2646 = vmatprep.subr.mxu0 0.0
  %2647 = vmatpush1.msra.mxu0 0.0
  %2648 = vmatprep.subr.mxu0 0.0
  %2649 = vmatpush1.msra.mxu0 %v2640
  %2650 = vmatprep.subr.mxu0 0.0
  %2651 = vmatpush1.msra.mxu0 %v2342
  %2652 = vmatprep.subr.mxu0 0.0
  %2653 = vmatpush1.msra.mxu0 %v2341
  %2654 = vmatprep.subr.mxu0 0.0
  %2655 = vmatpush1.msra.mxu0 %v2340
  %2656 = vmatprep.subr.mxu0 0.0
  %2657 = vmatpush1.msra.mxu0 %v2339
  %2658 = vmatprep.subr.mxu0 0.0
  %2659 = vmatpush1.msra.mxu0 %v2338
  %2660 = vmatprep.subr.mxu0 0.0
  %2661 = vmatpush1.msra.mxu0 %v2337
  %2662 = vmatprep.subr.mxu0 0.0
  %2663 = vmatpush1.msra.mxu0 %v2336
  %2664 = vmatprep.subr.mxu0 0.0
  %2665 = vmatpush1.msra.mxu0 %v2335
  %2666 = vmatprep.subr.mxu0 0.0
  %2667 = vmatpush1.msra.mxu0 %v2334
  %2668 = vmatprep.subr.mxu0 0.0
  %2669 = vmatpush1.msra.mxu0 %v2333
  %2670 = vmatprep.subr.mxu0 0.0
  %2671 = vmatpush1.msra.mxu0 %v2332
  %2672 = vmatprep.subr.mxu0 0.0
  %2673 = vmatpush1.msra.mxu0 %v2331
  %2674 = vmatprep.subr.mxu0 0.0
  %2675 = vmatpush2.msra.mxu0 0.0
  %2676 = vmatprep.subr.mxu0 0.0
  %2677 = vmatpush2.msra.mxu0 0.0
  %2678 = vmatprep.subr.mxu0 0.0
  %2679 = vmatpush2.msra.mxu0 0.0
  %2680 = vmatprep.subr.mxu0 0.0
  %2681 = vmatpush2.msra.mxu0 0.0
  %2682 = vmatprep.subr.mxu0 0.0
  %2683 = vmatpush2.msra.mxu0 0.0
  %2684 = vmatprep.subr.mxu0 0.0
  %2685 = vmatpush2.msra.mxu0 0.0
  %2686 = vmatprep.subr.mxu0 0.0
  %2687 = vmatpush2.msra.mxu0 0.0
  %2688 = vmatprep.subr.mxu0 0.0
  %2689 = vmatpush2.msra.mxu0 0.0
  %2690 = vmatprep.subr.mxu0 0.0
  %2691 = vmatpush2.msra.mxu0 0.0
  %2692 = vmatprep.subr.mxu0 0.0
  %2693 = vmatpush2.msra.mxu0 0.0
  %2694 = vmatprep.subr.mxu0 0.0
  %2695 = vmatpush2.msra.mxu0 0.0
  %2696 = vmatprep.subr.mxu0 0.0
  %2697 = vmatpush2.msra.mxu0 0.0
  %2698 = vmatprep.subr.mxu0 0.0
  %2699 = vmatpush2.msra.mxu0 0.0
  %2700 = vmatprep.subr.mxu0 0.0
  %2701 = vmatpush2.msra.mxu0 0.0
  %2702 = vmatprep.subr.mxu0 0.0
  %2703 = vmatpush2.msra.mxu0 0.0
  %2704 = vmatprep.subr.mxu0 0.0
  %2705 = vmatpush2.msra.mxu0 0.0
  %2706 = vmatprep.mubr.f32.mxu0 0.0
  %2707 = vmatmul.mubr.f32.gmra.mxu0 %v2345
  %v2708 = vpop.f32.mrf.mxu0
  %v2709 = vadd.f32 0.0, %v2708
  %v2710 = vpop.f32.mrf.mxu0
  %2711 = vmatprep.mubr.f32.mxu0 0.0
  %2712 = vmatmul.mubr.f32.gmra.mxu0 %v2348
  %v2713 = vpop.f32.mrf.mxu0
  %v2714 = vadd.f32 0.0, %v2713
  %v2715 = vpop.f32.mrf.mxu0
  %2716 = vmatprep.mubr.f32.mxu0 0.0
  %2717 = vmatmul.mubr.f32.gmra.mxu0 %v2351
  %v2718 = vpop.f32.mrf.mxu0
  %v2719 = vadd.f32 0.0, %v2718
  %v2720 = vpop.f32.mrf.mxu0
  %2721 = vmatprep.mubr.f32.mxu0 0.0
  %2722 = vmatmul.mubr.f32.gmra.mxu0 %v2354
  %v2723 = vpop.f32.mrf.mxu0
  %v2724 = vadd.f32 0.0, %v2723
  %v2725 = vpop.f32.mrf.mxu0
  %2726 = vmatprep.mubr.f32.mxu0 0.0
  %2727 = vmatmul.mubr.f32.gmra.mxu0 %v2357
  %v2728 = vpop.f32.mrf.mxu0
  %v2729 = vadd.f32 0.0, %v2728
  %v2730 = vpop.f32.mrf.mxu0
  %2731 = vmatprep.mubr.f32.mxu0 0.0
  %2732 = vmatmul.mubr.f32.gmra.mxu0 %v2360
  %v2733 = vpop.f32.mrf.mxu0
  %v2734 = vadd.f32 0.0, %v2733
  %v2735 = vpop.f32.mrf.mxu0
  %2736 = vmatprep.mubr.f32.mxu0 0.0
  %2737 = vmatmul.mubr.f32.gmra.mxu0 %v2363
  %v2738 = vpop.f32.mrf.mxu0
  %v2739 = vadd.f32 0.0, %v2738
  %v2740 = vpop.f32.mrf.mxu0
  %2741 = vmatprep.mubr.f32.mxu0 0.0
  %2742 = vmatmul.mubr.f32.gmra.mxu0 %v2366
  %v2743 = vpop.f32.mrf.mxu0
  %v2744 = vadd.f32 0.0, %v2743
  %v2745 = vpop.f32.mrf.mxu0
  %2746 = vmatprep.mubr.f32.mxu0 0.0
  %2747 = vmatmul.mubr.f32.gmra.mxu0 %v2369
  %v2748 = vpop.f32.mrf.mxu0
  %v2749 = vadd.f32 0.0, %v2748
  %v2750 = vpop.f32.mrf.mxu0
  %2751 = vmatprep.mubr.f32.mxu0 0.0
  %2752 = vmatmul.mubr.f32.gmra.mxu0 %v2372
  %v2753 = vpop.f32.mrf.mxu0
  %v2754 = vadd.f32 0.0, %v2753
  %v2755 = vpop.f32.mrf.mxu0
  %2756 = vmatprep.mubr.f32.mxu0 0.0
  %2757 = vmatmul.mubr.f32.gmra.mxu0 %v2375
  %v2758 = vpop.f32.mrf.mxu0
  %v2759 = vadd.f32 0.0, %v2758
  %v2760 = vpop.f32.mrf.mxu0
  %2761 = vmatprep.mubr.f32.mxu0 0.0
  %2762 = vmatmul.mubr.f32.gmra.mxu0 %v2378
  %v2763 = vpop.f32.mrf.mxu0
  %v2764 = vadd.f32 0.0, %v2763
  %v2765 = vpop.f32.mrf.mxu0
  %2766 = vmatprep.mubr.f32.mxu0 0.0
  %2767 = vmatmul.mubr.f32.gmra.mxu0 %v2381
  %v2768 = vpop.f32.mrf.mxu0
  %v2769 = vadd.f32 0.0, %v2768
  %v2770 = vpop.f32.mrf.mxu0
  %2771 = vmatprep.mubr.f32.mxu0 0.0
  %2772 = vmatmul.mubr.f32.gmra.mxu0 %v2384
  %v2773 = vpop.f32.mrf.mxu0
  %v2774 = vadd.f32 0.0, %v2773
  %v2775 = vpop.f32.mrf.mxu0
  %2776 = vmatprep.mubr.f32.mxu0 0.0
  %2777 = vmatmul.mubr.f32.gmra.mxu0 %v2387
  %v2778 = vpop.f32.mrf.mxu0
  %v2779 = vadd.f32 0.0, %v2778
  %v2780 = vpop.f32.mrf.mxu0
  %2781 = vmatprep.mubr.f32.mxu0 0.0
  %2782 = vmatmul.mubr.f32.gmra.mxu0 %v2390
  %v2783 = vpop.f32.mrf.mxu0
  %v2784 = vadd.f32 0.0, %v2783
  %v2785 = vpop.f32.mrf.mxu0
  %2786 = vmatprep.mubr.f32.mxu0 0.0
  %2787 = vmatmul.mubr.f32.gmra.mxu0 %v2393
  %v2788 = vpop.f32.mrf.mxu0
  %v2789 = vadd.f32 0.0, %v2788
  %v2790 = vpop.f32.mrf.mxu0
  %2791 = vmatprep.mubr.f32.mxu0 0.0
  %2792 = vmatmul.mubr.f32.gmra.mxu0 %v2396
  %v2793 = vpop.f32.mrf.mxu0
  %v2794 = vadd.f32 0.0, %v2793
  %v2795 = vpop.f32.mrf.mxu0
  %2796 = vmatprep.mubr.f32.mxu0 0.0
  %2797 = vmatmul.mubr.f32.gmra.mxu0 %v2399
  %v2798 = vpop.f32.mrf.mxu0
  %v2799 = vadd.f32 0.0, %v2798
  %v2800 = vpop.f32.mrf.mxu0
  %2801 = vmatprep.mubr.f32.mxu0 0.0
  %2802 = vmatmul.mubr.f32.gmra.mxu0 %v2402
  %v2803 = vpop.f32.mrf.mxu0
  %v2804 = vadd.f32 0.0, %v2803
  %v2805 = vpop.f32.mrf.mxu0
  %2806 = vmatprep.mubr.f32.mxu0 0.0
  %2807 = vmatmul.mubr.f32.gmra.mxu0 %v2405
  %v2808 = vpop.f32.mrf.mxu0
  %v2809 = vadd.f32 0.0, %v2808
  %v2810 = vpop.f32.mrf.mxu0
  %2811 = vmatprep.mubr.f32.mxu0 0.0
  %2812 = vmatmul.mubr.f32.gmra.mxu0 %v2408
  %v2813 = vpop.f32.mrf.mxu0
  %v2814 = vadd.f32 0.0, %v2813
  %v2815 = vpop.f32.mrf.mxu0
  %2816 = vmatprep.mubr.f32.mxu0 0.0
  %2817 = vmatmul.mubr.f32.gmra.mxu0 %v2411
  %v2818 = vpop.f32.mrf.mxu0
  %v2819 = vadd.f32 0.0, %v2818
  %v2820 = vpop.f32.mrf.mxu0
  %2821 = vmatprep.mubr.f32.mxu0 0.0
  %2822 = vmatmul.mubr.f32.gmra.mxu0 %v2414
  %v2823 = vpop.f32.mrf.mxu0
  %v2824 = vadd.f32 0.0, %v2823
  %v2825 = vpop.f32.mrf.mxu0
  %2826 = vmatprep.mubr.f32.mxu0 0.0
  %2827 = vmatmul.mubr.f32.gmra.mxu0 %v2417
  %v2828 = vpop.f32.mrf.mxu0
  %v2829 = vadd.f32 0.0, %v2828
  %v2830 = vpop.f32.mrf.mxu0
  %2831 = vmatprep.mubr.f32.mxu0 0.0
  %2832 = vmatmul.mubr.f32.gmra.mxu0 %v2420
  %v2833 = vpop.f32.mrf.mxu0
  %v2834 = vadd.f32 0.0, %v2833
  %v2835 = vpop.f32.mrf.mxu0
  %2836 = vmatprep.mubr.f32.mxu0 0.0
  %2837 = vmatmul.mubr.f32.gmra.mxu0 %v2423
  %v2838 = vpop.f32.mrf.mxu0
  %v2839 = vadd.f32 0.0, %v2838
  %v2840 = vpop.f32.mrf.mxu0
  %2841 = vmatprep.mubr.f32.mxu0 0.0
  %2842 = vmatmul.mubr.f32.gmra.mxu0 %v2426
  %v2843 = vpop.f32.mrf.mxu0
  %v2844 = vadd.f32 0.0, %v2843
  %v2845 = vpop.f32.mrf.mxu0
  %2846 = vmatprep.mubr.f32.mxu0 0.0
  %2847 = vmatmul.mubr.f32.gmra.mxu0 %v2429
  %v2848 = vpop.f32.mrf.mxu0
  %v2849 = vadd.f32 0.0, %v2848
  %v2850 = vpop.f32.mrf.mxu0
  %2851 = vmatprep.mubr.f32.mxu0 0.0
  %2852 = vmatmul.mubr.f32.gmra.mxu0 %v2432
  %v2853 = vpop.f32.mrf.mxu0
  %v2854 = vadd.f32 0.0, %v2853
  %v2855 = vpop.f32.mrf.mxu0
  %2856 = vmatprep.mubr.f32.mxu0 0.0
  %2857 = vmatmul.mubr.f32.gmra.mxu0 %v2435
  %v2858 = vpop.f32.mrf.mxu0
  %v2859 = vadd.f32 0.0, %v2858
  %v2860 = vpop.f32.mrf.mxu0
  %2861 = vmatprep.mubr.f32.mxu0 0.0
  %2862 = vmatmul.mubr.f32.gmra.mxu0 %v2438
  %v2863 = vpop.f32.mrf.mxu0
  %v2864 = vadd.f32 0.0, %v2863
  %v2865 = vpop.f32.mrf.mxu0
  %2866 = vmatprep.mubr.f32.mxu0 0.0
  %2867 = vmatmul.mubr.f32.gmra.mxu0 %v2441
  %v2868 = vpop.f32.mrf.mxu0
  %v2869 = vadd.f32 0.0, %v2868
  %v2870 = vpop.f32.mrf.mxu0
  %2871 = vmatprep.mubr.f32.mxu0 0.0
  %2872 = vmatmul.mubr.f32.gmra.mxu0 %v2444
  %v2873 = vpop.f32.mrf.mxu0
  %v2874 = vadd.f32 0.0, %v2873
  %v2875 = vpop.f32.mrf.mxu0
  %2876 = vmatprep.mubr.f32.mxu0 0.0
  %2877 = vmatmul.mubr.f32.gmra.mxu0 %v2447
  %v2878 = vpop.f32.mrf.mxu0
  %v2879 = vadd.f32 0.0, %v2878
  %v2880 = vpop.f32.mrf.mxu0
  %2881 = vmatprep.mubr.f32.mxu0 0.0
  %2882 = vmatmul.mubr.f32.gmra.mxu0 %v2450
  %v2883 = vpop.f32.mrf.mxu0
  %v2884 = vadd.f32 0.0, %v2883
  %v2885 = vpop.f32.mrf.mxu0
  %2886 = vmatprep.mubr.f32.mxu0 0.0
  %2887 = vmatmul.mubr.f32.gmra.mxu0 %v2453
  %v2888 = vpop.f32.mrf.mxu0
  %v2889 = vadd.f32 0.0, %v2888
  %v2890 = vpop.f32.mrf.mxu0
  %2891 = vmatprep.mubr.f32.mxu0 0.0
  %2892 = vmatmul.mubr.f32.gmra.mxu0 %v2456
  %v2893 = vpop.f32.mrf.mxu0
  %v2894 = vadd.f32 0.0, %v2893
  %v2895 = vpop.f32.mrf.mxu0
  %2896 = vmatprep.mubr.f32.mxu0 0.0
  %2897 = vmatmul.mubr.f32.gmra.mxu0 %v2459
  %v2898 = vpop.f32.mrf.mxu0
  %v2899 = vadd.f32 0.0, %v2898
  %v2900 = vpop.f32.mrf.mxu0
  %2901 = vmatprep.mubr.f32.mxu0 0.0
  %2902 = vmatmul.mubr.f32.gmra.mxu0 %v2462
  %v2903 = vpop.f32.mrf.mxu0
  %v2904 = vadd.f32 0.0, %v2903
  %v2905 = vpop.f32.mrf.mxu0
  %2906 = vmatprep.mubr.f32.mxu0 0.0
  %2907 = vmatmul.mubr.f32.gmra.mxu0 %v2465
  %v2908 = vpop.f32.mrf.mxu0
  %v2909 = vadd.f32 0.0, %v2908
  %v2910 = vpop.f32.mrf.mxu0
  %2911 = vmatprep.mubr.f32.mxu0 0.0
  %2912 = vmatmul.mubr.f32.gmra.mxu0 %v2468
  %v2913 = vpop.f32.mrf.mxu0
  %v2914 = vadd.f32 0.0, %v2913
  %v2915 = vpop.f32.mrf.mxu0
  %2916 = vmatprep.mubr.f32.mxu0 0.0
  %2917 = vmatmul.mubr.f32.gmra.mxu0 %v2471
  %v2918 = vpop.f32.mrf.mxu0
  %v2919 = vadd.f32 0.0, %v2918
  %v2920 = vpop.f32.mrf.mxu0
  %2921 = vmatprep.mubr.f32.mxu0 0.0
  %2922 = vmatmul.mubr.f32.gmra.mxu0 %v2474
  %v2923 = vpop.f32.mrf.mxu0
  %v2924 = vadd.f32 0.0, %v2923
  %v2925 = vpop.f32.mrf.mxu0
  %2926 = vmatprep.mubr.f32.mxu0 0.0
  %2927 = vmatmul.mubr.f32.gmra.mxu0 %v2477
  %v2928 = vpop.f32.mrf.mxu0
  %v2929 = vadd.f32 0.0, %v2928
  %v2930 = vpop.f32.mrf.mxu0
  %2931 = vmatprep.mubr.f32.mxu0 0.0
  %2932 = vmatmul.mubr.f32.gmra.mxu0 %v2480
  %v2933 = vpop.f32.mrf.mxu0
  %v2934 = vadd.f32 0.0, %v2933
  %v2935 = vpop.f32.mrf.mxu0
  %2936 = vmatprep.mubr.f32.mxu0 0.0
  %2937 = vmatmul.mubr.f32.gmra.mxu0 %v2483
  %v2938 = vpop.f32.mrf.mxu0
  %v2939 = vadd.f32 0.0, %v2938
  %v2940 = vpop.f32.mrf.mxu0
  %2941 = vmatprep.mubr.f32.mxu0 0.0
  %2942 = vmatmul.mubr.f32.gmra.mxu0 %v2486
  %v2943 = vpop.f32.mrf.mxu0
  %v2944 = vadd.f32 0.0, %v2943
  %v2945 = vpop.f32.mrf.mxu0
  %2946 = vmatprep.mubr.f32.mxu0 0.0
  %2947 = vmatmul.mubr.f32.gmra.mxu0 %v2489
  %v2948 = vpop.f32.mrf.mxu0
  %v2949 = vadd.f32 0.0, %v2948
  %v2950 = vpop.f32.mrf.mxu0
  %2951 = vmatprep.mubr.f32.mxu0 0.0
  %2952 = vmatmul.mubr.f32.gmra.mxu0 %v2492
  %v2953 = vpop.f32.mrf.mxu0
  %v2954 = vadd.f32 0.0, %v2953
  %v2955 = vpop.f32.mrf.mxu0
  %2956 = vmatprep.mubr.f32.mxu0 0.0
  %2957 = vmatmul.mubr.f32.gmra.mxu0 %v2495
  %v2958 = vpop.f32.mrf.mxu0
  %v2959 = vadd.f32 0.0, %v2958
  %v2960 = vpop.f32.mrf.mxu0
  %2961 = vmatprep.mubr.f32.mxu0 0.0
  %2962 = vmatmul.mubr.f32.gmra.mxu0 %v2498
  %v2963 = vpop.f32.mrf.mxu0
  %v2964 = vadd.f32 0.0, %v2963
  %v2965 = vpop.f32.mrf.mxu0
  %2966 = vmatprep.mubr.f32.mxu0 0.0
  %2967 = vmatmul.mubr.f32.gmra.mxu0 %v2501
  %v2968 = vpop.f32.mrf.mxu0
  %v2969 = vadd.f32 0.0, %v2968
  %v2970 = vpop.f32.mrf.mxu0
  %2971 = vmatprep.mubr.f32.mxu0 0.0
  %2972 = vmatmul.mubr.f32.gmra.mxu0 %v2504
  %v2973 = vpop.f32.mrf.mxu0
  %v2974 = vadd.f32 0.0, %v2973
  %v2975 = vpop.f32.mrf.mxu0
  %2976 = vmatprep.mubr.f32.mxu0 0.0
  %2977 = vmatmul.mubr.f32.gmra.mxu0 %v2507
  %v2978 = vpop.f32.mrf.mxu0
  %v2979 = vadd.f32 0.0, %v2978
  %v2980 = vpop.f32.mrf.mxu0
  %2981 = vmatprep.mubr.f32.mxu0 0.0
  %2982 = vmatmul.mubr.f32.gmra.mxu0 %v2510
  %v2983 = vpop.f32.mrf.mxu0
  %v2984 = vadd.f32 0.0, %v2983
  %v2985 = vpop.f32.mrf.mxu0
  %2986 = vmatprep.mubr.f32.mxu0 0.0
  %2987 = vmatmul.mubr.f32.gmra.mxu0 %v2513
  %v2988 = vpop.f32.mrf.mxu0
  %v2989 = vadd.f32 0.0, %v2988
  %v2990 = vpop.f32.mrf.mxu0
  %2991 = vmatprep.mubr.f32.mxu0 0.0
  %2992 = vmatmul.mubr.f32.gmra.mxu0 %v2516
  %v2993 = vpop.f32.mrf.mxu0
  %v2994 = vadd.f32 0.0, %v2993
  %v2995 = vpop.f32.mrf.mxu0
  %2996 = vmatprep.mubr.f32.mxu0 0.0
  %2997 = vmatmul.mubr.f32.gmra.mxu0 %v2519
  %v2998 = vpop.f32.mrf.mxu0
  %v2999 = vadd.f32 0.0, %v2998
  %v3000 = vpop.f32.mrf.mxu0
  %3001 = vmatprep.mubr.f32.mxu0 0.0
  %3002 = vmatmul.mubr.f32.gmra.mxu0 %v2522
  %v3003 = vpop.f32.mrf.mxu0
  %v3004 = vadd.f32 0.0, %v3003
  %v3005 = vpop.f32.mrf.mxu0
  %3006 = vmatprep.mubr.f32.mxu0 0.0
  %3007 = vmatmul.mubr.f32.gmra.mxu0 %v2525
  %v3008 = vpop.f32.mrf.mxu0
  %v3009 = vadd.f32 0.0, %v3008
  %v3010 = vpop.f32.mrf.mxu0
  %3011 = vmatprep.mubr.f32.mxu0 0.0
  %3012 = vmatmul.mubr.f32.gmra.mxu0 %v2528
  %v3013 = vpop.f32.mrf.mxu0
  %v3014 = vadd.f32 0.0, %v3013
  %v3015 = vpop.f32.mrf.mxu0
  %3016 = vmatprep.mubr.f32.mxu0 0.0
  %3017 = vmatmul.mubr.f32.gmra.mxu0 %v2531
  %v3018 = vpop.f32.mrf.mxu0
  %v3019 = vadd.f32 0.0, %v3018
  %v3020 = vpop.f32.mrf.mxu0
  %3021 = vmatprep.mubr.f32.mxu0 0.0
  %3022 = vmatmul.mubr.f32.gmra.mxu0 %v2534
  %v3023 = vpop.f32.mrf.mxu0
  %v3024 = vadd.f32 0.0, %v3023
  %v3025 = vpop.f32.mrf.mxu0
  %3026 = vmatprep.mubr.f32.mxu0 0.0
  %3027 = vmatmul.mubr.f32.gmra.mxu0 %v2537
  %v3028 = vpop.f32.mrf.mxu0
  %v3029 = vadd.f32 0.0, %v3028
  %v3030 = vpop.f32.mrf.mxu0
  %3031 = vmatprep.mubr.f32.mxu0 0.0
  %3032 = vmatmul.mubr.f32.gmra.mxu0 %v2540
  %v3033 = vpop.f32.mrf.mxu0
  %v3034 = vadd.f32 0.0, %v3033
  %v3035 = vpop.f32.mrf.mxu0
  %3036 = vmatprep.mubr.f32.mxu0 0.0
  %3037 = vmatmul.mubr.f32.gmra.mxu0 %v2543
  %v3038 = vpop.f32.mrf.mxu0
  %v3039 = vadd.f32 0.0, %v3038
  %v3040 = vpop.f32.mrf.mxu0
  %3041 = vmatprep.mubr.f32.mxu0 0.0
  %3042 = vmatmul.mubr.f32.gmra.mxu0 %v2546
  %v3043 = vpop.f32.mrf.mxu0
  %v3044 = vadd.f32 0.0, %v3043
  %v3045 = vpop.f32.mrf.mxu0
  %3046 = vmatprep.mubr.f32.mxu0 0.0
  %3047 = vmatmul.mubr.f32.gmra.mxu0 %v2549
  %v3048 = vpop.f32.mrf.mxu0
  %v3049 = vadd.f32 0.0, %v3048
  %v3050 = vpop.f32.mrf.mxu0
  %3051 = vmatprep.mubr.f32.mxu0 0.0
  %3052 = vmatmul.mubr.f32.gmra.mxu0 %v2552
  %v3053 = vpop.f32.mrf.mxu0
  %v3054 = vadd.f32 0.0, %v3053
  %v3055 = vpop.f32.mrf.mxu0
  %3056 = vmatprep.mubr.f32.mxu0 0.0
  %3057 = vmatmul.mubr.f32.gmra.mxu0 %v2555
  %v3058 = vpop.f32.mrf.mxu0
  %v3059 = vadd.f32 0.0, %v3058
  %v3060 = vpop.f32.mrf.mxu0
  %3061 = vmatprep.mubr.f32.mxu0 0.0
  %3062 = vmatmul.mubr.f32.gmra.mxu0 %v2558
  %v3063 = vpop.f32.mrf.mxu0
  %v3064 = vadd.f32 0.0, %v3063
  %v3065 = vpop.f32.mrf.mxu0
  %3066 = vmatprep.mubr.f32.mxu0 0.0
  %3067 = vmatmul.mubr.f32.gmra.mxu0 %v2561
  %v3068 = vpop.f32.mrf.mxu0
  %v3069 = vadd.f32 0.0, %v3068
  %v3070 = vpop.f32.mrf.mxu0
  %3071 = vmatprep.mubr.f32.mxu0 0.0
  %3072 = vmatmul.mubr.f32.gmra.mxu0 %v2564
  %v3073 = vpop.f32.mrf.mxu0
  %v3074 = vadd.f32 0.0, %v3073
  %v3075 = vpop.f32.mrf.mxu0
  %3076 = vmatprep.mubr.f32.mxu0 0.0
  %3077 = vmatmul.mubr.f32.gmra.mxu0 %v2567
  %v3078 = vpop.f32.mrf.mxu0
  %v3079 = vadd.f32 0.0, %v3078
  %v3080 = vpop.f32.mrf.mxu0
  %3081 = vmatprep.mubr.f32.mxu0 0.0
  %3082 = vmatmul.mubr.f32.gmra.mxu0 %v2570
  %v3083 = vpop.f32.mrf.mxu0
  %v3084 = vadd.f32 0.0, %v3083
  %v3085 = vpop.f32.mrf.mxu0
  %3086 = vmatprep.mubr.f32.mxu0 0.0
  %3087 = vmatmul.mubr.f32.gmra.mxu0 %v2573
  %v3088 = vpop.f32.mrf.mxu0
  %v3089 = vadd.f32 0.0, %v3088
  %v3090 = vpop.f32.mrf.mxu0
  %3091 = vmatprep.mubr.f32.mxu0 0.0
  %3092 = vmatmul.mubr.f32.gmra.mxu0 %v2576
  %v3093 = vpop.f32.mrf.mxu0
  %v3094 = vadd.f32 0.0, %v3093
  %v3095 = vpop.f32.mrf.mxu0
  %3096 = vmatprep.mubr.f32.mxu0 0.0
  %3097 = vmatmul.mubr.f32.gmra.mxu0 %v2579
  %v3098 = vpop.f32.mrf.mxu0
  %v3099 = vadd.f32 0.0, %v3098
  %v3100 = vpop.f32.mrf.mxu0
  %3101 = vmatprep.mubr.f32.mxu0 0.0
  %3102 = vmatmul.mubr.f32.gmra.mxu0 %v2582
  %v3103 = vpop.f32.mrf.mxu0
  %v3104 = vadd.f32 0.0, %v3103
  %v3105 = vpop.f32.mrf.mxu0
  %3106 = vmatprep.mubr.f32.mxu0 0.0
  %3107 = vmatmul.mubr.f32.gmra.mxu0 %v2585
  %v3108 = vpop.f32.mrf.mxu0
  %v3109 = vadd.f32 0.0, %v3108
  %v3110 = vpop.f32.mrf.mxu0
  %3111 = vmatprep.mubr.f32.mxu0 0.0
  %3112 = vmatmul.mubr.f32.gmra.mxu0 %v2588
  %v3113 = vpop.f32.mrf.mxu0
  %v3114 = vadd.f32 0.0, %v3113
  %v3115 = vpop.f32.mrf.mxu0
  %3116 = vmatprep.mubr.f32.mxu0 0.0
  %3117 = vmatmul.mubr.f32.gmra.mxu0 %v2591
  %v3118 = vpop.f32.mrf.mxu0
  %v3119 = vadd.f32 0.0, %v3118
  %v3120 = vpop.f32.mrf.mxu0
  %3121 = vmatprep.mubr.f32.mxu0 0.0
  %3122 = vmatmul.mubr.f32.gmra.mxu0 %v2594
  %v3123 = vpop.f32.mrf.mxu0
  %v3124 = vadd.f32 0.0, %v3123
  %v3125 = vpop.f32.mrf.mxu0
  %3126 = vmatprep.mubr.f32.mxu0 0.0
  %3127 = vmatmul.mubr.f32.gmra.mxu0 %v2597
  %v3128 = vpop.f32.mrf.mxu0
  %v3129 = vadd.f32 0.0, %v3128
  %v3130 = vpop.f32.mrf.mxu0
  %3131 = vmatprep.mubr.f32.mxu0 0.0
  %3132 = vmatmul.mubr.f32.gmra.mxu0 %v2600
  %v3133 = vpop.f32.mrf.mxu0
  %v3134 = vadd.f32 0.0, %v3133
  %v3135 = vpop.f32.mrf.mxu0
  %3136 = vmatprep.mubr.f32.mxu0 0.0
  %3137 = vmatmul.mubr.f32.gmra.mxu0 %v2603
  %v3138 = vpop.f32.mrf.mxu0
  %v3139 = vadd.f32 0.0, %v3138
  %v3140 = vpop.f32.mrf.mxu0
  %3141 = vmatprep.mubr.f32.mxu0 0.0
  %3142 = vmatmul.mubr.f32.gmra.mxu0 %v2606
  %v3143 = vpop.f32.mrf.mxu0
  %v3144 = vadd.f32 0.0, %v3143
  %v3145 = vpop.f32.mrf.mxu0
  %3146 = vmatprep.mubr.f32.mxu0 0.0
  %3147 = vmatmul.mubr.f32.gmra.mxu0 %v2609
  %v3148 = vpop.f32.mrf.mxu0
  %v3149 = vadd.f32 0.0, %v3148
  %v3150 = vpop.f32.mrf.mxu0
  %3151 = vmatprep.mubr.f32.mxu0 0.0
  %3152 = vmatmul.mubr.f32.gmra.mxu0 %v2612
  %v3153 = vpop.f32.mrf.mxu0
  %v3154 = vadd.f32 0.0, %v3153
  %v3155 = vpop.f32.mrf.mxu0
  %3156 = vmatprep.mubr.f32.mxu0 0.0
  %3157 = vmatmul.mubr.f32.gmra.mxu0 %v2615
  %v3158 = vpop.f32.mrf.mxu0
  %v3159 = vadd.f32 0.0, %v3158
  %v3160 = vpop.f32.mrf.mxu0
  %3161 = vmatprep.mubr.f32.mxu0 0.0
  %3162 = vmatmul.mubr.f32.gmra.mxu0 %v2618
  %v3163 = vpop.f32.mrf.mxu0
  %v3164 = vadd.f32 0.0, %v3163
  %v3165 = vpop.f32.mrf.mxu0
  %3166 = vmatprep.mubr.f32.mxu0 0.0
  %3167 = vmatmul.mubr.f32.gmra.mxu0 %v2621
  %v3168 = vpop.f32.mrf.mxu0
  %v3169 = vadd.f32 0.0, %v3168
  %v3170 = vpop.f32.mrf.mxu0
  %3171 = vmatprep.mubr.f32.mxu0 0.0
  %3172 = vmatmul.mubr.f32.gmra.mxu0 %v2624
  %v3173 = vpop.f32.mrf.mxu0
  %v3174 = vadd.f32 0.0, %v3173
  %v3175 = vpop.f32.mrf.mxu0
  %3176 = vmatprep.mubr.f32.mxu0 0.0
  %3177 = vmatmul.mubr.f32.gmra.mxu0 %v2627
  %v3178 = vpop.f32.mrf.mxu0
  %v3179 = vadd.f32 0.0, %v3178
  %v3180 = vpop.f32.mrf.mxu0
  %3181 = vmatprep.mubr.f32.mxu0 0.0
  %3182 = vmatmul.mubr.f32.gmra.mxu0 %v2630
  %v3183 = vpop.f32.mrf.mxu0
  %v3184 = vadd.f32 0.0, %v3183
  %v3185 = vpop.f32.mrf.mxu0
  %3186 = vmatprep.mubr.f32.mxu0 0.0
  %3187 = vmatmul.mubr.f32.gmra.mxu0 %v2633
  %v3188 = vpop.f32.mrf.mxu0
  %v3189 = vadd.f32 0.0, %v3188
  %v3190 = vpop.f32.mrf.mxu0
  %3191 = vmatprep.mubr.f32.mxu0 0.0
  %3192 = vmatmul.mubr.f32.gmra.mxu0 %v2636
  %v3193 = vpop.f32.mrf.mxu0
  %v3194 = vadd.f32 0.0, %v3193
  %v3195 = vpop.f32.mrf.mxu0
  %3196 = vdwg.mxu0
  %v3197 = vld [vmem:[%s6] sm:$0xff]
  %v3198 = vld [vmem:[%s6 + $0x8] sm:$0xff]
  %v3199 = vld [vmem:[%s6 + $0x10] sm:$0xff]
  %v3200 = vld [vmem:[%s6 + $0x18] sm:$0xff]
  %v3201 = vld [vmem:[%s6 + $0x20] sm:$0xff]
  %v3202 = vld [vmem:[%s6 + $0x28] sm:$0xff]
  %v3203 = vld [vmem:[%s6 + $0x30] sm:$0xff]
  %v3204 = vld [vmem:[%s6 + $0x38] sm:$0xff]
  %v3205 = vld [vmem:[%s6 + $0x40] sm:$0xff]
  %v3206 = vld [vmem:[%s6 + $0x48] sm:$0xff]
  %v3207 = vld [vmem:[%s6 + $0x50] sm:$0xff]
  %v3208 = vld [vmem:[%s6 + $0x58] sm:$0xff]
  %v3209 = vld [vmem:[%s6 + $0x60] sm:$0xff]
  %v3210 = vld [vmem:[%s6 + $0x68] sm:$0xff]
  %v3211 = vld [vmem:[%s6 + $0x70] sm:$0xff]
  %v3212 = vld [vmem:[%s6 + $0x78] sm:$0xff]
  %v3213 = vld [vmem:[%s6 + $0x80] sm:$0xff]
  %v3214 = vld [vmem:[%s6 + $0x88] sm:$0xff]
  %v3215 = vld [vmem:[%s6 + $0x90] sm:$0xff]
  %v3216 = vld [vmem:[%s6 + $0x98] sm:$0xff]
  %v3217 = vld [vmem:[%s6 + $0xa0] sm:$0xff]
  %v3218 = vld [vmem:[%s6 + $0xa8] sm:$0xff]
  %v3219 = vld [vmem:[%s6 + $0xb0] sm:$0xff]
  %v3220 = vld [vmem:[%s6 + $0xb8] sm:$0xff]
  %v3221 = vld [vmem:[%s6 + $0xc0] sm:$0xff]
  %v3222 = vld [vmem:[%s6 + $0xc8] sm:$0xff]
  %v3223 = vld [vmem:[%s6 + $0xd0] sm:$0xff]
  %v3224 = vld [vmem:[%s6 + $0xd8] sm:$0xff]
  %v3225 = vld [vmem:[%s7] sm:$0xff]
  %v3226 = vld [vmem:[%s7 + $0x8] sm:$0xff]
  %v3227 = vld [vmem:[%s7 + $0x10] sm:$0xff]
  %v3228 = vld [vmem:[%s7 + $0x18] sm:$0xff]
  %3230 = vset.pattern.permute.xlu0 0
  %3231 = vperm.xlu0 %3230, %v3225
  %v3232 = vpop.permute.xlu0 %3231
  %3235 = vset.pattern.permute.xlu0 0
  %3236 = vperm.xlu0 %3235, %v3226
  %v3237 = vpop.permute.xlu0 %3236
  %3240 = vset.pattern.permute.xlu0 0
  %3241 = vperm.xlu0 %3240, %v3227
  %v3242 = vpop.permute.xlu0 %3241
  %3245 = vset.pattern.permute.xlu0 0
  %3246 = vperm.xlu0 %3245, %v3228
  %v3247 = vpop.permute.xlu0 %3246
  %v3250 = vsel %vm1285, %v3203, 0
  %v3253 = vsel %vm1285, %v3210, 0
  %v3256 = vsel %vm1285, %v3217, 0
  %v3259 = vsel %vm1285, %v3224, 0
  %3261 = vmatprep.subr.mxu0 0.0
  %3262 = vmatpush1.msra.mxu0 %v2784
  %3263 = vmatprep.subr.mxu0 0.0
  %3264 = vmatpush1.msra.mxu0 %v2779
  %3265 = vmatprep.subr.mxu0 0.0
  %3266 = vmatpush1.msra.mxu0 %v2774
  %3267 = vmatprep.subr.mxu0 0.0
  %3268 = vmatpush1.msra.mxu0 %v2769
  %3269 = vmatprep.subr.mxu0 0.0
  %3270 = vmatpush1.msra.mxu0 %v2764
  %3271 = vmatprep.subr.mxu0 0.0
  %3272 = vmatpush1.msra.mxu0 %v2759
  %3273 = vmatprep.subr.mxu0 0.0
  %3274 = vmatpush1.msra.mxu0 %v2754
  %3275 = vmatprep.subr.mxu0 0.0
  %3276 = vmatpush1.msra.mxu0 %v2749
  %3277 = vmatprep.subr.mxu0 0.0
  %3278 = vmatpush1.msra.mxu0 %v2744
  %3279 = vmatprep.subr.mxu0 0.0
  %3280 = vmatpush1.msra.mxu0 %v2739
  %3281 = vmatprep.subr.mxu0 0.0
  %3282 = vmatpush1.msra.mxu0 %v2734
  %3283 = vmatprep.subr.mxu0 0.0
  %3284 = vmatpush1.msra.mxu0 %v2729
  %3285 = vmatprep.subr.mxu0 0.0
  %3286 = vmatpush1.msra.mxu0 %v2724
  %3287 = vmatprep.subr.mxu0 0.0
  %3288 = vmatpush1.msra.mxu0 %v2719
  %3289 = vmatprep.subr.mxu0 0.0
  %3290 = vmatpush1.msra.mxu0 %v2714
  %3291 = vmatprep.subr.mxu0 0.0
  %3292 = vmatpush1.msra.mxu0 %v2709
  %3293 = vmatprep.subr.mxu0 0.0
  %3294 = vmatpush2.msra.mxu0 %v2864
  %3295 = vmatprep.subr.mxu0 0.0
  %3296 = vmatpush2.msra.mxu0 %v2859
  %3297 = vmatprep.subr.mxu0 0.0
  %3298 = vmatpush2.msra.mxu0 %v2854
  %3299 = vmatprep.subr.mxu0 0.0
  %3300 = vmatpush2.msra.mxu0 %v2849
  %3301 = vmatprep.subr.mxu0 0.0
  %3302 = vmatpush2.msra.mxu0 %v2844
  %3303 = vmatprep.subr.mxu0 0.0
  %3304 = vmatpush2.msra.mxu0 %v2839
  %3305 = vmatprep.subr.mxu0 0.0
  %3306 = vmatpush2.msra.mxu0 %v2834
  %3307 = vmatprep.subr.mxu0 0.0
  %3308 = vmatpush2.msra.mxu0 %v2829
  %3309 = vmatprep.subr.mxu0 0.0
  %3310 = vmatpush2.msra.mxu0 %v2824
  %3311 = vmatprep.subr.mxu0 0.0
  %3312 = vmatpush2.msra.mxu0 %v2819
  %3313 = vmatprep.subr.mxu0 0.0
  %3314 = vmatpush2.msra.mxu0 %v2814
  %3315 = vmatprep.subr.mxu0 0.0
  %3316 = vmatpush2.msra.mxu0 %v2809
  %3317 = vmatprep.subr.mxu0 0.0
  %3318 = vmatpush2.msra.mxu0 %v2804
  %3319 = vmatprep.subr.mxu0 0.0
  %3320 = vmatpush2.msra.mxu0 %v2799
  %3321 = vmatprep.subr.mxu0 0.0
  %3322 = vmatpush2.msra.mxu0 %v2794
  %3323 = vmatprep.subr.mxu0 0.0
  %3324 = vmatpush2.msra.mxu0 %v2789
  %3325 = vmatprep.mubr.f32.mxu0 %v3198
  %3326 = vmatmul.mubr.f32.gmra.mxu0 %v3197
  %v3327 = vpop.f32.mrf.mxu0
  %v3328 = vadd.f32 %v3232, %v3327
  %v3329 = vpop.f32.mrf.mxu0
  %3330 = vmatprep.mubr.f32.mxu0 %v3205
  %3331 = vmatmul.mubr.f32.gmra.mxu0 %v3204
  %v3332 = vpop.f32.mrf.mxu0
  %v3333 = vadd.f32 %v3237, %v3332
  %v3334 = vpop.f32.mrf.mxu0
  %3335 = vmatprep.mubr.f32.mxu0 %v3212
  %3336 = vmatmul.mubr.f32.gmra.mxu0 %v3211
  %v3337 = vpop.f32.mrf.mxu0
  %v3338 = vadd.f32 %v3242, %v3337
  %v3339 = vpop.f32.mrf.mxu0
  %3340 = vmatprep.mubr.f32.mxu0 %v3219
  %3341 = vmatmul.mubr.f32.gmra.mxu0 %v3218
  %v3342 = vpop.f32.mrf.mxu0
  %v3343 = vadd.f32 %v3247, %v3342
  %v3344 = vpop.f32.mrf.mxu0
  %3345 = vdwg.mxu0
  %3346 = vmatprep.subr.mxu0 0.0
  %3347 = vmatpush1.msra.mxu0 %v2944
  %3348 = vmatprep.subr.mxu0 0.0
  %3349 = vmatpush1.msra.mxu0 %v2939
  %3350 = vmatprep.subr.mxu0 0.0
  %3351 = vmatpush1.msra.mxu0 %v2934
  %3352 = vmatprep.subr.mxu0 0.0
  %3353 = vmatpush1.msra.mxu0 %v2929
  %3354 = vmatprep.subr.mxu0 0.0
  %3355 = vmatpush1.msra.mxu0 %v2924
  %3356 = vmatprep.subr.mxu0 0.0
  %3357 = vmatpush1.msra.mxu0 %v2919
  %3358 = vmatprep.subr.mxu0 0.0
  %3359 = vmatpush1.msra.mxu0 %v2914
  %3360 = vmatprep.subr.mxu0 0.0
  %3361 = vmatpush1.msra.mxu0 %v2909
  %3362 = vmatprep.subr.mxu0 0.0
  %3363 = vmatpush1.msra.mxu0 %v2904
  %3364 = vmatprep.subr.mxu0 0.0
  %3365 = vmatpush1.msra.mxu0 %v2899
  %3366 = vmatprep.subr.mxu0 0.0
  %3367 = vmatpush1.msra.mxu0 %v2894
  %3368 = vmatprep.subr.mxu0 0.0
  %3369 = vmatpush1.msra.mxu0 %v2889
  %3370 = vmatprep.subr.mxu0 0.0
  %3371 = vmatpush1.msra.mxu0 %v2884
  %3372 = vmatprep.subr.mxu0 0.0
  %3373 = vmatpush1.msra.mxu0 %v2879
  %3374 = vmatprep.subr.mxu0 0.0
  %3375 = vmatpush1.msra.mxu0 %v2874
  %3376 = vmatprep.subr.mxu0 0.0
  %3377 = vmatpush1.msra.mxu0 %v2869
  %3378 = vmatprep.subr.mxu0 0.0
  %3379 = vmatpush2.msra.mxu0 %v3024
  %3380 = vmatprep.subr.mxu0 0.0
  %3381 = vmatpush2.msra.mxu0 %v3019
  %3382 = vmatprep.subr.mxu0 0.0
  %3383 = vmatpush2.msra.mxu0 %v3014
  %3384 = vmatprep.subr.mxu0 0.0
  %3385 = vmatpush2.msra.mxu0 %v3009
  %3386 = vmatprep.subr.mxu0 0.0
  %3387 = vmatpush2.msra.mxu0 %v3004
  %3388 = vmatprep.subr.mxu0 0.0
  %3389 = vmatpush2.msra.mxu0 %v2999
  %3390 = vmatprep.subr.mxu0 0.0
  %3391 = vmatpush2.msra.mxu0 %v2994
  %3392 = vmatprep.subr.mxu0 0.0
  %3393 = vmatpush2.msra.mxu0 %v2989
  %3394 = vmatprep.subr.mxu0 0.0
  %3395 = vmatpush2.msra.mxu0 %v2984
  %3396 = vmatprep.subr.mxu0 0.0
  %3397 = vmatpush2.msra.mxu0 %v2979
  %3398 = vmatprep.subr.mxu0 0.0
  %3399 = vmatpush2.msra.mxu0 %v2974
  %3400 = vmatprep.subr.mxu0 0.0
  %3401 = vmatpush2.msra.mxu0 %v2969
  %3402 = vmatprep.subr.mxu0 0.0
  %3403 = vmatpush2.msra.mxu0 %v2964
  %3404 = vmatprep.subr.mxu0 0.0
  %3405 = vmatpush2.msra.mxu0 %v2959
  %3406 = vmatprep.subr.mxu0 0.0
  %3407 = vmatpush2.msra.mxu0 %v2954
  %3408 = vmatprep.subr.mxu0 0.0
  %3409 = vmatpush2.msra.mxu0 %v2949
  %3410 = vmatprep.mubr.f32.mxu0 %v3200
  %3411 = vmatmul.mubr.f32.gmra.mxu0 %v3199
  %v3412 = vpop.f32.mrf.mxu0
  %v3413 = vadd.f32 %v3328, %v3412
  %v3414 = vpop.f32.mrf.mxu0
  %3415 = vmatprep.mubr.f32.mxu0 %v3207
  %3416 = vmatmul.mubr.f32.gmra.mxu0 %v3206
  %v3417 = vpop.f32.mrf.mxu0
  %v3418 = vadd.f32 %v3333, %v3417
  %v3419 = vpop.f32.mrf.mxu0
  %3420 = vmatprep.mubr.f32.mxu0 %v3214
  %3421 = vmatmul.mubr.f32.gmra.mxu0 %v3213
  %v3422 = vpop.f32.mrf.mxu0
  %v3423 = vadd.f32 %v3338, %v3422
  %v3424 = vpop.f32.mrf.mxu0
  %3425 = vmatprep.mubr.f32.mxu0 %v3221
  %3426 = vmatmul.mubr.f32.gmra.mxu0 %v3220
  %v3427 = vpop.f32.mrf.mxu0
  %v3428 = vadd.f32 %v3343, %v3427
  %v3429 = vpop.f32.mrf.mxu0
  %3430 = vdwg.mxu0
  %3431 = vmatprep.subr.mxu0 0.0
  %3432 = vmatpush1.msra.mxu0 %v3104
  %3433 = vmatprep.subr.mxu0 0.0
  %3434 = vmatpush1.msra.mxu0 %v3099
  %3435 = vmatprep.subr.mxu0 0.0
  %3436 = vmatpush1.msra.mxu0 %v3094
  %3437 = vmatprep.subr.mxu0 0.0
  %3438 = vmatpush1.msra.mxu0 %v3089
  %3439 = vmatprep.subr.mxu0 0.0
  %3440 = vmatpush1.msra.mxu0 %v3084
  %3441 = vmatprep.subr.mxu0 0.0
  %3442 = vmatpush1.msra.mxu0 %v3079
  %3443 = vmatprep.subr.mxu0 0.0
  %3444 = vmatpush1.msra.mxu0 %v3074
  %3445 = vmatprep.subr.mxu0 0.0
  %3446 = vmatpush1.msra.mxu0 %v3069
  %3447 = vmatprep.subr.mxu0 0.0
  %3448 = vmatpush1.msra.mxu0 %v3064
  %3449 = vmatprep.subr.mxu0 0.0
  %3450 = vmatpush1.msra.mxu0 %v3059
  %3451 = vmatprep.subr.mxu0 0.0
  %3452 = vmatpush1.msra.mxu0 %v3054
  %3453 = vmatprep.subr.mxu0 0.0
  %3454 = vmatpush1.msra.mxu0 %v3049
  %3455 = vmatprep.subr.mxu0 0.0
  %3456 = vmatpush1.msra.mxu0 %v3044
  %3457 = vmatprep.subr.mxu0 0.0
  %3458 = vmatpush1.msra.mxu0 %v3039
  %3459 = vmatprep.subr.mxu0 0.0
  %3460 = vmatpush1.msra.mxu0 %v3034
  %3461 = vmatprep.subr.mxu0 0.0
  %3462 = vmatpush1.msra.mxu0 %v3029
  %3463 = vmatprep.subr.mxu0 0.0
  %3464 = vmatpush2.msra.mxu0 %v3184
  %3465 = vmatprep.subr.mxu0 0.0
  %3466 = vmatpush2.msra.mxu0 %v3179
  %3467 = vmatprep.subr.mxu0 0.0
  %3468 = vmatpush2.msra.mxu0 %v3174
  %3469 = vmatprep.subr.mxu0 0.0
  %3470 = vmatpush2.msra.mxu0 %v3169
  %3471 = vmatprep.subr.mxu0 0.0
  %3472 = vmatpush2.msra.mxu0 %v3164
  %3473 = vmatprep.subr.mxu0 0.0
  %3474 = vmatpush2.msra.mxu0 %v3159
  %3475 = vmatprep.subr.mxu0 0.0
  %3476 = vmatpush2.msra.mxu0 %v3154
  %3477 = vmatprep.subr.mxu0 0.0
  %3478 = vmatpush2.msra.mxu0 %v3149
  %3479 = vmatprep.subr.mxu0 0.0
  %3480 = vmatpush2.msra.mxu0 %v3144
  %3481 = vmatprep.subr.mxu0 0.0
  %3482 = vmatpush2.msra.mxu0 %v3139
  %3483 = vmatprep.subr.mxu0 0.0
  %3484 = vmatpush2.msra.mxu0 %v3134
  %3485 = vmatprep.subr.mxu0 0.0
  %3486 = vmatpush2.msra.mxu0 %v3129
  %3487 = vmatprep.subr.mxu0 0.0
  %3488 = vmatpush2.msra.mxu0 %v3124
  %3489 = vmatprep.subr.mxu0 0.0
  %3490 = vmatpush2.msra.mxu0 %v3119
  %3491 = vmatprep.subr.mxu0 0.0
  %3492 = vmatpush2.msra.mxu0 %v3114
  %3493 = vmatprep.subr.mxu0 0.0
  %3494 = vmatpush2.msra.mxu0 %v3109
  %3495 = vmatprep.mubr.f32.mxu0 %v3202
  %3496 = vmatmul.mubr.f32.gmra.mxu0 %v3201
  %v3497 = vpop.f32.mrf.mxu0
  %v3498 = vadd.f32 %v3413, %v3497
  %v3499 = vpop.f32.mrf.mxu0
  %3500 = vmatprep.mubr.f32.mxu0 %v3209
  %3501 = vmatmul.mubr.f32.gmra.mxu0 %v3208
  %v3502 = vpop.f32.mrf.mxu0
  %v3503 = vadd.f32 %v3418, %v3502
  %v3504 = vpop.f32.mrf.mxu0
  %3505 = vmatprep.mubr.f32.mxu0 %v3216
  %3506 = vmatmul.mubr.f32.gmra.mxu0 %v3215
  %v3507 = vpop.f32.mrf.mxu0
  %v3508 = vadd.f32 %v3423, %v3507
  %v3509 = vpop.f32.mrf.mxu0
  %3510 = vmatprep.mubr.f32.mxu0 %v3223
  %3511 = vmatmul.mubr.f32.gmra.mxu0 %v3222
  %v3512 = vpop.f32.mrf.mxu0
  %v3513 = vadd.f32 %v3428, %v3512
  %v3514 = vpop.f32.mrf.mxu0
  %3515 = vdwg.mxu0
  %3516 = vmatprep.subr.mxu0 0.0
  %3517 = vmatpush1.msra.mxu0 0.0
  %3518 = vmatprep.subr.mxu0 0.0
  %3519 = vmatpush1.msra.mxu0 0.0
  %3520 = vmatprep.subr.mxu0 0.0
  %3521 = vmatpush1.msra.mxu0 0.0
  %3522 = vmatprep.subr.mxu0 0.0
  %3523 = vmatpush1.msra.mxu0 0.0
  %3524 = vmatprep.subr.mxu0 0.0
  %3525 = vmatpush1.msra.mxu0 0.0
  %3526 = vmatprep.subr.mxu0 0.0
  %3527 = vmatpush1.msra.mxu0 0.0
  %3528 = vmatprep.subr.mxu0 0.0
  %3529 = vmatpush1.msra.mxu0 0.0
  %3530 = vmatprep.subr.mxu0 0.0
  %3531 = vmatpush1.msra.mxu0 0.0
  %3532 = vmatprep.subr.mxu0 0.0
  %3533 = vmatpush1.msra.mxu0 0.0
  %3534 = vmatprep.subr.mxu0 0.0
  %3535 = vmatpush1.msra.mxu0 0.0
  %3536 = vmatprep.subr.mxu0 0.0
  %3537 = vmatpush1.msra.mxu0 0.0
  %3538 = vmatprep.subr.mxu0 0.0
  %3539 = vmatpush1.msra.mxu0 0.0
  %3540 = vmatprep.subr.mxu0 0.0
  %3541 = vmatpush1.msra.mxu0 0.0
  %3542 = vmatprep.subr.mxu0 0.0
  %3543 = vmatpush1.msra.mxu0 0.0
  %3544 = vmatprep.subr.mxu0 0.0
  %3545 = vmatpush1.msra.mxu0 %v3194
  %3546 = vmatprep.subr.mxu0 0.0
  %3547 = vmatpush1.msra.mxu0 %v3189
  %3548 = vmatprep.subr.mxu0 0.0
  %3549 = vmatpush2.msra.mxu0 0.0
  %3550 = vmatprep.subr.mxu0 0.0
  %3551 = vmatpush2.msra.mxu0 0.0
  %3552 = vmatprep.subr.mxu0 0.0
  %3553 = vmatpush2.msra.mxu0 0.0
  %3554 = vmatprep.subr.mxu0 0.0
  %3555 = vmatpush2.msra.mxu0 0.0
  %3556 = vmatprep.subr.mxu0 0.0
  %3557 = vmatpush2.msra.mxu0 0.0
  %3558 = vmatprep.subr.mxu0 0.0
  %3559 = vmatpush2.msra.mxu0 0.0
  %3560 = vmatprep.subr.mxu0 0.0
  %3561 = vmatpush2.msra.mxu0 0.0
  %3562 = vmatprep.subr.mxu0 0.0
  %3563 = vmatpush2.msra.mxu0 0.0
  %3564 = vmatprep.subr.mxu0 0.0
  %3565 = vmatpush2.msra.mxu0 0.0
  %3566 = vmatprep.subr.mxu0 0.0
  %3567 = vmatpush2.msra.mxu0 0.0
  %3568 = vmatprep.subr.mxu0 0.0
  %3569 = vmatpush2.msra.mxu0 0.0
  %3570 = vmatprep.subr.mxu0 0.0
  %3571 = vmatpush2.msra.mxu0 0.0
  %3572 = vmatprep.subr.mxu0 0.0
  %3573 = vmatpush2.msra.mxu0 0.0
  %3574 = vmatprep.subr.mxu0 0.0
  %3575 = vmatpush2.msra.mxu0 0.0
  %3576 = vmatprep.subr.mxu0 0.0
  %3577 = vmatpush2.msra.mxu0 0.0
  %3578 = vmatprep.subr.mxu0 0.0
  %3579 = vmatpush2.msra.mxu0 0.0
  %3580 = vmatprep.mubr.f32.mxu0 0.0
  %3581 = vmatmul.mubr.f32.gmra.mxu0 %v3250
  %v3582 = vpop.f32.mrf.mxu0
  %v3583 = vadd.f32 %v3498, %v3582
  %v3584 = vpop.f32.mrf.mxu0
  %3585 = vmatprep.mubr.f32.mxu0 0.0
  %3586 = vmatmul.mubr.f32.gmra.mxu0 %v3253
  %v3587 = vpop.f32.mrf.mxu0
  %v3588 = vadd.f32 %v3503, %v3587
  %v3589 = vpop.f32.mrf.mxu0
  %3590 = vmatprep.mubr.f32.mxu0 0.0
  %3591 = vmatmul.mubr.f32.gmra.mxu0 %v3256
  %v3592 = vpop.f32.mrf.mxu0
  %v3593 = vadd.f32 %v3508, %v3592
  %v3594 = vpop.f32.mrf.mxu0
  %3595 = vmatprep.mubr.f32.mxu0 0.0
  %3596 = vmatmul.mubr.f32.gmra.mxu0 %v3259
  %v3597 = vpop.f32.mrf.mxu0
  %v3598 = vadd.f32 %v3513, %v3597
  %v3599 = vpop.f32.mrf.mxu0
  %3600 = vdwg.mxu0
  %v3601 = vmax.f32 %v3583, 0.0
  %v3602 = vmax.f32 %v3588, 0.0
  %v3603 = vmax.f32 %v3593, 0.0
  %v3604 = vmax.f32 %v3598, 0.0
  %v3605 = vld [vmem:[%s11] sm:$0x3]
  %vm3606 = vcmask 15360
  %v3608 = vsel %vm3606, %v3601, 0
  %v3611 = vsel %vm3606, %v3602, 0
  %v3614 = vsel %vm3606, %v3603, 0
  %v3617 = vsel %vm3606, %v3604, 0
  %v3620 = vsel %vm2638, %v3605, 0
  %3622 = vmatprep.subr.mxu0 0.0
  %3623 = vmatpush1.msra.mxu0 0.0
  %3624 = vmatprep.subr.mxu0 0.0
  %3625 = vmatpush1.msra.mxu0 0.0
  %3626 = vmatprep.subr.mxu0 0.0
  %3627 = vmatpush1.msra.mxu0 0.0
  %3628 = vmatprep.subr.mxu0 0.0
  %3629 = vmatpush1.msra.mxu0 0.0
  %3630 = vmatprep.subr.mxu0 0.0
  %3631 = vmatpush1.msra.mxu0 0.0
  %3632 = vmatprep.subr.mxu0 0.0
  %3633 = vmatpush1.msra.mxu0 0.0
  %3634 = vmatprep.subr.mxu0 0.0
  %3635 = vmatpush1.msra.mxu0 0.0
  %3636 = vmatprep.subr.mxu0 0.0
  %3637 = vmatpush1.msra.mxu0 0.0
  %3638 = vmatprep.subr.mxu0 0.0
  %3639 = vmatpush1.msra.mxu0 0.0
  %3640 = vmatprep.subr.mxu0 0.0
  %3641 = vmatpush1.msra.mxu0 0.0
  %3642 = vmatprep.subr.mxu0 0.0
  %3643 = vmatpush1.msra.mxu0 0.0
  %3644 = vmatprep.subr.mxu0 0.0
  %3645 = vmatpush1.msra.mxu0 0.0
  %3646 = vmatprep.subr.mxu0 0.0
  %3647 = vmatpush1.msra.mxu0 0.0
  %3648 = vmatprep.subr.mxu0 0.0
  %3649 = vmatpush1.msra.mxu0 0.0
  %3650 = vmatprep.subr.mxu0 0.0
  %3651 = vmatpush1.msra.mxu0 0.0
  %3652 = vmatprep.subr.mxu0 0.0
  %3653 = vmatpush1.msra.mxu0 %v3620
  %3654 = vmatprep.subr.mxu0 0.0
  %3655 = vmatpush2.msra.mxu0 0.0
  %3656 = vmatprep.subr.mxu0 0.0
  %3657 = vmatpush2.msra.mxu0 0.0
  %3658 = vmatprep.subr.mxu0 0.0
  %3659 = vmatpush2.msra.mxu0 0.0
  %3660 = vmatprep.subr.mxu0 0.0
  %3661 = vmatpush2.msra.mxu0 0.0
  %3662 = vmatprep.subr.mxu0 0.0
  %3663 = vmatpush2.msra.mxu0 0.0
  %3664 = vmatprep.subr.mxu0 0.0
  %3665 = vmatpush2.msra.mxu0 0.0
  %3666 = vmatprep.subr.mxu0 0.0
  %3667 = vmatpush2.msra.mxu0 0.0
  %3668 = vmatprep.subr.mxu0 0.0
  %3669 = vmatpush2.msra.mxu0 0.0
  %3670 = vmatprep.subr.mxu0 0.0
  %3671 = vmatpush2.msra.mxu0 0.0
  %3672 = vmatprep.subr.mxu0 0.0
  %3673 = vmatpush2.msra.mxu0 0.0
  %3674 = vmatprep.subr.mxu0 0.0
  %3675 = vmatpush2.msra.mxu0 0.0
  %3676 = vmatprep.subr.mxu0 0.0
  %3677 = vmatpush2.msra.mxu0 0.0
  %3678 = vmatprep.subr.mxu0 0.0
  %3679 = vmatpush2.msra.mxu0 0.0
  %3680 = vmatprep.subr.mxu0 0.0
  %3681 = vmatpush2.msra.mxu0 0.0
  %3682 = vmatprep.subr.mxu0 0.0
  %3683 = vmatpush2.msra.mxu0 0.0
  %3684 = vmatprep.subr.mxu0 0.0
  %3685 = vmatpush2.msra.mxu0 0.0
  %3686 = vmatprep.mubr.f32.mxu0 0.0
  %3687 = vmatmul.mubr.f32.gmra.mxu0 %v3608
  %v3688 = vpop.f32.mrf.mxu0
  %v3689 = vadd.f32 0.0, %v3688
  %v3690 = vpop.f32.mrf.mxu0
  %3691 = vmatprep.mubr.f32.mxu0 0.0
  %3692 = vmatmul.mubr.f32.gmra.mxu0 %v3611
  %v3693 = vpop.f32.mrf.mxu0
  %v3694 = vadd.f32 0.0, %v3693
  %v3695 = vpop.f32.mrf.mxu0
  %3696 = vmatprep.mubr.f32.mxu0 0.0
  %3697 = vmatmul.mubr.f32.gmra.mxu0 %v3614
  %v3698 = vpop.f32.mrf.mxu0
  %v3699 = vadd.f32 0.0, %v3698
  %v3700 = vpop.f32.mrf.mxu0
  %3701 = vmatprep.mubr.f32.mxu0 0.0
  %3702 = vmatmul.mubr.f32.gmra.mxu0 %v3617
  %v3703 = vpop.f32.mrf.mxu0
  %v3704 = vadd.f32 0.0, %v3703
  %v3705 = vpop.f32.mrf.mxu0
  %3706 = vdwg.mxu0
  %v3707 = vld [vmem:[%s12] sm:$0xff]
  %v3708 = vld [vmem:[%s12 + $0x8] sm:$0xff]
  %v3709 = vlaneseq
  %v3710 = vshrl.u32 %v3709, 7
  %v3711 = vsub.s32 0, %v3710
  %v3712 = vrot.slane %v3689, %v3711
  %v3713 = vmul.f32 %v3712, %v3707
  %v3714 = vmul.f32 %v3712, %v3708
  %v3715 = vadd.f32 %v3713, 0.0
  %v3716 = vadd.f32 %v3714, 0.0
  %s3717 = scalar_lea.vmem %s12, 16
  %v3718 = vld [vmem:[%s3717] sm:$0xff]
  %v3719 = vld [vmem:[%s3717 + $0x8] sm:$0xff]
  %v3720 = vlaneseq
  %v3721 = vshrl.u32 %v3720, 7
  %v3722 = vsub.s32 1, %v3721
  %v3723 = vrot.slane %v3689, %v3722
  %v3724 = vmul.f32 %v3723, %v3718
  %v3725 = vmul.f32 %v3723, %v3719
  %v3726 = vadd.f32 %v3715, %v3724
  %v3727 = vadd.f32 %v3716, %v3725
  %s3728 = scalar_lea.vmem %s12, 32
  %v3729 = vld [vmem:[%s3728] sm:$0xff]
  %v3730 = vld [vmem:[%s3728 + $0x8] sm:$0xff]
  %v3731 = vlaneseq
  %v3732 = vshrl.u32 %v3731, 7
  %v3733 = vsub.s32 2, %v3732
  %v3734 = vrot.slane %v3689, %v3733
  %v3735 = vmul.f32 %v3734, %v3729
  %v3736 = vmul.f32 %v3734, %v3730
  %v3737 = vadd.f32 %v3726, %v3735
  %v3738 = vadd.f32 %v3727, %v3736
  %s3739 = scalar_lea.vmem %s12, 48
  %v3740 = vld [vmem:[%s3739] sm:$0xff]
  %v3741 = vld [vmem:[%s3739 + $0x8] sm:$0xff]
  %v3742 = vlaneseq
  %v3743 = vshrl.u32 %v3742, 7
  %v3744 = vsub.s32 3, %v3743
  %v3745 = vrot.slane %v3689, %v3744
  %v3746 = vmul.f32 %v3745, %v3740
  %v3747 = vmul.f32 %v3745, %v3741
  %v3748 = vadd.f32 %v3737, %v3746
  %v3749 = vadd.f32 %v3738, %v3747
  %s3750 = scalar_lea.vmem %s12, 64
  %v3751 = vld [vmem:[%s3750] sm:$0xff]
  %v3752 = vld [vmem:[%s3750 + $0x8] sm:$0xff]
  %v3753 = vlaneseq
  %v3754 = vshrl.u32 %v3753, 7
  %v3755 = vsub.s32 4, %v3754
  %v3756 = vrot.slane %v3689, %v3755
  %v3757 = vmul.f32 %v3756, %v3751
  %v3758 = vmul.f32 %v3756, %v3752
  %v3759 = vadd.f32 %v3748, %v3757
  %v3760 = vadd.f32 %v3749, %v3758
  %s3761 = scalar_lea.vmem %s12, 80
  %v3762 = vld [vmem:[%s3761] sm:$0xff]
  %v3763 = vld [vmem:[%s3761 + $0x8] sm:$0xff]
  %v3764 = vlaneseq
  %v3765 = vshrl.u32 %v3764, 7
  %v3766 = vsub.s32 5, %v3765
  %v3767 = vrot.slane %v3689, %v3766
  %v3768 = vmul.f32 %v3767, %v3762
  %v3769 = vmul.f32 %v3767, %v3763
  %v3770 = vadd.f32 %v3759, %v3768
  %v3771 = vadd.f32 %v3760, %v3769
  %s3772 = scalar_lea.vmem %s12, 96
  %v3773 = vld [vmem:[%s3772] sm:$0xff]
  %v3774 = vld [vmem:[%s3772 + $0x8] sm:$0xff]
  %v3775 = vlaneseq
  %v3776 = vshrl.u32 %v3775, 7
  %v3777 = vsub.s32 6, %v3776
  %v3778 = vrot.slane %v3689, %v3777
  %v3779 = vmul.f32 %v3778, %v3773
  %v3780 = vmul.f32 %v3778, %v3774
  %v3781 = vadd.f32 %v3770, %v3779
  %v3782 = vadd.f32 %v3771, %v3780
  %s3783 = scalar_lea.vmem %s12, 112
  %v3784 = vld [vmem:[%s3783] sm:$0xff]
  %v3785 = vld [vmem:[%s3783 + $0x8] sm:$0xff]
  %v3786 = vlaneseq
  %v3787 = vshrl.u32 %v3786, 7
  %v3788 = vsub.s32 7, %v3787
  %v3789 = vrot.slane %v3689, %v3788
  %v3790 = vmul.f32 %v3789, %v3784
  %v3791 = vmul.f32 %v3789, %v3785
  %v3792 = vadd.f32 %v3781, %v3790
  %v3793 = vadd.f32 %v3782, %v3791
  %s3794 = scalar_lea.vmem %s12, 128
  %v3795 = vld [vmem:[%s3794] sm:$0xff]
  %v3796 = vld [vmem:[%s3794 + $0x8] sm:$0xff]
  %v3797 = vlaneseq
  %v3798 = vshrl.u32 %v3797, 7
  %v3799 = vsub.s32 0, %v3798
  %v3800 = vrot.slane %v3694, %v3799
  %v3801 = vmul.f32 %v3800, %v3795
  %v3802 = vmul.f32 %v3800, %v3796
  %v3803 = vadd.f32 %v3792, %v3801
  %v3804 = vadd.f32 %v3793, %v3802
  %s3805 = scalar_lea.vmem %s12, 144
  %v3806 = vld [vmem:[%s3805] sm:$0xff]
  %v3807 = vld [vmem:[%s3805 + $0x8] sm:$0xff]
  %v3808 = vlaneseq
  %v3809 = vshrl.u32 %v3808, 7
  %v3810 = vsub.s32 1, %v3809
  %v3811 = vrot.slane %v3694, %v3810
  %v3812 = vmul.f32 %v3811, %v3806
  %v3813 = vmul.f32 %v3811, %v3807
  %v3814 = vadd.f32 %v3803, %v3812
  %v3815 = vadd.f32 %v3804, %v3813
  %s3816 = scalar_lea.vmem %s12, 160
  %v3817 = vld [vmem:[%s3816] sm:$0xff]
  %v3818 = vld [vmem:[%s3816 + $0x8] sm:$0xff]
  %v3819 = vlaneseq
  %v3820 = vshrl.u32 %v3819, 7
  %v3821 = vsub.s32 2, %v3820
  %v3822 = vrot.slane %v3694, %v3821
  %v3823 = vmul.f32 %v3822, %v3817
  %v3824 = vmul.f32 %v3822, %v3818
  %v3825 = vadd.f32 %v3814, %v3823
  %v3826 = vadd.f32 %v3815, %v3824
  %s3827 = scalar_lea.vmem %s12, 176
  %v3828 = vld [vmem:[%s3827] sm:$0xff]
  %v3829 = vld [vmem:[%s3827 + $0x8] sm:$0xff]
  %v3830 = vlaneseq
  %v3831 = vshrl.u32 %v3830, 7
  %v3832 = vsub.s32 3, %v3831
  %v3833 = vrot.slane %v3694, %v3832
  %v3834 = vmul.f32 %v3833, %v3828
  %v3835 = vmul.f32 %v3833, %v3829
  %v3836 = vadd.f32 %v3825, %v3834
  %v3837 = vadd.f32 %v3826, %v3835
  %s3838 = scalar_lea.vmem %s12, 192
  %v3839 = vld [vmem:[%s3838] sm:$0xff]
  %v3840 = vld [vmem:[%s3838 + $0x8] sm:$0xff]
  %v3841 = vlaneseq
  %v3842 = vshrl.u32 %v3841, 7
  %v3843 = vsub.s32 4, %v3842
  %v3844 = vrot.slane %v3694, %v3843
  %v3845 = vmul.f32 %v3844, %v3839
  %v3846 = vmul.f32 %v3844, %v3840
  %v3847 = vadd.f32 %v3836, %v3845
  %v3848 = vadd.f32 %v3837, %v3846
  %s3849 = scalar_lea.vmem %s12, 208
  %v3850 = vld [vmem:[%s3849] sm:$0xff]
  %v3851 = vld [vmem:[%s3849 + $0x8] sm:$0xff]
  %v3852 = vlaneseq
  %v3853 = vshrl.u32 %v3852, 7
  %v3854 = vsub.s32 5, %v3853
  %v3855 = vrot.slane %v3694, %v3854
  %v3856 = vmul.f32 %v3855, %v3850
  %v3857 = vmul.f32 %v3855, %v3851
  %v3858 = vadd.f32 %v3847, %v3856
  %v3859 = vadd.f32 %v3848, %v3857
  %s3860 = scalar_lea.vmem %s12, 224
  %v3861 = vld [vmem:[%s3860] sm:$0xff]
  %v3862 = vld [vmem:[%s3860 + $0x8] sm:$0xff]
  %v3863 = vlaneseq
  %v3864 = vshrl.u32 %v3863, 7
  %v3865 = vsub.s32 6, %v3864
  %v3866 = vrot.slane %v3694, %v3865
  %v3867 = vmul.f32 %v3866, %v3861
  %v3868 = vmul.f32 %v3866, %v3862
  %v3869 = vadd.f32 %v3858, %v3867
  %v3870 = vadd.f32 %v3859, %v3868
  %s3871 = scalar_lea.vmem %s12, 240
  %v3872 = vld [vmem:[%s3871] sm:$0xff]
  %v3873 = vld [vmem:[%s3871 + $0x8] sm:$0xff]
  %v3874 = vlaneseq
  %v3875 = vshrl.u32 %v3874, 7
  %v3876 = vsub.s32 7, %v3875
  %v3877 = vrot.slane %v3694, %v3876
  %v3878 = vmul.f32 %v3877, %v3872
  %v3879 = vmul.f32 %v3877, %v3873
  %v3880 = vadd.f32 %v3869, %v3878
  %v3881 = vadd.f32 %v3870, %v3879
  %s3882 = scalar_lea.vmem %s12, 256
  %v3883 = vld [vmem:[%s3882] sm:$0xff]
  %v3884 = vld [vmem:[%s3882 + $0x8] sm:$0xff]
  %v3885 = vlaneseq
  %v3886 = vshrl.u32 %v3885, 7
  %v3887 = vsub.s32 0, %v3886
  %v3888 = vrot.slane %v3699, %v3887
  %v3889 = vmul.f32 %v3888, %v3883
  %v3890 = vmul.f32 %v3888, %v3884
  %v3891 = vadd.f32 %v3880, %v3889
  %v3892 = vadd.f32 %v3881, %v3890
  %s3893 = scalar_lea.vmem %s12, 272
  %v3894 = vld [vmem:[%s3893] sm:$0xff]
  %v3895 = vld [vmem:[%s3893 + $0x8] sm:$0xff]
  %v3896 = vlaneseq
  %v3897 = vshrl.u32 %v3896, 7
  %v3898 = vsub.s32 1, %v3897
  %v3899 = vrot.slane %v3699, %v3898
  %v3900 = vmul.f32 %v3899, %v3894
  %v3901 = vmul.f32 %v3899, %v3895
  %v3902 = vadd.f32 %v3891, %v3900
  %v3903 = vadd.f32 %v3892, %v3901
  %s3904 = scalar_lea.vmem %s12, 288
  %v3905 = vld [vmem:[%s3904] sm:$0xff]
  %v3906 = vld [vmem:[%s3904 + $0x8] sm:$0xff]
  %v3907 = vlaneseq
  %v3908 = vshrl.u32 %v3907, 7
  %v3909 = vsub.s32 2, %v3908
  %v3910 = vrot.slane %v3699, %v3909
  %v3911 = vmul.f32 %v3910, %v3905
  %v3912 = vmul.f32 %v3910, %v3906
  %v3913 = vadd.f32 %v3902, %v3911
  %v3914 = vadd.f32 %v3903, %v3912
  %s3915 = scalar_lea.vmem %s12, 304
  %v3916 = vld [vmem:[%s3915] sm:$0xff]
  %v3917 = vld [vmem:[%s3915 + $0x8] sm:$0xff]
  %v3918 = vlaneseq
  %v3919 = vshrl.u32 %v3918, 7
  %v3920 = vsub.s32 3, %v3919
  %v3921 = vrot.slane %v3699, %v3920
  %v3922 = vmul.f32 %v3921, %v3916
  %v3923 = vmul.f32 %v3921, %v3917
  %v3924 = vadd.f32 %v3913, %v3922
  %v3925 = vadd.f32 %v3914, %v3923
  %s3926 = scalar_lea.vmem %s12, 320
  %v3927 = vld [vmem:[%s3926] sm:$0xff]
  %v3928 = vld [vmem:[%s3926 + $0x8] sm:$0xff]
  %v3929 = vlaneseq
  %v3930 = vshrl.u32 %v3929, 7
  %v3931 = vsub.s32 4, %v3930
  %v3932 = vrot.slane %v3699, %v3931
  %v3933 = vmul.f32 %v3932, %v3927
  %v3934 = vmul.f32 %v3932, %v3928
  %v3935 = vadd.f32 %v3924, %v3933
  %v3936 = vadd.f32 %v3925, %v3934
  %s3937 = scalar_lea.vmem %s12, 336
  %v3938 = vld [vmem:[%s3937] sm:$0xff]
  %v3939 = vld [vmem:[%s3937 + $0x8] sm:$0xff]
  %v3940 = vlaneseq
  %v3941 = vshrl.u32 %v3940, 7
  %v3942 = vsub.s32 5, %v3941
  %v3943 = vrot.slane %v3699, %v3942
  %v3944 = vmul.f32 %v3943, %v3938
  %v3945 = vmul.f32 %v3943, %v3939
  %v3946 = vadd.f32 %v3935, %v3944
  %v3947 = vadd.f32 %v3936, %v3945
  %s3948 = scalar_lea.vmem %s12, 352
  %v3949 = vld [vmem:[%s3948] sm:$0xff]
  %v3950 = vld [vmem:[%s3948 + $0x8] sm:$0xff]
  %v3951 = vlaneseq
  %v3952 = vshrl.u32 %v3951, 7
  %v3953 = vsub.s32 6, %v3952
  %v3954 = vrot.slane %v3699, %v3953
  %v3955 = vmul.f32 %v3954, %v3949
  %v3956 = vmul.f32 %v3954, %v3950
  %v3957 = vadd.f32 %v3946, %v3955
  %v3958 = vadd.f32 %v3947, %v3956
  %s3959 = scalar_lea.vmem %s12, 368
  %v3960 = vld [vmem:[%s3959] sm:$0xff]
  %v3961 = vld [vmem:[%s3959 + $0x8] sm:$0xff]
  %v3962 = vlaneseq
  %v3963 = vshrl.u32 %v3962, 7
  %v3964 = vsub.s32 7, %v3963
  %v3965 = vrot.slane %v3699, %v3964
  %v3966 = vmul.f32 %v3965, %v3960
  %v3967 = vmul.f32 %v3965, %v3961
  %v3968 = vadd.f32 %v3957, %v3966
  %v3969 = vadd.f32 %v3958, %v3967
  %s3970 = scalar_lea.vmem %s12, 384
  %v3971 = vld [vmem:[%s3970] sm:$0xff]
  %v3972 = vld [vmem:[%s3970 + $0x8] sm:$0xff]
  %v3973 = vlaneseq
  %v3974 = vshrl.u32 %v3973, 7
  %v3975 = vsub.s32 0, %v3974
  %v3976 = vrot.slane %v3704, %v3975
  %v3977 = vmul.f32 %v3976, %v3971
  %v3978 = vmul.f32 %v3976, %v3972
  %v3979 = vadd.f32 %v3968, %v3977
  %v3980 = vadd.f32 %v3969, %v3978
  %s3981 = scalar_lea.vmem %s12, 400
  %v3982 = vld [vmem:[%s3981] sm:$0xff]
  %v3983 = vld [vmem:[%s3981 + $0x8] sm:$0xff]
  %v3984 = vlaneseq
  %v3985 = vshrl.u32 %v3984, 7
  %v3986 = vsub.s32 1, %v3985
  %v3987 = vrot.slane %v3704, %v3986
  %v3988 = vmul.f32 %v3987, %v3982
  %v3989 = vmul.f32 %v3987, %v3983
  %v3990 = vadd.f32 %v3979, %v3988
  %v3991 = vadd.f32 %v3980, %v3989
  %s3992 = scalar_lea.vmem %s12, 416
  %v3993 = vld [vmem:[%s3992] sm:$0xff]
  %v3994 = vld [vmem:[%s3992 + $0x8] sm:$0xff]
  %v3995 = vlaneseq
  %v3996 = vshrl.u32 %v3995, 7
  %v3997 = vsub.s32 2, %v3996
  %v3998 = vrot.slane %v3704, %v3997
  %v3999 = vmul.f32 %v3998, %v3993
  %v4000 = vmul.f32 %v3998, %v3994
  %v4001 = vadd.f32 %v3990, %v3999
  %v4002 = vadd.f32 %v3991, %v4000
  %s4003 = scalar_lea.vmem %s12, 432
  %v4004 = vld [vmem:[%s4003] sm:$0xff]
  %v4005 = vld [vmem:[%s4003 + $0x8] sm:$0xff]
  %v4006 = vlaneseq
  %v4007 = vshrl.u32 %v4006, 7
  %v4008 = vsub.s32 3, %v4007
  %v4009 = vrot.slane %v3704, %v4008
  %v4010 = vmul.f32 %v4009, %v4004
  %v4011 = vmul.f32 %v4009, %v4005
  %v4012 = vadd.f32 %v4001, %v4010
  %v4013 = vadd.f32 %v4002, %v4011
  %s4014 = scalar_lea.vmem %s12, 448
  %v4015 = vld [vmem:[%s4014] sm:$0xff]
  %v4016 = vld [vmem:[%s4014 + $0x8] sm:$0xff]
  %v4017 = vlaneseq
  %v4018 = vshrl.u32 %v4017, 7
  %v4019 = vsub.s32 4, %v4018
  %v4020 = vrot.slane %v3704, %v4019
  %v4021 = vmul.f32 %v4020, %v4015
  %v4022 = vmul.f32 %v4020, %v4016
  %v4023 = vadd.f32 %v4012, %v4021
  %v4024 = vadd.f32 %v4013, %v4022
  %s4025 = scalar_lea.vmem %s12, 464
  %v4026 = vld [vmem:[%s4025] sm:$0xff]
  %v4027 = vld [vmem:[%s4025 + $0x8] sm:$0xff]
  %v4028 = vlaneseq
  %v4029 = vshrl.u32 %v4028, 7
  %v4030 = vsub.s32 5, %v4029
  %v4031 = vrot.slane %v3704, %v4030
  %v4032 = vmul.f32 %v4031, %v4026
  %v4033 = vmul.f32 %v4031, %v4027
  %v4034 = vadd.f32 %v4023, %v4032
  %v4035 = vadd.f32 %v4024, %v4033
  %s4036 = scalar_lea.vmem %s12, 480
  %v4037 = vld [vmem:[%s4036] sm:$0xff]
  %v4038 = vld [vmem:[%s4036 + $0x8] sm:$0xff]
  %v4039 = vlaneseq
  %v4040 = vshrl.u32 %v4039, 7
  %v4041 = vsub.s32 6, %v4040
  %v4042 = vrot.slane %v3704, %v4041
  %v4043 = vmul.f32 %v4042, %v4037
  %v4044 = vmul.f32 %v4042, %v4038
  %v4045 = vadd.f32 %v4034, %v4043
  %v4046 = vadd.f32 %v4035, %v4044
  %s4047 = scalar_lea.vmem %s12, 496
  %v4048 = vld [vmem:[%s4047] sm:$0xff]
  %v4049 = vld [vmem:[%s4047 + $0x8] sm:$0xff]
  %v4050 = vlaneseq
  %v4051 = vshrl.u32 %v4050, 7
  %v4052 = vsub.s32 7, %v4051
  %v4053 = vrot.slane %v3704, %v4052
  %v4054 = vmul.f32 %v4053, %v4048
  %v4055 = vmul.f32 %v4053, %v4049
  %v4056 = vadd.f32 %v4045, %v4054
  %v4057 = vadd.f32 %v4046, %v4055
  %v4058 = vld [vmem:[%s13] sm:$0xff]
  %v4059 = vld [vmem:[%s13 + $0x8] sm:$0xff]
  %v4060 = vsel %vm1133, %v4056, 0.0
  %4061 = vadd.xlane.f32.xlu0 %v4060
  %v4062 = vpop.xlane.xlu0 %4061
  %v4063 = vsel %vm1133, %v4057, 0.0
  %4064 = vadd.xlane.f32.xlu0 %v4063
  %v4065 = vpop.xlane.xlu0 %4064
  %v4066 = vmul.f32 %v4062, %v1140
  %v4067 = vmul.f32 %v4065, %v1140
  %v4068 = vsub.f32 %v4056, %v4066
  %v4069 = vsub.f32 %v4057, %v4067
  %v4070 = vmul.f32 %v4068, %v4068
  %v4071 = vmul.f32 %v4069, %v4069
  %v4072 = vsel %vm1133, %v4070, 0.0
  %4073 = vadd.xlane.f32.xlu0 %v4072
  %v4074 = vpop.xlane.xlu0 %4073
  %v4075 = vsel %vm1133, %v4071, 0.0
  %4076 = vadd.xlane.f32.xlu0 %v4075
  %v4077 = vpop.xlane.xlu0 %4076
  %v4078 = vmul.f32 %v4074, %v1140
  %v4079 = vmul.f32 %v4077, %v1140
  %v4080 = vadd.f32 %v4078, 1e-05
  %v4081 = vadd.f32 %v4079, 1e-05
  %v4082 = vrsqrt.pop %v4080
  %v4083 = vrsqrt.pop %v4081
  %v4084 = vmul.f32 %v4058, %v4082
  %v4085 = vmul.f32 %v4059, %v4083
  %4087 = vset.pattern.permute.xlu0 0
  %4088 = vperm.xlu0 %4087, %v4084
  %v4089 = vpop.permute.xlu0 %4088
  %4092 = vset.pattern.permute.xlu0 0
  %4093 = vperm.xlu0 %4092, %v4085
  %v4094 = vpop.permute.xlu0 %4093
  %v4096 = vmul.f32 %v4068, %v4089
  %v4097 = vmul.f32 %v4069, %v4094
  %4099 = vset.pattern.permute.xlu0 1
  %4100 = vperm.xlu0 %4099, %v4058
  %v4101 = vpop.permute.xlu0 %4100
  %4104 = vset.pattern.permute.xlu0 1
  %4105 = vperm.xlu0 %4104, %v4059
  %v4106 = vpop.permute.xlu0 %4105
  %v4108 = vadd.f32 %v4096, %v4101
  %v4109 = vadd.f32 %v4097, %v4106
  %v4110 = vmax.f32 %v4108, 0.0
  %v4111 = vmax.f32 %v4109, 0.0
  %4114 = vrot.lane.b32.xlu0 %v4110, 120
  %v4115 = vpop.permute.xlu0 %4114
  %4116 = vrot.lane.b32.xlu0 %v4111, 120
  %v4117 = vpop.permute.xlu0 %4116
  %v4120 = vsel %vm1045, %v4115, 0.0
  %v4121 = vsel %vm1045, %v4117, 0.0
  %v4122 = vld [vmem:[%s15] sm:$0x1]
  %v4124 = vlaneseq
  %v4125 = vshrl.u32 %v4124, 7
  %v4126 = vsub.s32 0, %v4125
  %v4127 = vrot.slane %v4122, %v4126
  %v4129 = vmul.f32 %v4120, %v4127
  %v4130 = vmul.f32 %v4121, %v4127
  %v4131 = vld [vmem:[%s14] sm:$0xff]
  %4132 = vrot.lane.b32.xlu0 %v4110, 121
  %v4133 = vpop.permute.xlu0 %4132
  %4134 = vrot.lane.b32.xlu0 %v4111, 121
  %v4135 = vpop.permute.xlu0 %4134
  %v4138 = vsel %vm846, %v4133, 0.0
  %v4139 = vsel %vm846, %v4135, 0.0
  %s4140 = scalar_lea.vmem %s15, 1
  %v4141 = vld [vmem:[%s4140] sm:$0x1]
  %v4143 = vlaneseq
  %v4144 = vshrl.u32 %v4143, 7
  %v4145 = vsub.s32 0, %v4144
  %v4146 = vrot.slane %v4141, %v4145
  %v4148 = vmul.f32 %v4138, %v4146
  %v4149 = vmul.f32 %v4139, %v4146
  %s4150 = scalar_lea.vmem %s14, 8
  %v4151 = vld [vmem:[%s4150] sm:$0xff]
  %s4152 = scalar_lea.vmem %s15, 2
  %v4153 = vld [vmem:[%s4152] sm:$0x1]
  %v4155 = vlaneseq
  %v4156 = vshrl.u32 %v4155, 7
  %v4157 = vsub.s32 0, %v4156
  %v4158 = vrot.slane %v4153, %v4157
  %v4160 = vmul.f32 %v4138, %v4158
  %v4161 = vmul.f32 %v4139, %v4158
  %s4162 = scalar_lea.vmem %s14, 16
  %v4163 = vld [vmem:[%s4162] sm:$0xff]
  %v4165 = vsel %vm1285, %v4163, 0
  %4167 = vmatprep.subr.mxu0 0.0
  %4168 = vmatpush1.msra.mxu0 0.0
  %4169 = vmatprep.subr.mxu0 0.0
  %4170 = vmatpush1.msra.mxu0 0.0
  %4171 = vmatprep.subr.mxu0 0.0
  %4172 = vmatpush1.msra.mxu0 0.0
  %4173 = vmatprep.subr.mxu0 0.0
  %4174 = vmatpush1.msra.mxu0 0.0
  %4175 = vmatprep.subr.mxu0 0.0
  %4176 = vmatpush1.msra.mxu0 0.0
  %4177 = vmatprep.subr.mxu0 0.0
  %4178 = vmatpush1.msra.mxu0 0.0
  %4179 = vmatprep.subr.mxu0 0.0
  %4180 = vmatpush1.msra.mxu0 0.0
  %4181 = vmatprep.subr.mxu0 0.0
  %4182 = vmatpush1.msra.mxu0 0.0
  %4183 = vmatprep.subr.mxu0 0.0
  %4184 = vmatpush1.msra.mxu0 0.0
  %4185 = vmatprep.subr.mxu0 0.0
  %4186 = vmatpush1.msra.mxu0 0.0
  %4187 = vmatprep.subr.mxu0 0.0
  %4188 = vmatpush1.msra.mxu0 0.0
  %4189 = vmatprep.subr.mxu0 0.0
  %4190 = vmatpush1.msra.mxu0 0.0
  %4191 = vmatprep.subr.mxu0 0.0
  %4192 = vmatpush1.msra.mxu0 0.0
  %4193 = vmatprep.subr.mxu0 0.0
  %4194 = vmatpush1.msra.mxu0 0.0
  %4195 = vmatprep.subr.mxu0 0.0
  %4196 = vmatpush1.msra.mxu0 %v4161
  %4197 = vmatprep.subr.mxu0 0.0
  %4198 = vmatpush1.msra.mxu0 %v4160
  %4199 = vmatprep.subr.mxu0 0.0
  %4200 = vmatpush2.msra.mxu0 0.0
  %4201 = vmatprep.subr.mxu0 0.0
  %4202 = vmatpush2.msra.mxu0 0.0
  %4203 = vmatprep.subr.mxu0 0.0
  %4204 = vmatpush2.msra.mxu0 0.0
  %4205 = vmatprep.subr.mxu0 0.0
  %4206 = vmatpush2.msra.mxu0 0.0
  %4207 = vmatprep.subr.mxu0 0.0
  %4208 = vmatpush2.msra.mxu0 0.0
  %4209 = vmatprep.subr.mxu0 0.0
  %4210 = vmatpush2.msra.mxu0 0.0
  %4211 = vmatprep.subr.mxu0 0.0
  %4212 = vmatpush2.msra.mxu0 0.0
  %4213 = vmatprep.subr.mxu0 0.0
  %4214 = vmatpush2.msra.mxu0 0.0
  %4215 = vmatprep.subr.mxu0 0.0
  %4216 = vmatpush2.msra.mxu0 0.0
  %4217 = vmatprep.subr.mxu0 0.0
  %4218 = vmatpush2.msra.mxu0 0.0
  %4219 = vmatprep.subr.mxu0 0.0
  %4220 = vmatpush2.msra.mxu0 0.0
  %4221 = vmatprep.subr.mxu0 0.0
  %4222 = vmatpush2.msra.mxu0 0.0
  %4223 = vmatprep.subr.mxu0 0.0
  %4224 = vmatpush2.msra.mxu0 0.0
  %4225 = vmatprep.subr.mxu0 0.0
  %4226 = vmatpush2.msra.mxu0 0.0
  %4227 = vmatprep.subr.mxu0 0.0
  %4228 = vmatpush2.msra.mxu0 0.0
  %4229 = vmatprep.subr.mxu0 0.0
  %4230 = vmatpush2.msra.mxu0 0.0
  %4231 = vmatprep.mubr.f32.mxu0 0.0
  %4232 = vmatmul.mubr.f32.gmra.mxu0 %v4165
  %v4233 = vpop.f32.mrf.mxu0
  %v4234 = vadd.f32 0.0, %v4233
  %v4235 = vpop.f32.mrf.mxu0
  %4236 = vdwg.mxu0
  %v4238 = vsel %vm1285, %v4131, 0
  %4240 = vmatprep.subr.mxu0 0.0
  %4241 = vmatpush1.msra.mxu0 0.0
  %4242 = vmatprep.subr.mxu0 0.0
  %4243 = vmatpush1.msra.mxu0 0.0
  %4244 = vmatprep.subr.mxu0 0.0
  %4245 = vmatpush1.msra.mxu0 0.0
  %4246 = vmatprep.subr.mxu0 0.0
  %4247 = vmatpush1.msra.mxu0 0.0
  %4248 = vmatprep.subr.mxu0 0.0
  %4249 = vmatpush1.msra.mxu0 0.0
  %4250 = vmatprep.subr.mxu0 0.0
  %4251 = vmatpush1.msra.mxu0 0.0
  %4252 = vmatprep.subr.mxu0 0.0
  %4253 = vmatpush1.msra.mxu0 0.0
  %4254 = vmatprep.subr.mxu0 0.0
  %4255 = vmatpush1.msra.mxu0 0.0
  %4256 = vmatprep.subr.mxu0 0.0
  %4257 = vmatpush1.msra.mxu0 0.0
  %4258 = vmatprep.subr.mxu0 0.0
  %4259 = vmatpush1.msra.mxu0 0.0
  %4260 = vmatprep.subr.mxu0 0.0
  %4261 = vmatpush1.msra.mxu0 0.0
  %4262 = vmatprep.subr.mxu0 0.0
  %4263 = vmatpush1.msra.mxu0 0.0
  %4264 = vmatprep.subr.mxu0 0.0
  %4265 = vmatpush1.msra.mxu0 0.0
  %4266 = vmatprep.subr.mxu0 0.0
  %4267 = vmatpush1.msra.mxu0 0.0
  %4268 = vmatprep.subr.mxu0 0.0
  %4269 = vmatpush1.msra.mxu0 %v4130
  %4270 = vmatprep.subr.mxu0 0.0
  %4271 = vmatpush1.msra.mxu0 %v4129
  %4272 = vmatprep.subr.mxu0 0.0
  %4273 = vmatpush2.msra.mxu0 0.0
  %4274 = vmatprep.subr.mxu0 0.0
  %4275 = vmatpush2.msra.mxu0 0.0
  %4276 = vmatprep.subr.mxu0 0.0
  %4277 = vmatpush2.msra.mxu0 0.0
  %4278 = vmatprep.subr.mxu0 0.0
  %4279 = vmatpush2.msra.mxu0 0.0
  %4280 = vmatprep.subr.mxu0 0.0
  %4281 = vmatpush2.msra.mxu0 0.0
  %4282 = vmatprep.subr.mxu0 0.0
  %4283 = vmatpush2.msra.mxu0 0.0
  %4284 = vmatprep.subr.mxu0 0.0
  %4285 = vmatpush2.msra.mxu0 0.0
  %4286 = vmatprep.subr.mxu0 0.0
  %4287 = vmatpush2.msra.mxu0 0.0
  %4288 = vmatprep.subr.mxu0 0.0
  %4289 = vmatpush2.msra.mxu0 0.0
  %4290 = vmatprep.subr.mxu0 0.0
  %4291 = vmatpush2.msra.mxu0 0.0
  %4292 = vmatprep.subr.mxu0 0.0
  %4293 = vmatpush2.msra.mxu0 0.0
  %4294 = vmatprep.subr.mxu0 0.0
  %4295 = vmatpush2.msra.mxu0 0.0
  %4296 = vmatprep.subr.mxu0 0.0
  %4297 = vmatpush2.msra.mxu0 0.0
  %4298 = vmatprep.subr.mxu0 0.0
  %4299 = vmatpush2.msra.mxu0 0.0
  %4300 = vmatprep.subr.mxu0 0.0
  %4301 = vmatpush2.msra.mxu0 0.0
  %4302 = vmatprep.subr.mxu0 0.0
  %4303 = vmatpush2.msra.mxu0 0.0
  %4304 = vmatprep.mubr.f32.mxu0 0.0
  %4305 = vmatmul.mubr.f32.gmra.mxu0 %v4238
  %v4306 = vpop.f32.mrf.mxu0
  %v4307 = vadd.f32 %v4234, %v4306
  %v4308 = vpop.f32.mrf.mxu0
  %4309 = vdwg.mxu0
  %4310 = vrot.lane.b32.xlu0 %v4110, 127
  %v4311 = vpop.permute.xlu0 %4310
  %4312 = vrot.lane.b32.xlu0 %v4111, 127
  %v4313 = vpop.permute.xlu0 %4312
  %v4316 = vsel %vm459, %v4311, 0.0
  %v4317 = vsel %vm459, %v4313, 0.0
  %s4318 = scalar_lea.vmem %s15, 3
  %v4319 = vld [vmem:[%s4318] sm:$0x1]
  %v4321 = vlaneseq
  %v4322 = vshrl.u32 %v4321, 7
  %v4323 = vsub.s32 0, %v4322
  %v4324 = vrot.slane %v4319, %v4323
  %v4326 = vmul.f32 %v4316, %v4324
  %v4327 = vmul.f32 %v4317, %v4324
  %s4328 = scalar_lea.vmem %s14, 24
  %v4329 = vld [vmem:[%s4328] sm:$0xff]
  %s4330 = scalar_lea.vmem %s14, 32
  %v4331 = vld [vmem:[%s4330] sm:$0xff]
  %v4333 = vsel %vm1285, %v4331, 0
  %4335 = vmatprep.subr.mxu0 0.0
  %4336 = vmatpush1.msra.mxu0 0.0
  %4337 = vmatprep.subr.mxu0 0.0
  %4338 = vmatpush1.msra.mxu0 0.0
  %4339 = vmatprep.subr.mxu0 0.0
  %4340 = vmatpush1.msra.mxu0 0.0
  %4341 = vmatprep.subr.mxu0 0.0
  %4342 = vmatpush1.msra.mxu0 0.0
  %4343 = vmatprep.subr.mxu0 0.0
  %4344 = vmatpush1.msra.mxu0 0.0
  %4345 = vmatprep.subr.mxu0 0.0
  %4346 = vmatpush1.msra.mxu0 0.0
  %4347 = vmatprep.subr.mxu0 0.0
  %4348 = vmatpush1.msra.mxu0 0.0
  %4349 = vmatprep.subr.mxu0 0.0
  %4350 = vmatpush1.msra.mxu0 0.0
  %4351 = vmatprep.subr.mxu0 0.0
  %4352 = vmatpush1.msra.mxu0 0.0
  %4353 = vmatprep.subr.mxu0 0.0
  %4354 = vmatpush1.msra.mxu0 0.0
  %4355 = vmatprep.subr.mxu0 0.0
  %4356 = vmatpush1.msra.mxu0 0.0
  %4357 = vmatprep.subr.mxu0 0.0
  %4358 = vmatpush1.msra.mxu0 0.0
  %4359 = vmatprep.subr.mxu0 0.0
  %4360 = vmatpush1.msra.mxu0 0.0
  %4361 = vmatprep.subr.mxu0 0.0
  %4362 = vmatpush1.msra.mxu0 0.0
  %4363 = vmatprep.subr.mxu0 0.0
  %4364 = vmatpush1.msra.mxu0 %v4111
  %4365 = vmatprep.subr.mxu0 0.0
  %4366 = vmatpush1.msra.mxu0 %v4110
  %4367 = vmatprep.subr.mxu0 0.0
  %4368 = vmatpush2.msra.mxu0 0.0
  %4369 = vmatprep.subr.mxu0 0.0
  %4370 = vmatpush2.msra.mxu0 0.0
  %4371 = vmatprep.subr.mxu0 0.0
  %4372 = vmatpush2.msra.mxu0 0.0
  %4373 = vmatprep.subr.mxu0 0.0
  %4374 = vmatpush2.msra.mxu0 0.0
  %4375 = vmatprep.subr.mxu0 0.0
  %4376 = vmatpush2.msra.mxu0 0.0
  %4377 = vmatprep.subr.mxu0 0.0
  %4378 = vmatpush2.msra.mxu0 0.0
  %4379 = vmatprep.subr.mxu0 0.0
  %4380 = vmatpush2.msra.mxu0 0.0
  %4381 = vmatprep.subr.mxu0 0.0
  %4382 = vmatpush2.msra.mxu0 0.0
  %4383 = vmatprep.subr.mxu0 0.0
  %4384 = vmatpush2.msra.mxu0 0.0
  %4385 = vmatprep.subr.mxu0 0.0
  %4386 = vmatpush2.msra.mxu0 0.0
  %4387 = vmatprep.subr.mxu0 0.0
  %4388 = vmatpush2.msra.mxu0 0.0
  %4389 = vmatprep.subr.mxu0 0.0
  %4390 = vmatpush2.msra.mxu0 0.0
  %4391 = vmatprep.subr.mxu0 0.0
  %4392 = vmatpush2.msra.mxu0 0.0
  %4393 = vmatprep.subr.mxu0 0.0
  %4394 = vmatpush2.msra.mxu0 0.0
  %4395 = vmatprep.subr.mxu0 0.0
  %4396 = vmatpush2.msra.mxu0 0.0
  %4397 = vmatprep.subr.mxu0 0.0
  %4398 = vmatpush2.msra.mxu0 0.0
  %4399 = vmatprep.mubr.f32.mxu0 0.0
  %4400 = vmatmul.mubr.f32.gmra.mxu0 %v4333
  %v4401 = vpop.f32.mrf.mxu0
  %v4402 = vadd.f32 0.0, %v4401
  %v4403 = vpop.f32.mrf.mxu0
  %4404 = vdwg.mxu0
  %s4405 = scalar_lea.vmem %s14, 40
  %v4406 = vld [vmem:[%s4405] sm:$0xff]
  %v4408 = vsel %vm1285, %v4406, 0
  %4410 = vmatprep.subr.mxu0 0.0
  %4411 = vmatpush1.msra.mxu0 0.0
  %4412 = vmatprep.subr.mxu0 0.0
  %4413 = vmatpush1.msra.mxu0 0.0
  %4414 = vmatprep.subr.mxu0 0.0
  %4415 = vmatpush1.msra.mxu0 0.0
  %4416 = vmatprep.subr.mxu0 0.0
  %4417 = vmatpush1.msra.mxu0 0.0
  %4418 = vmatprep.subr.mxu0 0.0
  %4419 = vmatpush1.msra.mxu0 0.0
  %4420 = vmatprep.subr.mxu0 0.0
  %4421 = vmatpush1.msra.mxu0 0.0
  %4422 = vmatprep.subr.mxu0 0.0
  %4423 = vmatpush1.msra.mxu0 0.0
  %4424 = vmatprep.subr.mxu0 0.0
  %4425 = vmatpush1.msra.mxu0 0.0
  %4426 = vmatprep.subr.mxu0 0.0
  %4427 = vmatpush1.msra.mxu0 0.0
  %4428 = vmatprep.subr.mxu0 0.0
  %4429 = vmatpush1.msra.mxu0 0.0
  %4430 = vmatprep.subr.mxu0 0.0
  %4431 = vmatpush1.msra.mxu0 0.0
  %4432 = vmatprep.subr.mxu0 0.0
  %4433 = vmatpush1.msra.mxu0 0.0
  %4434 = vmatprep.subr.mxu0 0.0
  %4435 = vmatpush1.msra.mxu0 0.0
  %4436 = vmatprep.subr.mxu0 0.0
  %4437 = vmatpush1.msra.mxu0 0.0
  %4438 = vmatprep.subr.mxu0 0.0
  %4439 = vmatpush1.msra.mxu0 %v4111
  %4440 = vmatprep.subr.mxu0 0.0
  %4441 = vmatpush1.msra.mxu0 %v4110
  %4442 = vmatprep.subr.mxu0 0.0
  %4443 = vmatpush2.msra.mxu0 0.0
  %4444 = vmatprep.subr.mxu0 0.0
  %4445 = vmatpush2.msra.mxu0 0.0
  %4446 = vmatprep.subr.mxu0 0.0
  %4447 = vmatpush2.msra.mxu0 0.0
  %4448 = vmatprep.subr.mxu0 0.0
  %4449 = vmatpush2.msra.mxu0 0.0
  %4450 = vmatprep.subr.mxu0 0.0
  %4451 = vmatpush2.msra.mxu0 0.0
  %4452 = vmatprep.subr.mxu0 0.0
  %4453 = vmatpush2.msra.mxu0 0.0
  %4454 = vmatprep.subr.mxu0 0.0
  %4455 = vmatpush2.msra.mxu0 0.0
  %4456 = vmatprep.subr.mxu0 0.0
  %4457 = vmatpush2.msra.mxu0 0.0
  %4458 = vmatprep.subr.mxu0 0.0
  %4459 = vmatpush2.msra.mxu0 0.0
  %4460 = vmatprep.subr.mxu0 0.0
  %4461 = vmatpush2.msra.mxu0 0.0
  %4462 = vmatprep.subr.mxu0 0.0
  %4463 = vmatpush2.msra.mxu0 0.0
  %4464 = vmatprep.subr.mxu0 0.0
  %4465 = vmatpush2.msra.mxu0 0.0
  %4466 = vmatprep.subr.mxu0 0.0
  %4467 = vmatpush2.msra.mxu0 0.0
  %4468 = vmatprep.subr.mxu0 0.0
  %4469 = vmatpush2.msra.mxu0 0.0
  %4470 = vmatprep.subr.mxu0 0.0
  %4471 = vmatpush2.msra.mxu0 0.0
  %4472 = vmatprep.subr.mxu0 0.0
  %4473 = vmatpush2.msra.mxu0 0.0
  %4474 = vmatprep.mubr.f32.mxu0 0.0
  %4475 = vmatmul.mubr.f32.gmra.mxu0 %v4408
  %v4476 = vpop.f32.mrf.mxu0
  %v4477 = vadd.f32 0.0, %v4476
  %v4478 = vpop.f32.mrf.mxu0
  %4479 = vdwg.mxu0
  %v4481 = vsel %vm1285, %v4329, 0
  %4483 = vmatprep.subr.mxu0 0.0
  %4484 = vmatpush1.msra.mxu0 0.0
  %4485 = vmatprep.subr.mxu0 0.0
  %4486 = vmatpush1.msra.mxu0 0.0
  %4487 = vmatprep.subr.mxu0 0.0
  %4488 = vmatpush1.msra.mxu0 0.0
  %4489 = vmatprep.subr.mxu0 0.0
  %4490 = vmatpush1.msra.mxu0 0.0
  %4491 = vmatprep.subr.mxu0 0.0
  %4492 = vmatpush1.msra.mxu0 0.0
  %4493 = vmatprep.subr.mxu0 0.0
  %4494 = vmatpush1.msra.mxu0 0.0
  %4495 = vmatprep.subr.mxu0 0.0
  %4496 = vmatpush1.msra.mxu0 0.0
  %4497 = vmatprep.subr.mxu0 0.0
  %4498 = vmatpush1.msra.mxu0 0.0
  %4499 = vmatprep.subr.mxu0 0.0
  %4500 = vmatpush1.msra.mxu0 0.0
  %4501 = vmatprep.subr.mxu0 0.0
  %4502 = vmatpush1.msra.mxu0 0.0
  %4503 = vmatprep.subr.mxu0 0.0
  %4504 = vmatpush1.msra.mxu0 0.0
  %4505 = vmatprep.subr.mxu0 0.0
  %4506 = vmatpush1.msra.mxu0 0.0
  %4507 = vmatprep.subr.mxu0 0.0
  %4508 = vmatpush1.msra.mxu0 0.0
  %4509 = vmatprep.subr.mxu0 0.0
  %4510 = vmatpush1.msra.mxu0 0.0
  %4511 = vmatprep.subr.mxu0 0.0
  %4512 = vmatpush1.msra.mxu0 %v4327
  %4513 = vmatprep.subr.mxu0 0.0
  %4514 = vmatpush1.msra.mxu0 %v4326
  %4515 = vmatprep.subr.mxu0 0.0
  %4516 = vmatpush2.msra.mxu0 0.0
  %4517 = vmatprep.subr.mxu0 0.0
  %4518 = vmatpush2.msra.mxu0 0.0
  %4519 = vmatprep.subr.mxu0 0.0
  %4520 = vmatpush2.msra.mxu0 0.0
  %4521 = vmatprep.subr.mxu0 0.0
  %4522 = vmatpush2.msra.mxu0 0.0
  %4523 = vmatprep.subr.mxu0 0.0
  %4524 = vmatpush2.msra.mxu0 0.0
  %4525 = vmatprep.subr.mxu0 0.0
  %4526 = vmatpush2.msra.mxu0 0.0
  %4527 = vmatprep.subr.mxu0 0.0
  %4528 = vmatpush2.msra.mxu0 0.0
  %4529 = vmatprep.subr.mxu0 0.0
  %4530 = vmatpush2.msra.mxu0 0.0
  %4531 = vmatprep.subr.mxu0 0.0
  %4532 = vmatpush2.msra.mxu0 0.0
  %4533 = vmatprep.subr.mxu0 0.0
  %4534 = vmatpush2.msra.mxu0 0.0
  %4535 = vmatprep.subr.mxu0 0.0
  %4536 = vmatpush2.msra.mxu0 0.0
  %4537 = vmatprep.subr.mxu0 0.0
  %4538 = vmatpush2.msra.mxu0 0.0
  %4539 = vmatprep.subr.mxu0 0.0
  %4540 = vmatpush2.msra.mxu0 0.0
  %4541 = vmatprep.subr.mxu0 0.0
  %4542 = vmatpush2.msra.mxu0 0.0
  %4543 = vmatprep.subr.mxu0 0.0
  %4544 = vmatpush2.msra.mxu0 0.0
  %4545 = vmatprep.subr.mxu0 0.0
  %4546 = vmatpush2.msra.mxu0 0.0
  %4547 = vmatprep.mubr.f32.mxu0 0.0
  %4548 = vmatmul.mubr.f32.gmra.mxu0 %v4481
  %v4549 = vpop.f32.mrf.mxu0
  %v4550 = vadd.f32 %v4477, %v4549
  %v4551 = vpop.f32.mrf.mxu0
  %4552 = vdwg.mxu0
  %s4553 = scalar_lea.vmem %s15, 6
  %v4554 = vld [vmem:[%s4553] sm:$0x1]
  %v4556 = vlaneseq
  %v4557 = vshrl.u32 %v4556, 7
  %v4558 = vsub.s32 0, %v4557
  %v4559 = vrot.slane %v4554, %v4558
  %v4561 = vmul.f32 %v4316, %v4559
  %v4562 = vmul.f32 %v4317, %v4559
  %s4563 = scalar_lea.vmem %s14, 48
  %v4564 = vld [vmem:[%s4563] sm:$0xff]
  %v4566 = vsel %vm1285, %v4564, 0
  %4568 = vmatprep.subr.mxu0 0.0
  %4569 = vmatpush1.msra.mxu0 0.0
  %4570 = vmatprep.subr.mxu0 0.0
  %4571 = vmatpush1.msra.mxu0 0.0
  %4572 = vmatprep.subr.mxu0 0.0
  %4573 = vmatpush1.msra.mxu0 0.0
  %4574 = vmatprep.subr.mxu0 0.0
  %4575 = vmatpush1.msra.mxu0 0.0
  %4576 = vmatprep.subr.mxu0 0.0
  %4577 = vmatpush1.msra.mxu0 0.0
  %4578 = vmatprep.subr.mxu0 0.0
  %4579 = vmatpush1.msra.mxu0 0.0
  %4580 = vmatprep.subr.mxu0 0.0
  %4581 = vmatpush1.msra.mxu0 0.0
  %4582 = vmatprep.subr.mxu0 0.0
  %4583 = vmatpush1.msra.mxu0 0.0
  %4584 = vmatprep.subr.mxu0 0.0
  %4585 = vmatpush1.msra.mxu0 0.0
  %4586 = vmatprep.subr.mxu0 0.0
  %4587 = vmatpush1.msra.mxu0 0.0
  %4588 = vmatprep.subr.mxu0 0.0
  %4589 = vmatpush1.msra.mxu0 0.0
  %4590 = vmatprep.subr.mxu0 0.0
  %4591 = vmatpush1.msra.mxu0 0.0
  %4592 = vmatprep.subr.mxu0 0.0
  %4593 = vmatpush1.msra.mxu0 0.0
  %4594 = vmatprep.subr.mxu0 0.0
  %4595 = vmatpush1.msra.mxu0 0.0
  %4596 = vmatprep.subr.mxu0 0.0
  %4597 = vmatpush1.msra.mxu0 %v4562
  %4598 = vmatprep.subr.mxu0 0.0
  %4599 = vmatpush1.msra.mxu0 %v4561
  %4600 = vmatprep.subr.mxu0 0.0
  %4601 = vmatpush2.msra.mxu0 0.0
  %4602 = vmatprep.subr.mxu0 0.0
  %4603 = vmatpush2.msra.mxu0 0.0
  %4604 = vmatprep.subr.mxu0 0.0
  %4605 = vmatpush2.msra.mxu0 0.0
  %4606 = vmatprep.subr.mxu0 0.0
  %4607 = vmatpush2.msra.mxu0 0.0
  %4608 = vmatprep.subr.mxu0 0.0
  %4609 = vmatpush2.msra.mxu0 0.0
  %4610 = vmatprep.subr.mxu0 0.0
  %4611 = vmatpush2.msra.mxu0 0.0
  %4612 = vmatprep.subr.mxu0 0.0
  %4613 = vmatpush2.msra.mxu0 0.0
  %4614 = vmatprep.subr.mxu0 0.0
  %4615 = vmatpush2.msra.mxu0 0.0
  %4616 = vmatprep.subr.mxu0 0.0
  %4617 = vmatpush2.msra.mxu0 0.0
  %4618 = vmatprep.subr.mxu0 0.0
  %4619 = vmatpush2.msra.mxu0 0.0
  %4620 = vmatprep.subr.mxu0 0.0
  %4621 = vmatpush2.msra.mxu0 0.0
  %4622 = vmatprep.subr.mxu0 0.0
  %4623 = vmatpush2.msra.mxu0 0.0
  %4624 = vmatprep.subr.mxu0 0.0
  %4625 = vmatpush2.msra.mxu0 0.0
  %4626 = vmatprep.subr.mxu0 0.0
  %4627 = vmatpush2.msra.mxu0 0.0
  %4628 = vmatprep.subr.mxu0 0.0
  %4629 = vmatpush2.msra.mxu0 0.0
  %4630 = vmatprep.subr.mxu0 0.0
  %4631 = vmatpush2.msra.mxu0 0.0
  %4632 = vmatprep.mubr.f32.mxu0 0.0
  %4633 = vmatmul.mubr.f32.gmra.mxu0 %v4566
  %v4634 = vpop.f32.mrf.mxu0
  %v4635 = vadd.f32 0.0, %v4634
  %v4636 = vpop.f32.mrf.mxu0
  %4637 = vdwg.mxu0
  %v4638 = vadd.f32 %v4307, %v4635
  %s4639 = scalar_lea.vmem %s14, 56
  %v4640 = vld [vmem:[%s4639] sm:$0xff]
  %v4642 = vsel %vm1285, %v4640, 0
  %4644 = vmatprep.subr.mxu0 0.0
  %4645 = vmatpush1.msra.mxu0 0.0
  %4646 = vmatprep.subr.mxu0 0.0
  %4647 = vmatpush1.msra.mxu0 0.0
  %4648 = vmatprep.subr.mxu0 0.0
  %4649 = vmatpush1.msra.mxu0 0.0
  %4650 = vmatprep.subr.mxu0 0.0
  %4651 = vmatpush1.msra.mxu0 0.0
  %4652 = vmatprep.subr.mxu0 0.0
  %4653 = vmatpush1.msra.mxu0 0.0
  %4654 = vmatprep.subr.mxu0 0.0
  %4655 = vmatpush1.msra.mxu0 0.0
  %4656 = vmatprep.subr.mxu0 0.0
  %4657 = vmatpush1.msra.mxu0 0.0
  %4658 = vmatprep.subr.mxu0 0.0
  %4659 = vmatpush1.msra.mxu0 0.0
  %4660 = vmatprep.subr.mxu0 0.0
  %4661 = vmatpush1.msra.mxu0 0.0
  %4662 = vmatprep.subr.mxu0 0.0
  %4663 = vmatpush1.msra.mxu0 0.0
  %4664 = vmatprep.subr.mxu0 0.0
  %4665 = vmatpush1.msra.mxu0 0.0
  %4666 = vmatprep.subr.mxu0 0.0
  %4667 = vmatpush1.msra.mxu0 0.0
  %4668 = vmatprep.subr.mxu0 0.0
  %4669 = vmatpush1.msra.mxu0 0.0
  %4670 = vmatprep.subr.mxu0 0.0
  %4671 = vmatpush1.msra.mxu0 0.0
  %4672 = vmatprep.subr.mxu0 0.0
  %4673 = vmatpush1.msra.mxu0 %v4111
  %4674 = vmatprep.subr.mxu0 0.0
  %4675 = vmatpush1.msra.mxu0 %v4110
  %4676 = vmatprep.subr.mxu0 0.0
  %4677 = vmatpush2.msra.mxu0 0.0
  %4678 = vmatprep.subr.mxu0 0.0
  %4679 = vmatpush2.msra.mxu0 0.0
  %4680 = vmatprep.subr.mxu0 0.0
  %4681 = vmatpush2.msra.mxu0 0.0
  %4682 = vmatprep.subr.mxu0 0.0
  %4683 = vmatpush2.msra.mxu0 0.0
  %4684 = vmatprep.subr.mxu0 0.0
  %4685 = vmatpush2.msra.mxu0 0.0
  %4686 = vmatprep.subr.mxu0 0.0
  %4687 = vmatpush2.msra.mxu0 0.0
  %4688 = vmatprep.subr.mxu0 0.0
  %4689 = vmatpush2.msra.mxu0 0.0
  %4690 = vmatprep.subr.mxu0 0.0
  %4691 = vmatpush2.msra.mxu0 0.0
  %4692 = vmatprep.subr.mxu0 0.0
  %4693 = vmatpush2.msra.mxu0 0.0
  %4694 = vmatprep.subr.mxu0 0.0
  %4695 = vmatpush2.msra.mxu0 0.0
  %4696 = vmatprep.subr.mxu0 0.0
  %4697 = vmatpush2.msra.mxu0 0.0
  %4698 = vmatprep.subr.mxu0 0.0
  %4699 = vmatpush2.msra.mxu0 0.0
  %4700 = vmatprep.subr.mxu0 0.0
  %4701 = vmatpush2.msra.mxu0 0.0
  %4702 = vmatprep.subr.mxu0 0.0
  %4703 = vmatpush2.msra.mxu0 0.0
  %4704 = vmatprep.subr.mxu0 0.0
  %4705 = vmatpush2.msra.mxu0 0.0
  %4706 = vmatprep.subr.mxu0 0.0
  %4707 = vmatpush2.msra.mxu0 0.0
  %4708 = vmatprep.mubr.f32.mxu0 0.0
  %4709 = vmatmul.mubr.f32.gmra.mxu0 %v4642
  %v4710 = vpop.f32.mrf.mxu0
  %v4711 = vadd.f32 0.0, %v4710
  %v4712 = vpop.f32.mrf.mxu0
  %4713 = vdwg.mxu0
  %v4715 = vsel %vm1285, %v4151, 0
  %4717 = vmatprep.subr.mxu0 0.0
  %4718 = vmatpush1.msra.mxu0 0.0
  %4719 = vmatprep.subr.mxu0 0.0
  %4720 = vmatpush1.msra.mxu0 0.0
  %4721 = vmatprep.subr.mxu0 0.0
  %4722 = vmatpush1.msra.mxu0 0.0
  %4723 = vmatprep.subr.mxu0 0.0
  %4724 = vmatpush1.msra.mxu0 0.0
  %4725 = vmatprep.subr.mxu0 0.0
  %4726 = vmatpush1.msra.mxu0 0.0
  %4727 = vmatprep.subr.mxu0 0.0
  %4728 = vmatpush1.msra.mxu0 0.0
  %4729 = vmatprep.subr.mxu0 0.0
  %4730 = vmatpush1.msra.mxu0 0.0
  %4731 = vmatprep.subr.mxu0 0.0
  %4732 = vmatpush1.msra.mxu0 0.0
  %4733 = vmatprep.subr.mxu0 0.0
  %4734 = vmatpush1.msra.mxu0 0.0
  %4735 = vmatprep.subr.mxu0 0.0
  %4736 = vmatpush1.msra.mxu0 0.0
  %4737 = vmatprep.subr.mxu0 0.0
  %4738 = vmatpush1.msra.mxu0 0.0
  %4739 = vmatprep.subr.mxu0 0.0
  %4740 = vmatpush1.msra.mxu0 0.0
  %4741 = vmatprep.subr.mxu0 0.0
  %4742 = vmatpush1.msra.mxu0 0.0
  %4743 = vmatprep.subr.mxu0 0.0
  %4744 = vmatpush1.msra.mxu0 0.0
  %4745 = vmatprep.subr.mxu0 0.0
  %4746 = vmatpush1.msra.mxu0 %v4149
  %4747 = vmatprep.subr.mxu0 0.0
  %4748 = vmatpush1.msra.mxu0 %v4148
  %4749 = vmatprep.subr.mxu0 0.0
  %4750 = vmatpush2.msra.mxu0 0.0
  %4751 = vmatprep.subr.mxu0 0.0
  %4752 = vmatpush2.msra.mxu0 0.0
  %4753 = vmatprep.subr.mxu0 0.0
  %4754 = vmatpush2.msra.mxu0 0.0
  %4755 = vmatprep.subr.mxu0 0.0
  %4756 = vmatpush2.msra.mxu0 0.0
  %4757 = vmatprep.subr.mxu0 0.0
  %4758 = vmatpush2.msra.mxu0 0.0
  %4759 = vmatprep.subr.mxu0 0.0
  %4760 = vmatpush2.msra.mxu0 0.0
  %4761 = vmatprep.subr.mxu0 0.0
  %4762 = vmatpush2.msra.mxu0 0.0
  %4763 = vmatprep.subr.mxu0 0.0
  %4764 = vmatpush2.msra.mxu0 0.0
  %4765 = vmatprep.subr.mxu0 0.0
  %4766 = vmatpush2.msra.mxu0 0.0
  %4767 = vmatprep.subr.mxu0 0.0
  %4768 = vmatpush2.msra.mxu0 0.0
  %4769 = vmatprep.subr.mxu0 0.0
  %4770 = vmatpush2.msra.mxu0 0.0
  %4771 = vmatprep.subr.mxu0 0.0
  %4772 = vmatpush2.msra.mxu0 0.0
  %4773 = vmatprep.subr.mxu0 0.0
  %4774 = vmatpush2.msra.mxu0 0.0
  %4775 = vmatprep.subr.mxu0 0.0
  %4776 = vmatpush2.msra.mxu0 0.0
  %4777 = vmatprep.subr.mxu0 0.0
  %4778 = vmatpush2.msra.mxu0 0.0
  %4779 = vmatprep.subr.mxu0 0.0
  %4780 = vmatpush2.msra.mxu0 0.0
  %4781 = vmatprep.mubr.f32.mxu0 0.0
  %4782 = vmatmul.mubr.f32.gmra.mxu0 %v4715
  %v4783 = vpop.f32.mrf.mxu0
  %v4784 = vadd.f32 %v4711, %v4783
  %v4785 = vpop.f32.mrf.mxu0
  %4786 = vdwg.mxu0
  %s4787 = scalar_lea.vmem %s14, 64
  %v4788 = vld [vmem:[%s4787] sm:$0xff]
  %v4790 = vsel %vm1285, %v4788, 0
  %4792 = vmatprep.subr.mxu0 0.0
  %4793 = vmatpush1.msra.mxu0 0.0
  %4794 = vmatprep.subr.mxu0 0.0
  %4795 = vmatpush1.msra.mxu0 0.0
  %4796 = vmatprep.subr.mxu0 0.0
  %4797 = vmatpush1.msra.mxu0 0.0
  %4798 = vmatprep.subr.mxu0 0.0
  %4799 = vmatpush1.msra.mxu0 0.0
  %4800 = vmatprep.subr.mxu0 0.0
  %4801 = vmatpush1.msra.mxu0 0.0
  %4802 = vmatprep.subr.mxu0 0.0
  %4803 = vmatpush1.msra.mxu0 0.0
  %4804 = vmatprep.subr.mxu0 0.0
  %4805 = vmatpush1.msra.mxu0 0.0
  %4806 = vmatprep.subr.mxu0 0.0
  %4807 = vmatpush1.msra.mxu0 0.0
  %4808 = vmatprep.subr.mxu0 0.0
  %4809 = vmatpush1.msra.mxu0 0.0
  %4810 = vmatprep.subr.mxu0 0.0
  %4811 = vmatpush1.msra.mxu0 0.0
  %4812 = vmatprep.subr.mxu0 0.0
  %4813 = vmatpush1.msra.mxu0 0.0
  %4814 = vmatprep.subr.mxu0 0.0
  %4815 = vmatpush1.msra.mxu0 0.0
  %4816 = vmatprep.subr.mxu0 0.0
  %4817 = vmatpush1.msra.mxu0 0.0
  %4818 = vmatprep.subr.mxu0 0.0
  %4819 = vmatpush1.msra.mxu0 0.0
  %4820 = vmatprep.subr.mxu0 0.0
  %4821 = vmatpush1.msra.mxu0 %v4111
  %4822 = vmatprep.subr.mxu0 0.0
  %4823 = vmatpush1.msra.mxu0 %v4110
  %4824 = vmatprep.subr.mxu0 0.0
  %4825 = vmatpush2.msra.mxu0 0.0
  %4826 = vmatprep.subr.mxu0 0.0
  %4827 = vmatpush2.msra.mxu0 0.0
  %4828 = vmatprep.subr.mxu0 0.0
  %4829 = vmatpush2.msra.mxu0 0.0
  %4830 = vmatprep.subr.mxu0 0.0
  %4831 = vmatpush2.msra.mxu0 0.0
  %4832 = vmatprep.subr.mxu0 0.0
  %4833 = vmatpush2.msra.mxu0 0.0
  %4834 = vmatprep.subr.mxu0 0.0
  %4835 = vmatpush2.msra.mxu0 0.0
  %4836 = vmatprep.subr.mxu0 0.0
  %4837 = vmatpush2.msra.mxu0 0.0
  %4838 = vmatprep.subr.mxu0 0.0
  %4839 = vmatpush2.msra.mxu0 0.0
  %4840 = vmatprep.subr.mxu0 0.0
  %4841 = vmatpush2.msra.mxu0 0.0
  %4842 = vmatprep.subr.mxu0 0.0
  %4843 = vmatpush2.msra.mxu0 0.0
  %4844 = vmatprep.subr.mxu0 0.0
  %4845 = vmatpush2.msra.mxu0 0.0
  %4846 = vmatprep.subr.mxu0 0.0
  %4847 = vmatpush2.msra.mxu0 0.0
  %4848 = vmatprep.subr.mxu0 0.0
  %4849 = vmatpush2.msra.mxu0 0.0
  %4850 = vmatprep.subr.mxu0 0.0
  %4851 = vmatpush2.msra.mxu0 0.0
  %4852 = vmatprep.subr.mxu0 0.0
  %4853 = vmatpush2.msra.mxu0 0.0
  %4854 = vmatprep.subr.mxu0 0.0
  %4855 = vmatpush2.msra.mxu0 0.0
  %4856 = vmatprep.mubr.f32.mxu0 0.0
  %4857 = vmatmul.mubr.f32.gmra.mxu0 %v4790
  %v4858 = vpop.f32.mrf.mxu0
  %v4859 = vadd.f32 0.0, %v4858
  %v4860 = vpop.f32.mrf.mxu0
  %4861 = vdwg.mxu0
  %v4862 = vadd.f32 %v4638, %v4859
  %v4863 = vld [vmem:[%s16] sm:$0xff]
  %v4864 = vld [vmem:[%s16 + $0x8] sm:$0xff]
  %v4865 = vld [vmem:[%s16 + $0x10] sm:$0xff]
  %v4866 = vld [vmem:[%s16 + $0x18] sm:$0xff]
  %v4867 = vld [vmem:[%s16 + $0x20] sm:$0xff]
  %v4868 = vld [vmem:[%s16 + $0x28] sm:$0xff]
  %v4869 = vld [vmem:[%s16 + $0x30] sm:$0xff]
  %v4870 = vld [vmem:[%s16 + $0x38] sm:$0xff]
  %v4871 = vld [vmem:[%s16 + $0x40] sm:$0xff]
  %v4872 = vld [vmem:[%s16 + $0x48] sm:$0xff]
  %v4873 = vld [vmem:[%s16 + $0x50] sm:$0xff]
  %v4874 = vld [vmem:[%s16 + $0x58] sm:$0xff]
  %v4875 = vld [vmem:[%s16 + $0x60] sm:$0xff]
  %v4876 = vld [vmem:[%s16 + $0x68] sm:$0xff]
  %v4877 = vld [vmem:[%s16 + $0x70] sm:$0xff]
  %v4878 = vld [vmem:[%s16 + $0x78] sm:$0xff]
  %v4879 = vld [vmem:[%s16 + $0x80] sm:$0xff]
  %v4880 = vld [vmem:[%s16 + $0x88] sm:$0xff]
  %v4881 = vld [vmem:[%s16 + $0x90] sm:$0xff]
  %v4882 = vld [vmem:[%s16 + $0x98] sm:$0xff]
  %v4883 = vld [vmem:[%s16 + $0xa0] sm:$0xff]
  %v4884 = vld [vmem:[%s16 + $0xa8] sm:$0xff]
  %v4885 = vld [vmem:[%s16 + $0xb0] sm:$0xff]
  %v4886 = vld [vmem:[%s16 + $0xb8] sm:$0xff]
  %v4887 = vld [vmem:[%s16 + $0xc0] sm:$0xff]
  %v4888 = vld [vmem:[%s16 + $0xc8] sm:$0xff]
  %v4889 = vld [vmem:[%s16 + $0xd0] sm:$0xff]
  %v4890 = vld [vmem:[%s16 + $0xd8] sm:$0xff]
  %v4891 = vld [vmem:[%s16 + $0xe0] sm:$0xff]
  %v4892 = vld [vmem:[%s16 + $0xe8] sm:$0xff]
  %v4893 = vld [vmem:[%s16 + $0xf0] sm:$0xff]
  %v4894 = vld [vmem:[%s16 + $0xf8] sm:$0xff]
  %v4895 = vld [vmem:[%s16 + $0x100] sm:$0xff]
  %v4896 = vld [vmem:[%s16 + $0x108] sm:$0xff]
  %v4897 = vld [vmem:[%s16 + $0x110] sm:$0xff]
  %v4898 = vld [vmem:[%s16 + $0x118] sm:$0xff]
  %v4899 = vld [vmem:[%s16 + $0x120] sm:$0xff]
  %v4900 = vld [vmem:[%s16 + $0x128] sm:$0xff]
  %v4901 = vld [vmem:[%s16 + $0x130] sm:$0xff]
  %v4902 = vld [vmem:[%s16 + $0x138] sm:$0xff]
  %v4903 = vld [vmem:[%s16 + $0x140] sm:$0xff]
  %v4904 = vld [vmem:[%s16 + $0x148] sm:$0xff]
  %v4905 = vld [vmem:[%s16 + $0x150] sm:$0xff]
  %v4906 = vld [vmem:[%s16 + $0x158] sm:$0xff]
  %v4907 = vld [vmem:[%s16 + $0x160] sm:$0xff]
  %v4908 = vld [vmem:[%s16 + $0x168] sm:$0xff]
  %v4909 = vld [vmem:[%s16 + $0x170] sm:$0xff]
  %v4910 = vld [vmem:[%s16 + $0x178] sm:$0xff]
  %v4911 = vld [vmem:[%s16 + $0x180] sm:$0x3]
  %v4912 = vld [vmem:[%s16 + $0x188] sm:$0x3]
  %v4913 = vld [vmem:[%s16 + $0x190] sm:$0x3]
  %v4914 = vld [vmem:[%s16 + $0x198] sm:$0x3]
  %s4915 = scalar_lea.vmem %s16, 416
  %v4916 = vld [vmem:[%s4915] sm:$0xff]
  %v4917 = vld [vmem:[%s4915 + $0x8] sm:$0xff]
  %v4918 = vld [vmem:[%s4915 + $0x10] sm:$0xff]
  %v4919 = vld [vmem:[%s4915 + $0x18] sm:$0xff]
  %v4920 = vld [vmem:[%s4915 + $0x20] sm:$0xff]
  %v4921 = vld [vmem:[%s4915 + $0x28] sm:$0xff]
  %v4922 = vld [vmem:[%s4915 + $0x30] sm:$0xff]
  %v4923 = vld [vmem:[%s4915 + $0x38] sm:$0xff]
  %v4924 = vld [vmem:[%s4915 + $0x40] sm:$0xff]
  %v4925 = vld [vmem:[%s4915 + $0x48] sm:$0xff]
  %v4926 = vld [vmem:[%s4915 + $0x50] sm:$0xff]
  %v4927 = vld [vmem:[%s4915 + $0x58] sm:$0xff]
  %v4928 = vld [vmem:[%s4915 + $0x60] sm:$0xff]
  %v4929 = vld [vmem:[%s4915 + $0x68] sm:$0xff]
  %v4930 = vld [vmem:[%s4915 + $0x70] sm:$0xff]
  %v4931 = vld [vmem:[%s4915 + $0x78] sm:$0xff]
  %v4932 = vld [vmem:[%s4915 + $0x80] sm:$0xff]
  %v4933 = vld [vmem:[%s4915 + $0x88] sm:$0xff]
  %v4934 = vld [vmem:[%s4915 + $0x90] sm:$0xff]
  %v4935 = vld [vmem:[%s4915 + $0x98] sm:$0xff]
  %v4936 = vld [vmem:[%s4915 + $0xa0] sm:$0xff]
  %v4937 = vld [vmem:[%s4915 + $0xa8] sm:$0xff]
  %v4938 = vld [vmem:[%s4915 + $0xb0] sm:$0xff]
  %v4939 = vld [vmem:[%s4915 + $0xb8] sm:$0xff]
  %v4940 = vld [vmem:[%s4915 + $0xc0] sm:$0xff]
  %v4941 = vld [vmem:[%s4915 + $0xc8] sm:$0xff]
  %v4942 = vld [vmem:[%s4915 + $0xd0] sm:$0xff]
  %v4943 = vld [vmem:[%s4915 + $0xd8] sm:$0xff]
  %v4944 = vld [vmem:[%s4915 + $0xe0] sm:$0xff]
  %v4945 = vld [vmem:[%s4915 + $0xe8] sm:$0xff]
  %v4946 = vld [vmem:[%s4915 + $0xf0] sm:$0xff]
  %v4947 = vld [vmem:[%s4915 + $0xf8] sm:$0xff]
  %v4948 = vld [vmem:[%s4915 + $0x100] sm:$0xff]
  %v4949 = vld [vmem:[%s4915 + $0x108] sm:$0xff]
  %v4950 = vld [vmem:[%s4915 + $0x110] sm:$0xff]
  %v4951 = vld [vmem:[%s4915 + $0x118] sm:$0xff]
  %v4952 = vld [vmem:[%s4915 + $0x120] sm:$0xff]
  %v4953 = vld [vmem:[%s4915 + $0x128] sm:$0xff]
  %v4954 = vld [vmem:[%s4915 + $0x130] sm:$0xff]
  %v4955 = vld [vmem:[%s4915 + $0x138] sm:$0xff]
  %v4956 = vld [vmem:[%s4915 + $0x140] sm:$0xff]
  %v4957 = vld [vmem:[%s4915 + $0x148] sm:$0xff]
  %v4958 = vld [vmem:[%s4915 + $0x150] sm:$0xff]
  %v4959 = vld [vmem:[%s4915 + $0x158] sm:$0xff]
  %v4960 = vld [vmem:[%s4915 + $0x160] sm:$0xff]
  %v4961 = vld [vmem:[%s4915 + $0x168] sm:$0xff]
  %v4962 = vld [vmem:[%s4915 + $0x170] sm:$0xff]
  %v4963 = vld [vmem:[%s4915 + $0x178] sm:$0xff]
  %v4964 = vld [vmem:[%s4915 + $0x180] sm:$0x3]
  %v4965 = vld [vmem:[%s4915 + $0x188] sm:$0x3]
  %v4966 = vld [vmem:[%s4915 + $0x190] sm:$0x3]
  %v4967 = vld [vmem:[%s4915 + $0x198] sm:$0x3]
  %v4969 = vsel %vm1133, %v4550, 0
  %v4972 = vsel %vm2638, %v4964, 0
  %v4975 = vsel %vm2638, %v4965, 0
  %v4978 = vsel %vm2638, %v4966, 0
  %v4981 = vsel %vm2638, %v4967, 0
  %4983 = vmatprep.subr.mxu0 0.0
  %4984 = vmatpush1.msra.mxu0 0.0
  %4985 = vmatprep.subr.mxu0 0.0
  %4986 = vmatpush1.msra.mxu0 0.0
  %4987 = vmatprep.subr.mxu0 0.0
  %4988 = vmatpush1.msra.mxu0 0.0
  %4989 = vmatprep.subr.mxu0 %v4975
  %4990 = vmatpush1.msra.mxu0 %v4972
  %4991 = vmatprep.subr.mxu0 %v4961
  %4992 = vmatpush1.msra.mxu0 %v4960
  %4993 = vmatprep.subr.mxu0 %v4957
  %4994 = vmatpush1.msra.mxu0 %v4956
  %4995 = vmatprep.subr.mxu0 %v4953
  %4996 = vmatpush1.msra.mxu0 %v4952
  %4997 = vmatprep.subr.mxu0 %v4949
  %4998 = vmatpush1.msra.mxu0 %v4948
  %4999 = vmatprep.subr.mxu0 %v4945
  %5000 = vmatpush1.msra.mxu0 %v4944
  %5001 = vmatprep.subr.mxu0 %v4941
  %5002 = vmatpush1.msra.mxu0 %v4940
  %5003 = vmatprep.subr.mxu0 %v4937
  %5004 = vmatpush1.msra.mxu0 %v4936
  %5005 = vmatprep.subr.mxu0 %v4933
  %5006 = vmatpush1.msra.mxu0 %v4932
  %5007 = vmatprep.subr.mxu0 %v4929
  %5008 = vmatpush1.msra.mxu0 %v4928
  %5009 = vmatprep.subr.mxu0 %v4925
  %5010 = vmatpush1.msra.mxu0 %v4924
  %5011 = vmatprep.subr.mxu0 %v4921
  %5012 = vmatpush1.msra.mxu0 %v4920
  %5013 = vmatprep.subr.mxu0 %v4917
  %5014 = vmatpush1.msra.mxu0 %v4916
  %5015 = vmatprep.subr.mxu0 0.0
  %5016 = vmatpush2.msra.mxu0 0.0
  %5017 = vmatprep.subr.mxu0 0.0
  %5018 = vmatpush2.msra.mxu0 0.0
  %5019 = vmatprep.subr.mxu0 0.0
  %5020 = vmatpush2.msra.mxu0 0.0
  %5021 = vmatprep.subr.mxu0 0.0
  %5022 = vmatpush2.msra.mxu0 0.0
  %5023 = vmatprep.subr.mxu0 0.0
  %5024 = vmatpush2.msra.mxu0 0.0
  %5025 = vmatprep.subr.mxu0 0.0
  %5026 = vmatpush2.msra.mxu0 0.0
  %5027 = vmatprep.subr.mxu0 0.0
  %5028 = vmatpush2.msra.mxu0 0.0
  %5029 = vmatprep.subr.mxu0 0.0
  %5030 = vmatpush2.msra.mxu0 0.0
  %5031 = vmatprep.subr.mxu0 0.0
  %5032 = vmatpush2.msra.mxu0 0.0
  %5033 = vmatprep.subr.mxu0 0.0
  %5034 = vmatpush2.msra.mxu0 0.0
  %5035 = vmatprep.subr.mxu0 0.0
  %5036 = vmatpush2.msra.mxu0 0.0
  %5037 = vmatprep.subr.mxu0 0.0
  %5038 = vmatpush2.msra.mxu0 0.0
  %5039 = vmatprep.subr.mxu0 0.0
  %5040 = vmatpush2.msra.mxu0 0.0
  %5041 = vmatprep.subr.mxu0 0.0
  %5042 = vmatpush2.msra.mxu0 0.0
  %5043 = vmatprep.subr.mxu0 0.0
  %5044 = vmatpush2.msra.mxu0 0.0
  %5045 = vmatprep.subr.mxu0 0.0
  %5046 = vmatpush2.msra.mxu0 0.0
  %5047 = vmatprep.mubr.f32.mxu0 0.0
  %5048 = vmatmul.mubr.f32.gmra.mxu0 %v4969
  %v5049 = vpop.f32.mrf.mxu0
  %v5050 = vadd.f32 0.0, %v5049
  %v5051 = vpop.f32.mrf.mxu0
  %v5052 = vadd.f32 0.0, %v5051
  %5053 = vdwg.mxu0
  %5054 = vmatprep.subr.mxu0 0.0
  %5055 = vmatpush1.msra.mxu0 0.0
  %5056 = vmatprep.subr.mxu0 0.0
  %5057 = vmatpush1.msra.mxu0 0.0
  %5058 = vmatprep.subr.mxu0 0.0
  %5059 = vmatpush1.msra.mxu0 0.0
  %5060 = vmatprep.subr.mxu0 %v4981
  %5061 = vmatpush1.msra.mxu0 %v4978
  %5062 = vmatprep.subr.mxu0 %v4963
  %5063 = vmatpush1.msra.mxu0 %v4962
  %5064 = vmatprep.subr.mxu0 %v4959
  %5065 = vmatpush1.msra.mxu0 %v4958
  %5066 = vmatprep.subr.mxu0 %v4955
  %5067 = vmatpush1.msra.mxu0 %v4954
  %5068 = vmatprep.subr.mxu0 %v4951
  %5069 = vmatpush1.msra.mxu0 %v4950
  %5070 = vmatprep.subr.mxu0 %v4947
  %5071 = vmatpush1.msra.mxu0 %v4946
  %5072 = vmatprep.subr.mxu0 %v4943
  %5073 = vmatpush1.msra.mxu0 %v4942
  %5074 = vmatprep.subr.mxu0 %v4939
  %5075 = vmatpush1.msra.mxu0 %v4938
  %5076 = vmatprep.subr.mxu0 %v4935
  %5077 = vmatpush1.msra.mxu0 %v4934
  %5078 = vmatprep.subr.mxu0 %v4931
  %5079 = vmatpush1.msra.mxu0 %v4930
  %5080 = vmatprep.subr.mxu0 %v4927
  %5081 = vmatpush1.msra.mxu0 %v4926
  %5082 = vmatprep.subr.mxu0 %v4923
  %5083 = vmatpush1.msra.mxu0 %v4922
  %5084 = vmatprep.subr.mxu0 %v4919
  %5085 = vmatpush1.msra.mxu0 %v4918
  %5086 = vmatprep.subr.mxu0 0.0
  %5087 = vmatpush2.msra.mxu0 0.0
  %5088 = vmatprep.subr.mxu0 0.0
  %5089 = vmatpush2.msra.mxu0 0.0
  %5090 = vmatprep.subr.mxu0 0.0
  %5091 = vmatpush2.msra.mxu0 0.0
  %5092 = vmatprep.subr.mxu0 0.0
  %5093 = vmatpush2.msra.mxu0 0.0
  %5094 = vmatprep.subr.mxu0 0.0
  %5095 = vmatpush2.msra.mxu0 0.0
  %5096 = vmatprep.subr.mxu0 0.0
  %5097 = vmatpush2.msra.mxu0 0.0
  %5098 = vmatprep.subr.mxu0 0.0
  %5099 = vmatpush2.msra.mxu0 0.0
  %5100 = vmatprep.subr.mxu0 0.0
  %5101 = vmatpush2.msra.mxu0 0.0
  %5102 = vmatprep.subr.mxu0 0.0
  %5103 = vmatpush2.msra.mxu0 0.0
  %5104 = vmatprep.subr.mxu0 0.0
  %5105 = vmatpush2.msra.mxu0 0.0
  %5106 = vmatprep.subr.mxu0 0.0
  %5107 = vmatpush2.msra.mxu0 0.0
  %5108 = vmatprep.subr.mxu0 0.0
  %5109 = vmatpush2.msra.mxu0 0.0
  %5110 = vmatprep.subr.mxu0 0.0
  %5111 = vmatpush2.msra.mxu0 0.0
  %5112 = vmatprep.subr.mxu0 0.0
  %5113 = vmatpush2.msra.mxu0 0.0
  %5114 = vmatprep.subr.mxu0 0.0
  %5115 = vmatpush2.msra.mxu0 0.0
  %5116 = vmatprep.subr.mxu0 0.0
  %5117 = vmatpush2.msra.mxu0 0.0
  %5118 = vmatprep.mubr.f32.mxu0 0.0
  %5119 = vmatmul.mubr.f32.gmra.mxu0 %v4969
  %v5120 = vpop.f32.mrf.mxu0
  %v5121 = vadd.f32 0.0, %v5120
  %v5122 = vpop.f32.mrf.mxu0
  %v5123 = vadd.f32 0.0, %v5122
  %5124 = vdwg.mxu0
  %v5126 = vsel %vm1133, %v4402, 0
  %v5129 = vsel %vm2638, %v4911, 0
  %v5132 = vsel %vm2638, %v4912, 0
  %v5135 = vsel %vm2638, %v4913, 0
  %v5138 = vsel %vm2638, %v4914, 0
  %5140 = vmatprep.subr.mxu0 0.0
  %5141 = vmatpush1.msra.mxu0 0.0
  %5142 = vmatprep.subr.mxu0 0.0
  %5143 = vmatpush1.msra.mxu0 0.0
  %5144 = vmatprep.subr.mxu0 0.0
  %5145 = vmatpush1.msra.mxu0 0.0
  %5146 = vmatprep.subr.mxu0 %v5132
  %5147 = vmatpush1.msra.mxu0 %v5129
  %5148 = vmatprep.subr.mxu0 %v4908
  %5149 = vmatpush1.msra.mxu0 %v4907
  %5150 = vmatprep.subr.mxu0 %v4904
  %5151 = vmatpush1.msra.mxu0 %v4903
  %5152 = vmatprep.subr.mxu0 %v4900
  %5153 = vmatpush1.msra.mxu0 %v4899
  %5154 = vmatprep.subr.mxu0 %v4896
  %5155 = vmatpush1.msra.mxu0 %v4895
  %5156 = vmatprep.subr.mxu0 %v4892
  %5157 = vmatpush1.msra.mxu0 %v4891
  %5158 = vmatprep.subr.mxu0 %v4888
  %5159 = vmatpush1.msra.mxu0 %v4887
  %5160 = vmatprep.subr.mxu0 %v4884
  %5161 = vmatpush1.msra.mxu0 %v4883
  %5162 = vmatprep.subr.mxu0 %v4880
  %5163 = vmatpush1.msra.mxu0 %v4879
  %5164 = vmatprep.subr.mxu0 %v4876
  %5165 = vmatpush1.msra.mxu0 %v4875
  %5166 = vmatprep.subr.mxu0 %v4872
  %5167 = vmatpush1.msra.mxu0 %v4871
  %5168 = vmatprep.subr.mxu0 %v4868
  %5169 = vmatpush1.msra.mxu0 %v4867
  %5170 = vmatprep.subr.mxu0 %v4864
  %5171 = vmatpush1.msra.mxu0 %v4863
  %5172 = vmatprep.subr.mxu0 0.0
  %5173 = vmatpush2.msra.mxu0 0.0
  %5174 = vmatprep.subr.mxu0 0.0
  %5175 = vmatpush2.msra.mxu0 0.0
  %5176 = vmatprep.subr.mxu0 0.0
  %5177 = vmatpush2.msra.mxu0 0.0
  %5178 = vmatprep.subr.mxu0 0.0
  %5179 = vmatpush2.msra.mxu0 0.0
  %5180 = vmatprep.subr.mxu0 0.0
  %5181 = vmatpush2.msra.mxu0 0.0
  %5182 = vmatprep.subr.mxu0 0.0
  %5183 = vmatpush2.msra.mxu0 0.0
  %5184 = vmatprep.subr.mxu0 0.0
  %5185 = vmatpush2.msra.mxu0 0.0
  %5186 = vmatprep.subr.mxu0 0.0
  %5187 = vmatpush2.msra.mxu0 0.0
  %5188 = vmatprep.subr.mxu0 0.0
  %5189 = vmatpush2.msra.mxu0 0.0
  %5190 = vmatprep.subr.mxu0 0.0
  %5191 = vmatpush2.msra.mxu0 0.0
  %5192 = vmatprep.subr.mxu0 0.0
  %5193 = vmatpush2.msra.mxu0 0.0
  %5194 = vmatprep.subr.mxu0 0.0
  %5195 = vmatpush2.msra.mxu0 0.0
  %5196 = vmatprep.subr.mxu0 0.0
  %5197 = vmatpush2.msra.mxu0 0.0
  %5198 = vmatprep.subr.mxu0 0.0
  %5199 = vmatpush2.msra.mxu0 0.0
  %5200 = vmatprep.subr.mxu0 0.0
  %5201 = vmatpush2.msra.mxu0 0.0
  %5202 = vmatprep.subr.mxu0 0.0
  %5203 = vmatpush2.msra.mxu0 0.0
  %5204 = vmatprep.mubr.f32.mxu0 0.0
  %5205 = vmatmul.mubr.f32.gmra.mxu0 %v5126
  %v5206 = vpop.f32.mrf.mxu0
  %v5207 = vadd.f32 %v5050, %v5206
  %v5208 = vpop.f32.mrf.mxu0
  %v5209 = vadd.f32 %v5052, %v5208
  %5210 = vdwg.mxu0
  %5211 = vmatprep.subr.mxu0 0.0
  %5212 = vmatpush1.msra.mxu0 0.0
  %5213 = vmatprep.subr.mxu0 0.0
  %5214 = vmatpush1.msra.mxu0 0.0
  %5215 = vmatprep.subr.mxu0 0.0
  %5216 = vmatpush1.msra.mxu0 0.0
  %5217 = vmatprep.subr.mxu0 %v5138
  %5218 = vmatpush1.msra.mxu0 %v5135
  %5219 = vmatprep.subr.mxu0 %v4910
  %5220 = vmatpush1.msra.mxu0 %v4909
  %5221 = vmatprep.subr.mxu0 %v4906
  %5222 = vmatpush1.msra.mxu0 %v4905
  %5223 = vmatprep.subr.mxu0 %v4902
  %5224 = vmatpush1.msra.mxu0 %v4901
  %5225 = vmatprep.subr.mxu0 %v4898
  %5226 = vmatpush1.msra.mxu0 %v4897
  %5227 = vmatprep.subr.mxu0 %v4894
  %5228 = vmatpush1.msra.mxu0 %v4893
  %5229 = vmatprep.subr.mxu0 %v4890
  %5230 = vmatpush1.msra.mxu0 %v4889
  %5231 = vmatprep.subr.mxu0 %v4886
  %5232 = vmatpush1.msra.mxu0 %v4885
  %5233 = vmatprep.subr.mxu0 %v4882
  %5234 = vmatpush1.msra.mxu0 %v4881
  %5235 = vmatprep.subr.mxu0 %v4878
  %5236 = vmatpush1.msra.mxu0 %v4877
  %5237 = vmatprep.subr.mxu0 %v4874
  %5238 = vmatpush1.msra.mxu0 %v4873
  %5239 = vmatprep.subr.mxu0 %v4870
  %5240 = vmatpush1.msra.mxu0 %v4869
  %5241 = vmatprep.subr.mxu0 %v4866
  %5242 = vmatpush1.msra.mxu0 %v4865
  %5243 = vmatprep.subr.mxu0 0.0
  %5244 = vmatpush2.msra.mxu0 0.0
  %5245 = vmatprep.subr.mxu0 0.0
  %5246 = vmatpush2.msra.mxu0 0.0
  %5247 = vmatprep.subr.mxu0 0.0
  %5248 = vmatpush2.msra.mxu0 0.0
  %5249 = vmatprep.subr.mxu0 0.0
  %5250 = vmatpush2.msra.mxu0 0.0
  %5251 = vmatprep.subr.mxu0 0.0
  %5252 = vmatpush2.msra.mxu0 0.0
  %5253 = vmatprep.subr.mxu0 0.0
  %5254 = vmatpush2.msra.mxu0 0.0
  %5255 = vmatprep.subr.mxu0 0.0
  %5256 = vmatpush2.msra.mxu0 0.0
  %5257 = vmatprep.subr.mxu0 0.0
  %5258 = vmatpush2.msra.mxu0 0.0
  %5259 = vmatprep.subr.mxu0 0.0
  %5260 = vmatpush2.msra.mxu0 0.0
  %5261 = vmatprep.subr.mxu0 0.0
  %5262 = vmatpush2.msra.mxu0 0.0
  %5263 = vmatprep.subr.mxu0 0.0
  %5264 = vmatpush2.msra.mxu0 0.0
  %5265 = vmatprep.subr.mxu0 0.0
  %5266 = vmatpush2.msra.mxu0 0.0
  %5267 = vmatprep.subr.mxu0 0.0
  %5268 = vmatpush2.msra.mxu0 0.0
  %5269 = vmatprep.subr.mxu0 0.0
  %5270 = vmatpush2.msra.mxu0 0.0
  %5271 = vmatprep.subr.mxu0 0.0
  %5272 = vmatpush2.msra.mxu0 0.0
  %5273 = vmatprep.subr.mxu0 0.0
  %5274 = vmatpush2.msra.mxu0 0.0
  %5275 = vmatprep.mubr.f32.mxu0 0.0
  %5276 = vmatmul.mubr.f32.gmra.mxu0 %v5126
  %v5277 = vpop.f32.mrf.mxu0
  %v5278 = vadd.f32 %v5121, %v5277
  %v5279 = vpop.f32.mrf.mxu0
  %v5280 = vadd.f32 %v5123, %v5279
  %5281 = vdwg.mxu0
  %s5282 = scalar_lea.vmem %s16, 832
  %v5283 = vld [vmem:[%s5282] sm:$0xff]
  %v5284 = vld [vmem:[%s5282 + $0x8] sm:$0xff]
  %v5285 = vld [vmem:[%s5282 + $0x10] sm:$0xff]
  %v5286 = vld [vmem:[%s5282 + $0x18] sm:$0xff]
  %v5287 = vld [vmem:[%s5282 + $0x20] sm:$0xff]
  %v5288 = vld [vmem:[%s5282 + $0x28] sm:$0xff]
  %v5289 = vld [vmem:[%s5282 + $0x30] sm:$0xff]
  %v5290 = vld [vmem:[%s5282 + $0x38] sm:$0xff]
  %v5291 = vld [vmem:[%s5282 + $0x40] sm:$0xff]
  %v5292 = vld [vmem:[%s5282 + $0x48] sm:$0xff]
  %v5293 = vld [vmem:[%s5282 + $0x50] sm:$0xff]
  %v5294 = vld [vmem:[%s5282 + $0x58] sm:$0xff]
  %v5295 = vld [vmem:[%s5282 + $0x60] sm:$0xff]
  %v5296 = vld [vmem:[%s5282 + $0x68] sm:$0xff]
  %v5297 = vld [vmem:[%s5282 + $0x70] sm:$0xff]
  %v5298 = vld [vmem:[%s5282 + $0x78] sm:$0xff]
  %v5299 = vld [vmem:[%s5282 + $0x80] sm:$0xff]
  %v5300 = vld [vmem:[%s5282 + $0x88] sm:$0xff]
  %v5301 = vld [vmem:[%s5282 + $0x90] sm:$0xff]
  %v5302 = vld [vmem:[%s5282 + $0x98] sm:$0xff]
  %v5303 = vld [vmem:[%s5282 + $0xa0] sm:$0xff]
  %v5304 = vld [vmem:[%s5282 + $0xa8] sm:$0xff]
  %v5305 = vld [vmem:[%s5282 + $0xb0] sm:$0xff]
  %v5306 = vld [vmem:[%s5282 + $0xb8] sm:$0xff]
  %v5307 = vld [vmem:[%s5282 + $0xc0] sm:$0xff]
  %v5308 = vld [vmem:[%s5282 + $0xc8] sm:$0xff]
  %v5309 = vld [vmem:[%s5282 + $0xd0] sm:$0xff]
  %v5310 = vld [vmem:[%s5282 + $0xd8] sm:$0xff]
  %v5311 = vld [vmem:[%s5282 + $0xe0] sm:$0xff]
  %v5312 = vld [vmem:[%s5282 + $0xe8] sm:$0xff]
  %v5313 = vld [vmem:[%s5282 + $0xf0] sm:$0xff]
  %v5314 = vld [vmem:[%s5282 + $0xf8] sm:$0xff]
  %v5315 = vld [vmem:[%s5282 + $0x100] sm:$0xff]
  %v5316 = vld [vmem:[%s5282 + $0x108] sm:$0xff]
  %v5317 = vld [vmem:[%s5282 + $0x110] sm:$0xff]
  %v5318 = vld [vmem:[%s5282 + $0x118] sm:$0xff]
  %v5319 = vld [vmem:[%s5282 + $0x120] sm:$0xff]
  %v5320 = vld [vmem:[%s5282 + $0x128] sm:$0xff]
  %v5321 = vld [vmem:[%s5282 + $0x130] sm:$0xff]
  %v5322 = vld [vmem:[%s5282 + $0x138] sm:$0xff]
  %v5323 = vld [vmem:[%s5282 + $0x140] sm:$0xff]
  %v5324 = vld [vmem:[%s5282 + $0x148] sm:$0xff]
  %v5325 = vld [vmem:[%s5282 + $0x150] sm:$0xff]
  %v5326 = vld [vmem:[%s5282 + $0x158] sm:$0xff]
  %v5327 = vld [vmem:[%s5282 + $0x160] sm:$0xff]
  %v5328 = vld [vmem:[%s5282 + $0x168] sm:$0xff]
  %v5329 = vld [vmem:[%s5282 + $0x170] sm:$0xff]
  %v5330 = vld [vmem:[%s5282 + $0x178] sm:$0xff]
  %v5331 = vld [vmem:[%s5282 + $0x180] sm:$0x3]
  %v5332 = vld [vmem:[%s5282 + $0x188] sm:$0x3]
  %v5333 = vld [vmem:[%s5282 + $0x190] sm:$0x3]
  %v5334 = vld [vmem:[%s5282 + $0x198] sm:$0x3]
  %v5336 = vsel %vm1133, %v4784, 0
  %v5339 = vsel %vm2638, %v5331, 0
  %v5342 = vsel %vm2638, %v5332, 0
  %v5345 = vsel %vm2638, %v5333, 0
  %v5348 = vsel %vm2638, %v5334, 0
  %5350 = vmatprep.subr.mxu0 0.0
  %5351 = vmatpush1.msra.mxu0 0.0
  %5352 = vmatprep.subr.mxu0 0.0
  %5353 = vmatpush1.msra.mxu0 0.0
  %5354 = vmatprep.subr.mxu0 0.0
  %5355 = vmatpush1.msra.mxu0 0.0
  %5356 = vmatprep.subr.mxu0 %v5342
  %5357 = vmatpush1.msra.mxu0 %v5339
  %5358 = vmatprep.subr.mxu0 %v5328
  %5359 = vmatpush1.msra.mxu0 %v5327
  %5360 = vmatprep.subr.mxu0 %v5324
  %5361 = vmatpush1.msra.mxu0 %v5323
  %5362 = vmatprep.subr.mxu0 %v5320
  %5363 = vmatpush1.msra.mxu0 %v5319
  %5364 = vmatprep.subr.mxu0 %v5316
  %5365 = vmatpush1.msra.mxu0 %v5315
  %5366 = vmatprep.subr.mxu0 %v5312
  %5367 = vmatpush1.msra.mxu0 %v5311
  %5368 = vmatprep.subr.mxu0 %v5308
  %5369 = vmatpush1.msra.mxu0 %v5307
  %5370 = vmatprep.subr.mxu0 %v5304
  %5371 = vmatpush1.msra.mxu0 %v5303
  %5372 = vmatprep.subr.mxu0 %v5300
  %5373 = vmatpush1.msra.mxu0 %v5299
  %5374 = vmatprep.subr.mxu0 %v5296
  %5375 = vmatpush1.msra.mxu0 %v5295
  %5376 = vmatprep.subr.mxu0 %v5292
  %5377 = vmatpush1.msra.mxu0 %v5291
  %5378 = vmatprep.subr.mxu0 %v5288
  %5379 = vmatpush1.msra.mxu0 %v5287
  %5380 = vmatprep.subr.mxu0 %v5284
  %5381 = vmatpush1.msra.mxu0 %v5283
  %5382 = vmatprep.subr.mxu0 0.0
  %5383 = vmatpush2.msra.mxu0 0.0
  %5384 = vmatprep.subr.mxu0 0.0
  %5385 = vmatpush2.msra.mxu0 0.0
  %5386 = vmatprep.subr.mxu0 0.0
  %5387 = vmatpush2.msra.mxu0 0.0
  %5388 = vmatprep.subr.mxu0 0.0
  %5389 = vmatpush2.msra.mxu0 0.0
  %5390 = vmatprep.subr.mxu0 0.0
  %5391 = vmatpush2.msra.mxu0 0.0
  %5392 = vmatprep.subr.mxu0 0.0
  %5393 = vmatpush2.msra.mxu0 0.0
  %5394 = vmatprep.subr.mxu0 0.0
  %5395 = vmatpush2.msra.mxu0 0.0
  %5396 = vmatprep.subr.mxu0 0.0
  %5397 = vmatpush2.msra.mxu0 0.0
  %5398 = vmatprep.subr.mxu0 0.0
  %5399 = vmatpush2.msra.mxu0 0.0
  %5400 = vmatprep.subr.mxu0 0.0
  %5401 = vmatpush2.msra.mxu0 0.0
  %5402 = vmatprep.subr.mxu0 0.0
  %5403 = vmatpush2.msra.mxu0 0.0
  %5404 = vmatprep.subr.mxu0 0.0
  %5405 = vmatpush2.msra.mxu0 0.0
  %5406 = vmatprep.subr.mxu0 0.0
  %5407 = vmatpush2.msra.mxu0 0.0
  %5408 = vmatprep.subr.mxu0 0.0
  %5409 = vmatpush2.msra.mxu0 0.0
  %5410 = vmatprep.subr.mxu0 0.0
  %5411 = vmatpush2.msra.mxu0 0.0
  %5412 = vmatprep.subr.mxu0 0.0
  %5413 = vmatpush2.msra.mxu0 0.0
  %5414 = vmatprep.mubr.f32.mxu0 0.0
  %5415 = vmatmul.mubr.f32.gmra.mxu0 %v5336
  %v5416 = vpop.f32.mrf.mxu0
  %v5417 = vadd.f32 0.0, %v5416
  %v5418 = vpop.f32.mrf.mxu0
  %v5419 = vadd.f32 0.0, %v5418
  %5420 = vdwg.mxu0
  %5421 = vmatprep.subr.mxu0 0.0
  %5422 = vmatpush1.msra.mxu0 0.0
  %5423 = vmatprep.subr.mxu0 0.0
  %5424 = vmatpush1.msra.mxu0 0.0
  %5425 = vmatprep.subr.mxu0 0.0
  %5426 = vmatpush1.msra.mxu0 0.0
  %5427 = vmatprep.subr.mxu0 %v5348
  %5428 = vmatpush1.msra.mxu0 %v5345
  %5429 = vmatprep.subr.mxu0 %v5330
  %5430 = vmatpush1.msra.mxu0 %v5329
  %5431 = vmatprep.subr.mxu0 %v5326
  %5432 = vmatpush1.msra.mxu0 %v5325
  %5433 = vmatprep.subr.mxu0 %v5322
  %5434 = vmatpush1.msra.mxu0 %v5321
  %5435 = vmatprep.subr.mxu0 %v5318
  %5436 = vmatpush1.msra.mxu0 %v5317
  %5437 = vmatprep.subr.mxu0 %v5314
  %5438 = vmatpush1.msra.mxu0 %v5313
  %5439 = vmatprep.subr.mxu0 %v5310
  %5440 = vmatpush1.msra.mxu0 %v5309
  %5441 = vmatprep.subr.mxu0 %v5306
  %5442 = vmatpush1.msra.mxu0 %v5305
  %5443 = vmatprep.subr.mxu0 %v5302
  %5444 = vmatpush1.msra.mxu0 %v5301
  %5445 = vmatprep.subr.mxu0 %v5298
  %5446 = vmatpush1.msra.mxu0 %v5297
  %5447 = vmatprep.subr.mxu0 %v5294
  %5448 = vmatpush1.msra.mxu0 %v5293
  %5449 = vmatprep.subr.mxu0 %v5290
  %5450 = vmatpush1.msra.mxu0 %v5289
  %5451 = vmatprep.subr.mxu0 %v5286
  %5452 = vmatpush1.msra.mxu0 %v5285
  %5453 = vmatprep.subr.mxu0 0.0
  %5454 = vmatpush2.msra.mxu0 0.0
  %5455 = vmatprep.subr.mxu0 0.0
  %5456 = vmatpush2.msra.mxu0 0.0
  %5457 = vmatprep.subr.mxu0 0.0
  %5458 = vmatpush2.msra.mxu0 0.0
  %5459 = vmatprep.subr.mxu0 0.0
  %5460 = vmatpush2.msra.mxu0 0.0
  %5461 = vmatprep.subr.mxu0 0.0
  %5462 = vmatpush2.msra.mxu0 0.0
  %5463 = vmatprep.subr.mxu0 0.0
  %5464 = vmatpush2.msra.mxu0 0.0
  %5465 = vmatprep.subr.mxu0 0.0
  %5466 = vmatpush2.msra.mxu0 0.0
  %5467 = vmatprep.subr.mxu0 0.0
  %5468 = vmatpush2.msra.mxu0 0.0
  %5469 = vmatprep.subr.mxu0 0.0
  %5470 = vmatpush2.msra.mxu0 0.0
  %5471 = vmatprep.subr.mxu0 0.0
  %5472 = vmatpush2.msra.mxu0 0.0
  %5473 = vmatprep.subr.mxu0 0.0
  %5474 = vmatpush2.msra.mxu0 0.0
  %5475 = vmatprep.subr.mxu0 0.0
  %5476 = vmatpush2.msra.mxu0 0.0
  %5477 = vmatprep.subr.mxu0 0.0
  %5478 = vmatpush2.msra.mxu0 0.0
  %5479 = vmatprep.subr.mxu0 0.0
  %5480 = vmatpush2.msra.mxu0 0.0
  %5481 = vmatprep.subr.mxu0 0.0
  %5482 = vmatpush2.msra.mxu0 0.0
  %5483 = vmatprep.subr.mxu0 0.0
  %5484 = vmatpush2.msra.mxu0 0.0
  %5485 = vmatprep.mubr.f32.mxu0 0.0
  %5486 = vmatmul.mubr.f32.gmra.mxu0 %v5336
  %v5487 = vpop.f32.mrf.mxu0
  %v5488 = vadd.f32 0.0, %v5487
  %v5489 = vpop.f32.mrf.mxu0
  %v5490 = vadd.f32 0.0, %v5489
  %5491 = vdwg.mxu0
  %v5492 = vadd.f32 %v5207, %v5417
  %v5493 = vadd.f32 %v5209, %v5419
  %v5494 = vadd.f32 %v5278, %v5488
  %v5495 = vadd.f32 %v5280, %v5490
  %s5496 = scalar_lea.vmem %s16, 1248
  %v5497 = vld [vmem:[%s5496] sm:$0xff]
  %v5498 = vld [vmem:[%s5496 + $0x8] sm:$0xff]
  %v5499 = vld [vmem:[%s5496 + $0x10] sm:$0xff]
  %v5500 = vld [vmem:[%s5496 + $0x18] sm:$0xff]
  %v5501 = vld [vmem:[%s5496 + $0x20] sm:$0xff]
  %v5502 = vld [vmem:[%s5496 + $0x28] sm:$0xff]
  %v5503 = vld [vmem:[%s5496 + $0x30] sm:$0xff]
  %v5504 = vld [vmem:[%s5496 + $0x38] sm:$0xff]
  %v5505 = vld [vmem:[%s5496 + $0x40] sm:$0xff]
  %v5506 = vld [vmem:[%s5496 + $0x48] sm:$0xff]
  %v5507 = vld [vmem:[%s5496 + $0x50] sm:$0xff]
  %v5508 = vld [vmem:[%s5496 + $0x58] sm:$0xff]
  %v5509 = vld [vmem:[%s5496 + $0x60] sm:$0xff]
  %v5510 = vld [vmem:[%s5496 + $0x68] sm:$0xff]
  %v5511 = vld [vmem:[%s5496 + $0x70] sm:$0xff]
  %v5512 = vld [vmem:[%s5496 + $0x78] sm:$0xff]
  %v5513 = vld [vmem:[%s5496 + $0x80] sm:$0xff]
  %v5514 = vld [vmem:[%s5496 + $0x88] sm:$0xff]
  %v5515 = vld [vmem:[%s5496 + $0x90] sm:$0xff]
  %v5516 = vld [vmem:[%s5496 + $0x98] sm:$0xff]
  %v5517 = vld [vmem:[%s5496 + $0xa0] sm:$0xff]
  %v5518 = vld [vmem:[%s5496 + $0xa8] sm:$0xff]
  %v5519 = vld [vmem:[%s5496 + $0xb0] sm:$0xff]
  %v5520 = vld [vmem:[%s5496 + $0xb8] sm:$0xff]
  %v5521 = vld [vmem:[%s5496 + $0xc0] sm:$0xff]
  %v5522 = vld [vmem:[%s5496 + $0xc8] sm:$0xff]
  %v5523 = vld [vmem:[%s5496 + $0xd0] sm:$0xff]
  %v5524 = vld [vmem:[%s5496 + $0xd8] sm:$0xff]
  %v5525 = vld [vmem:[%s5496 + $0xe0] sm:$0xff]
  %v5526 = vld [vmem:[%s5496 + $0xe8] sm:$0xff]
  %v5527 = vld [vmem:[%s5496 + $0xf0] sm:$0xff]
  %v5528 = vld [vmem:[%s5496 + $0xf8] sm:$0xff]
  %v5529 = vld [vmem:[%s5496 + $0x100] sm:$0xff]
  %v5530 = vld [vmem:[%s5496 + $0x108] sm:$0xff]
  %v5531 = vld [vmem:[%s5496 + $0x110] sm:$0xff]
  %v5532 = vld [vmem:[%s5496 + $0x118] sm:$0xff]
  %v5533 = vld [vmem:[%s5496 + $0x120] sm:$0xff]
  %v5534 = vld [vmem:[%s5496 + $0x128] sm:$0xff]
  %v5535 = vld [vmem:[%s5496 + $0x130] sm:$0xff]
  %v5536 = vld [vmem:[%s5496 + $0x138] sm:$0xff]
  %v5537 = vld [vmem:[%s5496 + $0x140] sm:$0xff]
  %v5538 = vld [vmem:[%s5496 + $0x148] sm:$0xff]
  %v5539 = vld [vmem:[%s5496 + $0x150] sm:$0xff]
  %v5540 = vld [vmem:[%s5496 + $0x158] sm:$0xff]
  %v5541 = vld [vmem:[%s5496 + $0x160] sm:$0xff]
  %v5542 = vld [vmem:[%s5496 + $0x168] sm:$0xff]
  %v5543 = vld [vmem:[%s5496 + $0x170] sm:$0xff]
  %v5544 = vld [vmem:[%s5496 + $0x178] sm:$0xff]
  %v5545 = vld [vmem:[%s5496 + $0x180] sm:$0x3]
  %v5546 = vld [vmem:[%s5496 + $0x188] sm:$0x3]
  %v5547 = vld [vmem:[%s5496 + $0x190] sm:$0x3]
  %v5548 = vld [vmem:[%s5496 + $0x198] sm:$0x3]
  %v5550 = vsel %vm1133, %v4862, 0
  %v5553 = vsel %vm2638, %v5545, 0
  %v5556 = vsel %vm2638, %v5546, 0
  %v5559 = vsel %vm2638, %v5547, 0
  %v5562 = vsel %vm2638, %v5548, 0
  %5564 = vmatprep.subr.mxu0 0.0
  %5565 = vmatpush1.msra.mxu0 0.0
  %5566 = vmatprep.subr.mxu0 0.0
  %5567 = vmatpush1.msra.mxu0 0.0
  %5568 = vmatprep.subr.mxu0 0.0
  %5569 = vmatpush1.msra.mxu0 0.0
  %5570 = vmatprep.subr.mxu0 %v5556
  %5571 = vmatpush1.msra.mxu0 %v5553
  %5572 = vmatprep.subr.mxu0 %v5542
  %5573 = vmatpush1.msra.mxu0 %v5541
  %5574 = vmatprep.subr.mxu0 %v5538
  %5575 = vmatpush1.msra.mxu0 %v5537
  %5576 = vmatprep.subr.mxu0 %v5534
  %5577 = vmatpush1.msra.mxu0 %v5533
  %5578 = vmatprep.subr.mxu0 %v5530
  %5579 = vmatpush1.msra.mxu0 %v5529
  %5580 = vmatprep.subr.mxu0 %v5526
  %5581 = vmatpush1.msra.mxu0 %v5525
  %5582 = vmatprep.subr.mxu0 %v5522
  %5583 = vmatpush1.msra.mxu0 %v5521
  %5584 = vmatprep.subr.mxu0 %v5518
  %5585 = vmatpush1.msra.mxu0 %v5517
  %5586 = vmatprep.subr.mxu0 %v5514
  %5587 = vmatpush1.msra.mxu0 %v5513
  %5588 = vmatprep.subr.mxu0 %v5510
  %5589 = vmatpush1.msra.mxu0 %v5509
  %5590 = vmatprep.subr.mxu0 %v5506
  %5591 = vmatpush1.msra.mxu0 %v5505
  %5592 = vmatprep.subr.mxu0 %v5502
  %5593 = vmatpush1.msra.mxu0 %v5501
  %5594 = vmatprep.subr.mxu0 %v5498
  %5595 = vmatpush1.msra.mxu0 %v5497
  %5596 = vmatprep.subr.mxu0 0.0
  %5597 = vmatpush2.msra.mxu0 0.0
  %5598 = vmatprep.subr.mxu0 0.0
  %5599 = vmatpush2.msra.mxu0 0.0
  %5600 = vmatprep.subr.mxu0 0.0
  %5601 = vmatpush2.msra.mxu0 0.0
  %5602 = vmatprep.subr.mxu0 0.0
  %5603 = vmatpush2.msra.mxu0 0.0
  %5604 = vmatprep.subr.mxu0 0.0
  %5605 = vmatpush2.msra.mxu0 0.0
  %5606 = vmatprep.subr.mxu0 0.0
  %5607 = vmatpush2.msra.mxu0 0.0
  %5608 = vmatprep.subr.mxu0 0.0
  %5609 = vmatpush2.msra.mxu0 0.0
  %5610 = vmatprep.subr.mxu0 0.0
  %5611 = vmatpush2.msra.mxu0 0.0
  %5612 = vmatprep.subr.mxu0 0.0
  %5613 = vmatpush2.msra.mxu0 0.0
  %5614 = vmatprep.subr.mxu0 0.0
  %5615 = vmatpush2.msra.mxu0 0.0
  %5616 = vmatprep.subr.mxu0 0.0
  %5617 = vmatpush2.msra.mxu0 0.0
  %5618 = vmatprep.subr.mxu0 0.0
  %5619 = vmatpush2.msra.mxu0 0.0
  %5620 = vmatprep.subr.mxu0 0.0
  %5621 = vmatpush2.msra.mxu0 0.0
  %5622 = vmatprep.subr.mxu0 0.0
  %5623 = vmatpush2.msra.mxu0 0.0
  %5624 = vmatprep.subr.mxu0 0.0
  %5625 = vmatpush2.msra.mxu0 0.0
  %5626 = vmatprep.subr.mxu0 0.0
  %5627 = vmatpush2.msra.mxu0 0.0
  %5628 = vmatprep.mubr.f32.mxu0 0.0
  %5629 = vmatmul.mubr.f32.gmra.mxu0 %v5550
  %v5630 = vpop.f32.mrf.mxu0
  %v5631 = vadd.f32 0.0, %v5630
  %v5632 = vpop.f32.mrf.mxu0
  %v5633 = vadd.f32 0.0, %v5632
  %5634 = vdwg.mxu0
  %5635 = vmatprep.subr.mxu0 0.0
  %5636 = vmatpush1.msra.mxu0 0.0
  %5637 = vmatprep.subr.mxu0 0.0
  %5638 = vmatpush1.msra.mxu0 0.0
  %5639 = vmatprep.subr.mxu0 0.0
  %5640 = vmatpush1.msra.mxu0 0.0
  %5641 = vmatprep.subr.mxu0 %v5562
  %5642 = vmatpush1.msra.mxu0 %v5559
  %5643 = vmatprep.subr.mxu0 %v5544
  %5644 = vmatpush1.msra.mxu0 %v5543
  %5645 = vmatprep.subr.mxu0 %v5540
  %5646 = vmatpush1.msra.mxu0 %v5539
  %5647 = vmatprep.subr.mxu0 %v5536
  %5648 = vmatpush1.msra.mxu0 %v5535
  %5649 = vmatprep.subr.mxu0 %v5532
  %5650 = vmatpush1.msra.mxu0 %v5531
  %5651 = vmatprep.subr.mxu0 %v5528
  %5652 = vmatpush1.msra.mxu0 %v5527
  %5653 = vmatprep.subr.mxu0 %v5524
  %5654 = vmatpush1.msra.mxu0 %v5523
  %5655 = vmatprep.subr.mxu0 %v5520
  %5656 = vmatpush1.msra.mxu0 %v5519
  %5657 = vmatprep.subr.mxu0 %v5516
  %5658 = vmatpush1.msra.mxu0 %v5515
  %5659 = vmatprep.subr.mxu0 %v5512
  %5660 = vmatpush1.msra.mxu0 %v5511
  %5661 = vmatprep.subr.mxu0 %v5508
  %5662 = vmatpush1.msra.mxu0 %v5507
  %5663 = vmatprep.subr.mxu0 %v5504
  %5664 = vmatpush1.msra.mxu0 %v5503
  %5665 = vmatprep.subr.mxu0 %v5500
  %5666 = vmatpush1.msra.mxu0 %v5499
  %5667 = vmatprep.subr.mxu0 0.0
  %5668 = vmatpush2.msra.mxu0 0.0
  %5669 = vmatprep.subr.mxu0 0.0
  %5670 = vmatpush2.msra.mxu0 0.0
  %5671 = vmatprep.subr.mxu0 0.0
  %5672 = vmatpush2.msra.mxu0 0.0
  %5673 = vmatprep.subr.mxu0 0.0
  %5674 = vmatpush2.msra.mxu0 0.0
  %5675 = vmatprep.subr.mxu0 0.0
  %5676 = vmatpush2.msra.mxu0 0.0
  %5677 = vmatprep.subr.mxu0 0.0
  %5678 = vmatpush2.msra.mxu0 0.0
  %5679 = vmatprep.subr.mxu0 0.0
  %5680 = vmatpush2.msra.mxu0 0.0
  %5681 = vmatprep.subr.mxu0 0.0
  %5682 = vmatpush2.msra.mxu0 0.0
  %5683 = vmatprep.subr.mxu0 0.0
  %5684 = vmatpush2.msra.mxu0 0.0
  %5685 = vmatprep.subr.mxu0 0.0
  %5686 = vmatpush2.msra.mxu0 0.0
  %5687 = vmatprep.subr.mxu0 0.0
  %5688 = vmatpush2.msra.mxu0 0.0
  %5689 = vmatprep.subr.mxu0 0.0
  %5690 = vmatpush2.msra.mxu0 0.0
  %5691 = vmatprep.subr.mxu0 0.0
  %5692 = vmatpush2.msra.mxu0 0.0
  %5693 = vmatprep.subr.mxu0 0.0
  %5694 = vmatpush2.msra.mxu0 0.0
  %5695 = vmatprep.subr.mxu0 0.0
  %5696 = vmatpush2.msra.mxu0 0.0
  %5697 = vmatprep.subr.mxu0 0.0
  %5698 = vmatpush2.msra.mxu0 0.0
  %5699 = vmatprep.mubr.f32.mxu0 0.0
  %5700 = vmatmul.mubr.f32.gmra.mxu0 %v5550
  %v5701 = vpop.f32.mrf.mxu0
  %v5702 = vadd.f32 0.0, %v5701
  %v5703 = vpop.f32.mrf.mxu0
  %v5704 = vadd.f32 0.0, %v5703
  %5705 = vdwg.mxu0
  %v5706 = vadd.f32 %v5492, %v5631
  %v5707 = vadd.f32 %v5493, %v5633
  %v5708 = vadd.f32 %v5494, %v5702
  %v5709 = vadd.f32 %v5495, %v5704
  %v5710 = vld [vmem:[%s17] sm:$0xff]
  %v5711 = vadd.f32 %v5706, %v5707
  %v5712 = vadd.f32 %v5711, %v5708
  %v5713 = vsel %vm258, %v5709, 0.0
  %v5714 = vadd.f32 %v5712, %v5713
  %5715 = vadd.xlane.f32.xlu0 %v5714
  %v5716 = vpop.xlane.xlu0 %5715
  %v5717 = vrcp.pop 392.0
  %v5718 = vmul.f32 %v5716, %v5717
  %v5719 = vsub.f32 %v5706, %v5718
  %v5720 = vsub.f32 %v5707, %v5718
  %v5721 = vsub.f32 %v5708, %v5718
  %v5722 = vsub.f32 %v5709, %v5718
  %v5723 = vmul.f32 %v5719, %v5719
  %v5724 = vmul.f32 %v5720, %v5720
  %v5725 = vmul.f32 %v5721, %v5721
  %v5726 = vmul.f32 %v5722, %v5722
  %v5727 = vadd.f32 %v5723, %v5724
  %v5728 = vadd.f32 %v5727, %v5725
  %v5729 = vsel %vm258, %v5726, 0.0
  %v5730 = vadd.f32 %v5728, %v5729
  %5731 = vadd.xlane.f32.xlu0 %v5730
  %v5732 = vpop.xlane.xlu0 %5731
  %v5733 = vmul.f32 %v5732, %v5717
  %v5734 = vadd.f32 %v5733, 1e-05
  %v5735 = vrsqrt.pop %v5734
  %v5736 = vmul.f32 %v5710, %v5735
  %5738 = vset.pattern.permute.xlu0 0
  %5739 = vperm.xlu0 %5738, %v5736
  %v5740 = vpop.permute.xlu0 %5739
  %v5742 = vmul.f32 %v5719, %v5740
  %v5743 = vmul.f32 %v5720, %v5740
  %v5744 = vmul.f32 %v5721, %v5740
  %v5745 = vmul.f32 %v5722, %v5740
  %5747 = vset.pattern.permute.xlu0 1
  %5748 = vperm.xlu0 %5747, %v5710
  %v5749 = vpop.permute.xlu0 %5748
  %v5751 = vadd.f32 %v5742, %v5749
  %v5752 = vadd.f32 %v5743, %v5749
  %v5753 = vadd.f32 %v5744, %v5749
  %v5754 = vadd.f32 %v5745, %v5749
  %v5755 = vmax.f32 %v5751, 0.0
  %v5756 = vmax.f32 %v5752, 0.0
  %v5757 = vmax.f32 %v5753, 0.0
  %v5758 = vmax.f32 %v5754, 0.0
  %5763 = vrot.lane.b32.xlu0 %v5755, 113
  %v5764 = vpop.permute.xlu0 %5763
  %5765 = vrot.lane.b32.xlu0 %v5756, 113
  %v5766 = vpop.permute.xlu0 %5765
  %5767 = vrot.lane.b32.xlu0 %v5757, 113
  %v5768 = vpop.permute.xlu0 %5767
  %5769 = vrot.lane.b32.xlu0 %v5758, 113
  %v5770 = vpop.permute.xlu0 %5769
  %vm5771 = vcmask 924672
  %v5772 = vsel %vm5771, %v5764, %v5766
  %v5773 = vsel %vm5771, %v5766, %v5768
  %v5774 = vsel %vm5771, %v5768, %v5770
  %vm5778 = vcmask 990208
  %v5779 = vsel %vm5778, %v5774, 0.0
  %v5780 = vld [vmem:[%s19] sm:$0xf]
  %v5782 = vlaneseq
  %v5783 = vshrl.u32 %v5782, 7
  %v5784 = vsub.s32 0, %v5783
  %v5785 = vrot.slane %v5780, %v5784
  %v5786 = vlaneseq
  %v5787 = vshrl.u32 %v5786, 7
  %v5788 = vsub.s32 1, %v5787
  %v5789 = vrot.slane %v5780, %v5788
  %v5790 = vlaneseq
  %v5791 = vshrl.u32 %v5790, 7
  %v5792 = vsub.s32 2, %v5791
  %v5793 = vrot.slane %v5780, %v5792
  %v5794 = vlaneseq
  %v5795 = vshrl.u32 %v5794, 7
  %v5796 = vsub.s32 3, %v5795
  %v5797 = vrot.slane %v5780, %v5796
  %v5802 = vmul.f32 %v5772, %v5785
  %v5803 = vmul.f32 %v5773, %v5789
  %v5804 = vmul.f32 %v5779, %v5793
  %v5805 = vmul.f32 %v5797, 0.0
  %v5806 = vld [vmem:[%s18] sm:$0x7]
  %5807 = vrot.lane.b32.xlu0 %v5755, 114
  %v5808 = vpop.permute.xlu0 %5807
  %5809 = vrot.lane.b32.xlu0 %v5756, 114
  %v5810 = vpop.permute.xlu0 %5809
  %5811 = vrot.lane.b32.xlu0 %v5757, 114
  %v5812 = vpop.permute.xlu0 %5811
  %5813 = vrot.lane.b32.xlu0 %v5758, 114
  %v5814 = vpop.permute.xlu0 %5813
  %vm5815 = vcmask 932864
  %v5816 = vsel %vm5815, %v5808, %v5810
  %v5817 = vsel %vm5815, %v5810, %v5812
  %v5818 = vsel %vm5815, %v5812, %v5814
  %vm5822 = vcmask 998400
  %v5823 = vsel %vm5822, %v5818, 0.0
  %s5824 = scalar_lea.vmem %s19, 4
  %v5825 = vld [vmem:[%s5824] sm:$0xf]
  %v5827 = vlaneseq
  %v5828 = vshrl.u32 %v5827, 7
  %v5829 = vsub.s32 0, %v5828
  %v5830 = vrot.slane %v5825, %v5829
  %v5831 = vlaneseq
  %v5832 = vshrl.u32 %v5831, 7
  %v5833 = vsub.s32 1, %v5832
  %v5834 = vrot.slane %v5825, %v5833
  %v5835 = vlaneseq
  %v5836 = vshrl.u32 %v5835, 7
  %v5837 = vsub.s32 2, %v5836
  %v5838 = vrot.slane %v5825, %v5837
  %v5839 = vlaneseq
  %v5840 = vshrl.u32 %v5839, 7
  %v5841 = vsub.s32 3, %v5840
  %v5842 = vrot.slane %v5825, %v5841
  %v5847 = vmul.f32 %v5816, %v5830
  %v5848 = vmul.f32 %v5817, %v5834
  %v5849 = vmul.f32 %v5823, %v5838
  %v5850 = vmul.f32 %v5842, 0.0
  %s5851 = scalar_lea.vmem %s18, 4
  %v5852 = vld [vmem:[%s5851] sm:$0x7]
  %s5853 = scalar_lea.vmem %s19, 8
  %v5854 = vld [vmem:[%s5853] sm:$0xf]
  %v5856 = vlaneseq
  %v5857 = vshrl.u32 %v5856, 7
  %v5858 = vsub.s32 0, %v5857
  %v5859 = vrot.slane %v5854, %v5858
  %v5860 = vlaneseq
  %v5861 = vshrl.u32 %v5860, 7
  %v5862 = vsub.s32 1, %v5861
  %v5863 = vrot.slane %v5854, %v5862
  %v5864 = vlaneseq
  %v5865 = vshrl.u32 %v5864, 7
  %v5866 = vsub.s32 2, %v5865
  %v5867 = vrot.slane %v5854, %v5866
  %v5868 = vlaneseq
  %v5869 = vshrl.u32 %v5868, 7
  %v5870 = vsub.s32 3, %v5869
  %v5871 = vrot.slane %v5854, %v5870
  %v5876 = vmul.f32 %v5816, %v5859
  %v5877 = vmul.f32 %v5817, %v5863
  %v5878 = vmul.f32 %v5823, %v5867
  %v5879 = vmul.f32 %v5871, 0.0
  %s5880 = scalar_lea.vmem %s18, 8
  %v5881 = vld [vmem:[%s5880] sm:$0x7]
  %v5883 = vsel %vm258, %v5881, 0
  %5885 = vmatprep.subr.mxu0 0.0
  %5886 = vmatpush1.msra.mxu0 0.0
  %5887 = vmatprep.subr.mxu0 0.0
  %5888 = vmatpush1.msra.mxu0 0.0
  %5889 = vmatprep.subr.mxu0 0.0
  %5890 = vmatpush1.msra.mxu0 0.0
  %5891 = vmatprep.subr.mxu0 0.0
  %5892 = vmatpush1.msra.mxu0 0.0
  %5893 = vmatprep.subr.mxu0 0.0
  %5894 = vmatpush1.msra.mxu0 0.0
  %5895 = vmatprep.subr.mxu0 0.0
  %5896 = vmatpush1.msra.mxu0 0.0
  %5897 = vmatprep.subr.mxu0 0.0
  %5898 = vmatpush1.msra.mxu0 0.0
  %5899 = vmatprep.subr.mxu0 0.0
  %5900 = vmatpush1.msra.mxu0 0.0
  %5901 = vmatprep.subr.mxu0 0.0
  %5902 = vmatpush1.msra.mxu0 0.0
  %5903 = vmatprep.subr.mxu0 0.0
  %5904 = vmatpush1.msra.mxu0 0.0
  %5905 = vmatprep.subr.mxu0 0.0
  %5906 = vmatpush1.msra.mxu0 0.0
  %5907 = vmatprep.subr.mxu0 0.0
  %5908 = vmatpush1.msra.mxu0 0.0
  %5909 = vmatprep.subr.mxu0 0.0
  %5910 = vmatpush1.msra.mxu0 0.0
  %5911 = vmatprep.subr.mxu0 0.0
  %5912 = vmatpush1.msra.mxu0 0.0
  %5913 = vmatprep.subr.mxu0 0.0
  %5914 = vmatpush1.msra.mxu0 0.0
  %5915 = vmatprep.subr.mxu0 %v5877
  %5916 = vmatpush1.msra.mxu0 %v5876
  %5917 = vmatprep.subr.mxu0 0.0
  %5918 = vmatpush2.msra.mxu0 0.0
  %5919 = vmatprep.subr.mxu0 0.0
  %5920 = vmatpush2.msra.mxu0 0.0
  %5921 = vmatprep.subr.mxu0 0.0
  %5922 = vmatpush2.msra.mxu0 0.0
  %5923 = vmatprep.subr.mxu0 0.0
  %5924 = vmatpush2.msra.mxu0 0.0
  %5925 = vmatprep.subr.mxu0 0.0
  %5926 = vmatpush2.msra.mxu0 0.0
  %5927 = vmatprep.subr.mxu0 0.0
  %5928 = vmatpush2.msra.mxu0 0.0
  %5929 = vmatprep.subr.mxu0 0.0
  %5930 = vmatpush2.msra.mxu0 0.0
  %5931 = vmatprep.subr.mxu0 0.0
  %5932 = vmatpush2.msra.mxu0 0.0
  %5933 = vmatprep.subr.mxu0 0.0
  %5934 = vmatpush2.msra.mxu0 0.0
  %5935 = vmatprep.subr.mxu0 0.0
  %5936 = vmatpush2.msra.mxu0 0.0
  %5937 = vmatprep.subr.mxu0 0.0
  %5938 = vmatpush2.msra.mxu0 0.0
  %5939 = vmatprep.subr.mxu0 0.0
  %5940 = vmatpush2.msra.mxu0 0.0
  %5941 = vmatprep.subr.mxu0 0.0
  %5942 = vmatpush2.msra.mxu0 0.0
  %5943 = vmatprep.subr.mxu0 0.0
  %5944 = vmatpush2.msra.mxu0 0.0
  %5945 = vmatprep.subr.mxu0 0.0
  %5946 = vmatpush2.msra.mxu0 0.0
  %5947 = vmatprep.subr.mxu0 0.0
  %5948 = vmatpush2.msra.mxu0 0.0
  %5949 = vmatprep.mubr.f32.mxu0 0.0
  %5950 = vmatmul.mubr.f32.gmra.mxu0 %v5883
  %v5951 = vpop.f32.mrf.mxu0
  %v5952 = vadd.f32 0.0, %v5951
  %v5953 = vpop.f32.mrf.mxu0
  %v5954 = vadd.f32 0.0, %v5953
  %5955 = vdwg.mxu0
  %5956 = vmatprep.subr.mxu0 0.0
  %5957 = vmatpush1.msra.mxu0 0.0
  %5958 = vmatprep.subr.mxu0 0.0
  %5959 = vmatpush1.msra.mxu0 0.0
  %5960 = vmatprep.subr.mxu0 0.0
  %5961 = vmatpush1.msra.mxu0 0.0
  %5962 = vmatprep.subr.mxu0 0.0
  %5963 = vmatpush1.msra.mxu0 0.0
  %5964 = vmatprep.subr.mxu0 0.0
  %5965 = vmatpush1.msra.mxu0 0.0
  %5966 = vmatprep.subr.mxu0 0.0
  %5967 = vmatpush1.msra.mxu0 0.0
  %5968 = vmatprep.subr.mxu0 0.0
  %5969 = vmatpush1.msra.mxu0 0.0
  %5970 = vmatprep.subr.mxu0 0.0
  %5971 = vmatpush1.msra.mxu0 0.0
  %5972 = vmatprep.subr.mxu0 0.0
  %5973 = vmatpush1.msra.mxu0 0.0
  %5974 = vmatprep.subr.mxu0 0.0
  %5975 = vmatpush1.msra.mxu0 0.0
  %5976 = vmatprep.subr.mxu0 0.0
  %5977 = vmatpush1.msra.mxu0 0.0
  %5978 = vmatprep.subr.mxu0 0.0
  %5979 = vmatpush1.msra.mxu0 0.0
  %5980 = vmatprep.subr.mxu0 0.0
  %5981 = vmatpush1.msra.mxu0 0.0
  %5982 = vmatprep.subr.mxu0 0.0
  %5983 = vmatpush1.msra.mxu0 0.0
  %5984 = vmatprep.subr.mxu0 0.0
  %5985 = vmatpush1.msra.mxu0 0.0
  %5986 = vmatprep.subr.mxu0 %v5879
  %5987 = vmatpush1.msra.mxu0 %v5878
  %5988 = vmatprep.subr.mxu0 0.0
  %5989 = vmatpush2.msra.mxu0 0.0
  %5990 = vmatprep.subr.mxu0 0.0
  %5991 = vmatpush2.msra.mxu0 0.0
  %5992 = vmatprep.subr.mxu0 0.0
  %5993 = vmatpush2.msra.mxu0 0.0
  %5994 = vmatprep.subr.mxu0 0.0
  %5995 = vmatpush2.msra.mxu0 0.0
  %5996 = vmatprep.subr.mxu0 0.0
  %5997 = vmatpush2.msra.mxu0 0.0
  %5998 = vmatprep.subr.mxu0 0.0
  %5999 = vmatpush2.msra.mxu0 0.0
  %6000 = vmatprep.subr.mxu0 0.0
  %6001 = vmatpush2.msra.mxu0 0.0
  %6002 = vmatprep.subr.mxu0 0.0
  %6003 = vmatpush2.msra.mxu0 0.0
  %6004 = vmatprep.subr.mxu0 0.0
  %6005 = vmatpush2.msra.mxu0 0.0
  %6006 = vmatprep.subr.mxu0 0.0
  %6007 = vmatpush2.msra.mxu0 0.0
  %6008 = vmatprep.subr.mxu0 0.0
  %6009 = vmatpush2.msra.mxu0 0.0
  %6010 = vmatprep.subr.mxu0 0.0
  %6011 = vmatpush2.msra.mxu0 0.0
  %6012 = vmatprep.subr.mxu0 0.0
  %6013 = vmatpush2.msra.mxu0 0.0
  %6014 = vmatprep.subr.mxu0 0.0
  %6015 = vmatpush2.msra.mxu0 0.0
  %6016 = vmatprep.subr.mxu0 0.0
  %6017 = vmatpush2.msra.mxu0 0.0
  %6018 = vmatprep.subr.mxu0 0.0
  %6019 = vmatpush2.msra.mxu0 0.0
  %6020 = vmatprep.mubr.f32.mxu0 0.0
  %6021 = vmatmul.mubr.f32.gmra.mxu0 %v5883
  %v6022 = vpop.f32.mrf.mxu0
  %v6023 = vadd.f32 0.0, %v6022
  %v6024 = vpop.f32.mrf.mxu0
  %v6025 = vadd.f32 0.0, %v6024
  %6026 = vdwg.mxu0
  %v6028 = vsel %vm258, %v5806, 0
  %6030 = vmatprep.subr.mxu0 0.0
  %6031 = vmatpush1.msra.mxu0 0.0
  %6032 = vmatprep.subr.mxu0 0.0
  %6033 = vmatpush1.msra.mxu0 0.0
  %6034 = vmatprep.subr.mxu0 0.0
  %6035 = vmatpush1.msra.mxu0 0.0
  %6036 = vmatprep.subr.mxu0 0.0
  %6037 = vmatpush1.msra.mxu0 0.0
  %6038 = vmatprep.subr.mxu0 0.0
  %6039 = vmatpush1.msra.mxu0 0.0
  %6040 = vmatprep.subr.mxu0 0.0
  %6041 = vmatpush1.msra.mxu0 0.0
  %6042 = vmatprep.subr.mxu0 0.0
  %6043 = vmatpush1.msra.mxu0 0.0
  %6044 = vmatprep.subr.mxu0 0.0
  %6045 = vmatpush1.msra.mxu0 0.0
  %6046 = vmatprep.subr.mxu0 0.0
  %6047 = vmatpush1.msra.mxu0 0.0
  %6048 = vmatprep.subr.mxu0 0.0
  %6049 = vmatpush1.msra.mxu0 0.0
  %6050 = vmatprep.subr.mxu0 0.0
  %6051 = vmatpush1.msra.mxu0 0.0
  %6052 = vmatprep.subr.mxu0 0.0
  %6053 = vmatpush1.msra.mxu0 0.0
  %6054 = vmatprep.subr.mxu0 0.0
  %6055 = vmatpush1.msra.mxu0 0.0
  %6056 = vmatprep.subr.mxu0 0.0
  %6057 = vmatpush1.msra.mxu0 0.0
  %6058 = vmatprep.subr.mxu0 0.0
  %6059 = vmatpush1.msra.mxu0 0.0
  %6060 = vmatprep.subr.mxu0 %v5803
  %6061 = vmatpush1.msra.mxu0 %v5802
  %6062 = vmatprep.subr.mxu0 0.0
  %6063 = vmatpush2.msra.mxu0 0.0
  %6064 = vmatprep.subr.mxu0 0.0
  %6065 = vmatpush2.msra.mxu0 0.0
  %6066 = vmatprep.subr.mxu0 0.0
  %6067 = vmatpush2.msra.mxu0 0.0
  %6068 = vmatprep.subr.mxu0 0.0
  %6069 = vmatpush2.msra.mxu0 0.0
  %6070 = vmatprep.subr.mxu0 0.0
  %6071 = vmatpush2.msra.mxu0 0.0
  %6072 = vmatprep.subr.mxu0 0.0
  %6073 = vmatpush2.msra.mxu0 0.0
  %6074 = vmatprep.subr.mxu0 0.0
  %6075 = vmatpush2.msra.mxu0 0.0
  %6076 = vmatprep.subr.mxu0 0.0
  %6077 = vmatpush2.msra.mxu0 0.0
  %6078 = vmatprep.subr.mxu0 0.0
  %6079 = vmatpush2.msra.mxu0 0.0
  %6080 = vmatprep.subr.mxu0 0.0
  %6081 = vmatpush2.msra.mxu0 0.0
  %6082 = vmatprep.subr.mxu0 0.0
  %6083 = vmatpush2.msra.mxu0 0.0
  %6084 = vmatprep.subr.mxu0 0.0
  %6085 = vmatpush2.msra.mxu0 0.0
  %6086 = vmatprep.subr.mxu0 0.0
  %6087 = vmatpush2.msra.mxu0 0.0
  %6088 = vmatprep.subr.mxu0 0.0
  %6089 = vmatpush2.msra.mxu0 0.0
  %6090 = vmatprep.subr.mxu0 0.0
  %6091 = vmatpush2.msra.mxu0 0.0
  %6092 = vmatprep.subr.mxu0 0.0
  %6093 = vmatpush2.msra.mxu0 0.0
  %6094 = vmatprep.mubr.f32.mxu0 0.0
  %6095 = vmatmul.mubr.f32.gmra.mxu0 %v6028
  %v6096 = vpop.f32.mrf.mxu0
  %v6097 = vadd.f32 %v5952, %v6096
  %v6098 = vpop.f32.mrf.mxu0
  %v6099 = vadd.f32 %v5954, %v6098
  %6100 = vdwg.mxu0
  %6101 = vmatprep.subr.mxu0 0.0
  %6102 = vmatpush1.msra.mxu0 0.0
  %6103 = vmatprep.subr.mxu0 0.0
  %6104 = vmatpush1.msra.mxu0 0.0
  %6105 = vmatprep.subr.mxu0 0.0
  %6106 = vmatpush1.msra.mxu0 0.0
  %6107 = vmatprep.subr.mxu0 0.0
  %6108 = vmatpush1.msra.mxu0 0.0
  %6109 = vmatprep.subr.mxu0 0.0
  %6110 = vmatpush1.msra.mxu0 0.0
  %6111 = vmatprep.subr.mxu0 0.0
  %6112 = vmatpush1.msra.mxu0 0.0
  %6113 = vmatprep.subr.mxu0 0.0
  %6114 = vmatpush1.msra.mxu0 0.0
  %6115 = vmatprep.subr.mxu0 0.0
  %6116 = vmatpush1.msra.mxu0 0.0
  %6117 = vmatprep.subr.mxu0 0.0
  %6118 = vmatpush1.msra.mxu0 0.0
  %6119 = vmatprep.subr.mxu0 0.0
  %6120 = vmatpush1.msra.mxu0 0.0
  %6121 = vmatprep.subr.mxu0 0.0
  %6122 = vmatpush1.msra.mxu0 0.0
  %6123 = vmatprep.subr.mxu0 0.0
  %6124 = vmatpush1.msra.mxu0 0.0
  %6125 = vmatprep.subr.mxu0 0.0
  %6126 = vmatpush1.msra.mxu0 0.0
  %6127 = vmatprep.subr.mxu0 0.0
  %6128 = vmatpush1.msra.mxu0 0.0
  %6129 = vmatprep.subr.mxu0 0.0
  %6130 = vmatpush1.msra.mxu0 0.0
  %6131 = vmatprep.subr.mxu0 %v5805
  %6132 = vmatpush1.msra.mxu0 %v5804
  %6133 = vmatprep.subr.mxu0 0.0
  %6134 = vmatpush2.msra.mxu0 0.0
  %6135 = vmatprep.subr.mxu0 0.0
  %6136 = vmatpush2.msra.mxu0 0.0
  %6137 = vmatprep.subr.mxu0 0.0
  %6138 = vmatpush2.msra.mxu0 0.0
  %6139 = vmatprep.subr.mxu0 0.0
  %6140 = vmatpush2.msra.mxu0 0.0
  %6141 = vmatprep.subr.mxu0 0.0
  %6142 = vmatpush2.msra.mxu0 0.0
  %6143 = vmatprep.subr.mxu0 0.0
  %6144 = vmatpush2.msra.mxu0 0.0
  %6145 = vmatprep.subr.mxu0 0.0
  %6146 = vmatpush2.msra.mxu0 0.0
  %6147 = vmatprep.subr.mxu0 0.0
  %6148 = vmatpush2.msra.mxu0 0.0
  %6149 = vmatprep.subr.mxu0 0.0
  %6150 = vmatpush2.msra.mxu0 0.0
  %6151 = vmatprep.subr.mxu0 0.0
  %6152 = vmatpush2.msra.mxu0 0.0
  %6153 = vmatprep.subr.mxu0 0.0
  %6154 = vmatpush2.msra.mxu0 0.0
  %6155 = vmatprep.subr.mxu0 0.0
  %6156 = vmatpush2.msra.mxu0 0.0
  %6157 = vmatprep.subr.mxu0 0.0
  %6158 = vmatpush2.msra.mxu0 0.0
  %6159 = vmatprep.subr.mxu0 0.0
  %6160 = vmatpush2.msra.mxu0 0.0
  %6161 = vmatprep.subr.mxu0 0.0
  %6162 = vmatpush2.msra.mxu0 0.0
  %6163 = vmatprep.subr.mxu0 0.0
  %6164 = vmatpush2.msra.mxu0 0.0
  %6165 = vmatprep.mubr.f32.mxu0 0.0
  %6166 = vmatmul.mubr.f32.gmra.mxu0 %v6028
  %v6167 = vpop.f32.mrf.mxu0
  %v6168 = vadd.f32 %v6023, %v6167
  %v6169 = vpop.f32.mrf.mxu0
  %v6170 = vadd.f32 %v6025, %v6169
  %6171 = vdwg.mxu0
  %6172 = vrot.lane.b32.xlu0 %v5755, 127
  %v6173 = vpop.permute.xlu0 %6172
  %6174 = vrot.lane.b32.xlu0 %v5756, 127
  %v6175 = vpop.permute.xlu0 %6174
  %6176 = vrot.lane.b32.xlu0 %v5757, 127
  %v6177 = vpop.permute.xlu0 %6176
  %6178 = vrot.lane.b32.xlu0 %v5758, 127
  %v6179 = vpop.permute.xlu0 %6178
  %vm6180 = vcmask 1039360
  %v6181 = vsel %vm6180, %v6173, %v6175
  %v6182 = vsel %vm6180, %v6175, %v6177
  %v6183 = vsel %vm6180, %v6177, %v6179
  %v6188 = vsel %vm278, %v6179, 0.0
  %s6189 = scalar_lea.vmem %s19, 12
  %v6190 = vld [vmem:[%s6189] sm:$0xf]
  %v6192 = vlaneseq
  %v6193 = vshrl.u32 %v6192, 7
  %v6194 = vsub.s32 0, %v6193
  %v6195 = vrot.slane %v6190, %v6194
  %v6196 = vlaneseq
  %v6197 = vshrl.u32 %v6196, 7
  %v6198 = vsub.s32 1, %v6197
  %v6199 = vrot.slane %v6190, %v6198
  %v6200 = vlaneseq
  %v6201 = vshrl.u32 %v6200, 7
  %v6202 = vsub.s32 2, %v6201
  %v6203 = vrot.slane %v6190, %v6202
  %v6204 = vlaneseq
  %v6205 = vshrl.u32 %v6204, 7
  %v6206 = vsub.s32 3, %v6205
  %v6207 = vrot.slane %v6190, %v6206
  %v6212 = vmul.f32 %v6181, %v6195
  %v6213 = vmul.f32 %v6182, %v6199
  %v6214 = vmul.f32 %v6183, %v6203
  %v6215 = vmul.f32 %v6188, %v6207
  %s6216 = scalar_lea.vmem %s18, 12
  %v6217 = vld [vmem:[%s6216] sm:$0x7]
  %s6218 = scalar_lea.vmem %s18, 16
  %v6219 = vld [vmem:[%s6218] sm:$0x7]
  %s6220 = scalar_lea.vmem %s18, 20
  %v6221 = vld [vmem:[%s6220] sm:$0x7]
  %v6223 = vsel %vm258, %v6221, 0
  %6225 = vmatprep.subr.mxu0 0.0
  %6226 = vmatpush1.msra.mxu0 0.0
  %6227 = vmatprep.subr.mxu0 0.0
  %6228 = vmatpush1.msra.mxu0 0.0
  %6229 = vmatprep.subr.mxu0 0.0
  %6230 = vmatpush1.msra.mxu0 0.0
  %6231 = vmatprep.subr.mxu0 0.0
  %6232 = vmatpush1.msra.mxu0 0.0
  %6233 = vmatprep.subr.mxu0 0.0
  %6234 = vmatpush1.msra.mxu0 0.0
  %6235 = vmatprep.subr.mxu0 0.0
  %6236 = vmatpush1.msra.mxu0 0.0
  %6237 = vmatprep.subr.mxu0 0.0
  %6238 = vmatpush1.msra.mxu0 0.0
  %6239 = vmatprep.subr.mxu0 0.0
  %6240 = vmatpush1.msra.mxu0 0.0
  %6241 = vmatprep.subr.mxu0 0.0
  %6242 = vmatpush1.msra.mxu0 0.0
  %6243 = vmatprep.subr.mxu0 0.0
  %6244 = vmatpush1.msra.mxu0 0.0
  %6245 = vmatprep.subr.mxu0 0.0
  %6246 = vmatpush1.msra.mxu0 0.0
  %6247 = vmatprep.subr.mxu0 0.0
  %6248 = vmatpush1.msra.mxu0 0.0
  %6249 = vmatprep.subr.mxu0 0.0
  %6250 = vmatpush1.msra.mxu0 0.0
  %6251 = vmatprep.subr.mxu0 0.0
  %6252 = vmatpush1.msra.mxu0 0.0
  %6253 = vmatprep.subr.mxu0 0.0
  %6254 = vmatpush1.msra.mxu0 0.0
  %6255 = vmatprep.subr.mxu0 %v5756
  %6256 = vmatpush1.msra.mxu0 %v5755
  %6257 = vmatprep.subr.mxu0 0.0
  %6258 = vmatpush2.msra.mxu0 0.0
  %6259 = vmatprep.subr.mxu0 0.0
  %6260 = vmatpush2.msra.mxu0 0.0
  %6261 = vmatprep.subr.mxu0 0.0
  %6262 = vmatpush2.msra.mxu0 0.0
  %6263 = vmatprep.subr.mxu0 0.0
  %6264 = vmatpush2.msra.mxu0 0.0
  %6265 = vmatprep.subr.mxu0 0.0
  %6266 = vmatpush2.msra.mxu0 0.0
  %6267 = vmatprep.subr.mxu0 0.0
  %6268 = vmatpush2.msra.mxu0 0.0
  %6269 = vmatprep.subr.mxu0 0.0
  %6270 = vmatpush2.msra.mxu0 0.0
  %6271 = vmatprep.subr.mxu0 0.0
  %6272 = vmatpush2.msra.mxu0 0.0
  %6273 = vmatprep.subr.mxu0 0.0
  %6274 = vmatpush2.msra.mxu0 0.0
  %6275 = vmatprep.subr.mxu0 0.0
  %6276 = vmatpush2.msra.mxu0 0.0
  %6277 = vmatprep.subr.mxu0 0.0
  %6278 = vmatpush2.msra.mxu0 0.0
  %6279 = vmatprep.subr.mxu0 0.0
  %6280 = vmatpush2.msra.mxu0 0.0
  %6281 = vmatprep.subr.mxu0 0.0
  %6282 = vmatpush2.msra.mxu0 0.0
  %6283 = vmatprep.subr.mxu0 0.0
  %6284 = vmatpush2.msra.mxu0 0.0
  %6285 = vmatprep.subr.mxu0 0.0
  %6286 = vmatpush2.msra.mxu0 0.0
  %6287 = vmatprep.subr.mxu0 0.0
  %6288 = vmatpush2.msra.mxu0 0.0
  %6289 = vmatprep.mubr.f32.mxu0 0.0
  %6290 = vmatmul.mubr.f32.gmra.mxu0 %v6223
  %v6291 = vpop.f32.mrf.mxu0
  %v6292 = vadd.f32 0.0, %v6291
  %v6293 = vpop.f32.mrf.mxu0
  %v6294 = vadd.f32 0.0, %v6293
  %6295 = vdwg.mxu0
  %6296 = vmatprep.subr.mxu0 0.0
  %6297 = vmatpush1.msra.mxu0 0.0
  %6298 = vmatprep.subr.mxu0 0.0
  %6299 = vmatpush1.msra.mxu0 0.0
  %6300 = vmatprep.subr.mxu0 0.0
  %6301 = vmatpush1.msra.mxu0 0.0
  %6302 = vmatprep.subr.mxu0 0.0
  %6303 = vmatpush1.msra.mxu0 0.0
  %6304 = vmatprep.subr.mxu0 0.0
  %6305 = vmatpush1.msra.mxu0 0.0
  %6306 = vmatprep.subr.mxu0 0.0
  %6307 = vmatpush1.msra.mxu0 0.0
  %6308 = vmatprep.subr.mxu0 0.0
  %6309 = vmatpush1.msra.mxu0 0.0
  %6310 = vmatprep.subr.mxu0 0.0
  %6311 = vmatpush1.msra.mxu0 0.0
  %6312 = vmatprep.subr.mxu0 0.0
  %6313 = vmatpush1.msra.mxu0 0.0
  %6314 = vmatprep.subr.mxu0 0.0
  %6315 = vmatpush1.msra.mxu0 0.0
  %6316 = vmatprep.subr.mxu0 0.0
  %6317 = vmatpush1.msra.mxu0 0.0
  %6318 = vmatprep.subr.mxu0 0.0
  %6319 = vmatpush1.msra.mxu0 0.0
  %6320 = vmatprep.subr.mxu0 0.0
  %6321 = vmatpush1.msra.mxu0 0.0
  %6322 = vmatprep.subr.mxu0 0.0
  %6323 = vmatpush1.msra.mxu0 0.0
  %6324 = vmatprep.subr.mxu0 0.0
  %6325 = vmatpush1.msra.mxu0 0.0
  %6326 = vmatprep.subr.mxu0 %v5758
  %6327 = vmatpush1.msra.mxu0 %v5757
  %6328 = vmatprep.subr.mxu0 0.0
  %6329 = vmatpush2.msra.mxu0 0.0
  %6330 = vmatprep.subr.mxu0 0.0
  %6331 = vmatpush2.msra.mxu0 0.0
  %6332 = vmatprep.subr.mxu0 0.0
  %6333 = vmatpush2.msra.mxu0 0.0
  %6334 = vmatprep.subr.mxu0 0.0
  %6335 = vmatpush2.msra.mxu0 0.0
  %6336 = vmatprep.subr.mxu0 0.0
  %6337 = vmatpush2.msra.mxu0 0.0
  %6338 = vmatprep.subr.mxu0 0.0
  %6339 = vmatpush2.msra.mxu0 0.0
  %6340 = vmatprep.subr.mxu0 0.0
  %6341 = vmatpush2.msra.mxu0 0.0
  %6342 = vmatprep.subr.mxu0 0.0
  %6343 = vmatpush2.msra.mxu0 0.0
  %6344 = vmatprep.subr.mxu0 0.0
  %6345 = vmatpush2.msra.mxu0 0.0
  %6346 = vmatprep.subr.mxu0 0.0
  %6347 = vmatpush2.msra.mxu0 0.0
  %6348 = vmatprep.subr.mxu0 0.0
  %6349 = vmatpush2.msra.mxu0 0.0
  %6350 = vmatprep.subr.mxu0 0.0
  %6351 = vmatpush2.msra.mxu0 0.0
  %6352 = vmatprep.subr.mxu0 0.0
  %6353 = vmatpush2.msra.mxu0 0.0
  %6354 = vmatprep.subr.mxu0 0.0
  %6355 = vmatpush2.msra.mxu0 0.0
  %6356 = vmatprep.subr.mxu0 0.0
  %6357 = vmatpush2.msra.mxu0 0.0
  %6358 = vmatprep.subr.mxu0 0.0
  %6359 = vmatpush2.msra.mxu0 0.0
  %6360 = vmatprep.mubr.f32.mxu0 0.0
  %6361 = vmatmul.mubr.f32.gmra.mxu0 %v6223
  %v6362 = vpop.f32.mrf.mxu0
  %v6363 = vadd.f32 0.0, %v6362
  %v6364 = vpop.f32.mrf.mxu0
  %v6365 = vadd.f32 0.0, %v6364
  %6366 = vdwg.mxu0
  %v6368 = vsel %vm258, %v6217, 0
  %6370 = vmatprep.subr.mxu0 0.0
  %6371 = vmatpush1.msra.mxu0 0.0
  %6372 = vmatprep.subr.mxu0 0.0
  %6373 = vmatpush1.msra.mxu0 0.0
  %6374 = vmatprep.subr.mxu0 0.0
  %6375 = vmatpush1.msra.mxu0 0.0
  %6376 = vmatprep.subr.mxu0 0.0
  %6377 = vmatpush1.msra.mxu0 0.0
  %6378 = vmatprep.subr.mxu0 0.0
  %6379 = vmatpush1.msra.mxu0 0.0
  %6380 = vmatprep.subr.mxu0 0.0
  %6381 = vmatpush1.msra.mxu0 0.0
  %6382 = vmatprep.subr.mxu0 0.0
  %6383 = vmatpush1.msra.mxu0 0.0
  %6384 = vmatprep.subr.mxu0 0.0
  %6385 = vmatpush1.msra.mxu0 0.0
  %6386 = vmatprep.subr.mxu0 0.0
  %6387 = vmatpush1.msra.mxu0 0.0
  %6388 = vmatprep.subr.mxu0 0.0
  %6389 = vmatpush1.msra.mxu0 0.0
  %6390 = vmatprep.subr.mxu0 0.0
  %6391 = vmatpush1.msra.mxu0 0.0
  %6392 = vmatprep.subr.mxu0 0.0
  %6393 = vmatpush1.msra.mxu0 0.0
  %6394 = vmatprep.subr.mxu0 0.0
  %6395 = vmatpush1.msra.mxu0 0.0
  %6396 = vmatprep.subr.mxu0 0.0
  %6397 = vmatpush1.msra.mxu0 0.0
  %6398 = vmatprep.subr.mxu0 0.0
  %6399 = vmatpush1.msra.mxu0 0.0
  %6400 = vmatprep.subr.mxu0 %v6213
  %6401 = vmatpush1.msra.mxu0 %v6212
  %6402 = vmatprep.subr.mxu0 0.0
  %6403 = vmatpush2.msra.mxu0 0.0
  %6404 = vmatprep.subr.mxu0 0.0
  %6405 = vmatpush2.msra.mxu0 0.0
  %6406 = vmatprep.subr.mxu0 0.0
  %6407 = vmatpush2.msra.mxu0 0.0
  %6408 = vmatprep.subr.mxu0 0.0
  %6409 = vmatpush2.msra.mxu0 0.0
  %6410 = vmatprep.subr.mxu0 0.0
  %6411 = vmatpush2.msra.mxu0 0.0
  %6412 = vmatprep.subr.mxu0 0.0
  %6413 = vmatpush2.msra.mxu0 0.0
  %6414 = vmatprep.subr.mxu0 0.0
  %6415 = vmatpush2.msra.mxu0 0.0
  %6416 = vmatprep.subr.mxu0 0.0
  %6417 = vmatpush2.msra.mxu0 0.0
  %6418 = vmatprep.subr.mxu0 0.0
  %6419 = vmatpush2.msra.mxu0 0.0
  %6420 = vmatprep.subr.mxu0 0.0
  %6421 = vmatpush2.msra.mxu0 0.0
  %6422 = vmatprep.subr.mxu0 0.0
  %6423 = vmatpush2.msra.mxu0 0.0
  %6424 = vmatprep.subr.mxu0 0.0
  %6425 = vmatpush2.msra.mxu0 0.0
  %6426 = vmatprep.subr.mxu0 0.0
  %6427 = vmatpush2.msra.mxu0 0.0
  %6428 = vmatprep.subr.mxu0 0.0
  %6429 = vmatpush2.msra.mxu0 0.0
  %6430 = vmatprep.subr.mxu0 0.0
  %6431 = vmatpush2.msra.mxu0 0.0
  %6432 = vmatprep.subr.mxu0 0.0
  %6433 = vmatpush2.msra.mxu0 0.0
  %6434 = vmatprep.mubr.f32.mxu0 0.0
  %6435 = vmatmul.mubr.f32.gmra.mxu0 %v6368
  %v6436 = vpop.f32.mrf.mxu0
  %v6437 = vadd.f32 %v6292, %v6436
  %v6438 = vpop.f32.mrf.mxu0
  %v6439 = vadd.f32 %v6294, %v6438
  %6440 = vdwg.mxu0
  %6441 = vmatprep.subr.mxu0 0.0
  %6442 = vmatpush1.msra.mxu0 0.0
  %6443 = vmatprep.subr.mxu0 0.0
  %6444 = vmatpush1.msra.mxu0 0.0
  %6445 = vmatprep.subr.mxu0 0.0
  %6446 = vmatpush1.msra.mxu0 0.0
  %6447 = vmatprep.subr.mxu0 0.0
  %6448 = vmatpush1.msra.mxu0 0.0
  %6449 = vmatprep.subr.mxu0 0.0
  %6450 = vmatpush1.msra.mxu0 0.0
  %6451 = vmatprep.subr.mxu0 0.0
  %6452 = vmatpush1.msra.mxu0 0.0
  %6453 = vmatprep.subr.mxu0 0.0
  %6454 = vmatpush1.msra.mxu0 0.0
  %6455 = vmatprep.subr.mxu0 0.0
  %6456 = vmatpush1.msra.mxu0 0.0
  %6457 = vmatprep.subr.mxu0 0.0
  %6458 = vmatpush1.msra.mxu0 0.0
  %6459 = vmatprep.subr.mxu0 0.0
  %6460 = vmatpush1.msra.mxu0 0.0
  %6461 = vmatprep.subr.mxu0 0.0
  %6462 = vmatpush1.msra.mxu0 0.0
  %6463 = vmatprep.subr.mxu0 0.0
  %6464 = vmatpush1.msra.mxu0 0.0
  %6465 = vmatprep.subr.mxu0 0.0
  %6466 = vmatpush1.msra.mxu0 0.0
  %6467 = vmatprep.subr.mxu0 0.0
  %6468 = vmatpush1.msra.mxu0 0.0
  %6469 = vmatprep.subr.mxu0 0.0
  %6470 = vmatpush1.msra.mxu0 0.0
  %6471 = vmatprep.subr.mxu0 %v6215
  %6472 = vmatpush1.msra.mxu0 %v6214
  %6473 = vmatprep.subr.mxu0 0.0
  %6474 = vmatpush2.msra.mxu0 0.0
  %6475 = vmatprep.subr.mxu0 0.0
  %6476 = vmatpush2.msra.mxu0 0.0
  %6477 = vmatprep.subr.mxu0 0.0
  %6478 = vmatpush2.msra.mxu0 0.0
  %6479 = vmatprep.subr.mxu0 0.0
  %6480 = vmatpush2.msra.mxu0 0.0
  %6481 = vmatprep.subr.mxu0 0.0
  %6482 = vmatpush2.msra.mxu0 0.0
  %6483 = vmatprep.subr.mxu0 0.0
  %6484 = vmatpush2.msra.mxu0 0.0
  %6485 = vmatprep.subr.mxu0 0.0
  %6486 = vmatpush2.msra.mxu0 0.0
  %6487 = vmatprep.subr.mxu0 0.0
  %6488 = vmatpush2.msra.mxu0 0.0
  %6489 = vmatprep.subr.mxu0 0.0
  %6490 = vmatpush2.msra.mxu0 0.0
  %6491 = vmatprep.subr.mxu0 0.0
  %6492 = vmatpush2.msra.mxu0 0.0
  %6493 = vmatprep.subr.mxu0 0.0
  %6494 = vmatpush2.msra.mxu0 0.0
  %6495 = vmatprep.subr.mxu0 0.0
  %6496 = vmatpush2.msra.mxu0 0.0
  %6497 = vmatprep.subr.mxu0 0.0
  %6498 = vmatpush2.msra.mxu0 0.0
  %6499 = vmatprep.subr.mxu0 0.0
  %6500 = vmatpush2.msra.mxu0 0.0
  %6501 = vmatprep.subr.mxu0 0.0
  %6502 = vmatpush2.msra.mxu0 0.0
  %6503 = vmatprep.subr.mxu0 0.0
  %6504 = vmatpush2.msra.mxu0 0.0
  %6505 = vmatprep.mubr.f32.mxu0 0.0
  %6506 = vmatmul.mubr.f32.gmra.mxu0 %v6368
  %v6507 = vpop.f32.mrf.mxu0
  %v6508 = vadd.f32 %v6363, %v6507
  %v6509 = vpop.f32.mrf.mxu0
  %v6510 = vadd.f32 %v6365, %v6509
  %6511 = vdwg.mxu0
  %s6512 = scalar_lea.vmem %s19, 24
  %v6513 = vld [vmem:[%s6512] sm:$0xf]
  %v6515 = vlaneseq
  %v6516 = vshrl.u32 %v6515, 7
  %v6517 = vsub.s32 0, %v6516
  %v6518 = vrot.slane %v6513, %v6517
  %v6519 = vlaneseq
  %v6520 = vshrl.u32 %v6519, 7
  %v6521 = vsub.s32 1, %v6520
  %v6522 = vrot.slane %v6513, %v6521
  %v6523 = vlaneseq
  %v6524 = vshrl.u32 %v6523, 7
  %v6525 = vsub.s32 2, %v6524
  %v6526 = vrot.slane %v6513, %v6525
  %v6527 = vlaneseq
  %v6528 = vshrl.u32 %v6527, 7
  %v6529 = vsub.s32 3, %v6528
  %v6530 = vrot.slane %v6513, %v6529
  %v6535 = vmul.f32 %v6181, %v6518
  %v6536 = vmul.f32 %v6182, %v6522
  %v6537 = vmul.f32 %v6183, %v6526
  %v6538 = vmul.f32 %v6188, %v6530
  %s6539 = scalar_lea.vmem %s18, 24
  %v6540 = vld [vmem:[%s6539] sm:$0x7]
  %v6542 = vsel %vm258, %v6540, 0
  %6544 = vmatprep.subr.mxu0 0.0
  %6545 = vmatpush1.msra.mxu0 0.0
  %6546 = vmatprep.subr.mxu0 0.0
  %6547 = vmatpush1.msra.mxu0 0.0
  %6548 = vmatprep.subr.mxu0 0.0
  %6549 = vmatpush1.msra.mxu0 0.0
  %6550 = vmatprep.subr.mxu0 0.0
  %6551 = vmatpush1.msra.mxu0 0.0
  %6552 = vmatprep.subr.mxu0 0.0
  %6553 = vmatpush1.msra.mxu0 0.0
  %6554 = vmatprep.subr.mxu0 0.0
  %6555 = vmatpush1.msra.mxu0 0.0
  %6556 = vmatprep.subr.mxu0 0.0
  %6557 = vmatpush1.msra.mxu0 0.0
  %6558 = vmatprep.subr.mxu0 0.0
  %6559 = vmatpush1.msra.mxu0 0.0
  %6560 = vmatprep.subr.mxu0 0.0
  %6561 = vmatpush1.msra.mxu0 0.0
  %6562 = vmatprep.subr.mxu0 0.0
  %6563 = vmatpush1.msra.mxu0 0.0
  %6564 = vmatprep.subr.mxu0 0.0
  %6565 = vmatpush1.msra.mxu0 0.0
  %6566 = vmatprep.subr.mxu0 0.0
  %6567 = vmatpush1.msra.mxu0 0.0
  %6568 = vmatprep.subr.mxu0 0.0
  %6569 = vmatpush1.msra.mxu0 0.0
  %6570 = vmatprep.subr.mxu0 0.0
  %6571 = vmatpush1.msra.mxu0 0.0
  %6572 = vmatprep.subr.mxu0 0.0
  %6573 = vmatpush1.msra.mxu0 0.0
  %6574 = vmatprep.subr.mxu0 %v6536
  %6575 = vmatpush1.msra.mxu0 %v6535
  %6576 = vmatprep.subr.mxu0 0.0
  %6577 = vmatpush2.msra.mxu0 0.0
  %6578 = vmatprep.subr.mxu0 0.0
  %6579 = vmatpush2.msra.mxu0 0.0
  %6580 = vmatprep.subr.mxu0 0.0
  %6581 = vmatpush2.msra.mxu0 0.0
  %6582 = vmatprep.subr.mxu0 0.0
  %6583 = vmatpush2.msra.mxu0 0.0
  %6584 = vmatprep.subr.mxu0 0.0
  %6585 = vmatpush2.msra.mxu0 0.0
  %6586 = vmatprep.subr.mxu0 0.0
  %6587 = vmatpush2.msra.mxu0 0.0
  %6588 = vmatprep.subr.mxu0 0.0
  %6589 = vmatpush2.msra.mxu0 0.0
  %6590 = vmatprep.subr.mxu0 0.0
  %6591 = vmatpush2.msra.mxu0 0.0
  %6592 = vmatprep.subr.mxu0 0.0
  %6593 = vmatpush2.msra.mxu0 0.0
  %6594 = vmatprep.subr.mxu0 0.0
  %6595 = vmatpush2.msra.mxu0 0.0
  %6596 = vmatprep.subr.mxu0 0.0
  %6597 = vmatpush2.msra.mxu0 0.0
  %6598 = vmatprep.subr.mxu0 0.0
  %6599 = vmatpush2.msra.mxu0 0.0
  %6600 = vmatprep.subr.mxu0 0.0
  %6601 = vmatpush2.msra.mxu0 0.0
  %6602 = vmatprep.subr.mxu0 0.0
  %6603 = vmatpush2.msra.mxu0 0.0
  %6604 = vmatprep.subr.mxu0 0.0
  %6605 = vmatpush2.msra.mxu0 0.0
  %6606 = vmatprep.subr.mxu0 0.0
  %6607 = vmatpush2.msra.mxu0 0.0
  %6608 = vmatprep.mubr.f32.mxu0 0.0
  %6609 = vmatmul.mubr.f32.gmra.mxu0 %v6542
  %v6610 = vpop.f32.mrf.mxu0
  %v6611 = vadd.f32 0.0, %v6610
  %v6612 = vpop.f32.mrf.mxu0
  %v6613 = vadd.f32 0.0, %v6612
  %6614 = vdwg.mxu0
  %6615 = vmatprep.subr.mxu0 0.0
  %6616 = vmatpush1.msra.mxu0 0.0
  %6617 = vmatprep.subr.mxu0 0.0
  %6618 = vmatpush1.msra.mxu0 0.0
  %6619 = vmatprep.subr.mxu0 0.0
  %6620 = vmatpush1.msra.mxu0 0.0
  %6621 = vmatprep.subr.mxu0 0.0
  %6622 = vmatpush1.msra.mxu0 0.0
  %6623 = vmatprep.subr.mxu0 0.0
  %6624 = vmatpush1.msra.mxu0 0.0
  %6625 = vmatprep.subr.mxu0 0.0
  %6626 = vmatpush1.msra.mxu0 0.0
  %6627 = vmatprep.subr.mxu0 0.0
  %6628 = vmatpush1.msra.mxu0 0.0
  %6629 = vmatprep.subr.mxu0 0.0
  %6630 = vmatpush1.msra.mxu0 0.0
  %6631 = vmatprep.subr.mxu0 0.0
  %6632 = vmatpush1.msra.mxu0 0.0
  %6633 = vmatprep.subr.mxu0 0.0
  %6634 = vmatpush1.msra.mxu0 0.0
  %6635 = vmatprep.subr.mxu0 0.0
  %6636 = vmatpush1.msra.mxu0 0.0
  %6637 = vmatprep.subr.mxu0 0.0
  %6638 = vmatpush1.msra.mxu0 0.0
  %6639 = vmatprep.subr.mxu0 0.0
  %6640 = vmatpush1.msra.mxu0 0.0
  %6641 = vmatprep.subr.mxu0 0.0
  %6642 = vmatpush1.msra.mxu0 0.0
  %6643 = vmatprep.subr.mxu0 0.0
  %6644 = vmatpush1.msra.mxu0 0.0
  %6645 = vmatprep.subr.mxu0 %v6538
  %6646 = vmatpush1.msra.mxu0 %v6537
  %6647 = vmatprep.subr.mxu0 0.0
  %6648 = vmatpush2.msra.mxu0 0.0
  %6649 = vmatprep.subr.mxu0 0.0
  %6650 = vmatpush2.msra.mxu0 0.0
  %6651 = vmatprep.subr.mxu0 0.0
  %6652 = vmatpush2.msra.mxu0 0.0
  %6653 = vmatprep.subr.mxu0 0.0
  %6654 = vmatpush2.msra.mxu0 0.0
  %6655 = vmatprep.subr.mxu0 0.0
  %6656 = vmatpush2.msra.mxu0 0.0
  %6657 = vmatprep.subr.mxu0 0.0
  %6658 = vmatpush2.msra.mxu0 0.0
  %6659 = vmatprep.subr.mxu0 0.0
  %6660 = vmatpush2.msra.mxu0 0.0
  %6661 = vmatprep.subr.mxu0 0.0
  %6662 = vmatpush2.msra.mxu0 0.0
  %6663 = vmatprep.subr.mxu0 0.0
  %6664 = vmatpush2.msra.mxu0 0.0
  %6665 = vmatprep.subr.mxu0 0.0
  %6666 = vmatpush2.msra.mxu0 0.0
  %6667 = vmatprep.subr.mxu0 0.0
  %6668 = vmatpush2.msra.mxu0 0.0
  %6669 = vmatprep.subr.mxu0 0.0
  %6670 = vmatpush2.msra.mxu0 0.0
  %6671 = vmatprep.subr.mxu0 0.0
  %6672 = vmatpush2.msra.mxu0 0.0
  %6673 = vmatprep.subr.mxu0 0.0
  %6674 = vmatpush2.msra.mxu0 0.0
  %6675 = vmatprep.subr.mxu0 0.0
  %6676 = vmatpush2.msra.mxu0 0.0
  %6677 = vmatprep.subr.mxu0 0.0
  %6678 = vmatpush2.msra.mxu0 0.0
  %6679 = vmatprep.mubr.f32.mxu0 0.0
  %6680 = vmatmul.mubr.f32.gmra.mxu0 %v6542
  %v6681 = vpop.f32.mrf.mxu0
  %v6682 = vadd.f32 0.0, %v6681
  %v6683 = vpop.f32.mrf.mxu0
  %v6684 = vadd.f32 0.0, %v6683
  %6685 = vdwg.mxu0
  %v6686 = vadd.f32 %v6097, %v6611
  %v6687 = vadd.f32 %v6099, %v6613
  %v6688 = vadd.f32 %v6168, %v6682
  %v6689 = vadd.f32 %v6170, %v6684
  %s6690 = scalar_lea.vmem %s18, 28
  %v6691 = vld [vmem:[%s6690] sm:$0x7]
  %v6693 = vsel %vm258, %v6691, 0
  %6695 = vmatprep.subr.mxu0 0.0
  %6696 = vmatpush1.msra.mxu0 0.0
  %6697 = vmatprep.subr.mxu0 0.0
  %6698 = vmatpush1.msra.mxu0 0.0
  %6699 = vmatprep.subr.mxu0 0.0
  %6700 = vmatpush1.msra.mxu0 0.0
  %6701 = vmatprep.subr.mxu0 0.0
  %6702 = vmatpush1.msra.mxu0 0.0
  %6703 = vmatprep.subr.mxu0 0.0
  %6704 = vmatpush1.msra.mxu0 0.0
  %6705 = vmatprep.subr.mxu0 0.0
  %6706 = vmatpush1.msra.mxu0 0.0
  %6707 = vmatprep.subr.mxu0 0.0
  %6708 = vmatpush1.msra.mxu0 0.0
  %6709 = vmatprep.subr.mxu0 0.0
  %6710 = vmatpush1.msra.mxu0 0.0
  %6711 = vmatprep.subr.mxu0 0.0
  %6712 = vmatpush1.msra.mxu0 0.0
  %6713 = vmatprep.subr.mxu0 0.0
  %6714 = vmatpush1.msra.mxu0 0.0
  %6715 = vmatprep.subr.mxu0 0.0
  %6716 = vmatpush1.msra.mxu0 0.0
  %6717 = vmatprep.subr.mxu0 0.0
  %6718 = vmatpush1.msra.mxu0 0.0
  %6719 = vmatprep.subr.mxu0 0.0
  %6720 = vmatpush1.msra.mxu0 0.0
  %6721 = vmatprep.subr.mxu0 0.0
  %6722 = vmatpush1.msra.mxu0 0.0
  %6723 = vmatprep.subr.mxu0 0.0
  %6724 = vmatpush1.msra.mxu0 0.0
  %6725 = vmatprep.subr.mxu0 %v5756
  %6726 = vmatpush1.msra.mxu0 %v5755
  %6727 = vmatprep.subr.mxu0 0.0
  %6728 = vmatpush2.msra.mxu0 0.0
  %6729 = vmatprep.subr.mxu0 0.0
  %6730 = vmatpush2.msra.mxu0 0.0
  %6731 = vmatprep.subr.mxu0 0.0
  %6732 = vmatpush2.msra.mxu0 0.0
  %6733 = vmatprep.subr.mxu0 0.0
  %6734 = vmatpush2.msra.mxu0 0.0
  %6735 = vmatprep.subr.mxu0 0.0
  %6736 = vmatpush2.msra.mxu0 0.0
  %6737 = vmatprep.subr.mxu0 0.0
  %6738 = vmatpush2.msra.mxu0 0.0
  %6739 = vmatprep.subr.mxu0 0.0
  %6740 = vmatpush2.msra.mxu0 0.0
  %6741 = vmatprep.subr.mxu0 0.0
  %6742 = vmatpush2.msra.mxu0 0.0
  %6743 = vmatprep.subr.mxu0 0.0
  %6744 = vmatpush2.msra.mxu0 0.0
  %6745 = vmatprep.subr.mxu0 0.0
  %6746 = vmatpush2.msra.mxu0 0.0
  %6747 = vmatprep.subr.mxu0 0.0
  %6748 = vmatpush2.msra.mxu0 0.0
  %6749 = vmatprep.subr.mxu0 0.0
  %6750 = vmatpush2.msra.mxu0 0.0
  %6751 = vmatprep.subr.mxu0 0.0
  %6752 = vmatpush2.msra.mxu0 0.0
  %6753 = vmatprep.subr.mxu0 0.0
  %6754 = vmatpush2.msra.mxu0 0.0
  %6755 = vmatprep.subr.mxu0 0.0
  %6756 = vmatpush2.msra.mxu0 0.0
  %6757 = vmatprep.subr.mxu0 0.0
  %6758 = vmatpush2.msra.mxu0 0.0
  %6759 = vmatprep.mubr.f32.mxu0 0.0
  %6760 = vmatmul.mubr.f32.gmra.mxu0 %v6693
  %v6761 = vpop.f32.mrf.mxu0
  %v6762 = vadd.f32 0.0, %v6761
  %v6763 = vpop.f32.mrf.mxu0
  %v6764 = vadd.f32 0.0, %v6763
  %6765 = vdwg.mxu0
  %6766 = vmatprep.subr.mxu0 0.0
  %6767 = vmatpush1.msra.mxu0 0.0
  %6768 = vmatprep.subr.mxu0 0.0
  %6769 = vmatpush1.msra.mxu0 0.0
  %6770 = vmatprep.subr.mxu0 0.0
  %6771 = vmatpush1.msra.mxu0 0.0
  %6772 = vmatprep.subr.mxu0 0.0
  %6773 = vmatpush1.msra.mxu0 0.0
  %6774 = vmatprep.subr.mxu0 0.0
  %6775 = vmatpush1.msra.mxu0 0.0
  %6776 = vmatprep.subr.mxu0 0.0
  %6777 = vmatpush1.msra.mxu0 0.0
  %6778 = vmatprep.subr.mxu0 0.0
  %6779 = vmatpush1.msra.mxu0 0.0
  %6780 = vmatprep.subr.mxu0 0.0
  %6781 = vmatpush1.msra.mxu0 0.0
  %6782 = vmatprep.subr.mxu0 0.0
  %6783 = vmatpush1.msra.mxu0 0.0
  %6784 = vmatprep.subr.mxu0 0.0
  %6785 = vmatpush1.msra.mxu0 0.0
  %6786 = vmatprep.subr.mxu0 0.0
  %6787 = vmatpush1.msra.mxu0 0.0
  %6788 = vmatprep.subr.mxu0 0.0
  %6789 = vmatpush1.msra.mxu0 0.0
  %6790 = vmatprep.subr.mxu0 0.0
  %6791 = vmatpush1.msra.mxu0 0.0
  %6792 = vmatprep.subr.mxu0 0.0
  %6793 = vmatpush1.msra.mxu0 0.0
  %6794 = vmatprep.subr.mxu0 0.0
  %6795 = vmatpush1.msra.mxu0 0.0
  %6796 = vmatprep.subr.mxu0 %v5758
  %6797 = vmatpush1.msra.mxu0 %v5757
  %6798 = vmatprep.subr.mxu0 0.0
  %6799 = vmatpush2.msra.mxu0 0.0
  %6800 = vmatprep.subr.mxu0 0.0
  %6801 = vmatpush2.msra.mxu0 0.0
  %6802 = vmatprep.subr.mxu0 0.0
  %6803 = vmatpush2.msra.mxu0 0.0
  %6804 = vmatprep.subr.mxu0 0.0
  %6805 = vmatpush2.msra.mxu0 0.0
  %6806 = vmatprep.subr.mxu0 0.0
  %6807 = vmatpush2.msra.mxu0 0.0
  %6808 = vmatprep.subr.mxu0 0.0
  %6809 = vmatpush2.msra.mxu0 0.0
  %6810 = vmatprep.subr.mxu0 0.0
  %6811 = vmatpush2.msra.mxu0 0.0
  %6812 = vmatprep.subr.mxu0 0.0
  %6813 = vmatpush2.msra.mxu0 0.0
  %6814 = vmatprep.subr.mxu0 0.0
  %6815 = vmatpush2.msra.mxu0 0.0
  %6816 = vmatprep.subr.mxu0 0.0
  %6817 = vmatpush2.msra.mxu0 0.0
  %6818 = vmatprep.subr.mxu0 0.0
  %6819 = vmatpush2.msra.mxu0 0.0
  %6820 = vmatprep.subr.mxu0 0.0
  %6821 = vmatpush2.msra.mxu0 0.0
  %6822 = vmatprep.subr.mxu0 0.0
  %6823 = vmatpush2.msra.mxu0 0.0
  %6824 = vmatprep.subr.mxu0 0.0
  %6825 = vmatpush2.msra.mxu0 0.0
  %6826 = vmatprep.subr.mxu0 0.0
  %6827 = vmatpush2.msra.mxu0 0.0
  %6828 = vmatprep.subr.mxu0 0.0
  %6829 = vmatpush2.msra.mxu0 0.0
  %6830 = vmatprep.mubr.f32.mxu0 0.0
  %6831 = vmatmul.mubr.f32.gmra.mxu0 %v6693
  %v6832 = vpop.f32.mrf.mxu0
  %v6833 = vadd.f32 0.0, %v6832
  %v6834 = vpop.f32.mrf.mxu0
  %v6835 = vadd.f32 0.0, %v6834
  %6836 = vdwg.mxu0
  %v6838 = vsel %vm258, %v5852, 0
  %6840 = vmatprep.subr.mxu0 0.0
  %6841 = vmatpush1.msra.mxu0 0.0
  %6842 = vmatprep.subr.mxu0 0.0
  %6843 = vmatpush1.msra.mxu0 0.0
  %6844 = vmatprep.subr.mxu0 0.0
  %6845 = vmatpush1.msra.mxu0 0.0
  %6846 = vmatprep.subr.mxu0 0.0
  %6847 = vmatpush1.msra.mxu0 0.0
  %6848 = vmatprep.subr.mxu0 0.0
  %6849 = vmatpush1.msra.mxu0 0.0
  %6850 = vmatprep.subr.mxu0 0.0
  %6851 = vmatpush1.msra.mxu0 0.0
  %6852 = vmatprep.subr.mxu0 0.0
  %6853 = vmatpush1.msra.mxu0 0.0
  %6854 = vmatprep.subr.mxu0 0.0
  %6855 = vmatpush1.msra.mxu0 0.0
  %6856 = vmatprep.subr.mxu0 0.0
  %6857 = vmatpush1.msra.mxu0 0.0
  %6858 = vmatprep.subr.mxu0 0.0
  %6859 = vmatpush1.msra.mxu0 0.0
  %6860 = vmatprep.subr.mxu0 0.0
  %6861 = vmatpush1.msra.mxu0 0.0
  %6862 = vmatprep.subr.mxu0 0.0
  %6863 = vmatpush1.msra.mxu0 0.0
  %6864 = vmatprep.subr.mxu0 0.0
  %6865 = vmatpush1.msra.mxu0 0.0
  %6866 = vmatprep.subr.mxu0 0.0
  %6867 = vmatpush1.msra.mxu0 0.0
  %6868 = vmatprep.subr.mxu0 0.0
  %6869 = vmatpush1.msra.mxu0 0.0
  %6870 = vmatprep.subr.mxu0 %v5848
  %6871 = vmatpush1.msra.mxu0 %v5847
  %6872 = vmatprep.subr.mxu0 0.0
  %6873 = vmatpush2.msra.mxu0 0.0
  %6874 = vmatprep.subr.mxu0 0.0
  %6875 = vmatpush2.msra.mxu0 0.0
  %6876 = vmatprep.subr.mxu0 0.0
  %6877 = vmatpush2.msra.mxu0 0.0
  %6878 = vmatprep.subr.mxu0 0.0
  %6879 = vmatpush2.msra.mxu0 0.0
  %6880 = vmatprep.subr.mxu0 0.0
  %6881 = vmatpush2.msra.mxu0 0.0
  %6882 = vmatprep.subr.mxu0 0.0
  %6883 = vmatpush2.msra.mxu0 0.0
  %6884 = vmatprep.subr.mxu0 0.0
  %6885 = vmatpush2.msra.mxu0 0.0
  %6886 = vmatprep.subr.mxu0 0.0
  %6887 = vmatpush2.msra.mxu0 0.0
  %6888 = vmatprep.subr.mxu0 0.0
  %6889 = vmatpush2.msra.mxu0 0.0
  %6890 = vmatprep.subr.mxu0 0.0
  %6891 = vmatpush2.msra.mxu0 0.0
  %6892 = vmatprep.subr.mxu0 0.0
  %6893 = vmatpush2.msra.mxu0 0.0
  %6894 = vmatprep.subr.mxu0 0.0
  %6895 = vmatpush2.msra.mxu0 0.0
  %6896 = vmatprep.subr.mxu0 0.0
  %6897 = vmatpush2.msra.mxu0 0.0
  %6898 = vmatprep.subr.mxu0 0.0
  %6899 = vmatpush2.msra.mxu0 0.0
  %6900 = vmatprep.subr.mxu0 0.0
  %6901 = vmatpush2.msra.mxu0 0.0
  %6902 = vmatprep.subr.mxu0 0.0
  %6903 = vmatpush2.msra.mxu0 0.0
  %6904 = vmatprep.mubr.f32.mxu0 0.0
  %6905 = vmatmul.mubr.f32.gmra.mxu0 %v6838
  %v6906 = vpop.f32.mrf.mxu0
  %v6907 = vadd.f32 %v6762, %v6906
  %v6908 = vpop.f32.mrf.mxu0
  %v6909 = vadd.f32 %v6764, %v6908
  %6910 = vdwg.mxu0
  %6911 = vmatprep.subr.mxu0 0.0
  %6912 = vmatpush1.msra.mxu0 0.0
  %6913 = vmatprep.subr.mxu0 0.0
  %6914 = vmatpush1.msra.mxu0 0.0
  %6915 = vmatprep.subr.mxu0 0.0
  %6916 = vmatpush1.msra.mxu0 0.0
  %6917 = vmatprep.subr.mxu0 0.0
  %6918 = vmatpush1.msra.mxu0 0.0
  %6919 = vmatprep.subr.mxu0 0.0
  %6920 = vmatpush1.msra.mxu0 0.0
  %6921 = vmatprep.subr.mxu0 0.0
  %6922 = vmatpush1.msra.mxu0 0.0
  %6923 = vmatprep.subr.mxu0 0.0
  %6924 = vmatpush1.msra.mxu0 0.0
  %6925 = vmatprep.subr.mxu0 0.0
  %6926 = vmatpush1.msra.mxu0 0.0
  %6927 = vmatprep.subr.mxu0 0.0
  %6928 = vmatpush1.msra.mxu0 0.0
  %6929 = vmatprep.subr.mxu0 0.0
  %6930 = vmatpush1.msra.mxu0 0.0
  %6931 = vmatprep.subr.mxu0 0.0
  %6932 = vmatpush1.msra.mxu0 0.0
  %6933 = vmatprep.subr.mxu0 0.0
  %6934 = vmatpush1.msra.mxu0 0.0
  %6935 = vmatprep.subr.mxu0 0.0
  %6936 = vmatpush1.msra.mxu0 0.0
  %6937 = vmatprep.subr.mxu0 0.0
  %6938 = vmatpush1.msra.mxu0 0.0
  %6939 = vmatprep.subr.mxu0 0.0
  %6940 = vmatpush1.msra.mxu0 0.0
  %6941 = vmatprep.subr.mxu0 %v5850
  %6942 = vmatpush1.msra.mxu0 %v5849
  %6943 = vmatprep.subr.mxu0 0.0
  %6944 = vmatpush2.msra.mxu0 0.0
  %6945 = vmatprep.subr.mxu0 0.0
  %6946 = vmatpush2.msra.mxu0 0.0
  %6947 = vmatprep.subr.mxu0 0.0
  %6948 = vmatpush2.msra.mxu0 0.0
  %6949 = vmatprep.subr.mxu0 0.0
  %6950 = vmatpush2.msra.mxu0 0.0
  %6951 = vmatprep.subr.mxu0 0.0
  %6952 = vmatpush2.msra.mxu0 0.0
  %6953 = vmatprep.subr.mxu0 0.0
  %6954 = vmatpush2.msra.mxu0 0.0
  %6955 = vmatprep.subr.mxu0 0.0
  %6956 = vmatpush2.msra.mxu0 0.0
  %6957 = vmatprep.subr.mxu0 0.0
  %6958 = vmatpush2.msra.mxu0 0.0
  %6959 = vmatprep.subr.mxu0 0.0
  %6960 = vmatpush2.msra.mxu0 0.0
  %6961 = vmatprep.subr.mxu0 0.0
  %6962 = vmatpush2.msra.mxu0 0.0
  %6963 = vmatprep.subr.mxu0 0.0
  %6964 = vmatpush2.msra.mxu0 0.0
  %6965 = vmatprep.subr.mxu0 0.0
  %6966 = vmatpush2.msra.mxu0 0.0
  %6967 = vmatprep.subr.mxu0 0.0
  %6968 = vmatpush2.msra.mxu0 0.0
  %6969 = vmatprep.subr.mxu0 0.0
  %6970 = vmatpush2.msra.mxu0 0.0
  %6971 = vmatprep.subr.mxu0 0.0
  %6972 = vmatpush2.msra.mxu0 0.0
  %6973 = vmatprep.subr.mxu0 0.0
  %6974 = vmatpush2.msra.mxu0 0.0
  %6975 = vmatprep.mubr.f32.mxu0 0.0
  %6976 = vmatmul.mubr.f32.gmra.mxu0 %v6838
  %v6977 = vpop.f32.mrf.mxu0
  %v6978 = vadd.f32 %v6833, %v6977
  %v6979 = vpop.f32.mrf.mxu0
  %v6980 = vadd.f32 %v6835, %v6979
  %6981 = vdwg.mxu0
  %s6982 = scalar_lea.vmem %s18, 32
  %v6983 = vld [vmem:[%s6982] sm:$0x7]
  %v6985 = vsel %vm258, %v6983, 0
  %6987 = vmatprep.subr.mxu0 0.0
  %6988 = vmatpush1.msra.mxu0 0.0
  %6989 = vmatprep.subr.mxu0 0.0
  %6990 = vmatpush1.msra.mxu0 0.0
  %6991 = vmatprep.subr.mxu0 0.0
  %6992 = vmatpush1.msra.mxu0 0.0
  %6993 = vmatprep.subr.mxu0 0.0
  %6994 = vmatpush1.msra.mxu0 0.0
  %6995 = vmatprep.subr.mxu0 0.0
  %6996 = vmatpush1.msra.mxu0 0.0
  %6997 = vmatprep.subr.mxu0 0.0
  %6998 = vmatpush1.msra.mxu0 0.0
  %6999 = vmatprep.subr.mxu0 0.0
  %7000 = vmatpush1.msra.mxu0 0.0
  %7001 = vmatprep.subr.mxu0 0.0
  %7002 = vmatpush1.msra.mxu0 0.0
  %7003 = vmatprep.subr.mxu0 0.0
  %7004 = vmatpush1.msra.mxu0 0.0
  %7005 = vmatprep.subr.mxu0 0.0
  %7006 = vmatpush1.msra.mxu0 0.0
  %7007 = vmatprep.subr.mxu0 0.0
  %7008 = vmatpush1.msra.mxu0 0.0
  %7009 = vmatprep.subr.mxu0 0.0
  %7010 = vmatpush1.msra.mxu0 0.0
  %7011 = vmatprep.subr.mxu0 0.0
  %7012 = vmatpush1.msra.mxu0 0.0
  %7013 = vmatprep.subr.mxu0 0.0
  %7014 = vmatpush1.msra.mxu0 0.0
  %7015 = vmatprep.subr.mxu0 0.0
  %7016 = vmatpush1.msra.mxu0 0.0
  %7017 = vmatprep.subr.mxu0 %v5756
  %7018 = vmatpush1.msra.mxu0 %v5755
  %7019 = vmatprep.subr.mxu0 0.0
  %7020 = vmatpush2.msra.mxu0 0.0
  %7021 = vmatprep.subr.mxu0 0.0
  %7022 = vmatpush2.msra.mxu0 0.0
  %7023 = vmatprep.subr.mxu0 0.0
  %7024 = vmatpush2.msra.mxu0 0.0
  %7025 = vmatprep.subr.mxu0 0.0
  %7026 = vmatpush2.msra.mxu0 0.0
  %7027 = vmatprep.subr.mxu0 0.0
  %7028 = vmatpush2.msra.mxu0 0.0
  %7029 = vmatprep.subr.mxu0 0.0
  %7030 = vmatpush2.msra.mxu0 0.0
  %7031 = vmatprep.subr.mxu0 0.0
  %7032 = vmatpush2.msra.mxu0 0.0
  %7033 = vmatprep.subr.mxu0 0.0
  %7034 = vmatpush2.msra.mxu0 0.0
  %7035 = vmatprep.subr.mxu0 0.0
  %7036 = vmatpush2.msra.mxu0 0.0
  %7037 = vmatprep.subr.mxu0 0.0
  %7038 = vmatpush2.msra.mxu0 0.0
  %7039 = vmatprep.subr.mxu0 0.0
  %7040 = vmatpush2.msra.mxu0 0.0
  %7041 = vmatprep.subr.mxu0 0.0
  %7042 = vmatpush2.msra.mxu0 0.0
  %7043 = vmatprep.subr.mxu0 0.0
  %7044 = vmatpush2.msra.mxu0 0.0
  %7045 = vmatprep.subr.mxu0 0.0
  %7046 = vmatpush2.msra.mxu0 0.0
  %7047 = vmatprep.subr.mxu0 0.0
  %7048 = vmatpush2.msra.mxu0 0.0
  %7049 = vmatprep.subr.mxu0 0.0
  %7050 = vmatpush2.msra.mxu0 0.0
  %7051 = vmatprep.mubr.f32.mxu0 0.0
  %7052 = vmatmul.mubr.f32.gmra.mxu0 %v6985
  %v7053 = vpop.f32.mrf.mxu0
  %v7054 = vadd.f32 0.0, %v7053
  %v7055 = vpop.f32.mrf.mxu0
  %v7056 = vadd.f32 0.0, %v7055
  %7057 = vdwg.mxu0
  %7058 = vmatprep.subr.mxu0 0.0
  %7059 = vmatpush1.msra.mxu0 0.0
  %7060 = vmatprep.subr.mxu0 0.0
  %7061 = vmatpush1.msra.mxu0 0.0
  %7062 = vmatprep.subr.mxu0 0.0
  %7063 = vmatpush1.msra.mxu0 0.0
  %7064 = vmatprep.subr.mxu0 0.0
  %7065 = vmatpush1.msra.mxu0 0.0
  %7066 = vmatprep.subr.mxu0 0.0
  %7067 = vmatpush1.msra.mxu0 0.0
  %7068 = vmatprep.subr.mxu0 0.0
  %7069 = vmatpush1.msra.mxu0 0.0
  %7070 = vmatprep.subr.mxu0 0.0
  %7071 = vmatpush1.msra.mxu0 0.0
  %7072 = vmatprep.subr.mxu0 0.0
  %7073 = vmatpush1.msra.mxu0 0.0
  %7074 = vmatprep.subr.mxu0 0.0
  %7075 = vmatpush1.msra.mxu0 0.0
  %7076 = vmatprep.subr.mxu0 0.0
  %7077 = vmatpush1.msra.mxu0 0.0
  %7078 = vmatprep.subr.mxu0 0.0
  %7079 = vmatpush1.msra.mxu0 0.0
  %7080 = vmatprep.subr.mxu0 0.0
  %7081 = vmatpush1.msra.mxu0 0.0
  %7082 = vmatprep.subr.mxu0 0.0
  %7083 = vmatpush1.msra.mxu0 0.0
  %7084 = vmatprep.subr.mxu0 0.0
  %7085 = vmatpush1.msra.mxu0 0.0
  %7086 = vmatprep.subr.mxu0 0.0
  %7087 = vmatpush1.msra.mxu0 0.0
  %7088 = vmatprep.subr.mxu0 %v5758
  %7089 = vmatpush1.msra.mxu0 %v5757
  %7090 = vmatprep.subr.mxu0 0.0
  %7091 = vmatpush2.msra.mxu0 0.0
  %7092 = vmatprep.subr.mxu0 0.0
  %7093 = vmatpush2.msra.mxu0 0.0
  %7094 = vmatprep.subr.mxu0 0.0
  %7095 = vmatpush2.msra.mxu0 0.0
  %7096 = vmatprep.subr.mxu0 0.0
  %7097 = vmatpush2.msra.mxu0 0.0
  %7098 = vmatprep.subr.mxu0 0.0
  %7099 = vmatpush2.msra.mxu0 0.0
  %7100 = vmatprep.subr.mxu0 0.0
  %7101 = vmatpush2.msra.mxu0 0.0
  %7102 = vmatprep.subr.mxu0 0.0
  %7103 = vmatpush2.msra.mxu0 0.0
  %7104 = vmatprep.subr.mxu0 0.0
  %7105 = vmatpush2.msra.mxu0 0.0
  %7106 = vmatprep.subr.mxu0 0.0
  %7107 = vmatpush2.msra.mxu0 0.0
  %7108 = vmatprep.subr.mxu0 0.0
  %7109 = vmatpush2.msra.mxu0 0.0
  %7110 = vmatprep.subr.mxu0 0.0
  %7111 = vmatpush2.msra.mxu0 0.0
  %7112 = vmatprep.subr.mxu0 0.0
  %7113 = vmatpush2.msra.mxu0 0.0
  %7114 = vmatprep.subr.mxu0 0.0
  %7115 = vmatpush2.msra.mxu0 0.0
  %7116 = vmatprep.subr.mxu0 0.0
  %7117 = vmatpush2.msra.mxu0 0.0
  %7118 = vmatprep.subr.mxu0 0.0
  %7119 = vmatpush2.msra.mxu0 0.0
  %7120 = vmatprep.subr.mxu0 0.0
  %7121 = vmatpush2.msra.mxu0 0.0
  %7122 = vmatprep.mubr.f32.mxu0 0.0
  %7123 = vmatmul.mubr.f32.gmra.mxu0 %v6985
  %v7124 = vpop.f32.mrf.mxu0
  %v7125 = vadd.f32 0.0, %v7124
  %v7126 = vpop.f32.mrf.mxu0
  %v7127 = vadd.f32 0.0, %v7126
  %7128 = vdwg.mxu0
  %v7129 = vadd.f32 %v6686, %v7054
  %v7130 = vadd.f32 %v6687, %v7056
  %v7131 = vadd.f32 %v6688, %v7125
  %v7132 = vadd.f32 %v6689, %v7127
  %v7133 = vld [vmem:[%s20] sm:$0x7]
  %7135 = vset.pattern.permute.xlu0 0
  %7136 = vperm.xlu0 %7135, %v7133
  %v7137 = vpop.permute.xlu0 %7136
  %v7140 = vsel %vm258, %v6219, 0
  %7142 = vmatprep.subr.mxu0 0.0
  %7143 = vmatpush1.msra.mxu0 0.0
  %7144 = vmatprep.subr.mxu0 0.0
  %7145 = vmatpush1.msra.mxu0 0.0
  %7146 = vmatprep.subr.mxu0 0.0
  %7147 = vmatpush1.msra.mxu0 0.0
  %7148 = vmatprep.subr.mxu0 0.0
  %7149 = vmatpush1.msra.mxu0 0.0
  %7150 = vmatprep.subr.mxu0 0.0
  %7151 = vmatpush1.msra.mxu0 0.0
  %7152 = vmatprep.subr.mxu0 0.0
  %7153 = vmatpush1.msra.mxu0 0.0
  %7154 = vmatprep.subr.mxu0 0.0
  %7155 = vmatpush1.msra.mxu0 0.0
  %7156 = vmatprep.subr.mxu0 0.0
  %7157 = vmatpush1.msra.mxu0 0.0
  %7158 = vmatprep.subr.mxu0 0.0
  %7159 = vmatpush1.msra.mxu0 0.0
  %7160 = vmatprep.subr.mxu0 0.0
  %7161 = vmatpush1.msra.mxu0 0.0
  %7162 = vmatprep.subr.mxu0 0.0
  %7163 = vmatpush1.msra.mxu0 0.0
  %7164 = vmatprep.subr.mxu0 0.0
  %7165 = vmatpush1.msra.mxu0 0.0
  %7166 = vmatprep.subr.mxu0 0.0
  %7167 = vmatpush1.msra.mxu0 0.0
  %7168 = vmatprep.subr.mxu0 0.0
  %7169 = vmatpush1.msra.mxu0 0.0
  %7170 = vmatprep.subr.mxu0 0.0
  %7171 = vmatpush1.msra.mxu0 0.0
  %7172 = vmatprep.subr.mxu0 %v5756
  %7173 = vmatpush1.msra.mxu0 %v5755
  %7174 = vmatprep.subr.mxu0 0.0
  %7175 = vmatpush2.msra.mxu0 0.0
  %7176 = vmatprep.subr.mxu0 0.0
  %7177 = vmatpush2.msra.mxu0 0.0
  %7178 = vmatprep.subr.mxu0 0.0
  %7179 = vmatpush2.msra.mxu0 0.0
  %7180 = vmatprep.subr.mxu0 0.0
  %7181 = vmatpush2.msra.mxu0 0.0
  %7182 = vmatprep.subr.mxu0 0.0
  %7183 = vmatpush2.msra.mxu0 0.0
  %7184 = vmatprep.subr.mxu0 0.0
  %7185 = vmatpush2.msra.mxu0 0.0
  %7186 = vmatprep.subr.mxu0 0.0
  %7187 = vmatpush2.msra.mxu0 0.0
  %7188 = vmatprep.subr.mxu0 0.0
  %7189 = vmatpush2.msra.mxu0 0.0
  %7190 = vmatprep.subr.mxu0 0.0
  %7191 = vmatpush2.msra.mxu0 0.0
  %7192 = vmatprep.subr.mxu0 0.0
  %7193 = vmatpush2.msra.mxu0 0.0
  %7194 = vmatprep.subr.mxu0 0.0
  %7195 = vmatpush2.msra.mxu0 0.0
  %7196 = vmatprep.subr.mxu0 0.0
  %7197 = vmatpush2.msra.mxu0 0.0
  %7198 = vmatprep.subr.mxu0 0.0
  %7199 = vmatpush2.msra.mxu0 0.0
  %7200 = vmatprep.subr.mxu0 0.0
  %7201 = vmatpush2.msra.mxu0 0.0
  %7202 = vmatprep.subr.mxu0 0.0
  %7203 = vmatpush2.msra.mxu0 0.0
  %7204 = vmatprep.subr.mxu0 0.0
  %7205 = vmatpush2.msra.mxu0 0.0
  %7206 = vmatprep.mubr.f32.mxu0 0.0
  %7207 = vmatmul.mubr.f32.gmra.mxu0 %v7140
  %v7208 = vpop.f32.mrf.mxu0
  %v7209 = vadd.f32 %v7137, %v7208
  %v7210 = vpop.f32.mrf.mxu0
  %v7211 = vadd.f32 %v7137, %v7210
  %7212 = vdwg.mxu0
  %7213 = vmatprep.subr.mxu0 0.0
  %7214 = vmatpush1.msra.mxu0 0.0
  %7215 = vmatprep.subr.mxu0 0.0
  %7216 = vmatpush1.msra.mxu0 0.0
  %7217 = vmatprep.subr.mxu0 0.0
  %7218 = vmatpush1.msra.mxu0 0.0
  %7219 = vmatprep.subr.mxu0 0.0
  %7220 = vmatpush1.msra.mxu0 0.0
  %7221 = vmatprep.subr.mxu0 0.0
  %7222 = vmatpush1.msra.mxu0 0.0
  %7223 = vmatprep.subr.mxu0 0.0
  %7224 = vmatpush1.msra.mxu0 0.0
  %7225 = vmatprep.subr.mxu0 0.0
  %7226 = vmatpush1.msra.mxu0 0.0
  %7227 = vmatprep.subr.mxu0 0.0
  %7228 = vmatpush1.msra.mxu0 0.0
  %7229 = vmatprep.subr.mxu0 0.0
  %7230 = vmatpush1.msra.mxu0 0.0
  %7231 = vmatprep.subr.mxu0 0.0
  %7232 = vmatpush1.msra.mxu0 0.0
  %7233 = vmatprep.subr.mxu0 0.0
  %7234 = vmatpush1.msra.mxu0 0.0
  %7235 = vmatprep.subr.mxu0 0.0
  %7236 = vmatpush1.msra.mxu0 0.0
  %7237 = vmatprep.subr.mxu0 0.0
  %7238 = vmatpush1.msra.mxu0 0.0
  %7239 = vmatprep.subr.mxu0 0.0
  %7240 = vmatpush1.msra.mxu0 0.0
  %7241 = vmatprep.subr.mxu0 0.0
  %7242 = vmatpush1.msra.mxu0 0.0
  %7243 = vmatprep.subr.mxu0 %v5758
  %7244 = vmatpush1.msra.mxu0 %v5757
  %7245 = vmatprep.subr.mxu0 0.0
  %7246 = vmatpush2.msra.mxu0 0.0
  %7247 = vmatprep.subr.mxu0 0.0
  %7248 = vmatpush2.msra.mxu0 0.0
  %7249 = vmatprep.subr.mxu0 0.0
  %7250 = vmatpush2.msra.mxu0 0.0
  %7251 = vmatprep.subr.mxu0 0.0
  %7252 = vmatpush2.msra.mxu0 0.0
  %7253 = vmatprep.subr.mxu0 0.0
  %7254 = vmatpush2.msra.mxu0 0.0
  %7255 = vmatprep.subr.mxu0 0.0
  %7256 = vmatpush2.msra.mxu0 0.0
  %7257 = vmatprep.subr.mxu0 0.0
  %7258 = vmatpush2.msra.mxu0 0.0
  %7259 = vmatprep.subr.mxu0 0.0
  %7260 = vmatpush2.msra.mxu0 0.0
  %7261 = vmatprep.subr.mxu0 0.0
  %7262 = vmatpush2.msra.mxu0 0.0
  %7263 = vmatprep.subr.mxu0 0.0
  %7264 = vmatpush2.msra.mxu0 0.0
  %7265 = vmatprep.subr.mxu0 0.0
  %7266 = vmatpush2.msra.mxu0 0.0
  %7267 = vmatprep.subr.mxu0 0.0
  %7268 = vmatpush2.msra.mxu0 0.0
  %7269 = vmatprep.subr.mxu0 0.0
  %7270 = vmatpush2.msra.mxu0 0.0
  %7271 = vmatprep.subr.mxu0 0.0
  %7272 = vmatpush2.msra.mxu0 0.0
  %7273 = vmatprep.subr.mxu0 0.0
  %7274 = vmatpush2.msra.mxu0 0.0
  %7275 = vmatprep.subr.mxu0 0.0
  %7276 = vmatpush2.msra.mxu0 0.0
  %7277 = vmatprep.mubr.f32.mxu0 0.0
  %7278 = vmatmul.mubr.f32.gmra.mxu0 %v7140
  %v7279 = vpop.f32.mrf.mxu0
  %v7280 = vadd.f32 %v7137, %v7279
  %v7281 = vpop.f32.mrf.mxu0
  %v7282 = vadd.f32 %v7137, %v7281
  %7283 = vdwg.mxu0
  %v7284 = vxor.u32 %v7209, 2147483648
  %v7285 = vxor.u32 %v7211, 2147483648
  %v7286 = vxor.u32 %v7280, 2147483648
  %v7287 = vxor.u32 %v7282, 2147483648
  %v7288 = vmul.f32 %v7284, 1.442695
  %v7289 = vpow.pop %v7288
  %v7290 = vmul.f32 %v7285, 1.442695
  %v7291 = vpow.pop %v7290
  %v7292 = vmul.f32 %v7286, 1.442695
  %v7293 = vpow.pop %v7292
  %v7294 = vmul.f32 %v7287, 1.442695
  %v7295 = vpow.pop %v7294
  %v7296 = vadd.f32 %v7289, 1.0
  %v7297 = vadd.f32 %v7291, 1.0
  %v7298 = vadd.f32 %v7293, 1.0
  %v7299 = vadd.f32 %v7295, 1.0
  %v7300 = vrcp.pop %v7296
  %v7301 = vmul.f32 1.0, %v7300
  %v7302 = vrcp.pop %v7297
  %v7303 = vmul.f32 1.0, %v7302
  %v7304 = vrcp.pop %v7298
  %v7305 = vmul.f32 1.0, %v7304
  %v7306 = vrcp.pop %v7299
  %v7307 = vmul.f32 1.0, %v7306
  %v7312 = vcombine.low %v7301, %v7303
  %v7313 = vcombine.low %v7305, %v7307
  %7316 = vst [vmem:[%s21] sm:$0x77] %v7312
  %vm7317 = vcmask 63492
  %vm7318 = vmor %vm7317, %vm95
  %7319 = vst.msk [vmem:[%s21 + $0x8] sm:$0x77] %vm7318, %v7313
  %v7320 = vadd.f32 %v6437, %v7137
  %v7321 = vadd.f32 %v6439, %v7137
  %v7322 = vadd.f32 %v6508, %v7137
  %v7323 = vadd.f32 %v6510, %v7137
  %v7324 = vxor.u32 %v7320, 2147483648
  %v7325 = vxor.u32 %v7321, 2147483648
  %v7326 = vxor.u32 %v7322, 2147483648
  %v7327 = vxor.u32 %v7323, 2147483648
  %v7328 = vmul.f32 %v7324, 1.442695
  %v7329 = vpow.pop %v7328
  %v7330 = vmul.f32 %v7325, 1.442695
  %v7331 = vpow.pop %v7330
  %v7332 = vmul.f32 %v7326, 1.442695
  %v7333 = vpow.pop %v7332
  %v7334 = vmul.f32 %v7327, 1.442695
  %v7335 = vpow.pop %v7334
  %v7336 = vadd.f32 %v7329, 1.0
  %v7337 = vadd.f32 %v7331, 1.0
  %v7338 = vadd.f32 %v7333, 1.0
  %v7339 = vadd.f32 %v7335, 1.0
  %v7340 = vrcp.pop %v7336
  %v7341 = vmul.f32 1.0, %v7340
  %v7342 = vrcp.pop %v7337
  %v7343 = vmul.f32 1.0, %v7342
  %v7344 = vrcp.pop %v7338
  %v7345 = vmul.f32 1.0, %v7344
  %v7346 = vrcp.pop %v7339
  %v7347 = vmul.f32 1.0, %v7346
  %v7352 = vcombine.low %v7341, %v7343
  %v7353 = vcombine.low %v7345, %v7347
  %s7356 = scalar_lea.vmem %s21, 16
  %7357 = vst [vmem:[%s7356] sm:$0x77] %v7352
  %7358 = vst.msk [vmem:[%s7356 + $0x8] sm:$0x77] %vm7318, %v7353
  %v7359 = vadd.f32 %v6907, %v7137
  %v7360 = vadd.f32 %v6909, %v7137
  %v7361 = vadd.f32 %v6978, %v7137
  %v7362 = vadd.f32 %v6980, %v7137
  %v7363 = vxor.u32 %v7359, 2147483648
  %v7364 = vxor.u32 %v7360, 2147483648
  %v7365 = vxor.u32 %v7361, 2147483648
  %v7366 = vxor.u32 %v7362, 2147483648
  %v7367 = vmul.f32 %v7363, 1.442695
  %v7368 = vpow.pop %v7367
  %v7369 = vmul.f32 %v7364, 1.442695
  %v7370 = vpow.pop %v7369
  %v7371 = vmul.f32 %v7365, 1.442695
  %v7372 = vpow.pop %v7371
  %v7373 = vmul.f32 %v7366, 1.442695
  %v7374 = vpow.pop %v7373
  %v7375 = vadd.f32 %v7368, 1.0
  %v7376 = vadd.f32 %v7370, 1.0
  %v7377 = vadd.f32 %v7372, 1.0
  %v7378 = vadd.f32 %v7374, 1.0
  %v7379 = vrcp.pop %v7375
  %v7380 = vmul.f32 1.0, %v7379
  %v7381 = vrcp.pop %v7376
  %v7382 = vmul.f32 1.0, %v7381
  %v7383 = vrcp.pop %v7377
  %v7384 = vmul.f32 1.0, %v7383
  %v7385 = vrcp.pop %v7378
  %v7386 = vmul.f32 1.0, %v7385
  %v7391 = vcombine.low %v7380, %v7382
  %v7392 = vcombine.low %v7384, %v7386
  %s7395 = scalar_lea.vmem %s21, 32
  %7396 = vst [vmem:[%s7395] sm:$0x77] %v7391
  %7397 = vst.msk [vmem:[%s7395 + $0x8] sm:$0x77] %vm7318, %v7392
  %v7398 = vadd.f32 %v7129, %v7137
  %v7399 = vadd.f32 %v7130, %v7137
  %v7400 = vadd.f32 %v7131, %v7137
  %v7401 = vadd.f32 %v7132, %v7137
  %v7402 = vxor.u32 %v7398, 2147483648
  %v7403 = vxor.u32 %v7399, 2147483648
  %v7404 = vxor.u32 %v7400, 2147483648
  %v7405 = vxor.u32 %v7401, 2147483648
  %v7406 = vmul.f32 %v7402, 1.442695
  %v7407 = vpow.pop %v7406
  %v7408 = vmul.f32 %v7403, 1.442695
  %v7409 = vpow.pop %v7408
  %v7410 = vmul.f32 %v7404, 1.442695
  %v7411 = vpow.pop %v7410
  %v7412 = vmul.f32 %v7405, 1.442695
  %v7413 = vpow.pop %v7412
  %v7414 = vadd.f32 %v7407, 1.0
  %v7415 = vadd.f32 %v7409, 1.0
  %v7416 = vadd.f32 %v7411, 1.0
  %v7417 = vadd.f32 %v7413, 1.0
  %v7418 = vrcp.pop %v7414
  %v7419 = vmul.f32 1.0, %v7418
  %v7420 = vrcp.pop %v7415
  %v7421 = vmul.f32 1.0, %v7420
  %v7422 = vrcp.pop %v7416
  %v7423 = vmul.f32 1.0, %v7422
  %v7424 = vrcp.pop %v7417
  %v7425 = vmul.f32 1.0, %v7424
  %v7430 = vcombine.low %v7419, %v7421
  %v7431 = vcombine.low %v7423, %v7425
  %s7434 = scalar_lea.vmem %s21, 48
  %7435 = vst [vmem:[%s7434] sm:$0x77] %v7430
  %7436 = vst.msk [vmem:[%s7434 + $0x8] sm:$0x77] %vm7318, %v7431
  // Predicated region
  $region86: #{autoencoder_forward.1} parent=0 // pred_check
    _
  $region87: #{autoencoder_forward.1} parent=0 // pred_check_branch
    %7438 = sbr.rel (0) target = $region89
  $region88: #{autoencoder_forward.1} parent=0 // pred_region
    _
  $region89: #{autoencoder_forward.1} parent=0 // pred_fallthru
    _
  // Predicated region
  $region90: #{autoencoder_forward.1} parent=0 // pred_check
    _
  $region91: #{autoencoder_forward.1} parent=0 // pred_check_branch
    %7440 = sbr.rel (0) target = $region93
  $region92: #{autoencoder_forward.1} parent=0 // pred_region
    _
  $region93: #{autoencoder_forward.1} parent=0 // pred_fallthru
    _

</llo_original>
